<compile_context>
chip_gen: v7x
topology: tpu7x:2x2x1
jax: 0.10.0
libtpu: 0.0.40
codegen_flags: <defaults>
</compile_context>

<pallas_src>
import functools

import jax
import jax.numpy as jnp
from jax.experimental import pallas as pl
from jax.experimental.pallas import tpu as pltpu


_LPAD = 8   # interior starts at slab column 8 -> aligned interior store / center tap


def _round_up(x, m):
    return ((x + m - 1) // m) * m


def _choose_row_tile(H, W):
    """Rows per grid step: >=2 tiles when possible (v7x has 2 TensorCores) and
    TH*W small enough that per-step blocks stay modest."""
    divisors = [d for d in range(H, 0, -1) if H % d == 0]
    for d in divisors:
        if H // d >= 2 and d * W <= 2048:
            return d
    for d in divisors:
        if d * W <= 2048:
            return d
    return 1


def _choose_row_block(TH, W):
    """Inner matmul row block: M = RB*W around 128..256."""
    for rb in range(TH, 0, -1):
        if TH % rb == 0 and rb * W <= 256:
            return rb
    return 1


def _choose_cout_tile(Cout, M):
    """Keep the live f32 accumulator (M, COT) well under the 64-vreg file."""
    for cot in (256, 128, 64):
        if Cout % cot == 0 and M * cot <= 128 * 256:
            return cot
    return Cout


def _vmem_limit(block_bytes, scratch_bytes):
    """Scoped-VMEM request sized from actual usage (double-buffered blocks +
    scratch) with generous headroom -- not a blanket 64 MiB (v7x physical)."""
    need = 2 * block_bytes + scratch_bytes
    return int(min(max(2 * need + (2 << 20), 16 << 20), 48 << 20))


# ---------------------------------------------------------------------------
# Kernel 1: per-channel moments (sum, sum of squares), row-tiled reduction.
# ---------------------------------------------------------------------------
def _channel_moments_kernel(x_ref, o_ref, acc_ref):
    t = pl.program_id(1)

    @pl.when(t == 0)
    def _():
        acc_ref[...] = jnp.zeros_like(acc_ref)

    _, TH, W, C = x_ref.shape
    xc = x_ref[0].astype(jnp.float32).reshape(TH * W, C)
    acc_ref[0:1, :] = acc_ref[0:1, :] + jnp.sum(xc, axis=0, keepdims=True)
    acc_ref[1:2, :] = acc_ref[1:2, :] + jnp.sum(xc * xc, axis=0, keepdims=True)

    @pl.when(t == pl.num_programs(1) - 1)
    def _():
        o_ref[0] = acc_ref[...]


def channel_moments(x, *, H, W, row_tile):
    """Per-channel [sum, sum-of-squares] (f32) of a (N, H, W, C) activation."""
    N, _, _, C = x.shape
    T = H // row_tile
    blk = row_tile * W * C * x.dtype.itemsize + 2 * C * 4
    return pl.pallas_call(
        _channel_moments_kernel,
        out_shape=jax.ShapeDtypeStruct((N, 2, C), jnp.float32),
        grid=(N, T),
        in_specs=[pl.BlockSpec((1, row_tile, W, C), lambda n, t: (n, t, 0, 0))],
        out_specs=pl.BlockSpec((1, 2, C), lambda n, t: (n, 0, 0)),
        scratch_shapes=[pltpu.VMEM((2, C), jnp.float32)],
        compiler_params=pltpu.CompilerParams(
            dimension_semantics=("parallel", "arbitrary"),
            vmem_limit_bytes=_vmem_limit(blk, 2 * C * 4)),
    )(x)


def _finish_stats(moments, gamma, beta, num_groups, eps, count):
    """Tiny (N, 2, C) per-image glue: per-group mean/var -> per-channel GN
    scale/shift.  One-pass f32 moments (variance clamped at 0); the heavy
    per-pixel work stays inside the Pallas kernels."""
    N, _, C = moments.shape
    G = num_groups
    cpg = C // G
    s1 = moments[:, 0, :].reshape(N, G, cpg)
    s2 = moments[:, 1, :].reshape(N, G, cpg)
    mean = jnp.sum(s1, axis=-1, keepdims=True) / count
    ex2 = jnp.sum(s2, axis=-1, keepdims=True) / count
    var = jnp.maximum(ex2 - mean * mean, 0.0)
    inv = jax.lax.rsqrt(var + eps)
    mean = jnp.broadcast_to(mean, (N, G, cpg)).reshape(N, C)
    inv = jnp.broadcast_to(inv, (N, G, cpg)).reshape(N, C)
    scale = inv * gamma[None, :].astype(jnp.float32)
    shift = beta[None, :].astype(jnp.float32) - mean * scale
    return jnp.stack([scale, shift], axis=1)               # (N, 2, C) f32


# ---------------------------------------------------------------------------
# In-kernel helpers for the conv kernels (static python loops -> unrolled).
# ---------------------------------------------------------------------------
def _fill_slab(xm_ref, xt_ref, xb_ref, ss_ref, hp_ref, *, TH, W, RB, L):
    """GroupNorm(scale/shift) + SiLU of a TH-row tile (plus its 1-row halos)
    into the f32 padded scratch slab hp_ref of shape (TH+2, Ws, C)."""
    C = xm_ref.shape[-1]
    scale = ss_ref[0, 0:1, :]           # (1, C) f32
    shift = ss_ref[0, 1:2, :]

    def act(v):                          # v: f32 (..., C)
        y = v * scale + shift
        return y * jax.nn.sigmoid(y)     # SiLU (EUP)

    t = pl.program_id(1)
    n_t = pl.num_programs(1)

    # Border-only zeroing, re-done every step: the interior + halo rows are
    # fully overwritten below, and per-step (rather than once at step 0) stays
    # correct when the parallel grid is split across TensorCores, each with its
    # own uninitialized scratch.
    zcol = jnp.zeros((TH + 2, 1, C), hp_ref.dtype)
    hp_ref[:, L - 1:L, :] = zcol
    hp_ref[:, L + W:L + W + 1, :] = zcol

    zrow = jnp.zeros((1, W, C), hp_ref.dtype)

    @pl.when(t > 0)                      # top halo row = image row t*TH - 1
    def _():
        hp_ref[0:1, L:L + W, :] = act(xt_ref[0].astype(jnp.float32))

    @pl.when(t == 0)
    def _():
        hp_ref[0:1, L:L + W, :] = zrow

    @pl.when(t < n_t - 1)                # bottom halo row = image row (t+1)*TH
    def _():
        hp_ref[TH + 1:TH + 2, L:L + W, :] = act(xb_ref[0].astype(jnp.float32))

    @pl.when(t == n_t - 1)
    def _():
        hp_ref[TH + 1:TH + 2, L:L + W, :] = zrow

    for rb in range(TH // RB):           # interior rows (aligned stores at col L)
        xr = xm_ref[0, rb * RB:(rb + 1) * RB, :, :].astype(jnp.float32)
        hp_ref[1 + rb * RB:1 + (rb + 1) * RB, L:L + W, :] = act(xr)


def _conv3x3_rowblock(hp_ref, w_ref, rb, c0, *, RB, W, L, COT):
    """3x3 conv for output rows [rb*RB, (rb+1)*RB), out channels [c0, c0+COT)."""
    Cin = hp_ref.shape[-1]
    M = RB * W
    acc = jnp.zeros((M, COT), jnp.float32)
    for kx in range(3):
        # One halo'd f32 sub-slab load + one f32->bf16 pack per kx (cast hoisted
        # out of the ky loop: 3 packs/element instead of 9); the ky shifts below
        # are leading-dim slices of a value (pure addressing, free).
        sub = hp_ref[rb * RB:rb * RB + RB + 2, L - 1 + kx:L - 1 + kx + W, :]
        sub = sub.astype(jnp.bfloat16)                       # (RB+2, W, Cin)
        for ky in range(3):
            lhs = sub[ky:ky + RB].reshape(M, Cin)
            acc = acc + jnp.dot(lhs, w_ref[3 * ky + kx, :, c0:c0 + COT],
                                preferred_element_type=jnp.float32)
    return acc


# ---------------------------------------------------------------------------
# Kernel 2: GN(scale/shift) -> SiLU -> Conv3x3 for one row tile.
# ---------------------------------------------------------------------------
def _gn_silu_conv_kernel(xm_ref, xt_ref, xb_ref, ss_ref, w_ref, b_ref,
                         o_ref, hp_ref, *, TH, W, RB, COT, L):
    Cout = w_ref.shape[-1]
    _fill_slab(xm_ref, xt_ref, xb_ref, ss_ref, hp_ref, TH=TH, W=W, RB=RB, L=L)
    bias = b_ref[...]                                        # (1, Cout) f32
    for rb in range(TH // RB):
        for c0 in range(0, Cout, COT):
            acc = _conv3x3_rowblock(hp_ref, w_ref, rb, c0,
                                    RB=RB, W=W, L=L, COT=COT)
            res = (acc + bias[:, c0:c0 + COT]).reshape(RB, W, COT)
            o_ref[0, rb * RB:(rb + 1) * RB, :, c0:c0 + COT] = (
                res.astype(o_ref.dtype))


# ---------------------------------------------------------------------------
# Kernel 3: GN -> SiLU -> Conv3x3 -> (+ 1x1-conv / identity shortcut).
# ---------------------------------------------------------------------------
def _gn_silu_conv_shortcut_kernel(hm_ref, ht_ref, hb_ref, ss_ref, w_ref, b_ref,
                                  xs_ref, wn_ref, bn_ref, o_ref, hp_ref, *,
                                  TH, W, RB, COT, L, use_nin):
    Cout = w_ref.shape[-1]
    # Dropout(p=0.0) from the reference module is an identity: nothing to do.
    _fill_slab(hm_ref, ht_ref, hb_ref, ss_ref, hp_ref, TH=TH, W=W, RB=RB, L=L)
    bias = b_ref[...]
    for rb in range(TH // RB):
        xs = xs_ref[0, rb * RB:(rb + 1) * RB, :, :]          # (RB, W, Cin) bf16
        for c0 in range(0, Cout, COT):
            acc = _conv3x3_rowblock(hp_ref, w_ref, rb, c0,
                                    RB=RB, W=W, L=L, COT=COT)
            out3 = (acc + bias[:, c0:c0 + COT]).reshape(RB, W, COT)
            if use_nin:      # static branch: 1x1-conv shortcut on the MXU
                sc = jnp.dot(xs.reshape(RB * W, xs.shape[-1]),
                             wn_ref[:, c0:c0 + COT],
                             preferred_element_type=jnp.float32)
                sc = sc + bn_ref[:, c0:c0 + COT]
                out3 = out3 + sc.reshape(RB, W, COT)
            else:            # identity shortcut (in_channels == out_channels)
                out3 = out3 + xs[:, :, c0:c0 + COT].astype(jnp.float32)
            o_ref[0, rb * RB:(rb + 1) * RB, :, c0:c0 + COT] = (
                out3.astype(o_ref.dtype))


# ---------------------------------------------------------------------------
# pallas_call wrappers.
# ---------------------------------------------------------------------------
def gn_silu_conv3x3(x, stats, w9, bias, *, H, W, row_tile, row_block, out_dtype):
    """x: (N, H, W, Cin) bf16; stats: (N, 2, Cin) f32; w9: (9, Cin, Cout) bf16."""
    N, _, _, Cin = x.shape
    Cout = w9.shape[-1]
    T = H // row_tile
    COT = _choose_cout_tile(Cout, row_block * W)
    L = _LPAD
    Ws = _round_up(L + W + 1, 8)
    kern = functools.partial(_gn_silu_conv_kernel, TH=row_tile, W=W,
                             RB=row_block, COT=COT, L=L)
    out_b = jnp.dtype(out_dtype).itemsize
    block_bytes = (row_tile * W * Cin * x.dtype.itemsize
                   + 2 * W * Cin * x.dtype.itemsize
                   + 2 * Cin * 4 + Cout * 4 + 9 * Cin * Cout * 2
                   + row_tile * W * Cout * out_b)
    scratch_bytes = (row_tile + 2) * Ws * Cin * 4
    cost = pl.CostEstimate(
        flops=int(2 * N * H * W * 9 * Cin * Cout),
        transcendentals=int(N * H * W * Cin),
        bytes_accessed=int(N * H * W * (Cin * x.dtype.itemsize + Cout * out_b)
                           + 9 * Cin * Cout * 2))
    return pl.pallas_call(
        kern,
        out_shape=jax.ShapeDtypeStruct((N, H, W, Cout), out_dtype),
        grid=(N, T),
        in_specs=[
            pl.BlockSpec((1, row_tile, W, Cin), lambda n, t: (n, t, 0, 0)),
            pl.BlockSpec((1, 1, W, Cin),
                         lambda n, t: (n, jnp.maximum(t * row_tile - 1, 0), 0, 0)),
            pl.BlockSpec((1, 1, W, Cin),
                         lambda n, t: (n, jnp.minimum((t + 1) * row_tile, H - 1), 0, 0)),
            pl.BlockSpec((1, 2, Cin), lambda n, t: (n, 0, 0)),
            pl.BlockSpec((9, Cin, Cout), lambda n, t: (0, 0, 0),
                         pipeline_mode=pl.Buffered(1)),      # constant: 1 buffer
            pl.BlockSpec((1, Cout), lambda n, t: (0, 0)),
        ],
        out_specs=pl.BlockSpec((1, row_tile, W, Cout), lambda n, t: (n, t, 0, 0)),
        scratch_shapes=[pltpu.VMEM((row_tile + 2, Ws, Cin), jnp.float32)],
        compiler_params=pltpu.CompilerParams(
            dimension_semantics=("parallel", "parallel"),
            vmem_limit_bytes=_vmem_limit(block_bytes, scratch_bytes)),
        cost_estimate=cost,
    )(x, x, x, stats, w9, bias.reshape(1, Cout).astype(jnp.float32))


def gn_silu_conv3x3_shortcut(h, stats, w9, bias, x_sc, wn, bn, *, H, W,
                             row_tile, row_block, use_nin, out_dtype):
    N, _, _, Cmid = h.shape
    Cout = w9.shape[-1]
    Cin = x_sc.shape[-1]
    T = H // row_tile
    COT = _choose_cout_tile(Cout, row_block * W)
    L = _LPAD
    Ws = _round_up(L + W + 1, 8)
    kern = functools.partial(_gn_silu_conv_shortcut_kernel, TH=row_tile, W=W,
                             RB=row_block, COT=COT, L=L, use_nin=use_nin)
    out_b = jnp.dtype(out_dtype).itemsize
    block_bytes = (row_tile * W * Cmid * h.dtype.itemsize
                   + 2 * W * Cmid * h.dtype.itemsize
                   + 2 * Cmid * 4 + 2 * Cout * 4
                   + 9 * Cmid * Cout * 2 + Cin * Cout * 2
                   + row_tile * W * Cin * x_sc.dtype.itemsize
                   + row_tile * W * Cout * out_b)
    scratch_bytes = (row_tile + 2) * Ws * Cmid * 4
    sc_flops = 2 * N * H * W * Cin * Cout if use_nin else 0
    cost = pl.CostEstimate(
        flops=int(2 * N * H * W * 9 * Cmid * Cout + sc_flops),
        transcendentals=int(N * H * W * Cmid),
        bytes_accessed=int(N * H * W * (Cmid * h.dtype.itemsize
                                        + Cin * x_sc.dtype.itemsize
                                        + Cout * out_b)
                           + 9 * Cmid * Cout * 2 + Cin * Cout * 2))
    return pl.pallas_call(
        kern,
        out_shape=jax.ShapeDtypeStruct((N, H, W, Cout), out_dtype),
        grid=(N, T),
        in_specs=[
            pl.BlockSpec((1, row_tile, W, Cmid), lambda n, t: (n, t, 0, 0)),
            pl.BlockSpec((1, 1, W, Cmid),
                         lambda n, t: (n, jnp.maximum(t * row_tile - 1, 0), 0, 0)),
            pl.BlockSpec((1, 1, W, Cmid),
                         lambda n, t: (n, jnp.minimum((t + 1) * row_tile, H - 1), 0, 0)),
            pl.BlockSpec((1, 2, Cmid), lambda n, t: (n, 0, 0)),
            pl.BlockSpec((9, Cmid, Cout), lambda n, t: (0, 0, 0),
                         pipeline_mode=pl.Buffered(1)),
            pl.BlockSpec((1, Cout), lambda n, t: (0, 0)),
            pl.BlockSpec((1, row_tile, W, Cin), lambda n, t: (n, t, 0, 0)),
            pl.BlockSpec((Cin, Cout), lambda n, t: (0, 0),
                         pipeline_mode=pl.Buffered(1)),
            pl.BlockSpec((1, Cout), lambda n, t: (0, 0)),
        ],
        out_specs=pl.BlockSpec((1, row_tile, W, Cout), lambda n, t: (n, t, 0, 0)),
        scratch_shapes=[pltpu.VMEM((row_tile + 2, Ws, Cmid), jnp.float32)],
        compiler_params=pltpu.CompilerParams(
            dimension_semantics=("parallel", "parallel"),
            vmem_limit_bytes=_vmem_limit(block_bytes, scratch_bytes)),
        cost_estimate=cost,
    )(h, h, h, stats, w9, bias.reshape(1, Cout).astype(jnp.float32),
      x_sc, wn, bn.reshape(1, Cout).astype(jnp.float32))


# ---------------------------------------------------------------------------
# Full ResnetBlock forward (NCHW in / NCHW out, like the PyTorch module).
# ---------------------------------------------------------------------------
def resnet_block_forward(x_nchw, params, num_groups=32, eps=1e-6):
    N, Cin, H, W = x_nchw.shape
    Cout = params["w1"].shape[0]
    use_nin = Cin != Cout

    # NCHW -> NHWC; activations carried in bf16 at the HBM boundary (x is read
    # by the moments kernel, conv1 and the conv2 shortcut).  Note: h (and hence
    # norm2's statistics) is intentionally bf16-rounded; GN math stays f32.
    x = jnp.transpose(x_nchw, (0, 2, 3, 1)).astype(jnp.bfloat16)

    # torch OIHW (Cout, Cin, 3, 3) -> tap-major (9, Cin, Cout), bf16 MXU operands
    w1 = jnp.transpose(params["w1"], (2, 3, 1, 0)).reshape(9, Cin, Cout)
    w1 = w1.astype(jnp.bfloat16)
    w2 = jnp.transpose(params["w2"], (2, 3, 1, 0)).reshape(9, Cout, Cout)
    w2 = w2.astype(jnp.bfloat16)
    if use_nin:
        wn = jnp.transpose(params["wn"][:, :, 0, 0], (1, 0)).astype(jnp.bfloat16)
        bn = params["bn"].astype(jnp.float32)
    else:
        wn = jnp.zeros((Cin, Cout), jnp.bfloat16)    # unused (identity shortcut)
        bn = jnp.zeros((Cout,), jnp.float32)

    TH = _choose_row_tile(H, W)
    RB = _choose_row_block(TH, W)

    # stage 1: moments -> scale/shift -> GN+SiLU+conv1  (h kept bf16 in HBM)
    m1 = channel_moments(x, H=H, W=W, row_tile=TH)
    ss1 = _finish_stats(m1, params["g1"], params["b1"], num_groups, eps,
                        float(H * W * (Cin // num_groups)))
    h = gn_silu_conv3x3(x, ss1, w1, params["bias1"], H=H, W=W, row_tile=TH,
                        row_block=RB, out_dtype=jnp.bfloat16)

    # stage 2: moments over h -> GN+SiLU+dropout(identity)+conv2 -> + shortcut
    m2 = channel_moments(h, H=H, W=W, row_tile=TH)
    ss2 = _finish_stats(m2, params["g2"], params["b2"], num_groups, eps,
                        float(H * W * (Cout // num_groups)))
    out = gn_silu_conv3x3_shortcut(h, ss2, w2, params["bias2"], x, wn, bn,
                                   H=H, W=W, row_tile=TH, row_block=RB,
                                   use_nin=use_nin, out_dtype=jnp.float32)
    return jnp.transpose(out, (0, 3, 1, 2))


# ---------------------------------------------------------------------------
# Pure-JAX reference (for correctness check).
# ---------------------------------------------------------------------------
def reference_resnet_block(x, p, num_groups=32, eps=1e-6):
    def gn(v, g, b):
        N, C, H, W = v.shape
        vr = v.reshape(N, num_groups, C // num_groups, H, W)
        mean = vr.mean(axis=(2, 3, 4), keepdims=True)
        var = vr.var(axis=(2, 3, 4), keepdims=True)
        vn = ((vr - mean) / jnp.sqrt(var + eps)).reshape(N, C, H, W)
        return vn * g[None, :, None, None] + b[None, :, None, None]

    def silu(v):
        return v * jax.nn.sigmoid(v)

    def conv(v, w, b, pad):
        y = jax.lax.conv_general_dilated(
            v, w, (1, 1), ((pad, pad), (pad, pad)),
            dimension_numbers=("NCHW", "OIHW", "NCHW"))
        return y + b[None, :, None, None]

    h = silu(gn(x, p["g1"], p["b1"]))
    h = conv(h, p["w1"], p["bias1"], 1)
    h = silu(gn(h, p["g2"], p["b2"]))
    h = conv(h, p["w2"], p["bias2"], 1)
    if p["w1"].shape[0] != x.shape[1]:
        xs = conv(x, p["wn"], p["bn"], 0)
    else:
        xs = x
    return xs + h


if __name__ == "__main__":
    key = jax.random.PRNGKey(0)
    N, Cin, H, W = 2, 32, 16, 16   # channels must be divisible by 32 (GroupNorm)
    Cout = 64                      # != Cin -> exercises nin_shortcut (1x1 conv)
    ks = jax.random.split(key, 11)

    x = jax.random.normal(ks[0], (N, Cin, H, W), jnp.float32)
    params = {
        "g1":    1.0 + 0.1 * jax.random.normal(ks[1], (Cin,), jnp.float32),
        "b1":    0.1 * jax.random.normal(ks[2], (Cin,), jnp.float32),
        "w1":    0.1 * jax.random.normal(ks[3], (Cout, Cin, 3, 3), jnp.float32),
        "bias1": 0.1 * jax.random.normal(ks[4], (Cout,), jnp.float32),
        "g2":    1.0 + 0.1 * jax.random.normal(ks[5], (Cout,), jnp.float32),
        "b2":    0.1 * jax.random.normal(ks[6], (Cout,), jnp.float32),
        "w2":    0.1 * jax.random.normal(ks[7], (Cout, Cout, 3, 3), jnp.float32),
        "bias2": 0.1 * jax.random.normal(ks[8], (Cout,), jnp.float32),
        "wn":    0.1 * jax.random.normal(ks[9], (Cout, Cin, 1, 1), jnp.float32),
        "bn":    0.1 * jax.random.normal(ks[10], (Cout,), jnp.float32),
    }

    fwd = jax.jit(resnet_block_forward)
    out = jax.block_until_ready(fwd(x, params))
    assert out.shape == (N, Cout, H, W), out.shape

    ref = jax.block_until_ready(reference_resnet_block(x, params))
    max_err = float(jnp.max(jnp.abs(out - ref)))
    ref_scale = float(jnp.max(jnp.abs(ref)))
    # bf16 activations at the HBM boundary + bf16 MXU operands -> bf16-level
    # tolerance (structural bugs would give O(1) errors).  NOTE: this is a
    # global max-abs check; the bf16 intermediate h is an intentional,
    # documented deviation from the f32 PyTorch reference.
    tol = 3e-2 * max(ref_scale, 1.0)
    if max_err <= tol:
        print("KERNEL_OK")
    else:
        print(f"MISMATCH max_abs_err={max_err} tol={tol}")
</pallas_src>

<mosaic_0001>
module attributes {stable_mosaic.version = 11 : i64} {
  func.func @_channel_moments_kernel(%arg0: i32, %arg1: i32, %arg2: memref<1x8x16x32xbf16, #tpu.memory_space<vmem>>, %arg3: memref<1x2x32xf32, #tpu.memory_space<vmem>>, %arg4: memref<2x32xf32, #tpu.memory_space<vmem>>) attributes {dimension_semantics = [#tpu.dimension_semantics<parallel>, #tpu.dimension_semantics<arbitrary>], iteration_bounds = array<i64: 2, 2>, scalar_prefetch = 0 : i64, scratch_operands = 1 : i64, tpu.core_type = #tpu.core_type<tc>, window_params = [{transform_indices = @transform_0, window_bounds = array<i64: 1, 8, 16, 32>}, {transform_indices = @transform_1, window_bounds = array<i64: 1, 2, 32>}]} {
    %c0_i32 = arith.constant 0 : i32
    %0 = arith.cmpi eq, %arg1, %c0_i32 : i32
    %1 = arith.extui %0 : i1 to i32
    %c0_i32_0 = arith.constant 0 : i32
    %2 = arith.cmpi ne, %1, %c0_i32_0 : i32
    scf.if %2 {
      %cst_13 = arith.constant 0.000000e+00 : f32
      %21 = vector.broadcast %cst_13 : f32 to vector<2x32xf32>
      %c0_14 = arith.constant 0 : index
      %c0_15 = arith.constant 0 : index
      %22 = vector.load %arg4[%c0_14, %c0_15] : memref<2x32xf32, #tpu.memory_space<vmem>>, vector<2x32xf32>
      tpu.vector_store %arg4[%c0_14, %c0_15], %21 {strides = array<i32>} : memref<2x32xf32, #tpu.memory_space<vmem>>, vector<2x32xf32>,
    } else {
    }
    %c0 = arith.constant 0 : index
    %c0_1 = arith.constant 0 : index
    %c0_2 = arith.constant 0 : index
    %c0_3 = arith.constant 0 : index
    %3 = vector.load %arg2[%c0, %c0_1, %c0_2, %c0_3] : memref<1x8x16x32xbf16, #tpu.memory_space<vmem>>, vector<1x8x16x32xbf16>
    %4 = vector.shape_cast %3 : vector<1x8x16x32xbf16> to vector<8x16x32xbf16>
    %5 = arith.extf %4 : vector<8x16x32xbf16> to vector<8x16x32xf32>
    %6 = vector.shape_cast %5 : vector<8x16x32xf32> to vector<128x32xf32>
    %c0_4 = arith.constant 0 : index
    %c0_5 = arith.constant 0 : index
    %7 = vector.load %arg4[%c0_4, %c0_5] : memref<2x32xf32, #tpu.memory_space<vmem>>, vector<1x32xf32>
    %cst = arith.constant dense<0.000000e+00> : vector<32xf32>
    %8 = vector.multi_reduction <add>, %6, %cst [0] : vector<128x32xf32> to vector<32xf32>
    %9 = vector.shape_cast %8 : vector<32xf32> to vector<1x32xf32>
    %10 = arith.addf %7, %9 : vector<1x32xf32>
    %c0_6 = arith.constant 0 : index
    %c0_7 = arith.constant 0 : index
    %11 = vector.load %arg4[%c0_6, %c0_7] : memref<2x32xf32, #tpu.memory_space<vmem>>, vector<1x32xf32>
    tpu.vector_store %arg4[%c0_6, %c0_7], %10 {strides = array<i32>} : memref<2x32xf32, #tpu.memory_space<vmem>>, vector<1x32xf32>,
    %c1 = arith.constant 1 : index
    %c0_8 = arith.constant 0 : index
    %12 = vector.load %arg4[%c1, %c0_8] : memref<2x32xf32, #tpu.memory_space<vmem>>, vector<1x32xf32>
    %13 = arith.mulf %6, %6 : vector<128x32xf32>
    %cst_9 = arith.constant dense<0.000000e+00> : vector<32xf32>
    %14 = vector.multi_reduction <add>, %13, %cst_9 [0] : vector<128x32xf32> to vector<32xf32>
    %15 = vector.shape_cast %14 : vector<32xf32> to vector<1x32xf32>
    %16 = arith.addf %12, %15 : vector<1x32xf32>
    %c1_10 = arith.constant 1 : index
    %c0_11 = arith.constant 0 : index
    %17 = vector.load %arg4[%c1_10, %c0_11] : memref<2x32xf32, #tpu.memory_space<vmem>>, vector<1x32xf32>
    tpu.vector_store %arg4[%c1_10, %c0_11], %16 {strides = array<i32>} : memref<2x32xf32, #tpu.memory_space<vmem>>, vector<1x32xf32>,
    %c1_i32 = arith.constant 1 : i32
    %18 = arith.cmpi eq, %arg1, %c1_i32 : i32
    %19 = arith.extui %18 : i1 to i32
    %c0_i32_12 = arith.constant 0 : i32
    %20 = arith.cmpi ne, %19, %c0_i32_12 : i32
    scf.if %20 {
      %c0_13 = arith.constant 0 : index
      %c0_14 = arith.constant 0 : index
      %21 = vector.load %arg4[%c0_13, %c0_14] : memref<2x32xf32, #tpu.memory_space<vmem>>, vector<2x32xf32>
      %c0_15 = arith.constant 0 : index
      %c0_16 = arith.constant 0 : index
      %c0_17 = arith.constant 0 : index
      %22 = vector.load %arg3[%c0_15, %c0_16, %c0_17] : memref<1x2x32xf32, #tpu.memory_space<vmem>>, vector<1x2x32xf32>
      %23 = vector.shape_cast %22 : vector<1x2x32xf32> to vector<2x32xf32>
      %24 = vector.shape_cast %21 : vector<2x32xf32> to vector<1x2x32xf32>
      tpu.vector_store %arg3[%c0_15, %c0_16, %c0_17], %24 {strides = array<i32>} : memref<1x2x32xf32, #tpu.memory_space<vmem>>, vector<1x2x32xf32>,
    } else {
    }
    return
  }
  func.func @transform_0(%arg0: i32, %arg1: i32) -> (i32, i32, i32, i32) {
    %c0_i32 = arith.constant 0 : i32
    %c0_i32_0 = arith.constant 0 : i32
    %c0_i32_1 = arith.constant 0 : i32
    return %arg0, %arg1, %c0_i32, %c0_i32_0 : i32, i32, i32, i32
  }
  func.func @transform_1(%arg0: i32, %arg1: i32) -> (i32, i32, i32) {
    %c0_i32 = arith.constant 0 : i32
    %c0_i32_0 = arith.constant 0 : i32
    %c0_i32_1 = arith.constant 0 : i32
    return %arg0, %c0_i32, %c0_i32_0 : i32, i32, i32
  }
}

module attributes {stable_mosaic.version = 11 : i64} {
  func.func @_channel_moments_kernel(%arg0: i32, %arg1: i32, %arg2: memref<1x8x16x64xbf16, #tpu.memory_space<vmem>>, %arg3: memref<1x2x64xf32, #tpu.memory_space<vmem>>, %arg4: memref<2x64xf32, #tpu.memory_space<vmem>>) attributes {dimension_semantics = [#tpu.dimension_semantics<parallel>, #tpu.dimension_semantics<arbitrary>], iteration_bounds = array<i64: 2, 2>, scalar_prefetch = 0 : i64, scratch_operands = 1 : i64, tpu.core_type = #tpu.core_type<tc>, window_params = [{transform_indices = @transform_0, window_bounds = array<i64: 1, 8, 16, 64>}, {transform_indices = @transform_1, window_bounds = array<i64: 1, 2, 64>}]} {
    %c0_i32 = arith.constant 0 : i32
    %0 = arith.cmpi eq, %arg1, %c0_i32 : i32
    %1 = arith.extui %0 : i1 to i32
    %c0_i32_0 = arith.constant 0 : i32
    %2 = arith.cmpi ne, %1, %c0_i32_0 : i32
    scf.if %2 {
      %cst_13 = arith.constant 0.000000e+00 : f32
      %21 = vector.broadcast %cst_13 : f32 to vector<2x64xf32>
      %c0_14 = arith.constant 0 : index
      %c0_15 = arith.constant 0 : index
      %22 = vector.load %arg4[%c0_14, %c0_15] : memref<2x64xf32, #tpu.memory_space<vmem>>, vector<2x64xf32>
      tpu.vector_store %arg4[%c0_14, %c0_15], %21 {strides = array<i32>} : memref<2x64xf32, #tpu.memory_space<vmem>>, vector<2x64xf32>,
    } else {
    }
    %c0 = arith.constant 0 : index
    %c0_1 = arith.constant 0 : index
    %c0_2 = arith.constant 0 : index
    %c0_3 = arith.constant 0 : index
    %3 = vector.load %arg2[%c0, %c0_1, %c0_2, %c0_3] : memref<1x8x16x64xbf16, #tpu.memory_space<vmem>>, vector<1x8x16x64xbf16>
    %4 = vector.shape_cast %3 : vector<1x8x16x64xbf16> to vector<8x16x64xbf16>
    %5 = arith.extf %4 : vector<8x16x64xbf16> to vector<8x16x64xf32>
    %6 = vector.shape_cast %5 : vector<8x16x64xf32> to vector<128x64xf32>
    %c0_4 = arith.constant 0 : index
    %c0_5 = arith.constant 0 : index
    %7 = vector.load %arg4[%c0_4, %c0_5] : memref<2x64xf32, #tpu.memory_space<vmem>>, vector<1x64xf32>
    %cst = arith.constant dense<0.000000e+00> : vector<64xf32>
    %8 = vector.multi_reduction <add>, %6, %cst [0] : vector<128x64xf32> to vector<64xf32>
    %9 = vector.shape_cast %8 : vector<64xf32> to vector<1x64xf32>
    %10 = arith.addf %7, %9 : vector<1x64xf32>
    %c0_6 = arith.constant 0 : index
    %c0_7 = arith.constant 0 : index
    %11 = vector.load %arg4[%c0_6, %c0_7] : memref<2x64xf32, #tpu.memory_space<vmem>>, vector<1x64xf32>
    tpu.vector_store %arg4[%c0_6, %c0_7], %10 {strides = array<i32>} : memref<2x64xf32, #tpu.memory_space<vmem>>, vector<1x64xf32>,
    %c1 = arith.constant 1 : index
    %c0_8 = arith.constant 0 : index
    %12 = vector.load %arg4[%c1, %c0_8] : memref<2x64xf32, #tpu.memory_space<vmem>>, vector<1x64xf32>
    %13 = arith.mulf %6, %6 : vector<128x64xf32>
    %cst_9 = arith.constant dense<0.000000e+00> : vector<64xf32>
    %14 = vector.multi_reduction <add>, %13, %cst_9 [0] : vector<128x64xf32> to vector<64xf32>
    %15 = vector.shape_cast %14 : vector<64xf32> to vector<1x64xf32>
    %16 = arith.addf %12, %15 : vector<1x64xf32>
    %c1_10 = arith.constant 1 : index
    %c0_11 = arith.constant 0 : index
    %17 = vector.load %arg4[%c1_10, %c0_11] : memref<2x64xf32, #tpu.memory_space<vmem>>, vector<1x64xf32>
    tpu.vector_store %arg4[%c1_10, %c0_11], %16 {strides = array<i32>} : memref<2x64xf32, #tpu.memory_space<vmem>>, vector<1x64xf32>,
    %c1_i32 = arith.constant 1 : i32
    %18 = arith.cmpi eq, %arg1, %c1_i32 : i32
    %19 = arith.extui %18 : i1 to i32
    %c0_i32_12 = arith.constant 0 : i32
    %20 = arith.cmpi ne, %19, %c0_i32_12 : i32
    scf.if %20 {
      %c0_13 = arith.constant 0 : index
      %c0_14 = arith.constant 0 : index
      %21 = vector.load %arg4[%c0_13, %c0_14] : memref<2x64xf32, #tpu.memory_space<vmem>>, vector<2x64xf32>
      %c0_15 = arith.constant 0 : index
      %c0_16 = arith.constant 0 : index
      %c0_17 = arith.constant 0 : index
      %22 = vector.load %arg3[%c0_15, %c0_16, %c0_17] : memref<1x2x64xf32, #tpu.memory_space<vmem>>, vector<1x2x64xf32>
      %23 = vector.shape_cast %22 : vector<1x2x64xf32> to vector<2x64xf32>
      %24 = vector.shape_cast %21 : vector<2x64xf32> to vector<1x2x64xf32>
      tpu.vector_store %arg3[%c0_15, %c0_16, %c0_17], %24 {strides = array<i32>} : memref<1x2x64xf32, #tpu.memory_space<vmem>>, vector<1x2x64xf32>,
    } else {
    }
    return
  }
  func.func @transform_0(%arg0: i32, %arg1: i32) -> (i32, i32, i32, i32) {
    %c0_i32 = arith.constant 0 : i32
    %c0_i32_0 = arith.constant 0 : i32
    %c0_i32_1 = arith.constant 0 : i32
    return %arg0, %arg1, %c0_i32, %c0_i32_0 : i32, i32, i32, i32
  }
  func.func @transform_1(%arg0: i32, %arg1: i32) -> (i32, i32, i32) {
    %c0_i32 = arith.constant 0 : i32
    %c0_i32_0 = arith.constant 0 : i32
    %c0_i32_1 = arith.constant 0 : i32
    return %arg0, %c0_i32, %c0_i32_0 : i32, i32, i32
  }
}

module attributes {stable_mosaic.version = 11 : i64} {
  func.func @_gn_silu_conv_kernel(%arg0: i32, %arg1: i32, %arg2: memref<1x8x16x32xbf16, #tpu.memory_space<vmem>>, %arg3: memref<1x1x16x32xbf16, #tpu.memory_space<vmem>>, %arg4: memref<1x1x16x32xbf16, #tpu.memory_space<vmem>>, %arg5: memref<1x2x32xf32, #tpu.memory_space<vmem>>, %arg6: memref<9x32x64xbf16, #tpu.memory_space<vmem>>, %arg7: memref<1x64xf32, #tpu.memory_space<vmem>>, %arg8: memref<1x8x16x64xbf16, #tpu.memory_space<vmem>>, %arg9: memref<10x32x32xf32, #tpu.memory_space<vmem>>) attributes {dimension_semantics = [#tpu.dimension_semantics<parallel>, #tpu.dimension_semantics<parallel>], iteration_bounds = array<i64: 2, 2>, scalar_prefetch = 0 : i64, scratch_operands = 1 : i64, tpu.core_type = #tpu.core_type<tc>, window_params = [{transform_indices = @transform_0, window_bounds = array<i64: 1, 8, 16, 32>}, {transform_indices = @transform_1, window_bounds = array<i64: 1, 1, 16, 32>}, {transform_indices = @transform_2, window_bounds = array<i64: 1, 1, 16, 32>}, {transform_indices = @transform_3, window_bounds = array<i64: 1, 2, 32>}, {pipeline_mode = #tpu.pipeline_mode<synchronous>, transform_indices = @transform_4, window_bounds = array<i64: 9, 32, 64>}, {pipeline_mode = #tpu.pipeline_mode<synchronous>, transform_indices = @transform_5, window_bounds = array<i64: 1, 64>}, {transform_indices = @transform_6, window_bounds = array<i64: 1, 8, 16, 64>}]} {
    %c0 = arith.constant 0 : index
    %c0_0 = arith.constant 0 : index
    %c0_1 = arith.constant 0 : index
    %0 = vector.load %arg5[%c0, %c0_0, %c0_1] : memref<1x2x32xf32, #tpu.memory_space<vmem>>, vector<1x1x32xf32>
    %1 = vector.shape_cast %0 : vector<1x1x32xf32> to vector<1x32xf32>
    %c0_2 = arith.constant 0 : index
    %c1 = arith.constant 1 : index
    %c0_3 = arith.constant 0 : index
    %2 = vector.load %arg5[%c0_2, %c1, %c0_3] : memref<1x2x32xf32, #tpu.memory_space<vmem>>, vector<1x1x32xf32>
    %3 = vector.shape_cast %2 : vector<1x1x32xf32> to vector<1x32xf32>
    %cst = arith.constant 0.000000e+00 : f32
    %4 = vector.broadcast %cst : f32 to vector<10x1x32xf32>
    %c0_4 = arith.constant 0 : index
    %c7 = arith.constant 7 : index
    %c0_5 = arith.constant 0 : index
    %5 = vector.load %arg9[%c0_4, %c7, %c0_5] : memref<10x32x32xf32, #tpu.memory_space<vmem>>, vector<10x1x32xf32>
    tpu.vector_store %arg9[%c0_4, %c7, %c0_5], %4 {strides = array<i32>} : memref<10x32x32xf32, #tpu.memory_space<vmem>>, vector<10x1x32xf32>,
    %c0_6 = arith.constant 0 : index
    %c24 = arith.constant 24 : index
    %c0_7 = arith.constant 0 : index
    %6 = vector.load %arg9[%c0_6, %c24, %c0_7] : memref<10x32x32xf32, #tpu.memory_space<vmem>>, vector<10x1x32xf32>
    tpu.vector_store %arg9[%c0_6, %c24, %c0_7], %4 {strides = array<i32>} : memref<10x32x32xf32, #tpu.memory_space<vmem>>, vector<10x1x32xf32>,
    %cst_8 = arith.constant 0.000000e+00 : f32
    %7 = vector.broadcast %cst_8 : f32 to vector<1x16x32xf32>
    %c0_i32 = arith.constant 0 : i32
    %8 = arith.cmpi sgt, %arg1, %c0_i32 : i32
    %9 = arith.extui %8 : i1 to i32
    %c0_i32_9 = arith.constant 0 : i32
    %10 = arith.cmpi ne, %9, %c0_i32_9 : i32
    scf.if %10 {
      %c0_68 = arith.constant 0 : index
      %c0_69 = arith.constant 0 : index
      %c0_70 = arith.constant 0 : index
      %c0_71 = arith.constant 0 : index
      %105 = vector.load %arg3[%c0_68, %c0_69, %c0_70, %c0_71] : memref<1x1x16x32xbf16, #tpu.memory_space<vmem>>, vector<1x1x16x32xbf16>
      %106 = vector.shape_cast %105 : vector<1x1x16x32xbf16> to vector<1x16x32xbf16>
      %107 = arith.extf %106 : vector<1x16x32xbf16> to vector<1x16x32xf32>
      %108 = vector.shape_cast %1 : vector<1x32xf32> to vector<1x1x32xf32>
      %109 = vector.broadcast %108 : vector<1x1x32xf32> to vector<1x16x32xf32>
      %110 = arith.mulf %107, %109 : vector<1x16x32xf32>
      %111 = vector.shape_cast %3 : vector<1x32xf32> to vector<1x1x32xf32>
      %112 = vector.broadcast %111 : vector<1x1x32xf32> to vector<1x16x32xf32>
      %113 = arith.addf %110, %112 : vector<1x16x32xf32>
      %114 = arith.negf %113 : vector<1x16x32xf32>
      %115 = math.exp %114 : vector<1x16x32xf32>
      %cst_72 = arith.constant 1.000000e+00 : f32
      %116 = vector.broadcast %cst_72 : f32 to vector<1x16x32xf32>
      %117 = arith.addf %116, %115 : vector<1x16x32xf32>
      %118 = arith.divf %116, %117 : vector<1x16x32xf32>
      %119 = arith.mulf %113, %118 : vector<1x16x32xf32>
      %c0_73 = arith.constant 0 : index
      %c8_74 = arith.constant 8 : index
      %c0_75 = arith.constant 0 : index
      %120 = vector.load %arg9[%c0_73, %c8_74, %c0_75] : memref<10x32x32xf32, #tpu.memory_space<vmem>>, vector<1x16x32xf32>
      tpu.vector_store %arg9[%c0_73, %c8_74, %c0_75], %119 {strides = array<i32>} : memref<10x32x32xf32, #tpu.memory_space<vmem>>, vector<1x16x32xf32>,
    } else {
    }
    %c0_i32_10 = arith.constant 0 : i32
    %11 = arith.cmpi eq, %arg1, %c0_i32_10 : i32
    %12 = arith.extui %11 : i1 to i32
    %c0_i32_11 = arith.constant 0 : i32
    %13 = arith.cmpi ne, %12, %c0_i32_11 : i32
    scf.if %13 {
      %c0_68 = arith.constant 0 : index
      %c8_69 = arith.constant 8 : index
      %c0_70 = arith.constant 0 : index
      %105 = vector.load %arg9[%c0_68, %c8_69, %c0_70] : memref<10x32x32xf32, #tpu.memory_space<vmem>>, vector<1x16x32xf32>
      tpu.vector_store %arg9[%c0_68, %c8_69, %c0_70], %7 {strides = array<i32>} : memref<10x32x32xf32, #tpu.memory_space<vmem>>, vector<1x16x32xf32>,
    } else {
    }
    %c1_i32 = arith.constant 1 : i32
    %14 = arith.cmpi slt, %arg1, %c1_i32 : i32
    %15 = arith.extui %14 : i1 to i32
    %c0_i32_12 = arith.constant 0 : i32
    %16 = arith.cmpi ne, %15, %c0_i32_12 : i32
    scf.if %16 {
      %c0_68 = arith.constant 0 : index
      %c0_69 = arith.constant 0 : index
      %c0_70 = arith.constant 0 : index
      %c0_71 = arith.constant 0 : index
      %105 = vector.load %arg4[%c0_68, %c0_69, %c0_70, %c0_71] : memref<1x1x16x32xbf16, #tpu.memory_space<vmem>>, vector<1x1x16x32xbf16>
      %106 = vector.shape_cast %105 : vector<1x1x16x32xbf16> to vector<1x16x32xbf16>
      %107 = arith.extf %106 : vector<1x16x32xbf16> to vector<1x16x32xf32>
      %108 = vector.shape_cast %1 : vector<1x32xf32> to vector<1x1x32xf32>
      %109 = vector.broadcast %108 : vector<1x1x32xf32> to vector<1x16x32xf32>
      %110 = arith.mulf %107, %109 : vector<1x16x32xf32>
      %111 = vector.shape_cast %3 : vector<1x32xf32> to vector<1x1x32xf32>
      %112 = vector.broadcast %111 : vector<1x1x32xf32> to vector<1x16x32xf32>
      %113 = arith.addf %110, %112 : vector<1x16x32xf32>
      %114 = arith.negf %113 : vector<1x16x32xf32>
      %115 = math.exp %114 : vector<1x16x32xf32>
      %cst_72 = arith.constant 1.000000e+00 : f32
      %116 = vector.broadcast %cst_72 : f32 to vector<1x16x32xf32>
      %117 = arith.addf %116, %115 : vector<1x16x32xf32>
      %118 = arith.divf %116, %117 : vector<1x16x32xf32>
      %119 = arith.mulf %113, %118 : vector<1x16x32xf32>
      %c9_73 = arith.constant 9 : index
      %c8_74 = arith.constant 8 : index
      %c0_75 = arith.constant 0 : index
      %120 = vector.load %arg9[%c9_73, %c8_74, %c0_75] : memref<10x32x32xf32, #tpu.memory_space<vmem>>, vector<1x16x32xf32>
      tpu.vector_store %arg9[%c9_73, %c8_74, %c0_75], %119 {strides = array<i32>} : memref<10x32x32xf32, #tpu.memory_space<vmem>>, vector<1x16x32xf32>,
    } else {
    }
    %c1_i32_13 = arith.constant 1 : i32
    %17 = arith.cmpi eq, %arg1, %c1_i32_13 : i32
    %18 = arith.extui %17 : i1 to i32
    %c0_i32_14 = arith.constant 0 : i32
    %19 = arith.cmpi ne, %18, %c0_i32_14 : i32
    scf.if %19 {
      %c9_68 = arith.constant 9 : index
      %c8_69 = arith.constant 8 : index
      %c0_70 = arith.constant 0 : index
      %105 = vector.load %arg9[%c9_68, %c8_69, %c0_70] : memref<10x32x32xf32, #tpu.memory_space<vmem>>, vector<1x16x32xf32>
      tpu.vector_store %arg9[%c9_68, %c8_69, %c0_70], %7 {strides = array<i32>} : memref<10x32x32xf32, #tpu.memory_space<vmem>>, vector<1x16x32xf32>,
    } else {
    }
    %c0_15 = arith.constant 0 : index
    %c0_16 = arith.constant 0 : index
    %c0_17 = arith.constant 0 : index
    %c0_18 = arith.constant 0 : index
    %20 = vector.load %arg2[%c0_15, %c0_16, %c0_17, %c0_18] : memref<1x8x16x32xbf16, #tpu.memory_space<vmem>>, vector<1x8x16x32xbf16>
    %21 = vector.shape_cast %20 : vector<1x8x16x32xbf16> to vector<8x16x32xbf16>
    %22 = arith.extf %21 : vector<8x16x32xbf16> to vector<8x16x32xf32>
    %23 = vector.shape_cast %1 : vector<1x32xf32> to vector<1x1x32xf32>
    %24 = vector.broadcast %23 : vector<1x1x32xf32> to vector<8x16x32xf32>
    %25 = arith.mulf %22, %24 : vector<8x16x32xf32>
    %26 = vector.shape_cast %3 : vector<1x32xf32> to vector<1x1x32xf32>
    %27 = vector.broadcast %26 : vector<1x1x32xf32> to vector<8x16x32xf32>
    %28 = arith.addf %25, %27 : vector<8x16x32xf32>
    %29 = arith.negf %28 : vector<8x16x32xf32>
    %30 = math.exp %29 : vector<8x16x32xf32>
    %cst_19 = arith.constant 1.000000e+00 : f32
    %31 = vector.broadcast %cst_19 : f32 to vector<8x16x32xf32>
    %32 = arith.addf %31, %30 : vector<8x16x32xf32>
    %33 = arith.divf %31, %32 : vector<8x16x32xf32>
    %34 = arith.mulf %28, %33 : vector<8x16x32xf32>
    %c1_20 = arith.constant 1 : index
    %c8 = arith.constant 8 : index
    %c0_21 = arith.constant 0 : index
    %35 = vector.load %arg9[%c1_20, %c8, %c0_21] : memref<10x32x32xf32, #tpu.memory_space<vmem>>, vector<8x16x32xf32>
    tpu.vector_store %arg9[%c1_20, %c8, %c0_21], %34 {strides = array<i32>} : memref<10x32x32xf32, #tpu.memory_space<vmem>>, vector<8x16x32xf32>,
    %c0_22 = arith.constant 0 : index
    %c0_23 = arith.constant 0 : index
    %36 = vector.load %arg7[%c0_22, %c0_23] : memref<1x64xf32, #tpu.memory_space<vmem>>, vector<1x64xf32>
    %cst_24 = arith.constant 0.000000e+00 : f32
    %37 = vector.broadcast %cst_24 : f32 to vector<128x64xf32>
    %c0_25 = arith.constant 0 : index
    %c7_26 = arith.constant 7 : index
    %c0_27 = arith.constant 0 : index
    %38 = vector.load %arg9[%c0_25, %c7_26, %c0_27] : memref<10x32x32xf32, #tpu.memory_space<vmem>>, vector<10x16x32xf32>
    %39 = arith.truncf %38 : vector<10x16x32xf32> to vector<10x16x32xbf16>
    %40 = vector.extract_strided_slice %39 {offsets = [0, 0, 0], sizes = [8, 16, 32], strides = [1, 1, 1]} : vector<10x16x32xbf16> to vector<8x16x32xbf16>
    %41 = vector.shape_cast %40 : vector<8x16x32xbf16> to vector<128x32xbf16>
    %c0_28 = arith.constant 0 : index
    %c0_29 = arith.constant 0 : index
    %c0_30 = arith.constant 0 : index
    %42 = vector.load %arg6[%c0_28, %c0_29, %c0_30] : memref<9x32x64xbf16, #tpu.memory_space<vmem>>, vector<1x32x64xbf16>
    %43 = vector.shape_cast %42 : vector<1x32x64xbf16> to vector<32x64xbf16>
    %cst_31 = arith.constant dense<0.000000e+00> : vector<128x64xf32>
    %44 = tpu.matmul %41, %43, %cst_31 {dimension_numbers = #tpu.dot_dimension_numbers<[1], [0], [0], [1], [0, 0, 1, 1], [], []>} : vector<128x32xbf16>, vector<32x64xbf16>, vector<128x64xf32> -> vector<128x64xf32>
    %45 = arith.addf %37, %44 : vector<128x64xf32>
    %46 = vector.extract_strided_slice %39 {offsets = [1, 0, 0], sizes = [8, 16, 32], strides = [1, 1, 1]} : vector<10x16x32xbf16> to vector<8x16x32xbf16>
    %47 = vector.shape_cast %46 : vector<8x16x32xbf16> to vector<128x32xbf16>
    %c3 = arith.constant 3 : index
    %c0_32 = arith.constant 0 : index
    %c0_33 = arith.constant 0 : index
    %48 = vector.load %arg6[%c3, %c0_32, %c0_33] : memref<9x32x64xbf16, #tpu.memory_space<vmem>>, vector<1x32x64xbf16>
    %49 = vector.shape_cast %48 : vector<1x32x64xbf16> to vector<32x64xbf16>
    %cst_34 = arith.constant dense<0.000000e+00> : vector<128x64xf32>
    %50 = tpu.matmul %47, %49, %cst_34 {dimension_numbers = #tpu.dot_dimension_numbers<[1], [0], [0], [1], [0, 0, 1, 1], [], []>} : vector<128x32xbf16>, vector<32x64xbf16>, vector<128x64xf32> -> vector<128x64xf32>
    %51 = arith.addf %45, %50 : vector<128x64xf32>
    %52 = vector.extract_strided_slice %39 {offsets = [2, 0, 0], sizes = [8, 16, 32], strides = [1, 1, 1]} : vector<10x16x32xbf16> to vector<8x16x32xbf16>
    %53 = vector.shape_cast %52 : vector<8x16x32xbf16> to vector<128x32xbf16>
    %c6 = arith.constant 6 : index
    %c0_35 = arith.constant 0 : index
    %c0_36 = arith.constant 0 : index
    %54 = vector.load %arg6[%c6, %c0_35, %c0_36] : memref<9x32x64xbf16, #tpu.memory_space<vmem>>, vector<1x32x64xbf16>
    %55 = vector.shape_cast %54 : vector<1x32x64xbf16> to vector<32x64xbf16>
    %cst_37 = arith.constant dense<0.000000e+00> : vector<128x64xf32>
    %56 = tpu.matmul %53, %55, %cst_37 {dimension_numbers = #tpu.dot_dimension_numbers<[1], [0], [0], [1], [0, 0, 1, 1], [], []>} : vector<128x32xbf16>, vector<32x64xbf16>, vector<128x64xf32> -> vector<128x64xf32>
    %57 = arith.addf %51, %56 : vector<128x64xf32>
    %c0_38 = arith.constant 0 : index
    %c8_39 = arith.constant 8 : index
    %c0_40 = arith.constant 0 : index
    %58 = vector.load %arg9[%c0_38, %c8_39, %c0_40] : memref<10x32x32xf32, #tpu.memory_space<vmem>>, vector<10x16x32xf32>
    %59 = arith.truncf %58 : vector<10x16x32xf32> to vector<10x16x32xbf16>
    %60 = vector.extract_strided_slice %59 {offsets = [0, 0, 0], sizes = [8, 16, 32], strides = [1, 1, 1]} : vector<10x16x32xbf16> to vector<8x16x32xbf16>
    %61 = vector.shape_cast %60 : vector<8x16x32xbf16> to vector<128x32xbf16>
    %c1_41 = arith.constant 1 : index
    %c0_42 = arith.constant 0 : index
    %c0_43 = arith.constant 0 : index
    %62 = vector.load %arg6[%c1_41, %c0_42, %c0_43] : memref<9x32x64xbf16, #tpu.memory_space<vmem>>, vector<1x32x64xbf16>
    %63 = vector.shape_cast %62 : vector<1x32x64xbf16> to vector<32x64xbf16>
    %cst_44 = arith.constant dense<0.000000e+00> : vector<128x64xf32>
    %64 = tpu.matmul %61, %63, %cst_44 {dimension_numbers = #tpu.dot_dimension_numbers<[1], [0], [0], [1], [0, 0, 1, 1], [], []>} : vector<128x32xbf16>, vector<32x64xbf16>, vector<128x64xf32> -> vector<128x64xf32>
    %65 = arith.addf %57, %64 : vector<128x64xf32>
    %66 = vector.extract_strided_slice %59 {offsets = [1, 0, 0], sizes = [8, 16, 32], strides = [1, 1, 1]} : vector<10x16x32xbf16> to vector<8x16x32xbf16>
    %67 = vector.shape_cast %66 : vector<8x16x32xbf16> to vector<128x32xbf16>
    %c4 = arith.constant 4 : index
    %c0_45 = arith.constant 0 : index
    %c0_46 = arith.constant 0 : index
    %68 = vector.load %arg6[%c4, %c0_45, %c0_46] : memref<9x32x64xbf16, #tpu.memory_space<vmem>>, vector<1x32x64xbf16>
    %69 = vector.shape_cast %68 : vector<1x32x64xbf16> to vector<32x64xbf16>
    %cst_47 = arith.constant dense<0.000000e+00> : vector<128x64xf32>
    %70 = tpu.matmul %67, %69, %cst_47 {dimension_numbers = #tpu.dot_dimension_numbers<[1], [0], [0], [1], [0, 0, 1, 1], [], []>} : vector<128x32xbf16>, vector<32x64xbf16>, vector<128x64xf32> -> vector<128x64xf32>
    %71 = arith.addf %65, %70 : vector<128x64xf32>
    %72 = vector.extract_strided_slice %59 {offsets = [2, 0, 0], sizes = [8, 16, 32], strides = [1, 1, 1]} : vector<10x16x32xbf16> to vector<8x16x32xbf16>
    %73 = vector.shape_cast %72 : vector<8x16x32xbf16> to vector<128x32xbf16>
    %c7_48 = arith.constant 7 : index
    %c0_49 = arith.constant 0 : index
    %c0_50 = arith.constant 0 : index
    %74 = vector.load %arg6[%c7_48, %c0_49, %c0_50] : memref<9x32x64xbf16, #tpu.memory_space<vmem>>, vector<1x32x64xbf16>
    %75 = vector.shape_cast %74 : vector<1x32x64xbf16> to vector<32x64xbf16>
    %cst_51 = arith.constant dense<0.000000e+00> : vector<128x64xf32>
    %76 = tpu.matmul %73, %75, %cst_51 {dimension_numbers = #tpu.dot_dimension_numbers<[1], [0], [0], [1], [0, 0, 1, 1], [], []>} : vector<128x32xbf16>, vector<32x64xbf16>, vector<128x64xf32> -> vector<128x64xf32>
    %77 = arith.addf %71, %76 : vector<128x64xf32>
    %c0_52 = arith.constant 0 : index
    %c9 = arith.constant 9 : index
    %c0_53 = arith.constant 0 : index
    %78 = vector.load %arg9[%c0_52, %c9, %c0_53] : memref<10x32x32xf32, #tpu.memory_space<vmem>>, vector<10x16x32xf32>
    %79 = arith.truncf %78 : vector<10x16x32xf32> to vector<10x16x32xbf16>
    %80 = vector.extract_strided_slice %79 {offsets = [0, 0, 0], sizes = [8, 16, 32], strides = [1, 1, 1]} : vector<10x16x32xbf16> to vector<8x16x32xbf16>
    %81 = vector.shape_cast %80 : vector<8x16x32xbf16> to vector<128x32xbf16>
    %c2 = arith.constant 2 : index
    %c0_54 = arith.constant 0 : index
    %c0_55 = arith.constant 0 : index
    %82 = vector.load %arg6[%c2, %c0_54, %c0_55] : memref<9x32x64xbf16, #tpu.memory_space<vmem>>, vector<1x32x64xbf16>
    %83 = vector.shape_cast %82 : vector<1x32x64xbf16> to vector<32x64xbf16>
    %cst_56 = arith.constant dense<0.000000e+00> : vector<128x64xf32>
    %84 = tpu.matmul %81, %83, %cst_56 {dimension_numbers = #tpu.dot_dimension_numbers<[1], [0], [0], [1], [0, 0, 1, 1], [], []>} : vector<128x32xbf16>, vector<32x64xbf16>, vector<128x64xf32> -> vector<128x64xf32>
    %85 = arith.addf %77, %84 : vector<128x64xf32>
    %86 = vector.extract_strided_slice %79 {offsets = [1, 0, 0], sizes = [8, 16, 32], strides = [1, 1, 1]} : vector<10x16x32xbf16> to vector<8x16x32xbf16>
    %87 = vector.shape_cast %86 : vector<8x16x32xbf16> to vector<128x32xbf16>
    %c5 = arith.constant 5 : index
    %c0_57 = arith.constant 0 : index
    %c0_58 = arith.constant 0 : index
    %88 = vector.load %arg6[%c5, %c0_57, %c0_58] : memref<9x32x64xbf16, #tpu.memory_space<vmem>>, vector<1x32x64xbf16>
    %89 = vector.shape_cast %88 : vector<1x32x64xbf16> to vector<32x64xbf16>
    %cst_59 = arith.constant dense<0.000000e+00> : vector<128x64xf32>
    %90 = tpu.matmul %87, %89, %cst_59 {dimension_numbers = #tpu.dot_dimension_numbers<[1], [0], [0], [1], [0, 0, 1, 1], [], []>} : vector<128x32xbf16>, vector<32x64xbf16>, vector<128x64xf32> -> vector<128x64xf32>
    %91 = arith.addf %85, %90 : vector<128x64xf32>
    %92 = vector.extract_strided_slice %79 {offsets = [2, 0, 0], sizes = [8, 16, 32], strides = [1, 1, 1]} : vector<10x16x32xbf16> to vector<8x16x32xbf16>
    %93 = vector.shape_cast %92 : vector<8x16x32xbf16> to vector<128x32xbf16>
    %c8_60 = arith.constant 8 : index
    %c0_61 = arith.constant 0 : index
    %c0_62 = arith.constant 0 : index
    %94 = vector.load %arg6[%c8_60, %c0_61, %c0_62] : memref<9x32x64xbf16, #tpu.memory_space<vmem>>, vector<1x32x64xbf16>
    %95 = vector.shape_cast %94 : vector<1x32x64xbf16> to vector<32x64xbf16>
    %cst_63 = arith.constant dense<0.000000e+00> : vector<128x64xf32>
    %96 = tpu.matmul %93, %95, %cst_63 {dimension_numbers = #tpu.dot_dimension_numbers<[1], [0], [0], [1], [0, 0, 1, 1], [], []>} : vector<128x32xbf16>, vector<32x64xbf16>, vector<128x64xf32> -> vector<128x64xf32>
    %97 = arith.addf %91, %96 : vector<128x64xf32>
    %98 = vector.broadcast %36 : vector<1x64xf32> to vector<128x64xf32>
    %99 = arith.addf %97, %98 : vector<128x64xf32>
    %100 = vector.shape_cast %99 : vector<128x64xf32> to vector<8x16x64xf32>
    %101 = arith.truncf %100 : vector<8x16x64xf32> to vector<8x16x64xbf16>
    %c0_64 = arith.constant 0 : index
    %c0_65 = arith.constant 0 : index
    %c0_66 = arith.constant 0 : index
    %c0_67 = arith.constant 0 : index
    %102 = vector.load %arg8[%c0_64, %c0_65, %c0_66, %c0_67] : memref<1x8x16x64xbf16, #tpu.memory_space<vmem>>, vector<1x8x16x64xbf16>
    %103 = vector.shape_cast %102 : vector<1x8x16x64xbf16> to vector<8x16x64xbf16>
    %104 = vector.shape_cast %101 : vector<8x16x64xbf16> to vector<1x8x16x64xbf16>
    tpu.vector_store %arg8[%c0_64, %c0_65, %c0_66, %c0_67], %104 {strides = array<i32>} : memref<1x8x16x64xbf16, #tpu.memory_space<vmem>>, vector<1x8x16x64xbf16>,
    return
  }
  func.func @transform_0(%arg0: i32, %arg1: i32) -> (i32, i32, i32, i32) {
    %c0_i32 = arith.constant 0 : i32
    %c0_i32_0 = arith.constant 0 : i32
    %c0_i32_1 = arith.constant 0 : i32
    return %arg0, %arg1, %c0_i32, %c0_i32_0 : i32, i32, i32, i32
  }
  func.func @transform_1(%arg0: i32, %arg1: i32) -> (i32, i32, i32, i32) {
    %c8_i32 = arith.constant 8 : i32
    %0 = arith.muli %arg1, %c8_i32 : i32
    %c1_i32 = arith.constant 1 : i32
    %1 = arith.subi %0, %c1_i32 : i32
    %c0_i32 = arith.constant 0 : i32
    %2 = arith.maxsi %1, %c0_i32 : i32
    %c0_i32_0 = arith.constant 0 : i32
    %c0_i32_1 = arith.constant 0 : i32
    %c0_i32_2 = arith.constant 0 : i32
    return %arg0, %2, %c0_i32_0, %c0_i32_1 : i32, i32, i32, i32
  }
  func.func @transform_2(%arg0: i32, %arg1: i32) -> (i32, i32, i32, i32) {
    %c1_i32 = arith.constant 1 : i32
    %0 = arith.addi %arg1, %c1_i32 : i32
    %c8_i32 = arith.constant 8 : i32
    %1 = arith.muli %0, %c8_i32 : i32
    %c15_i32 = arith.constant 15 : i32
    %2 = arith.minsi %1, %c15_i32 : i32
    %c0_i32 = arith.constant 0 : i32
    %c0_i32_0 = arith.constant 0 : i32
    %c0_i32_1 = arith.constant 0 : i32
    return %arg0, %2, %c0_i32, %c0_i32_0 : i32, i32, i32, i32
  }
  func.func @transform_3(%arg0: i32, %arg1: i32) -> (i32, i32, i32) {
    %c0_i32 = arith.constant 0 : i32
    %c0_i32_0 = arith.constant 0 : i32
    %c0_i32_1 = arith.constant 0 : i32
    return %arg0, %c0_i32, %c0_i32_0 : i32, i32, i32
  }
  func.func @transform_4(%arg0: i32, %arg1: i32) -> (i32, i32, i32) {
    %c0_i32 = arith.constant 0 : i32
    %c0_i32_0 = arith.constant 0 : i32
    %c0_i32_1 = arith.constant 0 : i32
    %c0_i32_2 = arith.constant 0 : i32
    return %c0_i32, %c0_i32_0, %c0_i32_1 : i32, i32, i32
  }
  func.func @transform_5(%arg0: i32, %arg1: i32) -> (i32, i32) {
    %c0_i32 = arith.constant 0 : i32
    %c0_i32_0 = arith.constant 0 : i32
    %c0_i32_1 = arith.constant 0 : i32
    return %c0_i32, %c0_i32_0 : i32, i32
  }
  func.func @transform_6(%arg0: i32, %arg1: i32) -> (i32, i32, i32, i32) {
    %c0_i32 = arith.constant 0 : i32
    %c0_i32_0 = arith.constant 0 : i32
    %c0_i32_1 = arith.constant 0 : i32
    return %arg0, %arg1, %c0_i32, %c0_i32_0 : i32, i32, i32, i32
  }
}

module attributes {stable_mosaic.version = 11 : i64} {
  func.func @_gn_silu_conv_shortcut_kernel(%arg0: i32, %arg1: i32, %arg2: memref<1x8x16x64xbf16, #tpu.memory_space<vmem>>, %arg3: memref<1x1x16x64xbf16, #tpu.memory_space<vmem>>, %arg4: memref<1x1x16x64xbf16, #tpu.memory_space<vmem>>, %arg5: memref<1x2x64xf32, #tpu.memory_space<vmem>>, %arg6: memref<9x64x64xbf16, #tpu.memory_space<vmem>>, %arg7: memref<1x64xf32, #tpu.memory_space<vmem>>, %arg8: memref<1x8x16x32xbf16, #tpu.memory_space<vmem>>, %arg9: memref<32x64xbf16, #tpu.memory_space<vmem>>, %arg10: memref<1x64xf32, #tpu.memory_space<vmem>>, %arg11: memref<1x8x16x64xf32, #tpu.memory_space<vmem>>, %arg12: memref<10x32x64xf32, #tpu.memory_space<vmem>>) attributes {dimension_semantics = [#tpu.dimension_semantics<parallel>, #tpu.dimension_semantics<parallel>], iteration_bounds = array<i64: 2, 2>, scalar_prefetch = 0 : i64, scratch_operands = 1 : i64, tpu.core_type = #tpu.core_type<tc>, window_params = [{transform_indices = @transform_0, window_bounds = array<i64: 1, 8, 16, 64>}, {transform_indices = @transform_1, window_bounds = array<i64: 1, 1, 16, 64>}, {transform_indices = @transform_2, window_bounds = array<i64: 1, 1, 16, 64>}, {transform_indices = @transform_3, window_bounds = array<i64: 1, 2, 64>}, {pipeline_mode = #tpu.pipeline_mode<synchronous>, transform_indices = @transform_4, window_bounds = array<i64: 9, 64, 64>}, {pipeline_mode = #tpu.pipeline_mode<synchronous>, transform_indices = @transform_5, window_bounds = array<i64: 1, 64>}, {transform_indices = @transform_6, window_bounds = array<i64: 1, 8, 16, 32>}, {pipeline_mode = #tpu.pipeline_mode<synchronous>, transform_indices = @transform_7, window_bounds = array<i64: 32, 64>}, {pipeline_mode = #tpu.pipeline_mode<synchronous>, transform_indices = @transform_8, window_bounds = array<i64: 1, 64>}, {transform_indices = @transform_9, window_bounds = array<i64: 1, 8, 16, 64>}]} {
    %c0 = arith.constant 0 : index
    %c0_0 = arith.constant 0 : index
    %c0_1 = arith.constant 0 : index
    %0 = vector.load %arg5[%c0, %c0_0, %c0_1] : memref<1x2x64xf32, #tpu.memory_space<vmem>>, vector<1x1x64xf32>
    %1 = vector.shape_cast %0 : vector<1x1x64xf32> to vector<1x64xf32>
    %c0_2 = arith.constant 0 : index
    %c1 = arith.constant 1 : index
    %c0_3 = arith.constant 0 : index
    %2 = vector.load %arg5[%c0_2, %c1, %c0_3] : memref<1x2x64xf32, #tpu.memory_space<vmem>>, vector<1x1x64xf32>
    %3 = vector.shape_cast %2 : vector<1x1x64xf32> to vector<1x64xf32>
    %cst = arith.constant 0.000000e+00 : f32
    %4 = vector.broadcast %cst : f32 to vector<10x1x64xf32>
    %c0_4 = arith.constant 0 : index
    %c7 = arith.constant 7 : index
    %c0_5 = arith.constant 0 : index
    %5 = vector.load %arg12[%c0_4, %c7, %c0_5] : memref<10x32x64xf32, #tpu.memory_space<vmem>>, vector<10x1x64xf32>
    tpu.vector_store %arg12[%c0_4, %c7, %c0_5], %4 {strides = array<i32>} : memref<10x32x64xf32, #tpu.memory_space<vmem>>, vector<10x1x64xf32>,
    %c0_6 = arith.constant 0 : index
    %c24 = arith.constant 24 : index
    %c0_7 = arith.constant 0 : index
    %6 = vector.load %arg12[%c0_6, %c24, %c0_7] : memref<10x32x64xf32, #tpu.memory_space<vmem>>, vector<10x1x64xf32>
    tpu.vector_store %arg12[%c0_6, %c24, %c0_7], %4 {strides = array<i32>} : memref<10x32x64xf32, #tpu.memory_space<vmem>>, vector<10x1x64xf32>,
    %cst_8 = arith.constant 0.000000e+00 : f32
    %7 = vector.broadcast %cst_8 : f32 to vector<1x16x64xf32>
    %c0_i32 = arith.constant 0 : i32
    %8 = arith.cmpi sgt, %arg1, %c0_i32 : i32
    %9 = arith.extui %8 : i1 to i32
    %c0_i32_9 = arith.constant 0 : i32
    %10 = arith.cmpi ne, %9, %c0_i32_9 : i32
    scf.if %10 {
      %c0_77 = arith.constant 0 : index
      %c0_78 = arith.constant 0 : index
      %c0_79 = arith.constant 0 : index
      %c0_80 = arith.constant 0 : index
      %114 = vector.load %arg3[%c0_77, %c0_78, %c0_79, %c0_80] : memref<1x1x16x64xbf16, #tpu.memory_space<vmem>>, vector<1x1x16x64xbf16>
      %115 = vector.shape_cast %114 : vector<1x1x16x64xbf16> to vector<1x16x64xbf16>
      %116 = arith.extf %115 : vector<1x16x64xbf16> to vector<1x16x64xf32>
      %117 = vector.shape_cast %1 : vector<1x64xf32> to vector<1x1x64xf32>
      %118 = vector.broadcast %117 : vector<1x1x64xf32> to vector<1x16x64xf32>
      %119 = arith.mulf %116, %118 : vector<1x16x64xf32>
      %120 = vector.shape_cast %3 : vector<1x64xf32> to vector<1x1x64xf32>
      %121 = vector.broadcast %120 : vector<1x1x64xf32> to vector<1x16x64xf32>
      %122 = arith.addf %119, %121 : vector<1x16x64xf32>
      %123 = arith.negf %122 : vector<1x16x64xf32>
      %124 = math.exp %123 : vector<1x16x64xf32>
      %cst_81 = arith.constant 1.000000e+00 : f32
      %125 = vector.broadcast %cst_81 : f32 to vector<1x16x64xf32>
      %126 = arith.addf %125, %124 : vector<1x16x64xf32>
      %127 = arith.divf %125, %126 : vector<1x16x64xf32>
      %128 = arith.mulf %122, %127 : vector<1x16x64xf32>
      %c0_82 = arith.constant 0 : index
      %c8_83 = arith.constant 8 : index
      %c0_84 = arith.constant 0 : index
      %129 = vector.load %arg12[%c0_82, %c8_83, %c0_84] : memref<10x32x64xf32, #tpu.memory_space<vmem>>, vector<1x16x64xf32>
      tpu.vector_store %arg12[%c0_82, %c8_83, %c0_84], %128 {strides = array<i32>} : memref<10x32x64xf32, #tpu.memory_space<vmem>>, vector<1x16x64xf32>,
    } else {
    }
    %c0_i32_10 = arith.constant 0 : i32
    %11 = arith.cmpi eq, %arg1, %c0_i32_10 : i32
    %12 = arith.extui %11 : i1 to i32
    %c0_i32_11 = arith.constant 0 : i32
    %13 = arith.cmpi ne, %12, %c0_i32_11 : i32
    scf.if %13 {
      %c0_77 = arith.constant 0 : index
      %c8_78 = arith.constant 8 : index
      %c0_79 = arith.constant 0 : index
      %114 = vector.load %arg12[%c0_77, %c8_78, %c0_79] : memref<10x32x64xf32, #tpu.memory_space<vmem>>, vector<1x16x64xf32>
      tpu.vector_store %arg12[%c0_77, %c8_78, %c0_79], %7 {strides = array<i32>} : memref<10x32x64xf32, #tpu.memory_space<vmem>>, vector<1x16x64xf32>,
    } else {
    }
    %c1_i32 = arith.constant 1 : i32
    %14 = arith.cmpi slt, %arg1, %c1_i32 : i32
    %15 = arith.extui %14 : i1 to i32
    %c0_i32_12 = arith.constant 0 : i32
    %16 = arith.cmpi ne, %15, %c0_i32_12 : i32
    scf.if %16 {
      %c0_77 = arith.constant 0 : index
      %c0_78 = arith.constant 0 : index
      %c0_79 = arith.constant 0 : index
      %c0_80 = arith.constant 0 : index
      %114 = vector.load %arg4[%c0_77, %c0_78, %c0_79, %c0_80] : memref<1x1x16x64xbf16, #tpu.memory_space<vmem>>, vector<1x1x16x64xbf16>
      %115 = vector.shape_cast %114 : vector<1x1x16x64xbf16> to vector<1x16x64xbf16>
      %116 = arith.extf %115 : vector<1x16x64xbf16> to vector<1x16x64xf32>
      %117 = vector.shape_cast %1 : vector<1x64xf32> to vector<1x1x64xf32>
      %118 = vector.broadcast %117 : vector<1x1x64xf32> to vector<1x16x64xf32>
      %119 = arith.mulf %116, %118 : vector<1x16x64xf32>
      %120 = vector.shape_cast %3 : vector<1x64xf32> to vector<1x1x64xf32>
      %121 = vector.broadcast %120 : vector<1x1x64xf32> to vector<1x16x64xf32>
      %122 = arith.addf %119, %121 : vector<1x16x64xf32>
      %123 = arith.negf %122 : vector<1x16x64xf32>
      %124 = math.exp %123 : vector<1x16x64xf32>
      %cst_81 = arith.constant 1.000000e+00 : f32
      %125 = vector.broadcast %cst_81 : f32 to vector<1x16x64xf32>
      %126 = arith.addf %125, %124 : vector<1x16x64xf32>
      %127 = arith.divf %125, %126 : vector<1x16x64xf32>
      %128 = arith.mulf %122, %127 : vector<1x16x64xf32>
      %c9_82 = arith.constant 9 : index
      %c8_83 = arith.constant 8 : index
      %c0_84 = arith.constant 0 : index
      %129 = vector.load %arg12[%c9_82, %c8_83, %c0_84] : memref<10x32x64xf32, #tpu.memory_space<vmem>>, vector<1x16x64xf32>
      tpu.vector_store %arg12[%c9_82, %c8_83, %c0_84], %128 {strides = array<i32>} : memref<10x32x64xf32, #tpu.memory_space<vmem>>, vector<1x16x64xf32>,
    } else {
    }
    %c1_i32_13 = arith.constant 1 : i32
    %17 = arith.cmpi eq, %arg1, %c1_i32_13 : i32
    %18 = arith.extui %17 : i1 to i32
    %c0_i32_14 = arith.constant 0 : i32
    %19 = arith.cmpi ne, %18, %c0_i32_14 : i32
    scf.if %19 {
      %c9_77 = arith.constant 9 : index
      %c8_78 = arith.constant 8 : index
      %c0_79 = arith.constant 0 : index
      %114 = vector.load %arg12[%c9_77, %c8_78, %c0_79] : memref<10x32x64xf32, #tpu.memory_space<vmem>>, vector<1x16x64xf32>
      tpu.vector_store %arg12[%c9_77, %c8_78, %c0_79], %7 {strides = array<i32>} : memref<10x32x64xf32, #tpu.memory_space<vmem>>, vector<1x16x64xf32>,
    } else {
    }
    %c0_15 = arith.constant 0 : index
    %c0_16 = arith.constant 0 : index
    %c0_17 = arith.constant 0 : index
    %c0_18 = arith.constant 0 : index
    %20 = vector.load %arg2[%c0_15, %c0_16, %c0_17, %c0_18] : memref<1x8x16x64xbf16, #tpu.memory_space<vmem>>, vector<1x8x16x64xbf16>
    %21 = vector.shape_cast %20 : vector<1x8x16x64xbf16> to vector<8x16x64xbf16>
    %22 = arith.extf %21 : vector<8x16x64xbf16> to vector<8x16x64xf32>
    %23 = vector.shape_cast %1 : vector<1x64xf32> to vector<1x1x64xf32>
    %24 = vector.broadcast %23 : vector<1x1x64xf32> to vector<8x16x64xf32>
    %25 = arith.mulf %22, %24 : vector<8x16x64xf32>
    %26 = vector.shape_cast %3 : vector<1x64xf32> to vector<1x1x64xf32>
    %27 = vector.broadcast %26 : vector<1x1x64xf32> to vector<8x16x64xf32>
    %28 = arith.addf %25, %27 : vector<8x16x64xf32>
    %29 = arith.negf %28 : vector<8x16x64xf32>
    %30 = math.exp %29 : vector<8x16x64xf32>
    %cst_19 = arith.constant 1.000000e+00 : f32
    %31 = vector.broadcast %cst_19 : f32 to vector<8x16x64xf32>
    %32 = arith.addf %31, %30 : vector<8x16x64xf32>
    %33 = arith.divf %31, %32 : vector<8x16x64xf32>
    %34 = arith.mulf %28, %33 : vector<8x16x64xf32>
    %c1_20 = arith.constant 1 : index
    %c8 = arith.constant 8 : index
    %c0_21 = arith.constant 0 : index
    %35 = vector.load %arg12[%c1_20, %c8, %c0_21] : memref<10x32x64xf32, #tpu.memory_space<vmem>>, vector<8x16x64xf32>
    tpu.vector_store %arg12[%c1_20, %c8, %c0_21], %34 {strides = array<i32>} : memref<10x32x64xf32, #tpu.memory_space<vmem>>, vector<8x16x64xf32>,
    %c0_22 = arith.constant 0 : index
    %c0_23 = arith.constant 0 : index
    %36 = vector.load %arg7[%c0_22, %c0_23] : memref<1x64xf32, #tpu.memory_space<vmem>>, vector<1x64xf32>
    %c0_24 = arith.constant 0 : index
    %c0_25 = arith.constant 0 : index
    %c0_26 = arith.constant 0 : index
    %c0_27 = arith.constant 0 : index
    %37 = vector.load %arg8[%c0_24, %c0_25, %c0_26, %c0_27] : memref<1x8x16x32xbf16, #tpu.memory_space<vmem>>, vector<1x8x16x32xbf16>
    %38 = vector.shape_cast %37 : vector<1x8x16x32xbf16> to vector<8x16x32xbf16>
    %cst_28 = arith.constant 0.000000e+00 : f32
    %39 = vector.broadcast %cst_28 : f32 to vector<128x64xf32>
    %c0_29 = arith.constant 0 : index
    %c7_30 = arith.constant 7 : index
    %c0_31 = arith.constant 0 : index
    %40 = vector.load %arg12[%c0_29, %c7_30, %c0_31] : memref<10x32x64xf32, #tpu.memory_space<vmem>>, vector<10x16x64xf32>
    %41 = arith.truncf %40 : vector<10x16x64xf32> to vector<10x16x64xbf16>
    %42 = vector.extract_strided_slice %41 {offsets = [0, 0, 0], sizes = [8, 16, 64], strides = [1, 1, 1]} : vector<10x16x64xbf16> to vector<8x16x64xbf16>
    %43 = vector.shape_cast %42 : vector<8x16x64xbf16> to vector<128x64xbf16>
    %c0_32 = arith.constant 0 : index
    %c0_33 = arith.constant 0 : index
    %c0_34 = arith.constant 0 : index
    %44 = vector.load %arg6[%c0_32, %c0_33, %c0_34] : memref<9x64x64xbf16, #tpu.memory_space<vmem>>, vector<1x64x64xbf16>
    %45 = vector.shape_cast %44 : vector<1x64x64xbf16> to vector<64x64xbf16>
    %cst_35 = arith.constant dense<0.000000e+00> : vector<128x64xf32>
    %46 = tpu.matmul %43, %45, %cst_35 {dimension_numbers = #tpu.dot_dimension_numbers<[1], [0], [0], [1], [0, 0, 1, 1], [], []>} : vector<128x64xbf16>, vector<64x64xbf16>, vector<128x64xf32> -> vector<128x64xf32>
    %47 = arith.addf %39, %46 : vector<128x64xf32>
    %48 = vector.extract_strided_slice %41 {offsets = [1, 0, 0], sizes = [8, 16, 64], strides = [1, 1, 1]} : vector<10x16x64xbf16> to vector<8x16x64xbf16>
    %49 = vector.shape_cast %48 : vector<8x16x64xbf16> to vector<128x64xbf16>
    %c3 = arith.constant 3 : index
    %c0_36 = arith.constant 0 : index
    %c0_37 = arith.constant 0 : index
    %50 = vector.load %arg6[%c3, %c0_36, %c0_37] : memref<9x64x64xbf16, #tpu.memory_space<vmem>>, vector<1x64x64xbf16>
    %51 = vector.shape_cast %50 : vector<1x64x64xbf16> to vector<64x64xbf16>
    %cst_38 = arith.constant dense<0.000000e+00> : vector<128x64xf32>
    %52 = tpu.matmul %49, %51, %cst_38 {dimension_numbers = #tpu.dot_dimension_numbers<[1], [0], [0], [1], [0, 0, 1, 1], [], []>} : vector<128x64xbf16>, vector<64x64xbf16>, vector<128x64xf32> -> vector<128x64xf32>
    %53 = arith.addf %47, %52 : vector<128x64xf32>
    %54 = vector.extract_strided_slice %41 {offsets = [2, 0, 0], sizes = [8, 16, 64], strides = [1, 1, 1]} : vector<10x16x64xbf16> to vector<8x16x64xbf16>
    %55 = vector.shape_cast %54 : vector<8x16x64xbf16> to vector<128x64xbf16>
    %c6 = arith.constant 6 : index
    %c0_39 = arith.constant 0 : index
    %c0_40 = arith.constant 0 : index
    %56 = vector.load %arg6[%c6, %c0_39, %c0_40] : memref<9x64x64xbf16, #tpu.memory_space<vmem>>, vector<1x64x64xbf16>
    %57 = vector.shape_cast %56 : vector<1x64x64xbf16> to vector<64x64xbf16>
    %cst_41 = arith.constant dense<0.000000e+00> : vector<128x64xf32>
    %58 = tpu.matmul %55, %57, %cst_41 {dimension_numbers = #tpu.dot_dimension_numbers<[1], [0], [0], [1], [0, 0, 1, 1], [], []>} : vector<128x64xbf16>, vector<64x64xbf16>, vector<128x64xf32> -> vector<128x64xf32>
    %59 = arith.addf %53, %58 : vector<128x64xf32>
    %c0_42 = arith.constant 0 : index
    %c8_43 = arith.constant 8 : index
    %c0_44 = arith.constant 0 : index
    %60 = vector.load %arg12[%c0_42, %c8_43, %c0_44] : memref<10x32x64xf32, #tpu.memory_space<vmem>>, vector<10x16x64xf32>
    %61 = arith.truncf %60 : vector<10x16x64xf32> to vector<10x16x64xbf16>
    %62 = vector.extract_strided_slice %61 {offsets = [0, 0, 0], sizes = [8, 16, 64], strides = [1, 1, 1]} : vector<10x16x64xbf16> to vector<8x16x64xbf16>
    %63 = vector.shape_cast %62 : vector<8x16x64xbf16> to vector<128x64xbf16>
    %c1_45 = arith.constant 1 : index
    %c0_46 = arith.constant 0 : index
    %c0_47 = arith.constant 0 : index
    %64 = vector.load %arg6[%c1_45, %c0_46, %c0_47] : memref<9x64x64xbf16, #tpu.memory_space<vmem>>, vector<1x64x64xbf16>
    %65 = vector.shape_cast %64 : vector<1x64x64xbf16> to vector<64x64xbf16>
    %cst_48 = arith.constant dense<0.000000e+00> : vector<128x64xf32>
    %66 = tpu.matmul %63, %65, %cst_48 {dimension_numbers = #tpu.dot_dimension_numbers<[1], [0], [0], [1], [0, 0, 1, 1], [], []>} : vector<128x64xbf16>, vector<64x64xbf16>, vector<128x64xf32> -> vector<128x64xf32>
    %67 = arith.addf %59, %66 : vector<128x64xf32>
    %68 = vector.extract_strided_slice %61 {offsets = [1, 0, 0], sizes = [8, 16, 64], strides = [1, 1, 1]} : vector<10x16x64xbf16> to vector<8x16x64xbf16>
    %69 = vector.shape_cast %68 : vector<8x16x64xbf16> to vector<128x64xbf16>
    %c4 = arith.constant 4 : index
    %c0_49 = arith.constant 0 : index
    %c0_50 = arith.constant 0 : index
    %70 = vector.load %arg6[%c4, %c0_49, %c0_50] : memref<9x64x64xbf16, #tpu.memory_space<vmem>>, vector<1x64x64xbf16>
    %71 = vector.shape_cast %70 : vector<1x64x64xbf16> to vector<64x64xbf16>
    %cst_51 = arith.constant dense<0.000000e+00> : vector<128x64xf32>
    %72 = tpu.matmul %69, %71, %cst_51 {dimension_numbers = #tpu.dot_dimension_numbers<[1], [0], [0], [1], [0, 0, 1, 1], [], []>} : vector<128x64xbf16>, vector<64x64xbf16>, vector<128x64xf32> -> vector<128x64xf32>
    %73 = arith.addf %67, %72 : vector<128x64xf32>
    %74 = vector.extract_strided_slice %61 {offsets = [2, 0, 0], sizes = [8, 16, 64], strides = [1, 1, 1]} : vector<10x16x64xbf16> to vector<8x16x64xbf16>
    %75 = vector.shape_cast %74 : vector<8x16x64xbf16> to vector<128x64xbf16>
    %c7_52 = arith.constant 7 : index
    %c0_53 = arith.constant 0 : index
    %c0_54 = arith.constant 0 : index
    %76 = vector.load %arg6[%c7_52, %c0_53, %c0_54] : memref<9x64x64xbf16, #tpu.memory_space<vmem>>, vector<1x64x64xbf16>
    %77 = vector.shape_cast %76 : vector<1x64x64xbf16> to vector<64x64xbf16>
    %cst_55 = arith.constant dense<0.000000e+00> : vector<128x64xf32>
    %78 = tpu.matmul %75, %77, %cst_55 {dimension_numbers = #tpu.dot_dimension_numbers<[1], [0], [0], [1], [0, 0, 1, 1], [], []>} : vector<128x64xbf16>, vector<64x64xbf16>, vector<128x64xf32> -> vector<128x64xf32>
    %79 = arith.addf %73, %78 : vector<128x64xf32>
    %c0_56 = arith.constant 0 : index
    %c9 = arith.constant 9 : index
    %c0_57 = arith.constant 0 : index
    %80 = vector.load %arg12[%c0_56, %c9, %c0_57] : memref<10x32x64xf32, #tpu.memory_space<vmem>>, vector<10x16x64xf32>
    %81 = arith.truncf %80 : vector<10x16x64xf32> to vector<10x16x64xbf16>
    %82 = vector.extract_strided_slice %81 {offsets = [0, 0, 0], sizes = [8, 16, 64], strides = [1, 1, 1]} : vector<10x16x64xbf16> to vector<8x16x64xbf16>
    %83 = vector.shape_cast %82 : vector<8x16x64xbf16> to vector<128x64xbf16>
    %c2 = arith.constant 2 : index
    %c0_58 = arith.constant 0 : index
    %c0_59 = arith.constant 0 : index
    %84 = vector.load %arg6[%c2, %c0_58, %c0_59] : memref<9x64x64xbf16, #tpu.memory_space<vmem>>, vector<1x64x64xbf16>
    %85 = vector.shape_cast %84 : vector<1x64x64xbf16> to vector<64x64xbf16>
    %cst_60 = arith.constant dense<0.000000e+00> : vector<128x64xf32>
    %86 = tpu.matmul %83, %85, %cst_60 {dimension_numbers = #tpu.dot_dimension_numbers<[1], [0], [0], [1], [0, 0, 1, 1], [], []>} : vector<128x64xbf16>, vector<64x64xbf16>, vector<128x64xf32> -> vector<128x64xf32>
    %87 = arith.addf %79, %86 : vector<128x64xf32>
    %88 = vector.extract_strided_slice %81 {offsets = [1, 0, 0], sizes = [8, 16, 64], strides = [1, 1, 1]} : vector<10x16x64xbf16> to vector<8x16x64xbf16>
    %89 = vector.shape_cast %88 : vector<8x16x64xbf16> to vector<128x64xbf16>
    %c5 = arith.constant 5 : index
    %c0_61 = arith.constant 0 : index
    %c0_62 = arith.constant 0 : index
    %90 = vector.load %arg6[%c5, %c0_61, %c0_62] : memref<9x64x64xbf16, #tpu.memory_space<vmem>>, vector<1x64x64xbf16>
    %91 = vector.shape_cast %90 : vector<1x64x64xbf16> to vector<64x64xbf16>
    %cst_63 = arith.constant dense<0.000000e+00> : vector<128x64xf32>
    %92 = tpu.matmul %89, %91, %cst_63 {dimension_numbers = #tpu.dot_dimension_numbers<[1], [0], [0], [1], [0, 0, 1, 1], [], []>} : vector<128x64xbf16>, vector<64x64xbf16>, vector<128x64xf32> -> vector<128x64xf32>
    %93 = arith.addf %87, %92 : vector<128x64xf32>
    %94 = vector.extract_strided_slice %81 {offsets = [2, 0, 0], sizes = [8, 16, 64], strides = [1, 1, 1]} : vector<10x16x64xbf16> to vector<8x16x64xbf16>
    %95 = vector.shape_cast %94 : vector<8x16x64xbf16> to vector<128x64xbf16>
    %c8_64 = arith.constant 8 : index
    %c0_65 = arith.constant 0 : index
    %c0_66 = arith.constant 0 : index
    %96 = vector.load %arg6[%c8_64, %c0_65, %c0_66] : memref<9x64x64xbf16, #tpu.memory_space<vmem>>, vector<1x64x64xbf16>
    %97 = vector.shape_cast %96 : vector<1x64x64xbf16> to vector<64x64xbf16>
    %cst_67 = arith.constant dense<0.000000e+00> : vector<128x64xf32>
    %98 = tpu.matmul %95, %97, %cst_67 {dimension_numbers = #tpu.dot_dimension_numbers<[1], [0], [0], [1], [0, 0, 1, 1], [], []>} : vector<128x64xbf16>, vector<64x64xbf16>, vector<128x64xf32> -> vector<128x64xf32>
    %99 = arith.addf %93, %98 : vector<128x64xf32>
    %100 = vector.broadcast %36 : vector<1x64xf32> to vector<128x64xf32>
    %101 = arith.addf %99, %100 : vector<128x64xf32>
    %102 = vector.shape_cast %101 : vector<128x64xf32> to vector<8x16x64xf32>
    %103 = vector.shape_cast %38 : vector<8x16x32xbf16> to vector<128x32xbf16>
    %c0_68 = arith.constant 0 : index
    %c0_69 = arith.constant 0 : index
    %104 = vector.load %arg9[%c0_68, %c0_69] : memref<32x64xbf16, #tpu.memory_space<vmem>>, vector<32x64xbf16>
    %cst_70 = arith.constant dense<0.000000e+00> : vector<128x64xf32>
    %105 = tpu.matmul %103, %104, %cst_70 {dimension_numbers = #tpu.dot_dimension_numbers<[1], [0], [0], [1], [0, 0, 1, 1], [], []>} : vector<128x32xbf16>, vector<32x64xbf16>, vector<128x64xf32> -> vector<128x64xf32>
    %c0_71 = arith.constant 0 : index
    %c0_72 = arith.constant 0 : index
    %106 = vector.load %arg10[%c0_71, %c0_72] : memref<1x64xf32, #tpu.memory_space<vmem>>, vector<1x64xf32>
    %107 = vector.broadcast %106 : vector<1x64xf32> to vector<128x64xf32>
    %108 = arith.addf %105, %107 : vector<128x64xf32>
    %109 = vector.shape_cast %108 : vector<128x64xf32> to vector<8x16x64xf32>
    %110 = arith.addf %102, %109 : vector<8x16x64xf32>
    %c0_73 = arith.constant 0 : index
    %c0_74 = arith.constant 0 : index
    %c0_75 = arith.constant 0 : index
    %c0_76 = arith.constant 0 : index
    %111 = vector.load %arg11[%c0_73, %c0_74, %c0_75, %c0_76] : memref<1x8x16x64xf32, #tpu.memory_space<vmem>>, vector<1x8x16x64xf32>
    %112 = vector.shape_cast %111 : vector<1x8x16x64xf32> to vector<8x16x64xf32>
    %113 = vector.shape_cast %110 : vector<8x16x64xf32> to vector<1x8x16x64xf32>
    tpu.vector_store %arg11[%c0_73, %c0_74, %c0_75, %c0_76], %113 {strides = array<i32>} : memref<1x8x16x64xf32, #tpu.memory_space<vmem>>, vector<1x8x16x64xf32>,
    return
  }
  func.func @transform_0(%arg0: i32, %arg1: i32) -> (i32, i32, i32, i32) {
    %c0_i32 = arith.constant 0 : i32
    %c0_i32_0 = arith.constant 0 : i32
    %c0_i32_1 = arith.constant 0 : i32
    return %arg0, %arg1, %c0_i32, %c0_i32_0 : i32, i32, i32, i32
  }
  func.func @transform_1(%arg0: i32, %arg1: i32) -> (i32, i32, i32, i32) {
    %c8_i32 = arith.constant 8 : i32
    %0 = arith.muli %arg1, %c8_i32 : i32
    %c1_i32 = arith.constant 1 : i32
    %1 = arith.subi %0, %c1_i32 : i32
    %c0_i32 = arith.constant 0 : i32
    %2 = arith.maxsi %1, %c0_i32 : i32
    %c0_i32_0 = arith.constant 0 : i32
    %c0_i32_1 = arith.constant 0 : i32
    %c0_i32_2 = arith.constant 0 : i32
    return %arg0, %2, %c0_i32_0, %c0_i32_1 : i32, i32, i32, i32
  }
  func.func @transform_2(%arg0: i32, %arg1: i32) -> (i32, i32, i32, i32) {
    %c1_i32 = arith.constant 1 : i32
    %0 = arith.addi %arg1, %c1_i32 : i32
    %c8_i32 = arith.constant 8 : i32
    %1 = arith.muli %0, %c8_i32 : i32
    %c15_i32 = arith.constant 15 : i32
    %2 = arith.minsi %1, %c15_i32 : i32
    %c0_i32 = arith.constant 0 : i32
    %c0_i32_0 = arith.constant 0 : i32
    %c0_i32_1 = arith.constant 0 : i32
    return %arg0, %2, %c0_i32, %c0_i32_0 : i32, i32, i32, i32
  }
  func.func @transform_3(%arg0: i32, %arg1: i32) -> (i32, i32, i32) {
    %c0_i32 = arith.constant 0 : i32
    %c0_i32_0 = arith.constant 0 : i32
    %c0_i32_1 = arith.constant 0 : i32
    return %arg0, %c0_i32, %c0_i32_0 : i32, i32, i32
  }
  func.func @transform_4(%arg0: i32, %arg1: i32) -> (i32, i32, i32) {
    %c0_i32 = arith.constant 0 : i32
    %c0_i32_0 = arith.constant 0 : i32
    %c0_i32_1 = arith.constant 0 : i32
    %c0_i32_2 = arith.constant 0 : i32
    return %c0_i32, %c0_i32_0, %c0_i32_1 : i32, i32, i32
  }
  func.func @transform_5(%arg0: i32, %arg1: i32) -> (i32, i32) {
    %c0_i32 = arith.constant 0 : i32
    %c0_i32_0 = arith.constant 0 : i32
    %c0_i32_1 = arith.constant 0 : i32
    return %c0_i32, %c0_i32_0 : i32, i32
  }
  func.func @transform_6(%arg0: i32, %arg1: i32) -> (i32, i32, i32, i32) {
    %c0_i32 = arith.constant 0 : i32
    %c0_i32_0 = arith.constant 0 : i32
    %c0_i32_1 = arith.constant 0 : i32
    return %arg0, %arg1, %c0_i32, %c0_i32_0 : i32, i32, i32, i32
  }
  func.func @transform_7(%arg0: i32, %arg1: i32) -> (i32, i32) {
    %c0_i32 = arith.constant 0 : i32
    %c0_i32_0 = arith.constant 0 : i32
    %c0_i32_1 = arith.constant 0 : i32
    return %c0_i32, %c0_i32_0 : i32, i32
  }
  func.func @transform_8(%arg0: i32, %arg1: i32) -> (i32, i32) {
    %c0_i32 = arith.constant 0 : i32
    %c0_i32_0 = arith.constant 0 : i32
    %c0_i32_1 = arith.constant 0 : i32
    return %c0_i32, %c0_i32_0 : i32, i32
  }
  func.func @transform_9(%arg0: i32, %arg1: i32) -> (i32, i32, i32, i32) {
    %c0_i32 = arith.constant 0 : i32
    %c0_i32_0 = arith.constant 0 : i32
    %c0_i32_1 = arith.constant 0 : i32
    return %arg0, %arg1, %c0_i32, %c0_i32_0 : i32, i32, i32, i32
  }
}

</mosaic_0001>

<llo_original>
// kernel: squeeze.9
$region0: #{squeeze.9}
  %s0 = inlined_call_operand.vmem [shape: f32[2,64], index: 0, kind: input, shape index: {}]
  %s1 = inlined_call_operand.vmem [shape: f32[2,32,2], index: 1, kind: output, shape index: {}]
  $region1: #{squeeze.9} parent=0
    #allocation0 [shape = 'u8[4096]{0}', space=vmem, size = 0x1000, scoped, tag = 'scoped mem for input reshape']
    %s3 = sshllo.u32 0, 2
    %v4 = vld [vmem:[%s0] sm:%s3]
    %5 = vst [vmem:[#allocation0] sm:%s3] %v4
    %v6 = vld [vmem:[#allocation0] sm:$0x3]
    %vm7 = vcmask 15360
    %8 = vst.msk [vmem:[%s1] sm:$0x1] %vm7, %v6
    %s9 = scalar_lea.vmem %s1, 31
    %10 = vst.msk [vmem:[%s9] sm:$0x2] %vm7, %v6
    %v11 = vld [vmem:[#allocation0] sm:$0x3]
    %12 = vrot.lane.b32.xlu0 %v11, 126
    %v13 = vpop.permute.xlu0 %12
    %vm14 = vcmask 15360
    %s15 = scalar_lea.vmem %s1, 1
    %16 = vst.msk [vmem:[%s15] sm:$0x1] %vm14, %v13
    %s17 = scalar_lea.vmem %s1, 32
    %18 = vst.msk [vmem:[%s17] sm:$0x2] %vm14, %v13
    %v19 = vld [vmem:[#allocation0] sm:$0x3]
    %20 = vrot.lane.b32.xlu0 %v19, 124
    %v21 = vpop.permute.xlu0 %20
    %vm22 = vcmask 15360
    %s23 = scalar_lea.vmem %s1, 2
    %24 = vst.msk [vmem:[%s23] sm:$0x1] %vm22, %v21
    %s25 = scalar_lea.vmem %s1, 33
    %26 = vst.msk [vmem:[%s25] sm:$0x2] %vm22, %v21
    %v27 = vld [vmem:[#allocation0] sm:$0x3]
    %28 = vrot.lane.b32.xlu0 %v27, 122
    %v29 = vpop.permute.xlu0 %28
    %vm30 = vcmask 15360
    %s31 = scalar_lea.vmem %s1, 3
    %32 = vst.msk [vmem:[%s31] sm:$0x1] %vm30, %v29
    %s33 = scalar_lea.vmem %s1, 34
    %34 = vst.msk [vmem:[%s33] sm:$0x2] %vm30, %v29
    %v35 = vld [vmem:[#allocation0] sm:$0x3]
    %36 = vrot.lane.b32.xlu0 %v35, 120
    %v37 = vpop.permute.xlu0 %36
    %vm38 = vcmask 15360
    %s39 = scalar_lea.vmem %s1, 4
    %40 = vst.msk [vmem:[%s39] sm:$0x1] %vm38, %v37
    %s41 = scalar_lea.vmem %s1, 35
    %42 = vst.msk [vmem:[%s41] sm:$0x2] %vm38, %v37
    %v43 = vld [vmem:[#allocation0] sm:$0x3]
    %44 = vrot.lane.b32.xlu0 %v43, 118
    %v45 = vpop.permute.xlu0 %44
    %vm46 = vcmask 15360
    %s47 = scalar_lea.vmem %s1, 5
    %48 = vst.msk [vmem:[%s47] sm:$0x1] %vm46, %v45
    %s49 = scalar_lea.vmem %s1, 36
    %50 = vst.msk [vmem:[%s49] sm:$0x2] %vm46, %v45
    %v51 = vld [vmem:[#allocation0] sm:$0x3]
    %52 = vrot.lane.b32.xlu0 %v51, 116
    %v53 = vpop.permute.xlu0 %52
    %vm54 = vcmask 15360
    %s55 = scalar_lea.vmem %s1, 6
    %56 = vst.msk [vmem:[%s55] sm:$0x1] %vm54, %v53
    %s57 = scalar_lea.vmem %s1, 37
    %58 = vst.msk [vmem:[%s57] sm:$0x2] %vm54, %v53
    %v59 = vld [vmem:[#allocation0] sm:$0x3]
    %60 = vrot.lane.b32.xlu0 %v59, 114
    %v61 = vpop.permute.xlu0 %60
    %vm62 = vcmask 15360
    %s63 = scalar_lea.vmem %s1, 7
    %64 = vst.msk [vmem:[%s63] sm:$0x1] %vm62, %v61
    %s65 = scalar_lea.vmem %s1, 38
    %66 = vst.msk [vmem:[%s65] sm:$0x2] %vm62, %v61
    %v67 = vld [vmem:[#allocation0] sm:$0x3]
    %68 = vrot.lane.b32.xlu0 %v67, 112
    %v69 = vpop.permute.xlu0 %68
    %vm70 = vcmask 15360
    %s71 = scalar_lea.vmem %s1, 8
    %72 = vst.msk [vmem:[%s71] sm:$0x1] %vm70, %v69
    %s73 = scalar_lea.vmem %s1, 39
    %74 = vst.msk [vmem:[%s73] sm:$0x2] %vm70, %v69
    %v75 = vld [vmem:[#allocation0] sm:$0x3]
    %76 = vrot.lane.b32.xlu0 %v75, 110
    %v77 = vpop.permute.xlu0 %76
    %vm78 = vcmask 15360
    %s79 = scalar_lea.vmem %s1, 9
    %80 = vst.msk [vmem:[%s79] sm:$0x1] %vm78, %v77
    %s81 = scalar_lea.vmem %s1, 40
    %82 = vst.msk [vmem:[%s81] sm:$0x2] %vm78, %v77
    %v83 = vld [vmem:[#allocation0] sm:$0x3]
    %84 = vrot.lane.b32.xlu0 %v83, 108
    %v85 = vpop.permute.xlu0 %84
    %vm86 = vcmask 15360
    %s87 = scalar_lea.vmem %s1, 10
    %88 = vst.msk [vmem:[%s87] sm:$0x1] %vm86, %v85
    %s89 = scalar_lea.vmem %s1, 41
    %90 = vst.msk [vmem:[%s89] sm:$0x2] %vm86, %v85
    %v91 = vld [vmem:[#allocation0] sm:$0x3]
    %92 = vrot.lane.b32.xlu0 %v91, 106
    %v93 = vpop.permute.xlu0 %92
    %vm94 = vcmask 15360
    %s95 = scalar_lea.vmem %s1, 11
    %96 = vst.msk [vmem:[%s95] sm:$0x1] %vm94, %v93
    %s97 = scalar_lea.vmem %s1, 42
    %98 = vst.msk [vmem:[%s97] sm:$0x2] %vm94, %v93
    %v99 = vld [vmem:[#allocation0] sm:$0x3]
    %100 = vrot.lane.b32.xlu0 %v99, 104
    %v101 = vpop.permute.xlu0 %100
    %vm102 = vcmask 15360
    %s103 = scalar_lea.vmem %s1, 12
    %104 = vst.msk [vmem:[%s103] sm:$0x1] %vm102, %v101
    %s105 = scalar_lea.vmem %s1, 43
    %106 = vst.msk [vmem:[%s105] sm:$0x2] %vm102, %v101
    %v107 = vld [vmem:[#allocation0] sm:$0x3]
    %108 = vrot.lane.b32.xlu0 %v107, 102
    %v109 = vpop.permute.xlu0 %108
    %vm110 = vcmask 15360
    %s111 = scalar_lea.vmem %s1, 13
    %112 = vst.msk [vmem:[%s111] sm:$0x1] %vm110, %v109
    %s113 = scalar_lea.vmem %s1, 44
    %114 = vst.msk [vmem:[%s113] sm:$0x2] %vm110, %v109
    %v115 = vld [vmem:[#allocation0] sm:$0x3]
    %116 = vrot.lane.b32.xlu0 %v115, 100
    %v117 = vpop.permute.xlu0 %116
    %vm118 = vcmask 15360
    %s119 = scalar_lea.vmem %s1, 14
    %120 = vst.msk [vmem:[%s119] sm:$0x1] %vm118, %v117
    %s121 = scalar_lea.vmem %s1, 45
    %122 = vst.msk [vmem:[%s121] sm:$0x2] %vm118, %v117
    %v123 = vld [vmem:[#allocation0] sm:$0x3]
    %124 = vrot.lane.b32.xlu0 %v123, 98
    %v125 = vpop.permute.xlu0 %124
    %vm126 = vcmask 15360
    %s127 = scalar_lea.vmem %s1, 15
    %128 = vst.msk [vmem:[%s127] sm:$0x1] %vm126, %v125
    %s129 = scalar_lea.vmem %s1, 46
    %130 = vst.msk [vmem:[%s129] sm:$0x2] %vm126, %v125
    %v131 = vld [vmem:[#allocation0] sm:$0x3]
    %132 = vrot.lane.b32.xlu0 %v131, 96
    %v133 = vpop.permute.xlu0 %132
    %vm134 = vcmask 15360
    %s135 = scalar_lea.vmem %s1, 16
    %136 = vst.msk [vmem:[%s135] sm:$0x1] %vm134, %v133
    %s137 = scalar_lea.vmem %s1, 47
    %138 = vst.msk [vmem:[%s137] sm:$0x2] %vm134, %v133
    %v139 = vld [vmem:[#allocation0] sm:$0x3]
    %140 = vrot.lane.b32.xlu0 %v139, 94
    %v141 = vpop.permute.xlu0 %140
    %vm142 = vcmask 15360
    %s143 = scalar_lea.vmem %s1, 17
    %144 = vst.msk [vmem:[%s143] sm:$0x1] %vm142, %v141
    %s145 = scalar_lea.vmem %s1, 48
    %146 = vst.msk [vmem:[%s145] sm:$0x2] %vm142, %v141
    %v147 = vld [vmem:[#allocation0] sm:$0x3]
    %148 = vrot.lane.b32.xlu0 %v147, 92
    %v149 = vpop.permute.xlu0 %148
    %vm150 = vcmask 15360
    %s151 = scalar_lea.vmem %s1, 18
    %152 = vst.msk [vmem:[%s151] sm:$0x1] %vm150, %v149
    %s153 = scalar_lea.vmem %s1, 49
    %154 = vst.msk [vmem:[%s153] sm:$0x2] %vm150, %v149
    %v155 = vld [vmem:[#allocation0] sm:$0x3]
    %156 = vrot.lane.b32.xlu0 %v155, 90
    %v157 = vpop.permute.xlu0 %156
    %vm158 = vcmask 15360
    %s159 = scalar_lea.vmem %s1, 19
    %160 = vst.msk [vmem:[%s159] sm:$0x1] %vm158, %v157
    %s161 = scalar_lea.vmem %s1, 50
    %162 = vst.msk [vmem:[%s161] sm:$0x2] %vm158, %v157
    %v163 = vld [vmem:[#allocation0] sm:$0x3]
    %164 = vrot.lane.b32.xlu0 %v163, 88
    %v165 = vpop.permute.xlu0 %164
    %vm166 = vcmask 15360
    %s167 = scalar_lea.vmem %s1, 20
    %168 = vst.msk [vmem:[%s167] sm:$0x1] %vm166, %v165
    %s169 = scalar_lea.vmem %s1, 51
    %170 = vst.msk [vmem:[%s169] sm:$0x2] %vm166, %v165
    %v171 = vld [vmem:[#allocation0] sm:$0x3]
    %172 = vrot.lane.b32.xlu0 %v171, 86
    %v173 = vpop.permute.xlu0 %172
    %vm174 = vcmask 15360
    %s175 = scalar_lea.vmem %s1, 21
    %176 = vst.msk [vmem:[%s175] sm:$0x1] %vm174, %v173
    %s177 = scalar_lea.vmem %s1, 52
    %178 = vst.msk [vmem:[%s177] sm:$0x2] %vm174, %v173
    %v179 = vld [vmem:[#allocation0] sm:$0x3]
    %180 = vrot.lane.b32.xlu0 %v179, 84
    %v181 = vpop.permute.xlu0 %180
    %vm182 = vcmask 15360
    %s183 = scalar_lea.vmem %s1, 22
    %184 = vst.msk [vmem:[%s183] sm:$0x1] %vm182, %v181
    %s185 = scalar_lea.vmem %s1, 53
    %186 = vst.msk [vmem:[%s185] sm:$0x2] %vm182, %v181
    %v187 = vld [vmem:[#allocation0] sm:$0x3]
    %188 = vrot.lane.b32.xlu0 %v187, 82
    %v189 = vpop.permute.xlu0 %188
    %vm190 = vcmask 15360
    %s191 = scalar_lea.vmem %s1, 23
    %192 = vst.msk [vmem:[%s191] sm:$0x1] %vm190, %v189
    %s193 = scalar_lea.vmem %s1, 54
    %194 = vst.msk [vmem:[%s193] sm:$0x2] %vm190, %v189
    %v195 = vld [vmem:[#allocation0] sm:$0x3]
    %196 = vrot.lane.b32.xlu0 %v195, 80
    %v197 = vpop.permute.xlu0 %196
    %vm198 = vcmask 15360
    %s199 = scalar_lea.vmem %s1, 24
    %200 = vst.msk [vmem:[%s199] sm:$0x1] %vm198, %v197
    %s201 = scalar_lea.vmem %s1, 55
    %202 = vst.msk [vmem:[%s201] sm:$0x2] %vm198, %v197
    %v203 = vld [vmem:[#allocation0] sm:$0x3]
    %204 = vrot.lane.b32.xlu0 %v203, 78
    %v205 = vpop.permute.xlu0 %204
    %vm206 = vcmask 15360
    %s207 = scalar_lea.vmem %s1, 25
    %208 = vst.msk [vmem:[%s207] sm:$0x1] %vm206, %v205
    %s209 = scalar_lea.vmem %s1, 56
    %210 = vst.msk [vmem:[%s209] sm:$0x2] %vm206, %v205
    %v211 = vld [vmem:[#allocation0] sm:$0x3]
    %212 = vrot.lane.b32.xlu0 %v211, 76
    %v213 = vpop.permute.xlu0 %212
    %vm214 = vcmask 15360
    %s215 = scalar_lea.vmem %s1, 26
    %216 = vst.msk [vmem:[%s215] sm:$0x1] %vm214, %v213
    %s217 = scalar_lea.vmem %s1, 57
    %218 = vst.msk [vmem:[%s217] sm:$0x2] %vm214, %v213
    %v219 = vld [vmem:[#allocation0] sm:$0x3]
    %220 = vrot.lane.b32.xlu0 %v219, 74
    %v221 = vpop.permute.xlu0 %220
    %vm222 = vcmask 15360
    %s223 = scalar_lea.vmem %s1, 27
    %224 = vst.msk [vmem:[%s223] sm:$0x1] %vm222, %v221
    %s225 = scalar_lea.vmem %s1, 58
    %226 = vst.msk [vmem:[%s225] sm:$0x2] %vm222, %v221
    %v227 = vld [vmem:[#allocation0] sm:$0x3]
    %228 = vrot.lane.b32.xlu0 %v227, 72
    %v229 = vpop.permute.xlu0 %228
    %vm230 = vcmask 15360
    %s231 = scalar_lea.vmem %s1, 28
    %232 = vst.msk [vmem:[%s231] sm:$0x1] %vm230, %v229
    %s233 = scalar_lea.vmem %s1, 59
    %234 = vst.msk [vmem:[%s233] sm:$0x2] %vm230, %v229
    %v235 = vld [vmem:[#allocation0] sm:$0x3]
    %236 = vrot.lane.b32.xlu0 %v235, 70
    %v237 = vpop.permute.xlu0 %236
    %vm238 = vcmask 15360
    %s239 = scalar_lea.vmem %s1, 29
    %240 = vst.msk [vmem:[%s239] sm:$0x1] %vm238, %v237
    %s241 = scalar_lea.vmem %s1, 60
    %242 = vst.msk [vmem:[%s241] sm:$0x2] %vm238, %v237
    %v243 = vld [vmem:[#allocation0] sm:$0x3]
    %244 = vrot.lane.b32.xlu0 %v243, 68
    %v245 = vpop.permute.xlu0 %244
    %vm246 = vcmask 15360
    %s247 = scalar_lea.vmem %s1, 30
    %248 = vst.msk [vmem:[%s247] sm:$0x1] %vm246, %v245
    %s249 = scalar_lea.vmem %s1, 61
    %250 = vst.msk [vmem:[%s249] sm:$0x2] %vm246, %v245
    %v251 = vld [vmem:[#allocation0] sm:$0x3]
    %252 = vrot.lane.b32.xlu0 %v251, 66
    %v253 = vpop.permute.xlu0 %252
    %vm254 = vcmask 15360
    %s255 = scalar_lea.vmem %s1, 31
    %256 = vst.msk [vmem:[%s255] sm:$0x1] %vm254, %v253
    %s257 = scalar_lea.vmem %s1, 62
    %258 = vst.msk [vmem:[%s257] sm:$0x2] %vm254, %v253

// kernel: resnet_block_forward.4
$region0: #{resnet_block_forward.4}
  #allocation0 [shape = 'u32[]', space=smem, size = 0x4, offset = 0x4, fixed_abs, tag = 'smem constant byte address 0x4 - core index']
  #allocation1 [shape = 'u32[144,128]{1,0:T(1,128)}', space=vmem, size = 0x12000, scoped, tag = 'internal scratch']
  #allocation2 [shape = 'f32[2,32]{1,0:T(2,128)}', space=vmem, size = 0x400, scoped, tag = 'scratch operand']
  %s0 = inlined_call_operand.vmem [shape: bf16[2,16,16,32], index: 0, kind: input, shape index: {}]
  %s1 = inlined_call_operand.vmem [shape: f32[2,2,32], index: 1, kind: output, shape index: {}]
  %s2 = sld [smem:[#allocation0]]
  $region45: #{resnet_block_forward.4} parent=0
    _
  %s4 = ssub.s32 1, %s2
  %s5 = scalar_select 0, %s4, %s2
  loop: start=0, step=1, limit=6
  $region2: #{resnet_block_forward.4} parent=0 // loop_pre_header
    _
  $region3: #{resnet_block_forward.4} parent=0 // loop_header
    %s7 = sphi 0, %s11
    %p8 = scmp.ge.s32.totalorder %s7, 6
    %s14 = sphi 0, %s26
    %s15 = sphi 0, %s22
    %s16 = sphi 0, %s14
    %s17 = sphi 0, %s15
    %s18 = sphi 0, %s16
    %s19 = sphi 0, %s17
    %s31 = sphi 0, %s33
    %s34 = sphi 0, %s31
    %s35 = sphi 0, %s34
    %s51 = sphi 0, %s35
    %s57 = sphi 0, %s59
    %s60 = sphi 0, %s57
    %s61 = sphi 0, %s60
    %s77 = sphi 0, %s61
  $region4: #{resnet_block_forward.4} parent=0 // loop_header_branch
    %10 = sbr.rel (%p8) target = $region8
  $region5: #{resnet_block_forward.4} parent=0 // loop_body
    %s12 = ssub.s32 %s7, 1
    %s13 = ssub.s32 %s7, 2
    %s20 = sadd.s32 1, %s15
    %p21 = scmp.ge.s32.totalorder %s20, 2
    %s22 = scalar_select %p21, 0, %s20
    %s23 = sadd.s32 1, %s14
    %s24 = scalar_select %p21, %s23, %s14
    %p25 = scmp.ge.s32.totalorder %s24, 2
    %s26 = scalar_select %p25, 0, %s24
    %s27 = ssub.s32 %s14, %s26
    %s28 = ssub.s32 %s15, %s22
    %s29 = sor.u32 %s27, %s28
    %p30 = scmp.eq.s32.totalorder %s29, 0
    %s32 = sadd.s32 %s31, 1
    %s33 = scalar_select %p30, %s31, %s32
    %p36 = pneg %p30
    %p37 = scmp.eq.s32.totalorder %s7, 3
    %p38 = por %p36, %p37
    %p39 = scmp.ne.s32.totalorder %s31, %s34
    %p40 = scmp.eq.s32.totalorder %s7, 0
    %p41 = por %p39, %p40
    %p42 = scmp.ne.s32.totalorder %s31, %s34
    %p43 = scmp.eq.s32.totalorder %s12, 3
    %p44 = por %p42, %p43
    %p45 = scmp.ne.s32.totalorder %s34, %s35
    %p46 = scmp.eq.s32.totalorder %s12, 0
    %p47 = por %p45, %p46
    %p48 = scmp.ne.s32.totalorder %s34, %s35
    %p49 = scmp.eq.s32.totalorder %s13, 3
    %p50 = por %p48, %p49
    %p52 = scmp.ne.s32.totalorder %s35, %s51
    %p53 = scmp.eq.s32.totalorder %s13, 0
    %p54 = por %p52, %p53
    %s55 = ssub.s32 %s14, %s26
    %p56 = scmp.eq.s32.totalorder %s55, 0
    %s58 = sadd.s32 %s57, 1
    %s59 = scalar_select %p56, %s57, %s58
    %p62 = pneg %p56
    %p63 = scmp.eq.s32.totalorder %s7, 3
    %p64 = por %p62, %p63
    %p65 = scmp.ne.s32.totalorder %s57, %s60
    %p66 = scmp.eq.s32.totalorder %s7, 0
    %p67 = por %p65, %p66
    %p68 = scmp.ne.s32.totalorder %s57, %s60
    %p69 = scmp.eq.s32.totalorder %s12, 3
    %p70 = por %p68, %p69
    %p71 = scmp.ne.s32.totalorder %s60, %s61
    %p72 = scmp.eq.s32.totalorder %s12, 0
    %p73 = por %p71, %p72
    %p74 = scmp.ne.s32.totalorder %s60, %s61
    %p75 = scmp.eq.s32.totalorder %s13, 3
    %p76 = por %p74, %p75
    %p78 = scmp.ne.s32.totalorder %s61, %s77
    %p79 = scmp.eq.s32.totalorder %s13, 0
    %p80 = por %p78, %p79
    %p81 = scmp.le.s32.totalorder 1, %s7
    %p82 = scmp.lt.s32.totalorder %s7, 5
    %p83 = pnand %p81, %p82
    %p84 = pneg %p83
    // Predicated region
    $region9: #{resnet_block_forward.4} parent=5 // pred_check
      _
    $region10: #{resnet_block_forward.4} parent=5 // pred_check_branch
      %86 = sbr.rel (%p83) target = $region12
    $region11: #{resnet_block_forward.4} parent=5 // pred_region
      %s87 = ssub.s32 %s7, 1
    $region12: #{resnet_block_forward.4} parent=5 // pred_fallthru
      _
    %p88 = scmp.lt.s32.totalorder %s7, 4
    // Predicated region
    $region13: #{resnet_block_forward.4} parent=5 // pred_check
      %p89 = pneg %p88
    $region14: #{resnet_block_forward.4} parent=5 // pred_check_branch
      %91 = sbr.rel (%p89) target = $region16
    $region15: #{resnet_block_forward.4} parent=5 // pred_region
      // Predicated region
      $region17: #{resnet_block_forward.4} parent=15 // pred_check
        %p92 = pneg %p41
      $region18: #{resnet_block_forward.4} parent=15 // pred_check_branch
        %94 = sbr.rel (%p92) target = $region20
      $region19: #{resnet_block_forward.4} parent=15 // pred_region
        %s95 = smul.u32 8, %s15
        %p96 = scmp.lt.s32.totalorder %s14, 1
        %s97 = scalar_select %p96, %s14, 1
        %p98 = scmp.lt.s32.totalorder %s95, 15
        %s99 = scalar_select %p98, %s95, 15
        %s100 = smul.addr %s99, 2
        %s101 = smul.addr %s97, 32
        %s102 = sadd.s32 %s100, %s101
        %s103 = smul.addr %s102, 4
        %s104 = scalar_lea.vmem %s0, %s103
        %s105 = smul.u32 8, %s15
      $region20: #{resnet_block_forward.4} parent=15 // pred_fallthru
        _
    $region16: #{resnet_block_forward.4} parent=5 // pred_fallthru
      _
    %p106 = scmp.le.s32.totalorder 1, %s7
    %p107 = scmp.lt.s32.totalorder %s7, 5
    %p108 = pnand %p106, %p107
    %p109 = pneg %p108
    // Predicated region
    $region21: #{resnet_block_forward.4} parent=5 // pred_check
      _
    $region22: #{resnet_block_forward.4} parent=5 // pred_check_branch
      %111 = sbr.rel (%p108) target = $region24
    $region23: #{resnet_block_forward.4} parent=5 // pred_region
      %s112 = ssub.s32 %s7, 1
      %s113 = smul.u32 8, %s17
      %p114 = scmp.lt.s32.totalorder %s16, 1
      %s115 = scalar_select %p114, %s16, 1
      %p116 = scmp.lt.s32.totalorder %s113, 15
      %s117 = scalar_select %p116, %s113, 15
      %s118 = smul.addr %s117, 2
      %s119 = smul.addr %s115, 32
      %s120 = sadd.s32 %s118, %s119
      %s121 = smul.addr %s120, 4
      %s122 = scalar_lea.vmem %s0, %s121
      %p123 = pneg %p47
      %p124 = pneg %p44
      %p125 = pneg %p73
      %p126 = pneg %p70
      %p127 = scmp.lt.s32.totalorder %s16, 1
      %s128 = scalar_select %p127, %s16, 1
      %s129 = smul.addr %s128, 2
      %s130 = scalar_lea.vmem %s1, %s129
      %s131 = smul.u32 8, %s17
      %p132 = scmp.lt.s32.totalorder %s16, 1
      %s133 = scalar_select %p132, %s16, 1
      %p134 = scmp.lt.s32.totalorder %s131, 15
      %s135 = scalar_select %p134, %s131, 15
      %s136 = smul.addr %s135, 2
      %s137 = smul.addr %s133, 32
      %s138 = sadd.s32 %s136, %s137
      %s139 = smul.addr %s138, 4
      %s140 = scalar_lea.vmem %s0, %s139
      %s141 = smul.u32 8, %s17
      %p142 = scmp.lt.s32.totalorder %s16, 1
      %s143 = scalar_select %p142, %s16, 1
      %s144 = smul.addr %s143, 2
      %s145 = scalar_lea.vmem %s1, %s144
      %p146 = scmp.eq.s32.totalorder %s17, 0
      // Predicated region
      $region25: #{resnet_block_forward.4} parent=23 // pred_check
        %p147 = pneg %p146
      $region26: #{resnet_block_forward.4} parent=23 // pred_check_branch
        %149 = sbr.rel (%p147) target = $region28
      $region27: #{resnet_block_forward.4} parent=23 // pred_region
        %vm150 = vcmask 254976
        %151 = vst.msk [vmem:[#allocation2] sm:$0x3] %vm150, 0.0
      $region28: #{resnet_block_forward.4} parent=23 // pred_fallthru
        _
      %v152 = vld [vmem:[%s140] sm:$0xf]
      %v153 = vld [vmem:[%s140 + $0x4] sm:$0xf]
      %v154 = vld [vmem:[%s140 + $0x8] sm:$0xf]
      %v155 = vld [vmem:[%s140 + $0xc] sm:$0xf]
      %v156 = vld [vmem:[%s140 + $0x10] sm:$0xf]
      %v157 = vld [vmem:[%s140 + $0x14] sm:$0xf]
      %v158 = vld [vmem:[%s140 + $0x18] sm:$0xf]
      %v159 = vld [vmem:[%s140 + $0x1c] sm:$0xf]
      %v160 = vld [vmem:[%s140 + $0x20] sm:$0xf]
      %v161 = vld [vmem:[%s140 + $0x24] sm:$0xf]
      %v162 = vld [vmem:[%s140 + $0x28] sm:$0xf]
      %v163 = vld [vmem:[%s140 + $0x2c] sm:$0xf]
      %v164 = vld [vmem:[%s140 + $0x30] sm:$0xf]
      %v165 = vld [vmem:[%s140 + $0x34] sm:$0xf]
      %v166 = vld [vmem:[%s140 + $0x38] sm:$0xf]
      %v167 = vld [vmem:[%s140 + $0x3c] sm:$0xf]
      %v168 = vunpack.c.l.bf16 %v152
      %v169 = vunpack.c.l.bf16 %v153
      %v170 = vunpack.c.l.bf16 %v154
      %v171 = vunpack.c.l.bf16 %v155
      %v172 = vunpack.c.l.bf16 %v156
      %v173 = vunpack.c.l.bf16 %v157
      %v174 = vunpack.c.l.bf16 %v158
      %v175 = vunpack.c.l.bf16 %v159
      %v176 = vunpack.c.l.bf16 %v160
      %v177 = vunpack.c.l.bf16 %v161
      %v178 = vunpack.c.l.bf16 %v162
      %v179 = vunpack.c.l.bf16 %v163
      %v180 = vunpack.c.l.bf16 %v164
      %v181 = vunpack.c.l.bf16 %v165
      %v182 = vunpack.c.l.bf16 %v166
      %v183 = vunpack.c.l.bf16 %v167
      %v184 = vld [vmem:[#allocation2] sm:$0x1]
      %vm185 = vcmask 261120
      %v186 = vsel %vm185, %v168, 0.0
      %v187 = vsel %vm185, %v169, 0.0
      %v188 = vadd.f32 %v186, %v187
      %v189 = vsel %vm185, %v170, 0.0
      %v190 = vadd.f32 %v188, %v189
      %v191 = vsel %vm185, %v171, 0.0
      %v192 = vadd.f32 %v190, %v191
      %v193 = vsel %vm185, %v172, 0.0
      %v194 = vadd.f32 %v192, %v193
      %v195 = vsel %vm185, %v173, 0.0
      %v196 = vadd.f32 %v194, %v195
      %v197 = vsel %vm185, %v174, 0.0
      %v198 = vadd.f32 %v196, %v197
      %v199 = vsel %vm185, %v175, 0.0
      %v200 = vadd.f32 %v198, %v199
      %v201 = vsel %vm185, %v176, 0.0
      %v202 = vadd.f32 %v200, %v201
      %v203 = vsel %vm185, %v177, 0.0
      %v204 = vadd.f32 %v202, %v203
      %v205 = vsel %vm185, %v178, 0.0
      %v206 = vadd.f32 %v204, %v205
      %v207 = vsel %vm185, %v179, 0.0
      %v208 = vadd.f32 %v206, %v207
      %v209 = vsel %vm185, %v180, 0.0
      %v210 = vadd.f32 %v208, %v209
      %v211 = vsel %vm185, %v181, 0.0
      %v212 = vadd.f32 %v210, %v211
      %v213 = vsel %vm185, %v182, 0.0
      %v214 = vadd.f32 %v212, %v213
      %v215 = vsel %vm185, %v183, 0.0
      %v216 = vadd.f32 %v214, %v215
      %v217 = vrot.slane %v216, 4
      %v218 = vadd.f32 %v216, %v217
      %v219 = vrot.slane %v218, 2
      %v220 = vadd.f32 %v218, %v219
      %v221 = vrot.slane %v220, 1
      %v222 = vadd.f32 %v220, %v221
      %v223 = vadd.f32 %v184, %v222
      %vm224 = vcmask 253952
      %225 = vst.msk [vmem:[#allocation2] sm:$0x1] %vm224, %v223
      %v226 = vld [vmem:[#allocation2 + $0x1] sm:$0x1]
      %v227 = vmul.f32 %v168, %v168
      %v228 = vmul.f32 %v169, %v169
      %v229 = vmul.f32 %v170, %v170
      %v230 = vmul.f32 %v171, %v171
      %v231 = vmul.f32 %v172, %v172
      %v232 = vmul.f32 %v173, %v173
      %v233 = vmul.f32 %v174, %v174
      %v234 = vmul.f32 %v175, %v175
      %v235 = vmul.f32 %v176, %v176
      %v236 = vmul.f32 %v177, %v177
      %v237 = vmul.f32 %v178, %v178
      %v238 = vmul.f32 %v179, %v179
      %v239 = vmul.f32 %v180, %v180
      %v240 = vmul.f32 %v181, %v181
      %v241 = vmul.f32 %v182, %v182
      %v242 = vmul.f32 %v183, %v183
      %v243 = vsel %vm185, %v227, 0.0
      %v244 = vsel %vm185, %v228, 0.0
      %v245 = vadd.f32 %v243, %v244
      %v246 = vsel %vm185, %v229, 0.0
      %v247 = vadd.f32 %v245, %v246
      %v248 = vsel %vm185, %v230, 0.0
      %v249 = vadd.f32 %v247, %v248
      %v250 = vsel %vm185, %v231, 0.0
      %v251 = vadd.f32 %v249, %v250
      %v252 = vsel %vm185, %v232, 0.0
      %v253 = vadd.f32 %v251, %v252
      %v254 = vsel %vm185, %v233, 0.0
      %v255 = vadd.f32 %v253, %v254
      %v256 = vsel %vm185, %v234, 0.0
      %v257 = vadd.f32 %v255, %v256
      %v258 = vsel %vm185, %v235, 0.0
      %v259 = vadd.f32 %v257, %v258
      %v260 = vsel %vm185, %v236, 0.0
      %v261 = vadd.f32 %v259, %v260
      %v262 = vsel %vm185, %v237, 0.0
      %v263 = vadd.f32 %v261, %v262
      %v264 = vsel %vm185, %v238, 0.0
      %v265 = vadd.f32 %v263, %v264
      %v266 = vsel %vm185, %v239, 0.0
      %v267 = vadd.f32 %v265, %v266
      %v268 = vsel %vm185, %v240, 0.0
      %v269 = vadd.f32 %v267, %v268
      %v270 = vsel %vm185, %v241, 0.0
      %v271 = vadd.f32 %v269, %v270
      %v272 = vsel %vm185, %v242, 0.0
      %v273 = vadd.f32 %v271, %v272
      %v274 = vrot.slane %v273, 4
      %v275 = vadd.f32 %v273, %v274
      %v276 = vrot.slane %v275, 2
      %v277 = vadd.f32 %v275, %v276
      %v278 = vrot.slane %v277, 1
      %v279 = vadd.f32 %v277, %v278
      %v280 = vadd.f32 %v226, %v279
      %281 = vst.msk [vmem:[#allocation2 + $0x1] sm:$0x1] %vm224, %v280
      %p282 = scmp.eq.s32.totalorder %s17, 1
      // Predicated region
      $region29: #{resnet_block_forward.4} parent=23 // pred_check
        %p283 = pneg %p282
      $region30: #{resnet_block_forward.4} parent=23 // pred_check_branch
        %285 = sbr.rel (%p283) target = $region32
      $region31: #{resnet_block_forward.4} parent=23 // pred_region
        %v286 = vld [vmem:[#allocation2] sm:$0x3]
        %vm287 = vcmask 254976
        %288 = vst.msk [vmem:[%s145] sm:$0x3] %vm287, %v286
      $region32: #{resnet_block_forward.4} parent=23 // pred_fallthru
        _
      %p289 = scmp.lt.s32.totalorder %s16, 1
      %s290 = scalar_select %p289, %s16, 1
      %s291 = smul.addr %s290, 2
      %s292 = scalar_lea.vmem %s1, %s291
      // Predicated region
      $region33: #{resnet_block_forward.4} parent=23 // pred_check
        %p293 = pneg %p70
      $region34: #{resnet_block_forward.4} parent=23 // pred_check_branch
        %295 = sbr.rel (%p293) target = $region36
      $region35: #{resnet_block_forward.4} parent=23 // pred_region
        _
      $region36: #{resnet_block_forward.4} parent=23 // pred_fallthru
        _
    $region24: #{resnet_block_forward.4} parent=5 // pred_fallthru
      _
    %p296 = scmp.le.s32.totalorder 2, %s7
    // Predicated region
    $region37: #{resnet_block_forward.4} parent=5 // pred_check
      %p297 = pneg %p296
    $region38: #{resnet_block_forward.4} parent=5 // pred_check_branch
      %299 = sbr.rel (%p297) target = $region40
    $region39: #{resnet_block_forward.4} parent=5 // pred_region
      %s300 = ssub.s32 %s7, 2
      // Predicated region
      $region41: #{resnet_block_forward.4} parent=39 // pred_check
        %p301 = pneg %p76
      $region42: #{resnet_block_forward.4} parent=39 // pred_check_branch
        %303 = sbr.rel (%p301) target = $region44
      $region43: #{resnet_block_forward.4} parent=39 // pred_region
        %p304 = scmp.lt.s32.totalorder %s18, 1
        %s305 = scalar_select %p304, %s18, 1
        %s306 = smul.addr %s305, 2
        %s307 = scalar_lea.vmem %s1, %s306
      $region44: #{resnet_block_forward.4} parent=39 // pred_fallthru
        _
    $region40: #{resnet_block_forward.4} parent=5 // pred_fallthru
      _
  $region6: #{resnet_block_forward.4} parent=0 // loop_footer
    %s11 = sadd.s32 1, %s7
  $region7: #{resnet_block_forward.4} parent=0 // loop_footer_branch
    %6 = sbr.rel target = $region3
  $region8: #{resnet_block_forward.4} parent=0 // loop_exit
    _

// kernel: resnet_block_forward.6
$region0: #{resnet_block_forward.6}
  #allocation0 [shape = 'u32[]', space=smem, size = 0x4, offset = 0x4, fixed_abs, tag = 'smem constant byte address 0x4 - core index']
  #allocation1 [shape = 'u32[144,128]{1,0:T(1,128)}', space=vmem, size = 0x12000, scoped, tag = 'internal scratch']
  #allocation2 [shape = 'f32[2,64]{1,0:T(2,128)}', space=vmem, size = 0x400, scoped, tag = 'scratch operand']
  %s0 = inlined_call_operand.vmem [shape: bf16[2,16,16,64], index: 0, kind: input, shape index: {}]
  %s1 = inlined_call_operand.vmem [shape: f32[2,2,64], index: 1, kind: output, shape index: {}]
  %s2 = sld [smem:[#allocation0]]
  $region45: #{resnet_block_forward.6} parent=0
    _
  %s4 = ssub.s32 1, %s2
  %s5 = scalar_select 0, %s4, %s2
  loop: start=0, step=1, limit=6
  $region2: #{resnet_block_forward.6} parent=0 // loop_pre_header
    _
  $region3: #{resnet_block_forward.6} parent=0 // loop_header
    %s7 = sphi 0, %s11
    %p8 = scmp.ge.s32.totalorder %s7, 6
    %s14 = sphi 0, %s26
    %s15 = sphi 0, %s22
    %s16 = sphi 0, %s14
    %s17 = sphi 0, %s15
    %s18 = sphi 0, %s16
    %s19 = sphi 0, %s17
    %s31 = sphi 0, %s33
    %s34 = sphi 0, %s31
    %s35 = sphi 0, %s34
    %s51 = sphi 0, %s35
    %s57 = sphi 0, %s59
    %s60 = sphi 0, %s57
    %s61 = sphi 0, %s60
    %s77 = sphi 0, %s61
  $region4: #{resnet_block_forward.6} parent=0 // loop_header_branch
    %10 = sbr.rel (%p8) target = $region8
  $region5: #{resnet_block_forward.6} parent=0 // loop_body
    %s12 = ssub.s32 %s7, 1
    %s13 = ssub.s32 %s7, 2
    %s20 = sadd.s32 1, %s15
    %p21 = scmp.ge.s32.totalorder %s20, 2
    %s22 = scalar_select %p21, 0, %s20
    %s23 = sadd.s32 1, %s14
    %s24 = scalar_select %p21, %s23, %s14
    %p25 = scmp.ge.s32.totalorder %s24, 2
    %s26 = scalar_select %p25, 0, %s24
    %s27 = ssub.s32 %s14, %s26
    %s28 = ssub.s32 %s15, %s22
    %s29 = sor.u32 %s27, %s28
    %p30 = scmp.eq.s32.totalorder %s29, 0
    %s32 = sadd.s32 %s31, 1
    %s33 = scalar_select %p30, %s31, %s32
    %p36 = pneg %p30
    %p37 = scmp.eq.s32.totalorder %s7, 3
    %p38 = por %p36, %p37
    %p39 = scmp.ne.s32.totalorder %s31, %s34
    %p40 = scmp.eq.s32.totalorder %s7, 0
    %p41 = por %p39, %p40
    %p42 = scmp.ne.s32.totalorder %s31, %s34
    %p43 = scmp.eq.s32.totalorder %s12, 3
    %p44 = por %p42, %p43
    %p45 = scmp.ne.s32.totalorder %s34, %s35
    %p46 = scmp.eq.s32.totalorder %s12, 0
    %p47 = por %p45, %p46
    %p48 = scmp.ne.s32.totalorder %s34, %s35
    %p49 = scmp.eq.s32.totalorder %s13, 3
    %p50 = por %p48, %p49
    %p52 = scmp.ne.s32.totalorder %s35, %s51
    %p53 = scmp.eq.s32.totalorder %s13, 0
    %p54 = por %p52, %p53
    %s55 = ssub.s32 %s14, %s26
    %p56 = scmp.eq.s32.totalorder %s55, 0
    %s58 = sadd.s32 %s57, 1
    %s59 = scalar_select %p56, %s57, %s58
    %p62 = pneg %p56
    %p63 = scmp.eq.s32.totalorder %s7, 3
    %p64 = por %p62, %p63
    %p65 = scmp.ne.s32.totalorder %s57, %s60
    %p66 = scmp.eq.s32.totalorder %s7, 0
    %p67 = por %p65, %p66
    %p68 = scmp.ne.s32.totalorder %s57, %s60
    %p69 = scmp.eq.s32.totalorder %s12, 3
    %p70 = por %p68, %p69
    %p71 = scmp.ne.s32.totalorder %s60, %s61
    %p72 = scmp.eq.s32.totalorder %s12, 0
    %p73 = por %p71, %p72
    %p74 = scmp.ne.s32.totalorder %s60, %s61
    %p75 = scmp.eq.s32.totalorder %s13, 3
    %p76 = por %p74, %p75
    %p78 = scmp.ne.s32.totalorder %s61, %s77
    %p79 = scmp.eq.s32.totalorder %s13, 0
    %p80 = por %p78, %p79
    %p81 = scmp.le.s32.totalorder 1, %s7
    %p82 = scmp.lt.s32.totalorder %s7, 5
    %p83 = pnand %p81, %p82
    %p84 = pneg %p83
    // Predicated region
    $region9: #{resnet_block_forward.6} parent=5 // pred_check
      _
    $region10: #{resnet_block_forward.6} parent=5 // pred_check_branch
      %86 = sbr.rel (%p83) target = $region12
    $region11: #{resnet_block_forward.6} parent=5 // pred_region
      %s87 = ssub.s32 %s7, 1
    $region12: #{resnet_block_forward.6} parent=5 // pred_fallthru
      _
    %p88 = scmp.lt.s32.totalorder %s7, 4
    // Predicated region
    $region13: #{resnet_block_forward.6} parent=5 // pred_check
      %p89 = pneg %p88
    $region14: #{resnet_block_forward.6} parent=5 // pred_check_branch
      %91 = sbr.rel (%p89) target = $region16
    $region15: #{resnet_block_forward.6} parent=5 // pred_region
      // Predicated region
      $region17: #{resnet_block_forward.6} parent=15 // pred_check
        %p92 = pneg %p41
      $region18: #{resnet_block_forward.6} parent=15 // pred_check_branch
        %94 = sbr.rel (%p92) target = $region20
      $region19: #{resnet_block_forward.6} parent=15 // pred_region
        %s95 = smul.u32 8, %s15
        %p96 = scmp.lt.s32.totalorder %s14, 1
        %s97 = scalar_select %p96, %s14, 1
        %p98 = scmp.lt.s32.totalorder %s95, 15
        %s99 = scalar_select %p98, %s95, 15
        %s100 = smul.addr %s99, 2
        %s101 = smul.addr %s97, 32
        %s102 = sadd.s32 %s100, %s101
        %s103 = smul.addr %s102, 4
        %s104 = scalar_lea.vmem %s0, %s103
        %s105 = smul.u32 8, %s15
      $region20: #{resnet_block_forward.6} parent=15 // pred_fallthru
        _
    $region16: #{resnet_block_forward.6} parent=5 // pred_fallthru
      _
    %p106 = scmp.le.s32.totalorder 1, %s7
    %p107 = scmp.lt.s32.totalorder %s7, 5
    %p108 = pnand %p106, %p107
    %p109 = pneg %p108
    // Predicated region
    $region21: #{resnet_block_forward.6} parent=5 // pred_check
      _
    $region22: #{resnet_block_forward.6} parent=5 // pred_check_branch
      %111 = sbr.rel (%p108) target = $region24
    $region23: #{resnet_block_forward.6} parent=5 // pred_region
      %s112 = ssub.s32 %s7, 1
      %s113 = smul.u32 8, %s17
      %p114 = scmp.lt.s32.totalorder %s16, 1
      %s115 = scalar_select %p114, %s16, 1
      %p116 = scmp.lt.s32.totalorder %s113, 15
      %s117 = scalar_select %p116, %s113, 15
      %s118 = smul.addr %s117, 2
      %s119 = smul.addr %s115, 32
      %s120 = sadd.s32 %s118, %s119
      %s121 = smul.addr %s120, 4
      %s122 = scalar_lea.vmem %s0, %s121
      %p123 = pneg %p47
      %p124 = pneg %p44
      %p125 = pneg %p73
      %p126 = pneg %p70
      %p127 = scmp.lt.s32.totalorder %s16, 1
      %s128 = scalar_select %p127, %s16, 1
      %s129 = smul.addr %s128, 2
      %s130 = scalar_lea.vmem %s1, %s129
      %s131 = smul.u32 8, %s17
      %p132 = scmp.lt.s32.totalorder %s16, 1
      %s133 = scalar_select %p132, %s16, 1
      %p134 = scmp.lt.s32.totalorder %s131, 15
      %s135 = scalar_select %p134, %s131, 15
      %s136 = smul.addr %s135, 2
      %s137 = smul.addr %s133, 32
      %s138 = sadd.s32 %s136, %s137
      %s139 = smul.addr %s138, 4
      %s140 = scalar_lea.vmem %s0, %s139
      %s141 = smul.u32 8, %s17
      %p142 = scmp.lt.s32.totalorder %s16, 1
      %s143 = scalar_select %p142, %s16, 1
      %s144 = smul.addr %s143, 2
      %s145 = scalar_lea.vmem %s1, %s144
      %p146 = scmp.eq.s32.totalorder %s17, 0
      // Predicated region
      $region25: #{resnet_block_forward.6} parent=23 // pred_check
        %p147 = pneg %p146
      $region26: #{resnet_block_forward.6} parent=23 // pred_check_branch
        %149 = sbr.rel (%p147) target = $region28
      $region27: #{resnet_block_forward.6} parent=23 // pred_region
        %vm150 = vcmask 517120
        %151 = vst.msk [vmem:[#allocation2] sm:$0x3] %vm150, 0.0
      $region28: #{resnet_block_forward.6} parent=23 // pred_fallthru
        _
      %v152 = vld [vmem:[%s140] sm:$0xf]
      %v153 = vld [vmem:[%s140 + $0x4] sm:$0xf]
      %v154 = vld [vmem:[%s140 + $0x8] sm:$0xf]
      %v155 = vld [vmem:[%s140 + $0xc] sm:$0xf]
      %v156 = vld [vmem:[%s140 + $0x10] sm:$0xf]
      %v157 = vld [vmem:[%s140 + $0x14] sm:$0xf]
      %v158 = vld [vmem:[%s140 + $0x18] sm:$0xf]
      %v159 = vld [vmem:[%s140 + $0x1c] sm:$0xf]
      %v160 = vld [vmem:[%s140 + $0x20] sm:$0xf]
      %v161 = vld [vmem:[%s140 + $0x24] sm:$0xf]
      %v162 = vld [vmem:[%s140 + $0x28] sm:$0xf]
      %v163 = vld [vmem:[%s140 + $0x2c] sm:$0xf]
      %v164 = vld [vmem:[%s140 + $0x30] sm:$0xf]
      %v165 = vld [vmem:[%s140 + $0x34] sm:$0xf]
      %v166 = vld [vmem:[%s140 + $0x38] sm:$0xf]
      %v167 = vld [vmem:[%s140 + $0x3c] sm:$0xf]
      %v168 = vunpack.c.l.bf16 %v152
      %v169 = vunpack.c.l.bf16 %v153
      %v170 = vunpack.c.l.bf16 %v154
      %v171 = vunpack.c.l.bf16 %v155
      %v172 = vunpack.c.l.bf16 %v156
      %v173 = vunpack.c.l.bf16 %v157
      %v174 = vunpack.c.l.bf16 %v158
      %v175 = vunpack.c.l.bf16 %v159
      %v176 = vunpack.c.l.bf16 %v160
      %v177 = vunpack.c.l.bf16 %v161
      %v178 = vunpack.c.l.bf16 %v162
      %v179 = vunpack.c.l.bf16 %v163
      %v180 = vunpack.c.l.bf16 %v164
      %v181 = vunpack.c.l.bf16 %v165
      %v182 = vunpack.c.l.bf16 %v166
      %v183 = vunpack.c.l.bf16 %v167
      %v184 = vld [vmem:[#allocation2] sm:$0x1]
      %vm185 = vcmask 523264
      %v186 = vsel %vm185, %v168, 0.0
      %v187 = vsel %vm185, %v169, 0.0
      %v188 = vadd.f32 %v186, %v187
      %v189 = vsel %vm185, %v170, 0.0
      %v190 = vadd.f32 %v188, %v189
      %v191 = vsel %vm185, %v171, 0.0
      %v192 = vadd.f32 %v190, %v191
      %v193 = vsel %vm185, %v172, 0.0
      %v194 = vadd.f32 %v192, %v193
      %v195 = vsel %vm185, %v173, 0.0
      %v196 = vadd.f32 %v194, %v195
      %v197 = vsel %vm185, %v174, 0.0
      %v198 = vadd.f32 %v196, %v197
      %v199 = vsel %vm185, %v175, 0.0
      %v200 = vadd.f32 %v198, %v199
      %v201 = vsel %vm185, %v176, 0.0
      %v202 = vadd.f32 %v200, %v201
      %v203 = vsel %vm185, %v177, 0.0
      %v204 = vadd.f32 %v202, %v203
      %v205 = vsel %vm185, %v178, 0.0
      %v206 = vadd.f32 %v204, %v205
      %v207 = vsel %vm185, %v179, 0.0
      %v208 = vadd.f32 %v206, %v207
      %v209 = vsel %vm185, %v180, 0.0
      %v210 = vadd.f32 %v208, %v209
      %v211 = vsel %vm185, %v181, 0.0
      %v212 = vadd.f32 %v210, %v211
      %v213 = vsel %vm185, %v182, 0.0
      %v214 = vadd.f32 %v212, %v213
      %v215 = vsel %vm185, %v183, 0.0
      %v216 = vadd.f32 %v214, %v215
      %v217 = vrot.slane %v216, 4
      %v218 = vadd.f32 %v216, %v217
      %v219 = vrot.slane %v218, 2
      %v220 = vadd.f32 %v218, %v219
      %v221 = vrot.slane %v220, 1
      %v222 = vadd.f32 %v220, %v221
      %v223 = vadd.f32 %v184, %v222
      %vm224 = vcmask 516096
      %225 = vst.msk [vmem:[#allocation2] sm:$0x1] %vm224, %v223
      %v226 = vld [vmem:[#allocation2 + $0x1] sm:$0x1]
      %v227 = vmul.f32 %v168, %v168
      %v228 = vmul.f32 %v169, %v169
      %v229 = vmul.f32 %v170, %v170
      %v230 = vmul.f32 %v171, %v171
      %v231 = vmul.f32 %v172, %v172
      %v232 = vmul.f32 %v173, %v173
      %v233 = vmul.f32 %v174, %v174
      %v234 = vmul.f32 %v175, %v175
      %v235 = vmul.f32 %v176, %v176
      %v236 = vmul.f32 %v177, %v177
      %v237 = vmul.f32 %v178, %v178
      %v238 = vmul.f32 %v179, %v179
      %v239 = vmul.f32 %v180, %v180
      %v240 = vmul.f32 %v181, %v181
      %v241 = vmul.f32 %v182, %v182
      %v242 = vmul.f32 %v183, %v183
      %v243 = vsel %vm185, %v227, 0.0
      %v244 = vsel %vm185, %v228, 0.0
      %v245 = vadd.f32 %v243, %v244
      %v246 = vsel %vm185, %v229, 0.0
      %v247 = vadd.f32 %v245, %v246
      %v248 = vsel %vm185, %v230, 0.0
      %v249 = vadd.f32 %v247, %v248
      %v250 = vsel %vm185, %v231, 0.0
      %v251 = vadd.f32 %v249, %v250
      %v252 = vsel %vm185, %v232, 0.0
      %v253 = vadd.f32 %v251, %v252
      %v254 = vsel %vm185, %v233, 0.0
      %v255 = vadd.f32 %v253, %v254
      %v256 = vsel %vm185, %v234, 0.0
      %v257 = vadd.f32 %v255, %v256
      %v258 = vsel %vm185, %v235, 0.0
      %v259 = vadd.f32 %v257, %v258
      %v260 = vsel %vm185, %v236, 0.0
      %v261 = vadd.f32 %v259, %v260
      %v262 = vsel %vm185, %v237, 0.0
      %v263 = vadd.f32 %v261, %v262
      %v264 = vsel %vm185, %v238, 0.0
      %v265 = vadd.f32 %v263, %v264
      %v266 = vsel %vm185, %v239, 0.0
      %v267 = vadd.f32 %v265, %v266
      %v268 = vsel %vm185, %v240, 0.0
      %v269 = vadd.f32 %v267, %v268
      %v270 = vsel %vm185, %v241, 0.0
      %v271 = vadd.f32 %v269, %v270
      %v272 = vsel %vm185, %v242, 0.0
      %v273 = vadd.f32 %v271, %v272
      %v274 = vrot.slane %v273, 4
      %v275 = vadd.f32 %v273, %v274
      %v276 = vrot.slane %v275, 2
      %v277 = vadd.f32 %v275, %v276
      %v278 = vrot.slane %v277, 1
      %v279 = vadd.f32 %v277, %v278
      %v280 = vadd.f32 %v226, %v279
      %281 = vst.msk [vmem:[#allocation2 + $0x1] sm:$0x1] %vm224, %v280
      %p282 = scmp.eq.s32.totalorder %s17, 1
      // Predicated region
      $region29: #{resnet_block_forward.6} parent=23 // pred_check
        %p283 = pneg %p282
      $region30: #{resnet_block_forward.6} parent=23 // pred_check_branch
        %285 = sbr.rel (%p283) target = $region32
      $region31: #{resnet_block_forward.6} parent=23 // pred_region
        %v286 = vld [vmem:[#allocation2] sm:$0x3]
        %vm287 = vcmask 517120
        %288 = vst.msk [vmem:[%s145] sm:$0x3] %vm287, %v286
      $region32: #{resnet_block_forward.6} parent=23 // pred_fallthru
        _
      %p289 = scmp.lt.s32.totalorder %s16, 1
      %s290 = scalar_select %p289, %s16, 1
      %s291 = smul.addr %s290, 2
      %s292 = scalar_lea.vmem %s1, %s291
      // Predicated region
      $region33: #{resnet_block_forward.6} parent=23 // pred_check
        %p293 = pneg %p70
      $region34: #{resnet_block_forward.6} parent=23 // pred_check_branch
        %295 = sbr.rel (%p293) target = $region36
      $region35: #{resnet_block_forward.6} parent=23 // pred_region
        _
      $region36: #{resnet_block_forward.6} parent=23 // pred_fallthru
        _
    $region24: #{resnet_block_forward.6} parent=5 // pred_fallthru
      _
    %p296 = scmp.le.s32.totalorder 2, %s7
    // Predicated region
    $region37: #{resnet_block_forward.6} parent=5 // pred_check
      %p297 = pneg %p296
    $region38: #{resnet_block_forward.6} parent=5 // pred_check_branch
      %299 = sbr.rel (%p297) target = $region40
    $region39: #{resnet_block_forward.6} parent=5 // pred_region
      %s300 = ssub.s32 %s7, 2
      // Predicated region
      $region41: #{resnet_block_forward.6} parent=39 // pred_check
        %p301 = pneg %p76
      $region42: #{resnet_block_forward.6} parent=39 // pred_check_branch
        %303 = sbr.rel (%p301) target = $region44
      $region43: #{resnet_block_forward.6} parent=39 // pred_region
        %p304 = scmp.lt.s32.totalorder %s18, 1
        %s305 = scalar_select %p304, %s18, 1
        %s306 = smul.addr %s305, 2
        %s307 = scalar_lea.vmem %s1, %s306
      $region44: #{resnet_block_forward.6} parent=39 // pred_fallthru
        _
    $region40: #{resnet_block_forward.6} parent=5 // pred_fallthru
      _
  $region6: #{resnet_block_forward.6} parent=0 // loop_footer
    %s11 = sadd.s32 1, %s7
  $region7: #{resnet_block_forward.6} parent=0 // loop_footer_branch
    %6 = sbr.rel target = $region3
  $region8: #{resnet_block_forward.6} parent=0 // loop_exit
    _

// kernel: resnet_block_forward.5
$region0: #{resnet_block_forward.5}
  #allocation0 [shape = 'u32[]', space=smem, size = 0x4, offset = 0x4, fixed_abs, tag = 'smem constant byte address 0x4 - core index']
  #allocation1 [shape = 'u32[144,128]{1,0:T(1,128)}', space=vmem, size = 0x12000, scoped, tag = 'internal scratch']
  #allocation2 [shape = 'f32[10,32,32]{2,1,0:T(8,128)}', space=vmem, size = 0x28000, scoped, tag = 'scratch operand']
  %s0 = inlined_call_operand.vmem [shape: bf16[2,16,16,32], index: 0, kind: input, shape index: {}, may-alias: {0,1,2}]
  %s1 = inlined_call_operand.vmem [shape: bf16[2,16,16,32], index: 1, kind: input, shape index: {}, may-alias: {0,1,2}]
  %s2 = inlined_call_operand.vmem [shape: bf16[2,16,16,32], index: 2, kind: input, shape index: {}, may-alias: {0,1,2}]
  %s3 = inlined_call_operand.vmem [shape: f32[2,2,32], index: 3, kind: input, shape index: {}]
  %s4 = inlined_call_operand.vmem [shape: bf16[9,32,64], index: 4, kind: input, shape index: {}]
  %s5 = inlined_call_operand.vmem [shape: f32[1,64], index: 5, kind: input, shape index: {}]
  %s6 = inlined_call_operand.vmem [shape: bf16[2,16,16,64], index: 6, kind: output, shape index: {}]
  %s7 = sld [smem:[#allocation0]]
  $region73: #{resnet_block_forward.5} parent=0
    _
  %s9 = ssub.s32 1, %s7
  %s10 = scalar_select 0, %s9, %s7
  loop: start=0, step=1, limit=6
  $region2: #{resnet_block_forward.5} parent=0 // loop_pre_header
    _
  $region3: #{resnet_block_forward.5} parent=0 // loop_header
    %s12 = sphi 0, %s16
    %p13 = scmp.ge.s32.totalorder %s12, 6
    %s19 = sphi 0, %s31
    %s20 = sphi 0, %s27
    %s21 = sphi 0, %s19
    %s22 = sphi 0, %s20
    %s23 = sphi 0, %s21
    %s24 = sphi 0, %s22
    %s36 = sphi 0, %s38
    %s39 = sphi 0, %s36
    %s40 = sphi 0, %s39
    %s56 = sphi 0, %s40
    %s72 = sphi 0, %s74
    %s75 = sphi 0, %s72
    %s76 = sphi 0, %s75
    %s92 = sphi 0, %s76
    %s108 = sphi 0, %s110
    %s111 = sphi 0, %s108
    %s112 = sphi 0, %s111
    %s128 = sphi 0, %s112
    %s134 = sphi 0, %s136
    %s137 = sphi 0, %s134
    %s138 = sphi 0, %s137
    %s154 = sphi 0, %s138
    %s158 = sphi 0, %s158
    %s160 = sphi 0, %s158
    %s161 = sphi 0, %s160
    %s175 = sphi 0, %s161
    %s179 = sphi 0, %s179
    %s181 = sphi 0, %s179
    %s182 = sphi 0, %s181
    %s196 = sphi 0, %s182
    %s204 = sphi 0, %s206
    %s207 = sphi 0, %s204
    %s208 = sphi 0, %s207
    %s224 = sphi 0, %s208
  $region4: #{resnet_block_forward.5} parent=0 // loop_header_branch
    %15 = sbr.rel (%p13) target = $region8
  $region5: #{resnet_block_forward.5} parent=0 // loop_body
    %s17 = ssub.s32 %s12, 1
    %s18 = ssub.s32 %s12, 2
    %s25 = sadd.s32 1, %s20
    %p26 = scmp.ge.s32.totalorder %s25, 2
    %s27 = scalar_select %p26, 0, %s25
    %s28 = sadd.s32 1, %s19
    %s29 = scalar_select %p26, %s28, %s19
    %p30 = scmp.ge.s32.totalorder %s29, 2
    %s31 = scalar_select %p30, 0, %s29
    %s32 = ssub.s32 %s19, %s31
    %s33 = ssub.s32 %s20, %s27
    %s34 = sor.u32 %s32, %s33
    %p35 = scmp.eq.s32.totalorder %s34, 0
    %s37 = sadd.s32 %s36, 1
    %s38 = scalar_select %p35, %s36, %s37
    %p41 = pneg %p35
    %p42 = scmp.eq.s32.totalorder %s12, 3
    %p43 = por %p41, %p42
    %p44 = scmp.ne.s32.totalorder %s36, %s39
    %p45 = scmp.eq.s32.totalorder %s12, 0
    %p46 = por %p44, %p45
    %p47 = scmp.ne.s32.totalorder %s36, %s39
    %p48 = scmp.eq.s32.totalorder %s17, 3
    %p49 = por %p47, %p48
    %p50 = scmp.ne.s32.totalorder %s39, %s40
    %p51 = scmp.eq.s32.totalorder %s17, 0
    %p52 = por %p50, %p51
    %p53 = scmp.ne.s32.totalorder %s39, %s40
    %p54 = scmp.eq.s32.totalorder %s18, 3
    %p55 = por %p53, %p54
    %p57 = scmp.ne.s32.totalorder %s40, %s56
    %p58 = scmp.eq.s32.totalorder %s18, 0
    %p59 = por %p57, %p58
    %s60 = smul.u32 %s20, 8
    %s61 = ssub.s32 %s60, 1
    %p62 = scmp.gt.s32.totalorder %s61, 0
    %s63 = scalar_select %p62, %s61, 0
    %s64 = smul.u32 %s27, 8
    %s65 = ssub.s32 %s64, 1
    %p66 = scmp.gt.s32.totalorder %s65, 0
    %s67 = scalar_select %p66, %s65, 0
    %s68 = ssub.s32 %s19, %s31
    %s69 = ssub.s32 %s63, %s67
    %s70 = sor.u32 %s68, %s69
    %p71 = scmp.eq.s32.totalorder %s70, 0
    %s73 = sadd.s32 %s72, 1
    %s74 = scalar_select %p71, %s72, %s73
    %p77 = pneg %p71
    %p78 = scmp.eq.s32.totalorder %s12, 3
    %p79 = por %p77, %p78
    %p80 = scmp.ne.s32.totalorder %s72, %s75
    %p81 = scmp.eq.s32.totalorder %s12, 0
    %p82 = por %p80, %p81
    %p83 = scmp.ne.s32.totalorder %s72, %s75
    %p84 = scmp.eq.s32.totalorder %s17, 3
    %p85 = por %p83, %p84
    %p86 = scmp.ne.s32.totalorder %s75, %s76
    %p87 = scmp.eq.s32.totalorder %s17, 0
    %p88 = por %p86, %p87
    %p89 = scmp.ne.s32.totalorder %s75, %s76
    %p90 = scmp.eq.s32.totalorder %s18, 3
    %p91 = por %p89, %p90
    %p93 = scmp.ne.s32.totalorder %s76, %s92
    %p94 = scmp.eq.s32.totalorder %s18, 0
    %p95 = por %p93, %p94
    %s96 = sadd.s32 %s20, 1
    %s97 = smul.u32 %s96, 8
    %p98 = scmp.lt.s32.totalorder %s97, 15
    %s99 = scalar_select %p98, %s97, 15
    %s100 = sadd.s32 %s27, 1
    %s101 = smul.u32 %s100, 8
    %p102 = scmp.lt.s32.totalorder %s101, 15
    %s103 = scalar_select %p102, %s101, 15
    %s104 = ssub.s32 %s19, %s31
    %s105 = ssub.s32 %s99, %s103
    %s106 = sor.u32 %s104, %s105
    %p107 = scmp.eq.s32.totalorder %s106, 0
    %s109 = sadd.s32 %s108, 1
    %s110 = scalar_select %p107, %s108, %s109
    %p113 = pneg %p107
    %p114 = scmp.eq.s32.totalorder %s12, 3
    %p115 = por %p113, %p114
    %p116 = scmp.ne.s32.totalorder %s108, %s111
    %p117 = scmp.eq.s32.totalorder %s12, 0
    %p118 = por %p116, %p117
    %p119 = scmp.ne.s32.totalorder %s108, %s111
    %p120 = scmp.eq.s32.totalorder %s17, 3
    %p121 = por %p119, %p120
    %p122 = scmp.ne.s32.totalorder %s111, %s112
    %p123 = scmp.eq.s32.totalorder %s17, 0
    %p124 = por %p122, %p123
    %p125 = scmp.ne.s32.totalorder %s111, %s112
    %p126 = scmp.eq.s32.totalorder %s18, 3
    %p127 = por %p125, %p126
    %p129 = scmp.ne.s32.totalorder %s112, %s128
    %p130 = scmp.eq.s32.totalorder %s18, 0
    %p131 = por %p129, %p130
    %s132 = ssub.s32 %s19, %s31
    %p133 = scmp.eq.s32.totalorder %s132, 0
    %s135 = sadd.s32 %s134, 1
    %s136 = scalar_select %p133, %s134, %s135
    %p139 = pneg %p133
    %p140 = scmp.eq.s32.totalorder %s12, 3
    %p141 = por %p139, %p140
    %p142 = scmp.ne.s32.totalorder %s134, %s137
    %p143 = scmp.eq.s32.totalorder %s12, 0
    %p144 = por %p142, %p143
    %p145 = scmp.ne.s32.totalorder %s134, %s137
    %p146 = scmp.eq.s32.totalorder %s17, 3
    %p147 = por %p145, %p146
    %p148 = scmp.ne.s32.totalorder %s137, %s138
    %p149 = scmp.eq.s32.totalorder %s17, 0
    %p150 = por %p148, %p149
    %p151 = scmp.ne.s32.totalorder %s137, %s138
    %p152 = scmp.eq.s32.totalorder %s18, 3
    %p153 = por %p151, %p152
    %p155 = scmp.ne.s32.totalorder %s138, %s154
    %p156 = scmp.eq.s32.totalorder %s18, 0
    %p157 = por %p155, %p156
    %s159 = sadd.s32 %s158, 1
    %p162 = scmp.eq.s32.totalorder %s12, 3
    %p163 = scmp.ne.s32.totalorder %s158, %s160
    %p164 = scmp.eq.s32.totalorder %s12, 0
    %p165 = por %p163, %p164
    %p166 = scmp.ne.s32.totalorder %s158, %s160
    %p167 = scmp.eq.s32.totalorder %s17, 3
    %p168 = por %p166, %p167
    %p169 = scmp.ne.s32.totalorder %s160, %s161
    %p170 = scmp.eq.s32.totalorder %s17, 0
    %p171 = por %p169, %p170
    %p172 = scmp.ne.s32.totalorder %s160, %s161
    %p173 = scmp.eq.s32.totalorder %s18, 3
    %p174 = por %p172, %p173
    %p176 = scmp.ne.s32.totalorder %s161, %s175
    %p177 = scmp.eq.s32.totalorder %s18, 0
    %p178 = por %p176, %p177
    %s180 = sadd.s32 %s179, 1
    %p183 = scmp.eq.s32.totalorder %s12, 3
    %p184 = scmp.ne.s32.totalorder %s179, %s181
    %p185 = scmp.eq.s32.totalorder %s12, 0
    %p186 = por %p184, %p185
    %p187 = scmp.ne.s32.totalorder %s179, %s181
    %p188 = scmp.eq.s32.totalorder %s17, 3
    %p189 = por %p187, %p188
    %p190 = scmp.ne.s32.totalorder %s181, %s182
    %p191 = scmp.eq.s32.totalorder %s17, 0
    %p192 = por %p190, %p191
    %p193 = scmp.ne.s32.totalorder %s181, %s182
    %p194 = scmp.eq.s32.totalorder %s18, 3
    %p195 = por %p193, %p194
    %p197 = scmp.ne.s32.totalorder %s182, %s196
    %p198 = scmp.eq.s32.totalorder %s18, 0
    %p199 = por %p197, %p198
    %s200 = ssub.s32 %s19, %s31
    %s201 = ssub.s32 %s20, %s27
    %s202 = sor.u32 %s200, %s201
    %p203 = scmp.eq.s32.totalorder %s202, 0
    %s205 = sadd.s32 %s204, 1
    %s206 = scalar_select %p203, %s204, %s205
    %p209 = pneg %p203
    %p210 = scmp.eq.s32.totalorder %s12, 3
    %p211 = por %p209, %p210
    %p212 = scmp.ne.s32.totalorder %s204, %s207
    %p213 = scmp.eq.s32.totalorder %s12, 0
    %p214 = por %p212, %p213
    %p215 = scmp.ne.s32.totalorder %s204, %s207
    %p216 = scmp.eq.s32.totalorder %s17, 3
    %p217 = por %p215, %p216
    %p218 = scmp.ne.s32.totalorder %s207, %s208
    %p219 = scmp.eq.s32.totalorder %s17, 0
    %p220 = por %p218, %p219
    %p221 = scmp.ne.s32.totalorder %s207, %s208
    %p222 = scmp.eq.s32.totalorder %s18, 3
    %p223 = por %p221, %p222
    %p225 = scmp.ne.s32.totalorder %s208, %s224
    %p226 = scmp.eq.s32.totalorder %s18, 0
    %p227 = por %p225, %p226
    %p228 = scmp.le.s32.totalorder 1, %s12
    %p229 = scmp.lt.s32.totalorder %s12, 5
    %p230 = pnand %p228, %p229
    %p231 = pneg %p230
    // Predicated region
    $region9: #{resnet_block_forward.5} parent=5 // pred_check
      _
    $region10: #{resnet_block_forward.5} parent=5 // pred_check_branch
      %233 = sbr.rel (%p230) target = $region12
    $region11: #{resnet_block_forward.5} parent=5 // pred_region
      %s234 = ssub.s32 %s12, 1
      // Predicated region
      $region13: #{resnet_block_forward.5} parent=11 // pred_check
        %p235 = pneg %p171
      $region14: #{resnet_block_forward.5} parent=11 // pred_check_branch
        %237 = sbr.rel (%p235) target = $region16
      $region15: #{resnet_block_forward.5} parent=11 // pred_region
        _
      $region16: #{resnet_block_forward.5} parent=11 // pred_fallthru
        _
      // Predicated region
      $region17: #{resnet_block_forward.5} parent=11 // pred_check
        %p238 = pneg %p192
      $region18: #{resnet_block_forward.5} parent=11 // pred_check_branch
        %240 = sbr.rel (%p238) target = $region20
      $region19: #{resnet_block_forward.5} parent=11 // pred_region
        _
      $region20: #{resnet_block_forward.5} parent=11 // pred_fallthru
        _
    $region12: #{resnet_block_forward.5} parent=5 // pred_fallthru
      _
    %p241 = scmp.lt.s32.totalorder %s12, 4
    // Predicated region
    $region21: #{resnet_block_forward.5} parent=5 // pred_check
      %p242 = pneg %p241
    $region22: #{resnet_block_forward.5} parent=5 // pred_check_branch
      %244 = sbr.rel (%p242) target = $region24
    $region23: #{resnet_block_forward.5} parent=5 // pred_region
      // Predicated region
      $region25: #{resnet_block_forward.5} parent=23 // pred_check
        %p245 = pneg %p46
      $region26: #{resnet_block_forward.5} parent=23 // pred_check_branch
        %247 = sbr.rel (%p245) target = $region28
      $region27: #{resnet_block_forward.5} parent=23 // pred_region
        %s248 = smul.u32 8, %s20
        %p249 = scmp.lt.s32.totalorder %s19, 1
        %s250 = scalar_select %p249, %s19, 1
        %p251 = scmp.lt.s32.totalorder %s248, 15
        %s252 = scalar_select %p251, %s248, 15
        %s253 = smul.addr %s252, 2
        %s254 = smul.addr %s250, 32
        %s255 = sadd.s32 %s253, %s254
        %s256 = smul.addr %s255, 4
        %s257 = scalar_lea.vmem %s0, %s256
        %s258 = smul.u32 8, %s20
      $region28: #{resnet_block_forward.5} parent=23 // pred_fallthru
        _
      // Predicated region
      $region29: #{resnet_block_forward.5} parent=23 // pred_check
        %p259 = pneg %p82
      $region30: #{resnet_block_forward.5} parent=23 // pred_check_branch
        %261 = sbr.rel (%p259) target = $region32
      $region31: #{resnet_block_forward.5} parent=23 // pred_region
        %s262 = smul.u32 %s20, 8
        %s263 = ssub.s32 %s262, 1
        %p264 = scmp.gt.s32.totalorder %s263, 0
        %s265 = scalar_select %p264, %s263, 0
        %p266 = scmp.lt.s32.totalorder %s19, 1
        %s267 = scalar_select %p266, %s19, 1
        %p268 = scmp.lt.s32.totalorder %s265, 15
        %s269 = scalar_select %p268, %s265, 15
        %s270 = smul.addr %s269, 2
        %s271 = smul.addr %s267, 32
        %s272 = sadd.s32 %s270, %s271
        %s273 = smul.addr %s272, 4
        %s274 = scalar_lea.vmem %s1, %s273
        %s275 = smul.u32 %s20, 8
        %s276 = ssub.s32 %s275, 1
        %p277 = scmp.gt.s32.totalorder %s276, 0
        %s278 = scalar_select %p277, %s276, 0
      $region32: #{resnet_block_forward.5} parent=23 // pred_fallthru
        _
      // Predicated region
      $region33: #{resnet_block_forward.5} parent=23 // pred_check
        %p279 = pneg %p118
      $region34: #{resnet_block_forward.5} parent=23 // pred_check_branch
        %281 = sbr.rel (%p279) target = $region36
      $region35: #{resnet_block_forward.5} parent=23 // pred_region
        %s282 = sadd.s32 %s20, 1
        %s283 = smul.u32 %s282, 8
        %p284 = scmp.lt.s32.totalorder %s283, 15
        %s285 = scalar_select %p284, %s283, 15
        %p286 = scmp.lt.s32.totalorder %s19, 1
        %s287 = scalar_select %p286, %s19, 1
        %p288 = scmp.lt.s32.totalorder %s285, 15
        %s289 = scalar_select %p288, %s285, 15
        %s290 = smul.addr %s289, 2
        %s291 = smul.addr %s287, 32
        %s292 = sadd.s32 %s290, %s291
        %s293 = smul.addr %s292, 4
        %s294 = scalar_lea.vmem %s2, %s293
        %s295 = sadd.s32 %s20, 1
        %s296 = smul.u32 %s295, 8
        %p297 = scmp.lt.s32.totalorder %s296, 15
        %s298 = scalar_select %p297, %s296, 15
      $region36: #{resnet_block_forward.5} parent=23 // pred_fallthru
        _
      // Predicated region
      $region37: #{resnet_block_forward.5} parent=23 // pred_check
        %p299 = pneg %p144
      $region38: #{resnet_block_forward.5} parent=23 // pred_check_branch
        %301 = sbr.rel (%p299) target = $region40
      $region39: #{resnet_block_forward.5} parent=23 // pred_region
        %p302 = scmp.lt.s32.totalorder %s19, 1
        %s303 = scalar_select %p302, %s19, 1
        %s304 = smul.addr %s303, 2
        %s305 = scalar_lea.vmem %s3, %s304
      $region40: #{resnet_block_forward.5} parent=23 // pred_fallthru
        _
    $region24: #{resnet_block_forward.5} parent=5 // pred_fallthru
      _
    %p306 = scmp.le.s32.totalorder 1, %s12
    %p307 = scmp.lt.s32.totalorder %s12, 5
    %p308 = pnand %p306, %p307
    %p309 = pneg %p308
    // Predicated region
    $region41: #{resnet_block_forward.5} parent=5 // pred_check
      _
    $region42: #{resnet_block_forward.5} parent=5 // pred_check_branch
      %311 = sbr.rel (%p308) target = $region44
    $region43: #{resnet_block_forward.5} parent=5 // pred_region
      %s312 = ssub.s32 %s12, 1
      %s313 = smul.u32 8, %s22
      %p314 = scmp.lt.s32.totalorder %s21, 1
      %s315 = scalar_select %p314, %s21, 1
      %p316 = scmp.lt.s32.totalorder %s313, 15
      %s317 = scalar_select %p316, %s313, 15
      %s318 = smul.addr %s317, 2
      %s319 = smul.addr %s315, 32
      %s320 = sadd.s32 %s318, %s319
      %s321 = smul.addr %s320, 4
      %s322 = scalar_lea.vmem %s0, %s321
      %p323 = pneg %p52
      %p324 = pneg %p49
      %s325 = smul.u32 %s22, 8
      %s326 = ssub.s32 %s325, 1
      %p327 = scmp.gt.s32.totalorder %s326, 0
      %s328 = scalar_select %p327, %s326, 0
      %p329 = scmp.lt.s32.totalorder %s21, 1
      %s330 = scalar_select %p329, %s21, 1
      %p331 = scmp.lt.s32.totalorder %s328, 15
      %s332 = scalar_select %p331, %s328, 15
      %s333 = smul.addr %s332, 2
      %s334 = smul.addr %s330, 32
      %s335 = sadd.s32 %s333, %s334
      %s336 = smul.addr %s335, 4
      %s337 = scalar_lea.vmem %s1, %s336
      %p338 = pneg %p88
      %p339 = pneg %p85
      %s340 = sadd.s32 %s22, 1
      %s341 = smul.u32 %s340, 8
      %p342 = scmp.lt.s32.totalorder %s341, 15
      %s343 = scalar_select %p342, %s341, 15
      %p344 = scmp.lt.s32.totalorder %s21, 1
      %s345 = scalar_select %p344, %s21, 1
      %p346 = scmp.lt.s32.totalorder %s343, 15
      %s347 = scalar_select %p346, %s343, 15
      %s348 = smul.addr %s347, 2
      %s349 = smul.addr %s345, 32
      %s350 = sadd.s32 %s348, %s349
      %s351 = smul.addr %s350, 4
      %s352 = scalar_lea.vmem %s2, %s351
      %p353 = pneg %p124
      %p354 = pneg %p121
      %p355 = scmp.lt.s32.totalorder %s21, 1
      %s356 = scalar_select %p355, %s21, 1
      %s357 = smul.addr %s356, 2
      %s358 = scalar_lea.vmem %s3, %s357
      %p359 = pneg %p150
      %p360 = pneg %p147
      %p361 = pneg %p171
      %p362 = pneg %p168
      %p363 = pneg %p192
      %p364 = pneg %p189
      %p365 = pneg %p220
      %p366 = pneg %p217
      %s367 = smul.u32 8, %s22
      %p368 = scmp.lt.s32.totalorder %s21, 1
      %s369 = scalar_select %p368, %s21, 1
      %p370 = scmp.lt.s32.totalorder %s367, 15
      %s371 = scalar_select %p370, %s367, 15
      %s372 = smul.addr %s371, 2
      %s373 = smul.addr %s369, 32
      %s374 = sadd.s32 %s372, %s373
      %s375 = smul.addr %s374, 4
      %s376 = scalar_lea.vmem %s6, %s375
      %s377 = smul.u32 8, %s22
      %p378 = scmp.lt.s32.totalorder %s21, 1
      %s379 = scalar_select %p378, %s21, 1
      %p380 = scmp.lt.s32.totalorder %s377, 15
      %s381 = scalar_select %p380, %s377, 15
      %s382 = smul.addr %s381, 2
      %s383 = smul.addr %s379, 32
      %s384 = sadd.s32 %s382, %s383
      %s385 = smul.addr %s384, 4
      %s386 = scalar_lea.vmem %s0, %s385
      %s387 = smul.u32 8, %s22
      %s388 = smul.u32 %s22, 8
      %s389 = ssub.s32 %s388, 1
      %p390 = scmp.gt.s32.totalorder %s389, 0
      %s391 = scalar_select %p390, %s389, 0
      %p392 = scmp.lt.s32.totalorder %s21, 1
      %s393 = scalar_select %p392, %s21, 1
      %p394 = scmp.lt.s32.totalorder %s391, 15
      %s395 = scalar_select %p394, %s391, 15
      %s396 = smul.addr %s395, 2
      %s397 = smul.addr %s393, 32
      %s398 = sadd.s32 %s396, %s397
      %s399 = smul.addr %s398, 4
      %s400 = scalar_lea.vmem %s1, %s399
      %s401 = smul.u32 %s22, 8
      %s402 = ssub.s32 %s401, 1
      %p403 = scmp.gt.s32.totalorder %s402, 0
      %s404 = scalar_select %p403, %s402, 0
      %s405 = sadd.s32 %s22, 1
      %s406 = smul.u32 %s405, 8
      %p407 = scmp.lt.s32.totalorder %s406, 15
      %s408 = scalar_select %p407, %s406, 15
      %p409 = scmp.lt.s32.totalorder %s21, 1
      %s410 = scalar_select %p409, %s21, 1
      %p411 = scmp.lt.s32.totalorder %s408, 15
      %s412 = scalar_select %p411, %s408, 15
      %s413 = smul.addr %s412, 2
      %s414 = smul.addr %s410, 32
      %s415 = sadd.s32 %s413, %s414
      %s416 = smul.addr %s415, 4
      %s417 = scalar_lea.vmem %s2, %s416
      %s418 = sadd.s32 %s22, 1
      %s419 = smul.u32 %s418, 8
      %p420 = scmp.lt.s32.totalorder %s419, 15
      %s421 = scalar_select %p420, %s419, 15
      %p422 = scmp.lt.s32.totalorder %s21, 1
      %s423 = scalar_select %p422, %s21, 1
      %s424 = smul.addr %s423, 2
      %s425 = scalar_lea.vmem %s3, %s424
      %s426 = smul.u32 8, %s22
      %p427 = scmp.lt.s32.totalorder %s21, 1
      %s428 = scalar_select %p427, %s21, 1
      %p429 = scmp.lt.s32.totalorder %s426, 15
      %s430 = scalar_select %p429, %s426, 15
      %s431 = smul.addr %s430, 2
      %s432 = smul.addr %s428, 32
      %s433 = sadd.s32 %s431, %s432
      %s434 = smul.addr %s433, 4
      %s435 = scalar_lea.vmem %s6, %s434
      %s436 = smul.u32 8, %s22
      %v438 = vld [vmem:[%s425] sm:$0x1]
      %v439 = vld [vmem:[%s425 + $0x1] sm:$0x1]
      %vm440 = vcmask 253952
      %441 = vst.msk [vmem:[#allocation2 + $0x7] sm:$0x1] %vm440, 0.0
      %442 = vst.msk [vmem:[#allocation2 + $0x27] sm:$0x1] %vm440, 0.0
      %443 = vst.msk [vmem:[#allocation2 + $0x47] sm:$0x1] %vm440, 0.0
      %444 = vst.msk [vmem:[#allocation2 + $0x67] sm:$0x1] %vm440, 0.0
      %445 = vst.msk [vmem:[#allocation2 + $0x87] sm:$0x1] %vm440, 0.0
      %446 = vst.msk [vmem:[#allocation2 + $0xa7] sm:$0x1] %vm440, 0.0
      %447 = vst.msk [vmem:[#allocation2 + $0xc7] sm:$0x1] %vm440, 0.0
      %448 = vst.msk [vmem:[#allocation2 + $0xe7] sm:$0x1] %vm440, 0.0
      %449 = vst.msk [vmem:[#allocation2 + $0x107] sm:$0x1] %vm440, 0.0
      %450 = vst.msk [vmem:[#allocation2 + $0x127] sm:$0x1] %vm440, 0.0
      %451 = vst.msk [vmem:[#allocation2 + $0x18] sm:$0x1] %vm440, 0.0
      %452 = vst.msk [vmem:[#allocation2 + $0x38] sm:$0x1] %vm440, 0.0
      %453 = vst.msk [vmem:[#allocation2 + $0x58] sm:$0x1] %vm440, 0.0
      %454 = vst.msk [vmem:[#allocation2 + $0x78] sm:$0x1] %vm440, 0.0
      %455 = vst.msk [vmem:[#allocation2 + $0x98] sm:$0x1] %vm440, 0.0
      %456 = vst.msk [vmem:[#allocation2 + $0xb8] sm:$0x1] %vm440, 0.0
      %457 = vst.msk [vmem:[#allocation2 + $0xd8] sm:$0x1] %vm440, 0.0
      %458 = vst.msk [vmem:[#allocation2 + $0xf8] sm:$0x1] %vm440, 0.0
      %459 = vst.msk [vmem:[#allocation2 + $0x118] sm:$0x1] %vm440, 0.0
      %460 = vst.msk [vmem:[#allocation2 + $0x138] sm:$0x1] %vm440, 0.0
      %p461 = scmp.gt.s32.totalorder %s22, 0
      // Predicated region
      $region45: #{resnet_block_forward.5} parent=43 // pred_check
        %p462 = pneg %p461
      $region46: #{resnet_block_forward.5} parent=43 // pred_check_branch
        %464 = sbr.rel (%p462) target = $region48
      $region47: #{resnet_block_forward.5} parent=43 // pred_region
        %v465 = vld [vmem:[%s400] sm:$0xf]
        %v466 = vld [vmem:[%s400 + $0x4] sm:$0xf]
        %v467 = vunpack.c.l.bf16 %v465
        %v468 = vunpack.c.l.bf16 %v466
        %v469 = vlaneseq
        %v470 = vshrl.u32 %v469, 7
        %v471 = vsub.s32 0, %v470
        %v472 = vrot.slane %v438, %v471
        %v473 = vmul.f32 %v467, %v472
        %v474 = vmul.f32 %v468, %v472
        %v475 = vlaneseq
        %v476 = vshrl.u32 %v475, 7
        %v477 = vsub.s32 0, %v476
        %v478 = vrot.slane %v439, %v477
        %v479 = vadd.f32 %v473, %v478
        %v480 = vadd.f32 %v474, %v478
        %v481 = vxor.u32 %v479, 2147483648
        %v482 = vxor.u32 %v480, 2147483648
        %v483 = vmul.f32 %v481, 1.442695
        %v484 = vpow.pop %v483
        %v485 = vmul.f32 %v482, 1.442695
        %v486 = vpow.pop %v485
        %v487 = vadd.f32 %v484, 1.0
        %v488 = vadd.f32 %v486, 1.0
        %v489 = vrcp.pop %v487
        %v490 = vmul.f32 1.0, %v489
        %v491 = vrcp.pop %v488
        %v492 = vmul.f32 1.0, %v491
        %v493 = vmul.f32 %v479, %v490
        %v494 = vmul.f32 %v480, %v492
        %vm495 = vcmask 261120
        %496 = vst.msk [vmem:[#allocation2 + $0x8] sm:$0xff] %vm495, %v493
        %497 = vst.msk [vmem:[#allocation2 + $0x10] sm:$0xff] %vm495, %v494
      $region48: #{resnet_block_forward.5} parent=43 // pred_fallthru
        _
      %p498 = scmp.eq.s32.totalorder %s22, 0
      // Predicated region
      $region49: #{resnet_block_forward.5} parent=43 // pred_check
        %p499 = pneg %p498
      $region50: #{resnet_block_forward.5} parent=43 // pred_check_branch
        %501 = sbr.rel (%p499) target = $region52
      $region51: #{resnet_block_forward.5} parent=43 // pred_region
        %vm502 = vcmask 261120
        %503 = vst.msk [vmem:[#allocation2 + $0x8] sm:$0xff] %vm502, 0.0
        %504 = vst.msk [vmem:[#allocation2 + $0x10] sm:$0xff] %vm502, 0.0
      $region52: #{resnet_block_forward.5} parent=43 // pred_fallthru
        _
      %p505 = scmp.lt.s32.totalorder %s22, 1
      // Predicated region
      $region53: #{resnet_block_forward.5} parent=43 // pred_check
        %p506 = pneg %p505
      $region54: #{resnet_block_forward.5} parent=43 // pred_check_branch
        %508 = sbr.rel (%p506) target = $region56
      $region55: #{resnet_block_forward.5} parent=43 // pred_region
        %v509 = vld [vmem:[%s417] sm:$0xf]
        %v510 = vld [vmem:[%s417 + $0x4] sm:$0xf]
        %v511 = vunpack.c.l.bf16 %v509
        %v512 = vunpack.c.l.bf16 %v510
        %v513 = vlaneseq
        %v514 = vshrl.u32 %v513, 7
        %v515 = vsub.s32 0, %v514
        %v516 = vrot.slane %v438, %v515
        %v517 = vmul.f32 %v511, %v516
        %v518 = vmul.f32 %v512, %v516
        %v519 = vlaneseq
        %v520 = vshrl.u32 %v519, 7
        %v521 = vsub.s32 0, %v520
        %v522 = vrot.slane %v439, %v521
        %v523 = vadd.f32 %v517, %v522
        %v524 = vadd.f32 %v518, %v522
        %v525 = vxor.u32 %v523, 2147483648
        %v526 = vxor.u32 %v524, 2147483648
        %v527 = vmul.f32 %v525, 1.442695
        %v528 = vpow.pop %v527
        %v529 = vmul.f32 %v526, 1.442695
        %v530 = vpow.pop %v529
        %v531 = vadd.f32 %v528, 1.0
        %v532 = vadd.f32 %v530, 1.0
        %v533 = vrcp.pop %v531
        %v534 = vmul.f32 1.0, %v533
        %v535 = vrcp.pop %v532
        %v536 = vmul.f32 1.0, %v535
        %v537 = vmul.f32 %v523, %v534
        %v538 = vmul.f32 %v524, %v536
        %s539 = scalar_lea.vmem [#allocation2], 288
        %vm540 = vcmask 261120
        %541 = vst.msk [vmem:[%s539 + $0x8] sm:$0xff] %vm540, %v537
        %542 = vst.msk [vmem:[%s539 + $0x10] sm:$0xff] %vm540, %v538
      $region56: #{resnet_block_forward.5} parent=43 // pred_fallthru
        _
      %p543 = scmp.eq.s32.totalorder %s22, 1
      // Predicated region
      $region57: #{resnet_block_forward.5} parent=43 // pred_check
        %p544 = pneg %p543
      $region58: #{resnet_block_forward.5} parent=43 // pred_check_branch
        %546 = sbr.rel (%p544) target = $region60
      $region59: #{resnet_block_forward.5} parent=43 // pred_region
        %s547 = scalar_lea.vmem [#allocation2], 288
        %vm548 = vcmask 261120
        %549 = vst.msk [vmem:[%s547 + $0x8] sm:$0xff] %vm548, 0.0
        %550 = vst.msk [vmem:[%s547 + $0x10] sm:$0xff] %vm548, 0.0
      $region60: #{resnet_block_forward.5} parent=43 // pred_fallthru
        _
      %v551 = vld [vmem:[%s386] sm:$0xf]
      %v552 = vld [vmem:[%s386 + $0x4] sm:$0xf]
      %v553 = vld [vmem:[%s386 + $0x8] sm:$0xf]
      %v554 = vld [vmem:[%s386 + $0xc] sm:$0xf]
      %v555 = vld [vmem:[%s386 + $0x10] sm:$0xf]
      %v556 = vld [vmem:[%s386 + $0x14] sm:$0xf]
      %v557 = vld [vmem:[%s386 + $0x18] sm:$0xf]
      %v558 = vld [vmem:[%s386 + $0x1c] sm:$0xf]
      %v559 = vld [vmem:[%s386 + $0x20] sm:$0xf]
      %v560 = vld [vmem:[%s386 + $0x24] sm:$0xf]
      %v561 = vld [vmem:[%s386 + $0x28] sm:$0xf]
      %v562 = vld [vmem:[%s386 + $0x2c] sm:$0xf]
      %v563 = vld [vmem:[%s386 + $0x30] sm:$0xf]
      %v564 = vld [vmem:[%s386 + $0x34] sm:$0xf]
      %v565 = vld [vmem:[%s386 + $0x38] sm:$0xf]
      %v566 = vld [vmem:[%s386 + $0x3c] sm:$0xf]
      %v567 = vunpack.c.l.bf16 %v551
      %v568 = vunpack.c.l.bf16 %v552
      %v569 = vunpack.c.l.bf16 %v553
      %v570 = vunpack.c.l.bf16 %v554
      %v571 = vunpack.c.l.bf16 %v555
      %v572 = vunpack.c.l.bf16 %v556
      %v573 = vunpack.c.l.bf16 %v557
      %v574 = vunpack.c.l.bf16 %v558
      %v575 = vunpack.c.l.bf16 %v559
      %v576 = vunpack.c.l.bf16 %v560
      %v577 = vunpack.c.l.bf16 %v561
      %v578 = vunpack.c.l.bf16 %v562
      %v579 = vunpack.c.l.bf16 %v563
      %v580 = vunpack.c.l.bf16 %v564
      %v581 = vunpack.c.l.bf16 %v565
      %v582 = vunpack.c.l.bf16 %v566
      %v583 = vlaneseq
      %v584 = vshrl.u32 %v583, 7
      %v585 = vsub.s32 0, %v584
      %v586 = vrot.slane %v438, %v585
      %v587 = vmul.f32 %v567, %v586
      %v588 = vmul.f32 %v568, %v586
      %v589 = vmul.f32 %v569, %v586
      %v590 = vmul.f32 %v570, %v586
      %v591 = vmul.f32 %v571, %v586
      %v592 = vmul.f32 %v572, %v586
      %v593 = vmul.f32 %v573, %v586
      %v594 = vmul.f32 %v574, %v586
      %v595 = vmul.f32 %v575, %v586
      %v596 = vmul.f32 %v576, %v586
      %v597 = vmul.f32 %v577, %v586
      %v598 = vmul.f32 %v578, %v586
      %v599 = vmul.f32 %v579, %v586
      %v600 = vmul.f32 %v580, %v586
      %v601 = vmul.f32 %v581, %v586
      %v602 = vmul.f32 %v582, %v586
      %v603 = vlaneseq
      %v604 = vshrl.u32 %v603, 7
      %v605 = vsub.s32 0, %v604
      %v606 = vrot.slane %v439, %v605
      %v607 = vadd.f32 %v587, %v606
      %v608 = vadd.f32 %v588, %v606
      %v609 = vadd.f32 %v589, %v606
      %v610 = vadd.f32 %v590, %v606
      %v611 = vadd.f32 %v591, %v606
      %v612 = vadd.f32 %v592, %v606
      %v613 = vadd.f32 %v593, %v606
      %v614 = vadd.f32 %v594, %v606
      %v615 = vadd.f32 %v595, %v606
      %v616 = vadd.f32 %v596, %v606
      %v617 = vadd.f32 %v597, %v606
      %v618 = vadd.f32 %v598, %v606
      %v619 = vadd.f32 %v599, %v606
      %v620 = vadd.f32 %v600, %v606
      %v621 = vadd.f32 %v601, %v606
      %v622 = vadd.f32 %v602, %v606
      %v623 = vxor.u32 %v607, 2147483648
      %v624 = vxor.u32 %v608, 2147483648
      %v625 = vxor.u32 %v609, 2147483648
      %v626 = vxor.u32 %v610, 2147483648
      %v627 = vxor.u32 %v611, 2147483648
      %v628 = vxor.u32 %v612, 2147483648
      %v629 = vxor.u32 %v613, 2147483648
      %v630 = vxor.u32 %v614, 2147483648
      %v631 = vxor.u32 %v615, 2147483648
      %v632 = vxor.u32 %v616, 2147483648
      %v633 = vxor.u32 %v617, 2147483648
      %v634 = vxor.u32 %v618, 2147483648
      %v635 = vxor.u32 %v619, 2147483648
      %v636 = vxor.u32 %v620, 2147483648
      %v637 = vxor.u32 %v621, 2147483648
      %v638 = vxor.u32 %v622, 2147483648
      %v639 = vmul.f32 %v623, 1.442695
      %v640 = vpow.pop %v639
      %v641 = vmul.f32 %v624, 1.442695
      %v642 = vpow.pop %v641
      %v643 = vmul.f32 %v625, 1.442695
      %v644 = vpow.pop %v643
      %v645 = vmul.f32 %v626, 1.442695
      %v646 = vpow.pop %v645
      %v647 = vmul.f32 %v627, 1.442695
      %v648 = vpow.pop %v647
      %v649 = vmul.f32 %v628, 1.442695
      %v650 = vpow.pop %v649
      %v651 = vmul.f32 %v629, 1.442695
      %v652 = vpow.pop %v651
      %v653 = vmul.f32 %v630, 1.442695
      %v654 = vpow.pop %v653
      %v655 = vmul.f32 %v631, 1.442695
      %v656 = vpow.pop %v655
      %v657 = vmul.f32 %v632, 1.442695
      %v658 = vpow.pop %v657
      %v659 = vmul.f32 %v633, 1.442695
      %v660 = vpow.pop %v659
      %v661 = vmul.f32 %v634, 1.442695
      %v662 = vpow.pop %v661
      %v663 = vmul.f32 %v635, 1.442695
      %v664 = vpow.pop %v663
      %v665 = vmul.f32 %v636, 1.442695
      %v666 = vpow.pop %v665
      %v667 = vmul.f32 %v637, 1.442695
      %v668 = vpow.pop %v667
      %v669 = vmul.f32 %v638, 1.442695
      %v670 = vpow.pop %v669
      %v671 = vadd.f32 %v640, 1.0
      %v672 = vadd.f32 %v642, 1.0
      %v673 = vadd.f32 %v644, 1.0
      %v674 = vadd.f32 %v646, 1.0
      %v675 = vadd.f32 %v648, 1.0
      %v676 = vadd.f32 %v650, 1.0
      %v677 = vadd.f32 %v652, 1.0
      %v678 = vadd.f32 %v654, 1.0
      %v679 = vadd.f32 %v656, 1.0
      %v680 = vadd.f32 %v658, 1.0
      %v681 = vadd.f32 %v660, 1.0
      %v682 = vadd.f32 %v662, 1.0
      %v683 = vadd.f32 %v664, 1.0
      %v684 = vadd.f32 %v666, 1.0
      %v685 = vadd.f32 %v668, 1.0
      %v686 = vadd.f32 %v670, 1.0
      %v687 = vrcp.pop %v671
      %v688 = vmul.f32 1.0, %v687
      %v689 = vrcp.pop %v672
      %v690 = vmul.f32 1.0, %v689
      %v691 = vrcp.pop %v673
      %v692 = vmul.f32 1.0, %v691
      %v693 = vrcp.pop %v674
      %v694 = vmul.f32 1.0, %v693
      %v695 = vrcp.pop %v675
      %v696 = vmul.f32 1.0, %v695
      %v697 = vrcp.pop %v676
      %v698 = vmul.f32 1.0, %v697
      %v699 = vrcp.pop %v677
      %v700 = vmul.f32 1.0, %v699
      %v701 = vrcp.pop %v678
      %v702 = vmul.f32 1.0, %v701
      %v703 = vrcp.pop %v679
      %v704 = vmul.f32 1.0, %v703
      %v705 = vrcp.pop %v680
      %v706 = vmul.f32 1.0, %v705
      %v707 = vrcp.pop %v681
      %v708 = vmul.f32 1.0, %v707
      %v709 = vrcp.pop %v682
      %v710 = vmul.f32 1.0, %v709
      %v711 = vrcp.pop %v683
      %v712 = vmul.f32 1.0, %v711
      %v713 = vrcp.pop %v684
      %v714 = vmul.f32 1.0, %v713
      %v715 = vrcp.pop %v685
      %v716 = vmul.f32 1.0, %v715
      %v717 = vrcp.pop %v686
      %v718 = vmul.f32 1.0, %v717
      %v719 = vmul.f32 %v607, %v688
      %v720 = vmul.f32 %v608, %v690
      %v721 = vmul.f32 %v609, %v692
      %v722 = vmul.f32 %v610, %v694
      %v723 = vmul.f32 %v611, %v696
      %v724 = vmul.f32 %v612, %v698
      %v725 = vmul.f32 %v613, %v700
      %v726 = vmul.f32 %v614, %v702
      %v727 = vmul.f32 %v615, %v704
      %v728 = vmul.f32 %v616, %v706
      %v729 = vmul.f32 %v617, %v708
      %v730 = vmul.f32 %v618, %v710
      %v731 = vmul.f32 %v619, %v712
      %v732 = vmul.f32 %v620, %v714
      %v733 = vmul.f32 %v621, %v716
      %v734 = vmul.f32 %v622, %v718
      %s735 = scalar_lea.vmem [#allocation2], 32
      %vm736 = vcmask 261120
      %737 = vst.msk [vmem:[%s735 + $0x8] sm:$0xff] %vm736, %v719
      %738 = vst.msk [vmem:[%s735 + $0x10] sm:$0xff] %vm736, %v720
      %739 = vst.msk [vmem:[%s735 + $0x28] sm:$0xff] %vm736, %v721
      %740 = vst.msk [vmem:[%s735 + $0x30] sm:$0xff] %vm736, %v722
      %741 = vst.msk [vmem:[%s735 + $0x48] sm:$0xff] %vm736, %v723
      %742 = vst.msk [vmem:[%s735 + $0x50] sm:$0xff] %vm736, %v724
      %743 = vst.msk [vmem:[%s735 + $0x68] sm:$0xff] %vm736, %v725
      %744 = vst.msk [vmem:[%s735 + $0x70] sm:$0xff] %vm736, %v726
      %745 = vst.msk [vmem:[%s735 + $0x88] sm:$0xff] %vm736, %v727
      %746 = vst.msk [vmem:[%s735 + $0x90] sm:$0xff] %vm736, %v728
      %747 = vst.msk [vmem:[%s735 + $0xa8] sm:$0xff] %vm736, %v729
      %748 = vst.msk [vmem:[%s735 + $0xb0] sm:$0xff] %vm736, %v730
      %749 = vst.msk [vmem:[%s735 + $0xc8] sm:$0xff] %vm736, %v731
      %750 = vst.msk [vmem:[%s735 + $0xd0] sm:$0xff] %vm736, %v732
      %751 = vst.msk [vmem:[%s735 + $0xe8] sm:$0xff] %vm736, %v733
      %752 = vst.msk [vmem:[%s735 + $0xf0] sm:$0xff] %vm736, %v734
      %v753 = vld [vmem:[%s5] sm:$0x1]
      %v754 = vld [vmem:[#allocation2 + $0x7] sm:$0xff]
      %v755 = vld [vmem:[#allocation2 + $0xf] sm:$0xff]
      %v756 = vld [vmem:[#allocation2 + $0x27] sm:$0xff]
      %v757 = vld [vmem:[#allocation2 + $0x2f] sm:$0xff]
      %v758 = vld [vmem:[#allocation2 + $0x47] sm:$0xff]
      %v759 = vld [vmem:[#allocation2 + $0x4f] sm:$0xff]
      %v760 = vld [vmem:[#allocation2 + $0x67] sm:$0xff]
      %v761 = vld [vmem:[#allocation2 + $0x6f] sm:$0xff]
      %v762 = vld [vmem:[#allocation2 + $0x87] sm:$0xff]
      %v763 = vld [vmem:[#allocation2 + $0x8f] sm:$0xff]
      %v764 = vld [vmem:[#allocation2 + $0xa7] sm:$0xff]
      %v765 = vld [vmem:[#allocation2 + $0xaf] sm:$0xff]
      %v766 = vld [vmem:[#allocation2 + $0xc7] sm:$0xff]
      %v767 = vld [vmem:[#allocation2 + $0xcf] sm:$0xff]
      %v768 = vld [vmem:[#allocation2 + $0xe7] sm:$0xff]
      %v769 = vld [vmem:[#allocation2 + $0xef] sm:$0xff]
      %v770 = vld [vmem:[#allocation2 + $0x107] sm:$0xff]
      %v771 = vld [vmem:[#allocation2 + $0x10f] sm:$0xff]
      %v772 = vld [vmem:[#allocation2 + $0x127] sm:$0xff]
      %v773 = vld [vmem:[#allocation2 + $0x12f] sm:$0xff]
      %v774 = vpack.c.bf16 %v755, %v754
      %v775 = vpack.c.bf16 %v757, %v756
      %v776 = vpack.c.bf16 %v759, %v758
      %v777 = vpack.c.bf16 %v761, %v760
      %v778 = vpack.c.bf16 %v763, %v762
      %v779 = vpack.c.bf16 %v765, %v764
      %v780 = vpack.c.bf16 %v767, %v766
      %v781 = vpack.c.bf16 %v769, %v768
      %v782 = vpack.c.bf16 %v771, %v770
      %v783 = vpack.c.bf16 %v773, %v772
      %v784 = vld [vmem:[%s4] sm:$0xf]
      %v785 = vld [vmem:[%s4 + $0x4] sm:$0xf]
      %v786 = vld [vmem:[%s4 + $0x8] sm:$0xf]
      %v787 = vld [vmem:[%s4 + $0xc] sm:$0xf]
      %s788 = scalar_lea.vmem %s4, 48
      %v789 = vld [vmem:[%s788] sm:$0xf]
      %v790 = vld [vmem:[%s788 + $0x4] sm:$0xf]
      %v791 = vld [vmem:[%s788 + $0x8] sm:$0xf]
      %v792 = vld [vmem:[%s788 + $0xc] sm:$0xf]
      %v797 = vunpack.c.l.b16 %v789
      %v798 = vunpack.c.l.b16 %v790
      %v799 = vunpack.c.l.b16 %v791
      %v800 = vunpack.c.l.b16 %v792
      %v801 = vpack.c.b16 %v798, %v797
      %v802 = vpack.c.b16 %v800, %v799
      %v806 = vsel %vm736, %v775, 0
      %v809 = vsel %vm736, %v776, 0
      %v812 = vsel %vm736, %v777, 0
      %v815 = vsel %vm736, %v778, 0
      %v818 = vsel %vm736, %v779, 0
      %v821 = vsel %vm736, %v780, 0
      %v824 = vsel %vm736, %v781, 0
      %v827 = vsel %vm736, %v782, 0
      %829 = vmatprep.subr.bf16.mxu0 0
      %830 = vmatpush1.bf16.msra.mxu0 %v801
      %831 = vmatprep.subr.bf16.mxu0 0
      %832 = vmatpush1.bf16.msra.mxu0 %v802
      %833 = vmatprep.subr.bf16.mxu0 0
      %834 = vmatpush1.bf16.msra.mxu0 0
      %835 = vmatprep.subr.bf16.mxu0 0
      %836 = vmatpush1.bf16.msra.mxu0 0
      %837 = vmatprep.subr.bf16.mxu0 0
      %838 = vmatpush1.bf16.msra.mxu0 0
      %839 = vmatprep.subr.bf16.mxu0 0
      %840 = vmatpush1.bf16.msra.mxu0 0
      %841 = vmatprep.subr.bf16.mxu0 0
      %842 = vmatpush1.bf16.msra.mxu0 0
      %843 = vmatprep.subr.bf16.mxu0 0
      %844 = vmatpush1.bf16.msra.mxu0 0
      %845 = vmatprep.subr.bf16.mxu0 0
      %846 = vmatpush1.bf16.msra.mxu0 0
      %847 = vmatprep.subr.bf16.mxu0 0
      %848 = vmatpush1.bf16.msra.mxu0 0
      %849 = vmatprep.subr.bf16.mxu0 0
      %850 = vmatpush1.bf16.msra.mxu0 0
      %851 = vmatprep.subr.bf16.mxu0 0
      %852 = vmatpush1.bf16.msra.mxu0 0
      %853 = vmatprep.subr.bf16.mxu0 0
      %854 = vmatpush1.bf16.msra.mxu0 0
      %855 = vmatprep.subr.bf16.mxu0 0
      %856 = vmatpush1.bf16.msra.mxu0 0
      %857 = vmatprep.subr.bf16.mxu0 0
      %858 = vmatpush1.bf16.msra.mxu0 0
      %859 = vmatprep.subr.bf16.mxu0 0
      %860 = vmatpush1.bf16.msra.mxu0 0
      %861 = vmatprep.mubr.bf16.mxu0 0
      %862 = vmatmul.mubr.bf16.gmra.mrb[0].mxu0 %v806
      %v863 = vpop.f32.mrb[0].mxu0
      %v864 = vadd.f32 0.0, %v863
      %v865 = vpop.f32.mrb[0].mxu0
      %v866 = vpop.f32.mrb[0].mxu0
      %v867 = vadd.f32 0.0, %v866
      %v868 = vpop.f32.mrb[0].mxu0
      %869 = vmatprep.mubr.bf16.mxu0 0
      %870 = vmatmul.mubr.bf16.gmra.mrb[0].mxu0 %v809
      %v871 = vpop.f32.mrb[0].mxu0
      %v872 = vadd.f32 0.0, %v871
      %v873 = vpop.f32.mrb[0].mxu0
      %v874 = vpop.f32.mrb[0].mxu0
      %v875 = vadd.f32 0.0, %v874
      %v876 = vpop.f32.mrb[0].mxu0
      %877 = vmatprep.mubr.bf16.mxu0 0
      %878 = vmatmul.mubr.bf16.gmra.mrb[0].mxu0 %v812
      %v879 = vpop.f32.mrb[0].mxu0
      %v880 = vadd.f32 0.0, %v879
      %v881 = vpop.f32.mrb[0].mxu0
      %v882 = vpop.f32.mrb[0].mxu0
      %v883 = vadd.f32 0.0, %v882
      %v884 = vpop.f32.mrb[0].mxu0
      %885 = vmatprep.mubr.bf16.mxu0 0
      %886 = vmatmul.mubr.bf16.gmra.mrb[0].mxu0 %v815
      %v887 = vpop.f32.mrb[0].mxu0
      %v888 = vadd.f32 0.0, %v887
      %v889 = vpop.f32.mrb[0].mxu0
      %v890 = vpop.f32.mrb[0].mxu0
      %v891 = vadd.f32 0.0, %v890
      %v892 = vpop.f32.mrb[0].mxu0
      %893 = vmatprep.mubr.bf16.mxu0 0
      %894 = vmatmul.mubr.bf16.gmra.mrb[0].mxu0 %v818
      %v895 = vpop.f32.mrb[0].mxu0
      %v896 = vadd.f32 0.0, %v895
      %v897 = vpop.f32.mrb[0].mxu0
      %v898 = vpop.f32.mrb[0].mxu0
      %v899 = vadd.f32 0.0, %v898
      %v900 = vpop.f32.mrb[0].mxu0
      %901 = vmatprep.mubr.bf16.mxu0 0
      %902 = vmatmul.mubr.bf16.gmra.mrb[0].mxu0 %v821
      %v903 = vpop.f32.mrb[0].mxu0
      %v904 = vadd.f32 0.0, %v903
      %v905 = vpop.f32.mrb[0].mxu0
      %v906 = vpop.f32.mrb[0].mxu0
      %v907 = vadd.f32 0.0, %v906
      %v908 = vpop.f32.mrb[0].mxu0
      %909 = vmatprep.mubr.bf16.mxu0 0
      %910 = vmatmul.mubr.bf16.gmra.mrb[0].mxu0 %v824
      %v911 = vpop.f32.mrb[0].mxu0
      %v912 = vadd.f32 0.0, %v911
      %v913 = vpop.f32.mrb[0].mxu0
      %v914 = vpop.f32.mrb[0].mxu0
      %v915 = vadd.f32 0.0, %v914
      %v916 = vpop.f32.mrb[0].mxu0
      %917 = vmatprep.mubr.bf16.mxu0 0
      %918 = vmatmul.mubr.bf16.gmra.mrb[0].mxu0 %v827
      %v919 = vpop.f32.mrb[0].mxu0
      %v920 = vadd.f32 0.0, %v919
      %v921 = vpop.f32.mrb[0].mxu0
      %v922 = vpop.f32.mrb[0].mxu0
      %v923 = vadd.f32 0.0, %v922
      %v924 = vpop.f32.mrb[0].mxu0
      %925 = vdwg.mxu0
      %v930 = vunpack.c.l.b16 %v784
      %v931 = vunpack.c.l.b16 %v785
      %v932 = vunpack.c.l.b16 %v786
      %v933 = vunpack.c.l.b16 %v787
      %v934 = vpack.c.b16 %v931, %v930
      %v935 = vpack.c.b16 %v933, %v932
      %v939 = vsel %vm736, %v774, 0
      %941 = vmatprep.subr.bf16.mxu0 0
      %942 = vmatpush1.bf16.msra.mxu0 %v934
      %943 = vmatprep.subr.bf16.mxu0 0
      %944 = vmatpush1.bf16.msra.mxu0 %v935
      %945 = vmatprep.subr.bf16.mxu0 0
      %946 = vmatpush1.bf16.msra.mxu0 0
      %947 = vmatprep.subr.bf16.mxu0 0
      %948 = vmatpush1.bf16.msra.mxu0 0
      %949 = vmatprep.subr.bf16.mxu0 0
      %950 = vmatpush1.bf16.msra.mxu0 0
      %951 = vmatprep.subr.bf16.mxu0 0
      %952 = vmatpush1.bf16.msra.mxu0 0
      %953 = vmatprep.subr.bf16.mxu0 0
      %954 = vmatpush1.bf16.msra.mxu0 0
      %955 = vmatprep.subr.bf16.mxu0 0
      %956 = vmatpush1.bf16.msra.mxu0 0
      %957 = vmatprep.subr.bf16.mxu0 0
      %958 = vmatpush1.bf16.msra.mxu0 0
      %959 = vmatprep.subr.bf16.mxu0 0
      %960 = vmatpush1.bf16.msra.mxu0 0
      %961 = vmatprep.subr.bf16.mxu0 0
      %962 = vmatpush1.bf16.msra.mxu0 0
      %963 = vmatprep.subr.bf16.mxu0 0
      %964 = vmatpush1.bf16.msra.mxu0 0
      %965 = vmatprep.subr.bf16.mxu0 0
      %966 = vmatpush1.bf16.msra.mxu0 0
      %967 = vmatprep.subr.bf16.mxu0 0
      %968 = vmatpush1.bf16.msra.mxu0 0
      %969 = vmatprep.subr.bf16.mxu0 0
      %970 = vmatpush1.bf16.msra.mxu0 0
      %971 = vmatprep.subr.bf16.mxu0 0
      %972 = vmatpush1.bf16.msra.mxu0 0
      %973 = vmatprep.mubr.bf16.mxu0 0
      %974 = vmatmul.mubr.bf16.gmra.mrb[0].mxu0 %v939
      %v975 = vpop.f32.mrb[0].mxu0
      %v976 = vadd.f32 %v864, %v975
      %v977 = vpop.f32.mrb[0].mxu0
      %v978 = vpop.f32.mrb[0].mxu0
      %v979 = vadd.f32 %v867, %v978
      %v980 = vpop.f32.mrb[0].mxu0
      %981 = vmatprep.mubr.bf16.mxu0 0
      %982 = vmatmul.mubr.bf16.gmra.mrb[0].mxu0 %v806
      %v983 = vpop.f32.mrb[0].mxu0
      %v984 = vadd.f32 %v872, %v983
      %v985 = vpop.f32.mrb[0].mxu0
      %v986 = vpop.f32.mrb[0].mxu0
      %v987 = vadd.f32 %v875, %v986
      %v988 = vpop.f32.mrb[0].mxu0
      %989 = vmatprep.mubr.bf16.mxu0 0
      %990 = vmatmul.mubr.bf16.gmra.mrb[0].mxu0 %v809
      %v991 = vpop.f32.mrb[0].mxu0
      %v992 = vadd.f32 %v880, %v991
      %v993 = vpop.f32.mrb[0].mxu0
      %v994 = vpop.f32.mrb[0].mxu0
      %v995 = vadd.f32 %v883, %v994
      %v996 = vpop.f32.mrb[0].mxu0
      %997 = vmatprep.mubr.bf16.mxu0 0
      %998 = vmatmul.mubr.bf16.gmra.mrb[0].mxu0 %v812
      %v999 = vpop.f32.mrb[0].mxu0
      %v1000 = vadd.f32 %v888, %v999
      %v1001 = vpop.f32.mrb[0].mxu0
      %v1002 = vpop.f32.mrb[0].mxu0
      %v1003 = vadd.f32 %v891, %v1002
      %v1004 = vpop.f32.mrb[0].mxu0
      %1005 = vmatprep.mubr.bf16.mxu0 0
      %1006 = vmatmul.mubr.bf16.gmra.mrb[0].mxu0 %v815
      %v1007 = vpop.f32.mrb[0].mxu0
      %v1008 = vadd.f32 %v896, %v1007
      %v1009 = vpop.f32.mrb[0].mxu0
      %v1010 = vpop.f32.mrb[0].mxu0
      %v1011 = vadd.f32 %v899, %v1010
      %v1012 = vpop.f32.mrb[0].mxu0
      %1013 = vmatprep.mubr.bf16.mxu0 0
      %1014 = vmatmul.mubr.bf16.gmra.mrb[0].mxu0 %v818
      %v1015 = vpop.f32.mrb[0].mxu0
      %v1016 = vadd.f32 %v904, %v1015
      %v1017 = vpop.f32.mrb[0].mxu0
      %v1018 = vpop.f32.mrb[0].mxu0
      %v1019 = vadd.f32 %v907, %v1018
      %v1020 = vpop.f32.mrb[0].mxu0
      %1021 = vmatprep.mubr.bf16.mxu0 0
      %1022 = vmatmul.mubr.bf16.gmra.mrb[0].mxu0 %v821
      %v1023 = vpop.f32.mrb[0].mxu0
      %v1024 = vadd.f32 %v912, %v1023
      %v1025 = vpop.f32.mrb[0].mxu0
      %v1026 = vpop.f32.mrb[0].mxu0
      %v1027 = vadd.f32 %v915, %v1026
      %v1028 = vpop.f32.mrb[0].mxu0
      %1029 = vmatprep.mubr.bf16.mxu0 0
      %1030 = vmatmul.mubr.bf16.gmra.mrb[0].mxu0 %v824
      %v1031 = vpop.f32.mrb[0].mxu0
      %v1032 = vadd.f32 %v920, %v1031
      %v1033 = vpop.f32.mrb[0].mxu0
      %v1034 = vpop.f32.mrb[0].mxu0
      %v1035 = vadd.f32 %v923, %v1034
      %v1036 = vpop.f32.mrb[0].mxu0
      %1037 = vdwg.mxu0
      %s1038 = scalar_lea.vmem %s4, 96
      %v1039 = vld [vmem:[%s1038] sm:$0xf]
      %v1040 = vld [vmem:[%s1038 + $0x4] sm:$0xf]
      %v1041 = vld [vmem:[%s1038 + $0x8] sm:$0xf]
      %v1042 = vld [vmem:[%s1038 + $0xc] sm:$0xf]
      %v1047 = vunpack.c.l.b16 %v1039
      %v1048 = vunpack.c.l.b16 %v1040
      %v1049 = vunpack.c.l.b16 %v1041
      %v1050 = vunpack.c.l.b16 %v1042
      %v1051 = vpack.c.b16 %v1048, %v1047
      %v1052 = vpack.c.b16 %v1050, %v1049
      %v1056 = vsel %vm736, %v783, 0
      %1058 = vmatprep.subr.bf16.mxu0 0
      %1059 = vmatpush1.bf16.msra.mxu0 %v1051
      %1060 = vmatprep.subr.bf16.mxu0 0
      %1061 = vmatpush1.bf16.msra.mxu0 %v1052
      %1062 = vmatprep.subr.bf16.mxu0 0
      %1063 = vmatpush1.bf16.msra.mxu0 0
      %1064 = vmatprep.subr.bf16.mxu0 0
      %1065 = vmatpush1.bf16.msra.mxu0 0
      %1066 = vmatprep.subr.bf16.mxu0 0
      %1067 = vmatpush1.bf16.msra.mxu0 0
      %1068 = vmatprep.subr.bf16.mxu0 0
      %1069 = vmatpush1.bf16.msra.mxu0 0
      %1070 = vmatprep.subr.bf16.mxu0 0
      %1071 = vmatpush1.bf16.msra.mxu0 0
      %1072 = vmatprep.subr.bf16.mxu0 0
      %1073 = vmatpush1.bf16.msra.mxu0 0
      %1074 = vmatprep.subr.bf16.mxu0 0
      %1075 = vmatpush1.bf16.msra.mxu0 0
      %1076 = vmatprep.subr.bf16.mxu0 0
      %1077 = vmatpush1.bf16.msra.mxu0 0
      %1078 = vmatprep.subr.bf16.mxu0 0
      %1079 = vmatpush1.bf16.msra.mxu0 0
      %1080 = vmatprep.subr.bf16.mxu0 0
      %1081 = vmatpush1.bf16.msra.mxu0 0
      %1082 = vmatprep.subr.bf16.mxu0 0
      %1083 = vmatpush1.bf16.msra.mxu0 0
      %1084 = vmatprep.subr.bf16.mxu0 0
      %1085 = vmatpush1.bf16.msra.mxu0 0
      %1086 = vmatprep.subr.bf16.mxu0 0
      %1087 = vmatpush1.bf16.msra.mxu0 0
      %1088 = vmatprep.subr.bf16.mxu0 0
      %1089 = vmatpush1.bf16.msra.mxu0 0
      %1090 = vmatprep.mubr.bf16.mxu0 0
      %1091 = vmatmul.mubr.bf16.gmra.mrb[0].mxu0 %v809
      %v1092 = vpop.f32.mrb[0].mxu0
      %v1093 = vadd.f32 0.0, %v1092
      %v1094 = vpop.f32.mrb[0].mxu0
      %v1095 = vpop.f32.mrb[0].mxu0
      %v1096 = vadd.f32 0.0, %v1095
      %v1097 = vpop.f32.mrb[0].mxu0
      %1098 = vmatprep.mubr.bf16.mxu0 0
      %1099 = vmatmul.mubr.bf16.gmra.mrb[0].mxu0 %v812
      %v1100 = vpop.f32.mrb[0].mxu0
      %v1101 = vadd.f32 0.0, %v1100
      %v1102 = vpop.f32.mrb[0].mxu0
      %v1103 = vpop.f32.mrb[0].mxu0
      %v1104 = vadd.f32 0.0, %v1103
      %v1105 = vpop.f32.mrb[0].mxu0
      %1106 = vmatprep.mubr.bf16.mxu0 0
      %1107 = vmatmul.mubr.bf16.gmra.mrb[0].mxu0 %v815
      %v1108 = vpop.f32.mrb[0].mxu0
      %v1109 = vadd.f32 0.0, %v1108
      %v1110 = vpop.f32.mrb[0].mxu0
      %v1111 = vpop.f32.mrb[0].mxu0
      %v1112 = vadd.f32 0.0, %v1111
      %v1113 = vpop.f32.mrb[0].mxu0
      %1114 = vmatprep.mubr.bf16.mxu0 0
      %1115 = vmatmul.mubr.bf16.gmra.mrb[0].mxu0 %v818
      %v1116 = vpop.f32.mrb[0].mxu0
      %v1117 = vadd.f32 0.0, %v1116
      %v1118 = vpop.f32.mrb[0].mxu0
      %v1119 = vpop.f32.mrb[0].mxu0
      %v1120 = vadd.f32 0.0, %v1119
      %v1121 = vpop.f32.mrb[0].mxu0
      %1122 = vmatprep.mubr.bf16.mxu0 0
      %1123 = vmatmul.mubr.bf16.gmra.mrb[0].mxu0 %v821
      %v1124 = vpop.f32.mrb[0].mxu0
      %v1125 = vadd.f32 0.0, %v1124
      %v1126 = vpop.f32.mrb[0].mxu0
      %v1127 = vpop.f32.mrb[0].mxu0
      %v1128 = vadd.f32 0.0, %v1127
      %v1129 = vpop.f32.mrb[0].mxu0
      %1130 = vmatprep.mubr.bf16.mxu0 0
      %1131 = vmatmul.mubr.bf16.gmra.mrb[0].mxu0 %v824
      %v1132 = vpop.f32.mrb[0].mxu0
      %v1133 = vadd.f32 0.0, %v1132
      %v1134 = vpop.f32.mrb[0].mxu0
      %v1135 = vpop.f32.mrb[0].mxu0
      %v1136 = vadd.f32 0.0, %v1135
      %v1137 = vpop.f32.mrb[0].mxu0
      %1138 = vmatprep.mubr.bf16.mxu0 0
      %1139 = vmatmul.mubr.bf16.gmra.mrb[0].mxu0 %v827
      %v1140 = vpop.f32.mrb[0].mxu0
      %v1141 = vadd.f32 0.0, %v1140
      %v1142 = vpop.f32.mrb[0].mxu0
      %v1143 = vpop.f32.mrb[0].mxu0
      %v1144 = vadd.f32 0.0, %v1143
      %v1145 = vpop.f32.mrb[0].mxu0
      %1146 = vmatprep.mubr.bf16.mxu0 0
      %1147 = vmatmul.mubr.bf16.gmra.mrb[0].mxu0 %v1056
      %v1148 = vpop.f32.mrb[0].mxu0
      %v1149 = vadd.f32 0.0, %v1148
      %v1150 = vpop.f32.mrb[0].mxu0
      %v1151 = vpop.f32.mrb[0].mxu0
      %v1152 = vadd.f32 0.0, %v1151
      %v1153 = vpop.f32.mrb[0].mxu0
      %1154 = vdwg.mxu0
      %v1155 = vadd.f32 %v976, %v1093
      %v1156 = vadd.f32 %v979, %v1096
      %v1157 = vadd.f32 %v984, %v1101
      %v1158 = vadd.f32 %v987, %v1104
      %v1159 = vadd.f32 %v992, %v1109
      %v1160 = vadd.f32 %v995, %v1112
      %v1161 = vadd.f32 %v1000, %v1117
      %v1162 = vadd.f32 %v1003, %v1120
      %v1163 = vadd.f32 %v1008, %v1125
      %v1164 = vadd.f32 %v1011, %v1128
      %v1165 = vadd.f32 %v1016, %v1133
      %v1166 = vadd.f32 %v1019, %v1136
      %v1167 = vadd.f32 %v1024, %v1141
      %v1168 = vadd.f32 %v1027, %v1144
      %v1169 = vadd.f32 %v1032, %v1149
      %v1170 = vadd.f32 %v1035, %v1152
      %v1171 = vld [vmem:[#allocation2 + $0x8] sm:$0xff]
      %v1172 = vld [vmem:[#allocation2 + $0x10] sm:$0xff]
      %v1173 = vld [vmem:[#allocation2 + $0x28] sm:$0xff]
      %v1174 = vld [vmem:[#allocation2 + $0x30] sm:$0xff]
      %v1175 = vld [vmem:[#allocation2 + $0x48] sm:$0xff]
      %v1176 = vld [vmem:[#allocation2 + $0x50] sm:$0xff]
      %v1177 = vld [vmem:[#allocation2 + $0x68] sm:$0xff]
      %v1178 = vld [vmem:[#allocation2 + $0x70] sm:$0xff]
      %v1179 = vld [vmem:[#allocation2 + $0x88] sm:$0xff]
      %v1180 = vld [vmem:[#allocation2 + $0x90] sm:$0xff]
      %v1181 = vld [vmem:[#allocation2 + $0xa8] sm:$0xff]
      %v1182 = vld [vmem:[#allocation2 + $0xb0] sm:$0xff]
      %v1183 = vld [vmem:[#allocation2 + $0xc8] sm:$0xff]
      %v1184 = vld [vmem:[#allocation2 + $0xd0] sm:$0xff]
      %v1185 = vld [vmem:[#allocation2 + $0xe8] sm:$0xff]
      %v1186 = vld [vmem:[#allocation2 + $0xf0] sm:$0xff]
      %v1187 = vld [vmem:[#allocation2 + $0x108] sm:$0xff]
      %v1188 = vld [vmem:[#allocation2 + $0x110] sm:$0xff]
      %v1189 = vld [vmem:[#allocation2 + $0x128] sm:$0xff]
      %v1190 = vld [vmem:[#allocation2 + $0x130] sm:$0xff]
      %v1191 = vpack.c.bf16 %v1172, %v1171
      %v1192 = vpack.c.bf16 %v1174, %v1173
      %v1193 = vpack.c.bf16 %v1176, %v1175
      %v1194 = vpack.c.bf16 %v1178, %v1177
      %v1195 = vpack.c.bf16 %v1180, %v1179
      %v1196 = vpack.c.bf16 %v1182, %v1181
      %v1197 = vpack.c.bf16 %v1184, %v1183
      %v1198 = vpack.c.bf16 %v1186, %v1185
      %v1199 = vpack.c.bf16 %v1188, %v1187
      %v1200 = vpack.c.bf16 %v1190, %v1189
      %s1201 = scalar_lea.vmem %s4, 16
      %v1202 = vld [vmem:[%s1201] sm:$0xf]
      %v1203 = vld [vmem:[%s1201 + $0x4] sm:$0xf]
      %v1204 = vld [vmem:[%s1201 + $0x8] sm:$0xf]
      %v1205 = vld [vmem:[%s1201 + $0xc] sm:$0xf]
      %v1210 = vunpack.c.l.b16 %v1202
      %v1211 = vunpack.c.l.b16 %v1203
      %v1212 = vunpack.c.l.b16 %v1204
      %v1213 = vunpack.c.l.b16 %v1205
      %v1214 = vpack.c.b16 %v1211, %v1210
      %v1215 = vpack.c.b16 %v1213, %v1212
      %v1219 = vsel %vm736, %v1191, 0
      %v1222 = vsel %vm736, %v1192, 0
      %v1225 = vsel %vm736, %v1193, 0
      %v1228 = vsel %vm736, %v1194, 0
      %v1231 = vsel %vm736, %v1195, 0
      %v1234 = vsel %vm736, %v1196, 0
      %v1237 = vsel %vm736, %v1197, 0
      %v1240 = vsel %vm736, %v1198, 0
      %1242 = vmatprep.subr.bf16.mxu0 0
      %1243 = vmatpush1.bf16.msra.mxu0 %v1214
      %1244 = vmatprep.subr.bf16.mxu0 0
      %1245 = vmatpush1.bf16.msra.mxu0 %v1215
      %1246 = vmatprep.subr.bf16.mxu0 0
      %1247 = vmatpush1.bf16.msra.mxu0 0
      %1248 = vmatprep.subr.bf16.mxu0 0
      %1249 = vmatpush1.bf16.msra.mxu0 0
      %1250 = vmatprep.subr.bf16.mxu0 0
      %1251 = vmatpush1.bf16.msra.mxu0 0
      %1252 = vmatprep.subr.bf16.mxu0 0
      %1253 = vmatpush1.bf16.msra.mxu0 0
      %1254 = vmatprep.subr.bf16.mxu0 0
      %1255 = vmatpush1.bf16.msra.mxu0 0
      %1256 = vmatprep.subr.bf16.mxu0 0
      %1257 = vmatpush1.bf16.msra.mxu0 0
      %1258 = vmatprep.subr.bf16.mxu0 0
      %1259 = vmatpush1.bf16.msra.mxu0 0
      %1260 = vmatprep.subr.bf16.mxu0 0
      %1261 = vmatpush1.bf16.msra.mxu0 0
      %1262 = vmatprep.subr.bf16.mxu0 0
      %1263 = vmatpush1.bf16.msra.mxu0 0
      %1264 = vmatprep.subr.bf16.mxu0 0
      %1265 = vmatpush1.bf16.msra.mxu0 0
      %1266 = vmatprep.subr.bf16.mxu0 0
      %1267 = vmatpush1.bf16.msra.mxu0 0
      %1268 = vmatprep.subr.bf16.mxu0 0
      %1269 = vmatpush1.bf16.msra.mxu0 0
      %1270 = vmatprep.subr.bf16.mxu0 0
      %1271 = vmatpush1.bf16.msra.mxu0 0
      %1272 = vmatprep.subr.bf16.mxu0 0
      %1273 = vmatpush1.bf16.msra.mxu0 0
      %1274 = vmatprep.mubr.bf16.mxu0 0
      %1275 = vmatmul.mubr.bf16.gmra.mrb[0].mxu0 %v1219
      %v1276 = vpop.f32.mrb[0].mxu0
      %v1277 = vadd.f32 0.0, %v1276
      %v1278 = vpop.f32.mrb[0].mxu0
      %v1279 = vpop.f32.mrb[0].mxu0
      %v1280 = vadd.f32 0.0, %v1279
      %v1281 = vpop.f32.mrb[0].mxu0
      %1282 = vmatprep.mubr.bf16.mxu0 0
      %1283 = vmatmul.mubr.bf16.gmra.mrb[0].mxu0 %v1222
      %v1284 = vpop.f32.mrb[0].mxu0
      %v1285 = vadd.f32 0.0, %v1284
      %v1286 = vpop.f32.mrb[0].mxu0
      %v1287 = vpop.f32.mrb[0].mxu0
      %v1288 = vadd.f32 0.0, %v1287
      %v1289 = vpop.f32.mrb[0].mxu0
      %1290 = vmatprep.mubr.bf16.mxu0 0
      %1291 = vmatmul.mubr.bf16.gmra.mrb[0].mxu0 %v1225
      %v1292 = vpop.f32.mrb[0].mxu0
      %v1293 = vadd.f32 0.0, %v1292
      %v1294 = vpop.f32.mrb[0].mxu0
      %v1295 = vpop.f32.mrb[0].mxu0
      %v1296 = vadd.f32 0.0, %v1295
      %v1297 = vpop.f32.mrb[0].mxu0
      %1298 = vmatprep.mubr.bf16.mxu0 0
      %1299 = vmatmul.mubr.bf16.gmra.mrb[0].mxu0 %v1228
      %v1300 = vpop.f32.mrb[0].mxu0
      %v1301 = vadd.f32 0.0, %v1300
      %v1302 = vpop.f32.mrb[0].mxu0
      %v1303 = vpop.f32.mrb[0].mxu0
      %v1304 = vadd.f32 0.0, %v1303
      %v1305 = vpop.f32.mrb[0].mxu0
      %1306 = vmatprep.mubr.bf16.mxu0 0
      %1307 = vmatmul.mubr.bf16.gmra.mrb[0].mxu0 %v1231
      %v1308 = vpop.f32.mrb[0].mxu0
      %v1309 = vadd.f32 0.0, %v1308
      %v1310 = vpop.f32.mrb[0].mxu0
      %v1311 = vpop.f32.mrb[0].mxu0
      %v1312 = vadd.f32 0.0, %v1311
      %v1313 = vpop.f32.mrb[0].mxu0
      %1314 = vmatprep.mubr.bf16.mxu0 0
      %1315 = vmatmul.mubr.bf16.gmra.mrb[0].mxu0 %v1234
      %v1316 = vpop.f32.mrb[0].mxu0
      %v1317 = vadd.f32 0.0, %v1316
      %v1318 = vpop.f32.mrb[0].mxu0
      %v1319 = vpop.f32.mrb[0].mxu0
      %v1320 = vadd.f32 0.0, %v1319
      %v1321 = vpop.f32.mrb[0].mxu0
      %1322 = vmatprep.mubr.bf16.mxu0 0
      %1323 = vmatmul.mubr.bf16.gmra.mrb[0].mxu0 %v1237
      %v1324 = vpop.f32.mrb[0].mxu0
      %v1325 = vadd.f32 0.0, %v1324
      %v1326 = vpop.f32.mrb[0].mxu0
      %v1327 = vpop.f32.mrb[0].mxu0
      %v1328 = vadd.f32 0.0, %v1327
      %v1329 = vpop.f32.mrb[0].mxu0
      %1330 = vmatprep.mubr.bf16.mxu0 0
      %1331 = vmatmul.mubr.bf16.gmra.mrb[0].mxu0 %v1240
      %v1332 = vpop.f32.mrb[0].mxu0
      %v1333 = vadd.f32 0.0, %v1332
      %v1334 = vpop.f32.mrb[0].mxu0
      %v1335 = vpop.f32.mrb[0].mxu0
      %v1336 = vadd.f32 0.0, %v1335
      %v1337 = vpop.f32.mrb[0].mxu0
      %1338 = vdwg.mxu0
      %v1339 = vadd.f32 %v1155, %v1277
      %v1340 = vadd.f32 %v1156, %v1280
      %v1341 = vadd.f32 %v1157, %v1285
      %v1342 = vadd.f32 %v1158, %v1288
      %v1343 = vadd.f32 %v1159, %v1293
      %v1344 = vadd.f32 %v1160, %v1296
      %v1345 = vadd.f32 %v1161, %v1301
      %v1346 = vadd.f32 %v1162, %v1304
      %v1347 = vadd.f32 %v1163, %v1309
      %v1348 = vadd.f32 %v1164, %v1312
      %v1349 = vadd.f32 %v1165, %v1317
      %v1350 = vadd.f32 %v1166, %v1320
      %v1351 = vadd.f32 %v1167, %v1325
      %v1352 = vadd.f32 %v1168, %v1328
      %v1353 = vadd.f32 %v1169, %v1333
      %v1354 = vadd.f32 %v1170, %v1336
      %s1355 = scalar_lea.vmem %s4, 64
      %v1356 = vld [vmem:[%s1355] sm:$0xf]
      %v1357 = vld [vmem:[%s1355 + $0x4] sm:$0xf]
      %v1358 = vld [vmem:[%s1355 + $0x8] sm:$0xf]
      %v1359 = vld [vmem:[%s1355 + $0xc] sm:$0xf]
      %v1364 = vunpack.c.l.b16 %v1356
      %v1365 = vunpack.c.l.b16 %v1357
      %v1366 = vunpack.c.l.b16 %v1358
      %v1367 = vunpack.c.l.b16 %v1359
      %v1368 = vpack.c.b16 %v1365, %v1364
      %v1369 = vpack.c.b16 %v1367, %v1366
      %v1373 = vsel %vm736, %v1199, 0
      %1375 = vmatprep.subr.bf16.mxu0 0
      %1376 = vmatpush1.bf16.msra.mxu0 %v1368
      %1377 = vmatprep.subr.bf16.mxu0 0
      %1378 = vmatpush1.bf16.msra.mxu0 %v1369
      %1379 = vmatprep.subr.bf16.mxu0 0
      %1380 = vmatpush1.bf16.msra.mxu0 0
      %1381 = vmatprep.subr.bf16.mxu0 0
      %1382 = vmatpush1.bf16.msra.mxu0 0
      %1383 = vmatprep.subr.bf16.mxu0 0
      %1384 = vmatpush1.bf16.msra.mxu0 0
      %1385 = vmatprep.subr.bf16.mxu0 0
      %1386 = vmatpush1.bf16.msra.mxu0 0
      %1387 = vmatprep.subr.bf16.mxu0 0
      %1388 = vmatpush1.bf16.msra.mxu0 0
      %1389 = vmatprep.subr.bf16.mxu0 0
      %1390 = vmatpush1.bf16.msra.mxu0 0
      %1391 = vmatprep.subr.bf16.mxu0 0
      %1392 = vmatpush1.bf16.msra.mxu0 0
      %1393 = vmatprep.subr.bf16.mxu0 0
      %1394 = vmatpush1.bf16.msra.mxu0 0
      %1395 = vmatprep.subr.bf16.mxu0 0
      %1396 = vmatpush1.bf16.msra.mxu0 0
      %1397 = vmatprep.subr.bf16.mxu0 0
      %1398 = vmatpush1.bf16.msra.mxu0 0
      %1399 = vmatprep.subr.bf16.mxu0 0
      %1400 = vmatpush1.bf16.msra.mxu0 0
      %1401 = vmatprep.subr.bf16.mxu0 0
      %1402 = vmatpush1.bf16.msra.mxu0 0
      %1403 = vmatprep.subr.bf16.mxu0 0
      %1404 = vmatpush1.bf16.msra.mxu0 0
      %1405 = vmatprep.subr.bf16.mxu0 0
      %1406 = vmatpush1.bf16.msra.mxu0 0
      %1407 = vmatprep.mubr.bf16.mxu0 0
      %1408 = vmatmul.mubr.bf16.gmra.mrb[0].mxu0 %v1222
      %v1409 = vpop.f32.mrb[0].mxu0
      %v1410 = vadd.f32 0.0, %v1409
      %v1411 = vpop.f32.mrb[0].mxu0
      %v1412 = vpop.f32.mrb[0].mxu0
      %v1413 = vadd.f32 0.0, %v1412
      %v1414 = vpop.f32.mrb[0].mxu0
      %1415 = vmatprep.mubr.bf16.mxu0 0
      %1416 = vmatmul.mubr.bf16.gmra.mrb[0].mxu0 %v1225
      %v1417 = vpop.f32.mrb[0].mxu0
      %v1418 = vadd.f32 0.0, %v1417
      %v1419 = vpop.f32.mrb[0].mxu0
      %v1420 = vpop.f32.mrb[0].mxu0
      %v1421 = vadd.f32 0.0, %v1420
      %v1422 = vpop.f32.mrb[0].mxu0
      %1423 = vmatprep.mubr.bf16.mxu0 0
      %1424 = vmatmul.mubr.bf16.gmra.mrb[0].mxu0 %v1228
      %v1425 = vpop.f32.mrb[0].mxu0
      %v1426 = vadd.f32 0.0, %v1425
      %v1427 = vpop.f32.mrb[0].mxu0
      %v1428 = vpop.f32.mrb[0].mxu0
      %v1429 = vadd.f32 0.0, %v1428
      %v1430 = vpop.f32.mrb[0].mxu0
      %1431 = vmatprep.mubr.bf16.mxu0 0
      %1432 = vmatmul.mubr.bf16.gmra.mrb[0].mxu0 %v1231
      %v1433 = vpop.f32.mrb[0].mxu0
      %v1434 = vadd.f32 0.0, %v1433
      %v1435 = vpop.f32.mrb[0].mxu0
      %v1436 = vpop.f32.mrb[0].mxu0
      %v1437 = vadd.f32 0.0, %v1436
      %v1438 = vpop.f32.mrb[0].mxu0
      %1439 = vmatprep.mubr.bf16.mxu0 0
      %1440 = vmatmul.mubr.bf16.gmra.mrb[0].mxu0 %v1234
      %v1441 = vpop.f32.mrb[0].mxu0
      %v1442 = vadd.f32 0.0, %v1441
      %v1443 = vpop.f32.mrb[0].mxu0
      %v1444 = vpop.f32.mrb[0].mxu0
      %v1445 = vadd.f32 0.0, %v1444
      %v1446 = vpop.f32.mrb[0].mxu0
      %1447 = vmatprep.mubr.bf16.mxu0 0
      %1448 = vmatmul.mubr.bf16.gmra.mrb[0].mxu0 %v1237
      %v1449 = vpop.f32.mrb[0].mxu0
      %v1450 = vadd.f32 0.0, %v1449
      %v1451 = vpop.f32.mrb[0].mxu0
      %v1452 = vpop.f32.mrb[0].mxu0
      %v1453 = vadd.f32 0.0, %v1452
      %v1454 = vpop.f32.mrb[0].mxu0
      %1455 = vmatprep.mubr.bf16.mxu0 0
      %1456 = vmatmul.mubr.bf16.gmra.mrb[0].mxu0 %v1240
      %v1457 = vpop.f32.mrb[0].mxu0
      %v1458 = vadd.f32 0.0, %v1457
      %v1459 = vpop.f32.mrb[0].mxu0
      %v1460 = vpop.f32.mrb[0].mxu0
      %v1461 = vadd.f32 0.0, %v1460
      %v1462 = vpop.f32.mrb[0].mxu0
      %1463 = vmatprep.mubr.bf16.mxu0 0
      %1464 = vmatmul.mubr.bf16.gmra.mrb[0].mxu0 %v1373
      %v1465 = vpop.f32.mrb[0].mxu0
      %v1466 = vadd.f32 0.0, %v1465
      %v1467 = vpop.f32.mrb[0].mxu0
      %v1468 = vpop.f32.mrb[0].mxu0
      %v1469 = vadd.f32 0.0, %v1468
      %v1470 = vpop.f32.mrb[0].mxu0
      %1471 = vdwg.mxu0
      %v1472 = vadd.f32 %v1339, %v1410
      %v1473 = vadd.f32 %v1340, %v1413
      %v1474 = vadd.f32 %v1341, %v1418
      %v1475 = vadd.f32 %v1342, %v1421
      %v1476 = vadd.f32 %v1343, %v1426
      %v1477 = vadd.f32 %v1344, %v1429
      %v1478 = vadd.f32 %v1345, %v1434
      %v1479 = vadd.f32 %v1346, %v1437
      %v1480 = vadd.f32 %v1347, %v1442
      %v1481 = vadd.f32 %v1348, %v1445
      %v1482 = vadd.f32 %v1349, %v1450
      %v1483 = vadd.f32 %v1350, %v1453
      %v1484 = vadd.f32 %v1351, %v1458
      %v1485 = vadd.f32 %v1352, %v1461
      %v1486 = vadd.f32 %v1353, %v1466
      %v1487 = vadd.f32 %v1354, %v1469
      %s1488 = scalar_lea.vmem %s4, 112
      %v1489 = vld [vmem:[%s1488] sm:$0xf]
      %v1490 = vld [vmem:[%s1488 + $0x4] sm:$0xf]
      %v1491 = vld [vmem:[%s1488 + $0x8] sm:$0xf]
      %v1492 = vld [vmem:[%s1488 + $0xc] sm:$0xf]
      %v1497 = vunpack.c.l.b16 %v1489
      %v1498 = vunpack.c.l.b16 %v1490
      %v1499 = vunpack.c.l.b16 %v1491
      %v1500 = vunpack.c.l.b16 %v1492
      %v1501 = vpack.c.b16 %v1498, %v1497
      %v1502 = vpack.c.b16 %v1500, %v1499
      %v1506 = vsel %vm736, %v1200, 0
      %1508 = vmatprep.subr.bf16.mxu0 0
      %1509 = vmatpush1.bf16.msra.mxu0 %v1501
      %1510 = vmatprep.subr.bf16.mxu0 0
      %1511 = vmatpush1.bf16.msra.mxu0 %v1502
      %1512 = vmatprep.subr.bf16.mxu0 0
      %1513 = vmatpush1.bf16.msra.mxu0 0
      %1514 = vmatprep.subr.bf16.mxu0 0
      %1515 = vmatpush1.bf16.msra.mxu0 0
      %1516 = vmatprep.subr.bf16.mxu0 0
      %1517 = vmatpush1.bf16.msra.mxu0 0
      %1518 = vmatprep.subr.bf16.mxu0 0
      %1519 = vmatpush1.bf16.msra.mxu0 0
      %1520 = vmatprep.subr.bf16.mxu0 0
      %1521 = vmatpush1.bf16.msra.mxu0 0
      %1522 = vmatprep.subr.bf16.mxu0 0
      %1523 = vmatpush1.bf16.msra.mxu0 0
      %1524 = vmatprep.subr.bf16.mxu0 0
      %1525 = vmatpush1.bf16.msra.mxu0 0
      %1526 = vmatprep.subr.bf16.mxu0 0
      %1527 = vmatpush1.bf16.msra.mxu0 0
      %1528 = vmatprep.subr.bf16.mxu0 0
      %1529 = vmatpush1.bf16.msra.mxu0 0
      %1530 = vmatprep.subr.bf16.mxu0 0
      %1531 = vmatpush1.bf16.msra.mxu0 0
      %1532 = vmatprep.subr.bf16.mxu0 0
      %1533 = vmatpush1.bf16.msra.mxu0 0
      %1534 = vmatprep.subr.bf16.mxu0 0
      %1535 = vmatpush1.bf16.msra.mxu0 0
      %1536 = vmatprep.subr.bf16.mxu0 0
      %1537 = vmatpush1.bf16.msra.mxu0 0
      %1538 = vmatprep.subr.bf16.mxu0 0
      %1539 = vmatpush1.bf16.msra.mxu0 0
      %1540 = vmatprep.mubr.bf16.mxu0 0
      %1541 = vmatmul.mubr.bf16.gmra.mrb[0].mxu0 %v1225
      %v1542 = vpop.f32.mrb[0].mxu0
      %v1543 = vadd.f32 0.0, %v1542
      %v1544 = vpop.f32.mrb[0].mxu0
      %v1545 = vpop.f32.mrb[0].mxu0
      %v1546 = vadd.f32 0.0, %v1545
      %v1547 = vpop.f32.mrb[0].mxu0
      %1548 = vmatprep.mubr.bf16.mxu0 0
      %1549 = vmatmul.mubr.bf16.gmra.mrb[0].mxu0 %v1228
      %v1550 = vpop.f32.mrb[0].mxu0
      %v1551 = vadd.f32 0.0, %v1550
      %v1552 = vpop.f32.mrb[0].mxu0
      %v1553 = vpop.f32.mrb[0].mxu0
      %v1554 = vadd.f32 0.0, %v1553
      %v1555 = vpop.f32.mrb[0].mxu0
      %1556 = vmatprep.mubr.bf16.mxu0 0
      %1557 = vmatmul.mubr.bf16.gmra.mrb[0].mxu0 %v1231
      %v1558 = vpop.f32.mrb[0].mxu0
      %v1559 = vadd.f32 0.0, %v1558
      %v1560 = vpop.f32.mrb[0].mxu0
      %v1561 = vpop.f32.mrb[0].mxu0
      %v1562 = vadd.f32 0.0, %v1561
      %v1563 = vpop.f32.mrb[0].mxu0
      %1564 = vmatprep.mubr.bf16.mxu0 0
      %1565 = vmatmul.mubr.bf16.gmra.mrb[0].mxu0 %v1234
      %v1566 = vpop.f32.mrb[0].mxu0
      %v1567 = vadd.f32 0.0, %v1566
      %v1568 = vpop.f32.mrb[0].mxu0
      %v1569 = vpop.f32.mrb[0].mxu0
      %v1570 = vadd.f32 0.0, %v1569
      %v1571 = vpop.f32.mrb[0].mxu0
      %1572 = vmatprep.mubr.bf16.mxu0 0
      %1573 = vmatmul.mubr.bf16.gmra.mrb[0].mxu0 %v1237
      %v1574 = vpop.f32.mrb[0].mxu0
      %v1575 = vadd.f32 0.0, %v1574
      %v1576 = vpop.f32.mrb[0].mxu0
      %v1577 = vpop.f32.mrb[0].mxu0
      %v1578 = vadd.f32 0.0, %v1577
      %v1579 = vpop.f32.mrb[0].mxu0
      %1580 = vmatprep.mubr.bf16.mxu0 0
      %1581 = vmatmul.mubr.bf16.gmra.mrb[0].mxu0 %v1240
      %v1582 = vpop.f32.mrb[0].mxu0
      %v1583 = vadd.f32 0.0, %v1582
      %v1584 = vpop.f32.mrb[0].mxu0
      %v1585 = vpop.f32.mrb[0].mxu0
      %v1586 = vadd.f32 0.0, %v1585
      %v1587 = vpop.f32.mrb[0].mxu0
      %1588 = vmatprep.mubr.bf16.mxu0 0
      %1589 = vmatmul.mubr.bf16.gmra.mrb[0].mxu0 %v1373
      %v1590 = vpop.f32.mrb[0].mxu0
      %v1591 = vadd.f32 0.0, %v1590
      %v1592 = vpop.f32.mrb[0].mxu0
      %v1593 = vpop.f32.mrb[0].mxu0
      %v1594 = vadd.f32 0.0, %v1593
      %v1595 = vpop.f32.mrb[0].mxu0
      %1596 = vmatprep.mubr.bf16.mxu0 0
      %1597 = vmatmul.mubr.bf16.gmra.mrb[0].mxu0 %v1506
      %v1598 = vpop.f32.mrb[0].mxu0
      %v1599 = vadd.f32 0.0, %v1598
      %v1600 = vpop.f32.mrb[0].mxu0
      %v1601 = vpop.f32.mrb[0].mxu0
      %v1602 = vadd.f32 0.0, %v1601
      %v1603 = vpop.f32.mrb[0].mxu0
      %1604 = vdwg.mxu0
      %v1605 = vadd.f32 %v1472, %v1543
      %v1606 = vadd.f32 %v1473, %v1546
      %v1607 = vadd.f32 %v1474, %v1551
      %v1608 = vadd.f32 %v1475, %v1554
      %v1609 = vadd.f32 %v1476, %v1559
      %v1610 = vadd.f32 %v1477, %v1562
      %v1611 = vadd.f32 %v1478, %v1567
      %v1612 = vadd.f32 %v1479, %v1570
      %v1613 = vadd.f32 %v1480, %v1575
      %v1614 = vadd.f32 %v1481, %v1578
      %v1615 = vadd.f32 %v1482, %v1583
      %v1616 = vadd.f32 %v1483, %v1586
      %v1617 = vadd.f32 %v1484, %v1591
      %v1618 = vadd.f32 %v1485, %v1594
      %v1619 = vadd.f32 %v1486, %v1599
      %v1620 = vadd.f32 %v1487, %v1602
      %v1621 = vld [vmem:[#allocation2 + $0x9] sm:$0xff]
      %v1622 = vld [vmem:[#allocation2 + $0x11] sm:$0xff]
      %v1623 = vld [vmem:[#allocation2 + $0x29] sm:$0xff]
      %v1624 = vld [vmem:[#allocation2 + $0x31] sm:$0xff]
      %v1625 = vld [vmem:[#allocation2 + $0x49] sm:$0xff]
      %v1626 = vld [vmem:[#allocation2 + $0x51] sm:$0xff]
      %v1627 = vld [vmem:[#allocation2 + $0x69] sm:$0xff]
      %v1628 = vld [vmem:[#allocation2 + $0x71] sm:$0xff]
      %v1629 = vld [vmem:[#allocation2 + $0x89] sm:$0xff]
      %v1630 = vld [vmem:[#allocation2 + $0x91] sm:$0xff]
      %v1631 = vld [vmem:[#allocation2 + $0xa9] sm:$0xff]
      %v1632 = vld [vmem:[#allocation2 + $0xb1] sm:$0xff]
      %v1633 = vld [vmem:[#allocation2 + $0xc9] sm:$0xff]
      %v1634 = vld [vmem:[#allocation2 + $0xd1] sm:$0xff]
      %v1635 = vld [vmem:[#allocation2 + $0xe9] sm:$0xff]
      %v1636 = vld [vmem:[#allocation2 + $0xf1] sm:$0xff]
      %v1637 = vld [vmem:[#allocation2 + $0x109] sm:$0xff]
      %v1638 = vld [vmem:[#allocation2 + $0x111] sm:$0xff]
      %v1639 = vld [vmem:[#allocation2 + $0x129] sm:$0xff]
      %v1640 = vld [vmem:[#allocation2 + $0x131] sm:$0xff]
      %v1641 = vpack.c.bf16 %v1622, %v1621
      %v1642 = vpack.c.bf16 %v1624, %v1623
      %v1643 = vpack.c.bf16 %v1626, %v1625
      %v1644 = vpack.c.bf16 %v1628, %v1627
      %v1645 = vpack.c.bf16 %v1630, %v1629
      %v1646 = vpack.c.bf16 %v1632, %v1631
      %v1647 = vpack.c.bf16 %v1634, %v1633
      %v1648 = vpack.c.bf16 %v1636, %v1635
      %v1649 = vpack.c.bf16 %v1638, %v1637
      %v1650 = vpack.c.bf16 %v1640, %v1639
      %s1651 = scalar_lea.vmem %s4, 32
      %v1652 = vld [vmem:[%s1651] sm:$0xf]
      %v1653 = vld [vmem:[%s1651 + $0x4] sm:$0xf]
      %v1654 = vld [vmem:[%s1651 + $0x8] sm:$0xf]
      %v1655 = vld [vmem:[%s1651 + $0xc] sm:$0xf]
      %v1660 = vunpack.c.l.b16 %v1652
      %v1661 = vunpack.c.l.b16 %v1653
      %v1662 = vunpack.c.l.b16 %v1654
      %v1663 = vunpack.c.l.b16 %v1655
      %v1664 = vpack.c.b16 %v1661, %v1660
      %v1665 = vpack.c.b16 %v1663, %v1662
      %v1669 = vsel %vm736, %v1641, 0
      %v1672 = vsel %vm736, %v1642, 0
      %v1675 = vsel %vm736, %v1643, 0
      %v1678 = vsel %vm736, %v1644, 0
      %v1681 = vsel %vm736, %v1645, 0
      %v1684 = vsel %vm736, %v1646, 0
      %v1687 = vsel %vm736, %v1647, 0
      %v1690 = vsel %vm736, %v1648, 0
      %1692 = vmatprep.subr.bf16.mxu0 0
      %1693 = vmatpush1.bf16.msra.mxu0 %v1664
      %1694 = vmatprep.subr.bf16.mxu0 0
      %1695 = vmatpush1.bf16.msra.mxu0 %v1665
      %1696 = vmatprep.subr.bf16.mxu0 0
      %1697 = vmatpush1.bf16.msra.mxu0 0
      %1698 = vmatprep.subr.bf16.mxu0 0
      %1699 = vmatpush1.bf16.msra.mxu0 0
      %1700 = vmatprep.subr.bf16.mxu0 0
      %1701 = vmatpush1.bf16.msra.mxu0 0
      %1702 = vmatprep.subr.bf16.mxu0 0
      %1703 = vmatpush1.bf16.msra.mxu0 0
      %1704 = vmatprep.subr.bf16.mxu0 0
      %1705 = vmatpush1.bf16.msra.mxu0 0
      %1706 = vmatprep.subr.bf16.mxu0 0
      %1707 = vmatpush1.bf16.msra.mxu0 0
      %1708 = vmatprep.subr.bf16.mxu0 0
      %1709 = vmatpush1.bf16.msra.mxu0 0
      %1710 = vmatprep.subr.bf16.mxu0 0
      %1711 = vmatpush1.bf16.msra.mxu0 0
      %1712 = vmatprep.subr.bf16.mxu0 0
      %1713 = vmatpush1.bf16.msra.mxu0 0
      %1714 = vmatprep.subr.bf16.mxu0 0
      %1715 = vmatpush1.bf16.msra.mxu0 0
      %1716 = vmatprep.subr.bf16.mxu0 0
      %1717 = vmatpush1.bf16.msra.mxu0 0
      %1718 = vmatprep.subr.bf16.mxu0 0
      %1719 = vmatpush1.bf16.msra.mxu0 0
      %1720 = vmatprep.subr.bf16.mxu0 0
      %1721 = vmatpush1.bf16.msra.mxu0 0
      %1722 = vmatprep.subr.bf16.mxu0 0
      %1723 = vmatpush1.bf16.msra.mxu0 0
      %1724 = vmatprep.mubr.bf16.mxu0 0
      %1725 = vmatmul.mubr.bf16.gmra.mrb[0].mxu0 %v1669
      %v1726 = vpop.f32.mrb[0].mxu0
      %v1727 = vadd.f32 0.0, %v1726
      %v1728 = vpop.f32.mrb[0].mxu0
      %v1729 = vpop.f32.mrb[0].mxu0
      %v1730 = vadd.f32 0.0, %v1729
      %v1731 = vpop.f32.mrb[0].mxu0
      %1732 = vmatprep.mubr.bf16.mxu0 0
      %1733 = vmatmul.mubr.bf16.gmra.mrb[0].mxu0 %v1672
      %v1734 = vpop.f32.mrb[0].mxu0
      %v1735 = vadd.f32 0.0, %v1734
      %v1736 = vpop.f32.mrb[0].mxu0
      %v1737 = vpop.f32.mrb[0].mxu0
      %v1738 = vadd.f32 0.0, %v1737
      %v1739 = vpop.f32.mrb[0].mxu0
      %1740 = vmatprep.mubr.bf16.mxu0 0
      %1741 = vmatmul.mubr.bf16.gmra.mrb[0].mxu0 %v1675
      %v1742 = vpop.f32.mrb[0].mxu0
      %v1743 = vadd.f32 0.0, %v1742
      %v1744 = vpop.f32.mrb[0].mxu0
      %v1745 = vpop.f32.mrb[0].mxu0
      %v1746 = vadd.f32 0.0, %v1745
      %v1747 = vpop.f32.mrb[0].mxu0
      %1748 = vmatprep.mubr.bf16.mxu0 0
      %1749 = vmatmul.mubr.bf16.gmra.mrb[0].mxu0 %v1678
      %v1750 = vpop.f32.mrb[0].mxu0
      %v1751 = vadd.f32 0.0, %v1750
      %v1752 = vpop.f32.mrb[0].mxu0
      %v1753 = vpop.f32.mrb[0].mxu0
      %v1754 = vadd.f32 0.0, %v1753
      %v1755 = vpop.f32.mrb[0].mxu0
      %1756 = vmatprep.mubr.bf16.mxu0 0
      %1757 = vmatmul.mubr.bf16.gmra.mrb[0].mxu0 %v1681
      %v1758 = vpop.f32.mrb[0].mxu0
      %v1759 = vadd.f32 0.0, %v1758
      %v1760 = vpop.f32.mrb[0].mxu0
      %v1761 = vpop.f32.mrb[0].mxu0
      %v1762 = vadd.f32 0.0, %v1761
      %v1763 = vpop.f32.mrb[0].mxu0
      %1764 = vmatprep.mubr.bf16.mxu0 0
      %1765 = vmatmul.mubr.bf16.gmra.mrb[0].mxu0 %v1684
      %v1766 = vpop.f32.mrb[0].mxu0
      %v1767 = vadd.f32 0.0, %v1766
      %v1768 = vpop.f32.mrb[0].mxu0
      %v1769 = vpop.f32.mrb[0].mxu0
      %v1770 = vadd.f32 0.0, %v1769
      %v1771 = vpop.f32.mrb[0].mxu0
      %1772 = vmatprep.mubr.bf16.mxu0 0
      %1773 = vmatmul.mubr.bf16.gmra.mrb[0].mxu0 %v1687
      %v1774 = vpop.f32.mrb[0].mxu0
      %v1775 = vadd.f32 0.0, %v1774
      %v1776 = vpop.f32.mrb[0].mxu0
      %v1777 = vpop.f32.mrb[0].mxu0
      %v1778 = vadd.f32 0.0, %v1777
      %v1779 = vpop.f32.mrb[0].mxu0
      %1780 = vmatprep.mubr.bf16.mxu0 0
      %1781 = vmatmul.mubr.bf16.gmra.mrb[0].mxu0 %v1690
      %v1782 = vpop.f32.mrb[0].mxu0
      %v1783 = vadd.f32 0.0, %v1782
      %v1784 = vpop.f32.mrb[0].mxu0
      %v1785 = vpop.f32.mrb[0].mxu0
      %v1786 = vadd.f32 0.0, %v1785
      %v1787 = vpop.f32.mrb[0].mxu0
      %1788 = vdwg.mxu0
      %v1789 = vadd.f32 %v1605, %v1727
      %v1790 = vadd.f32 %v1606, %v1730
      %v1791 = vadd.f32 %v1607, %v1735
      %v1792 = vadd.f32 %v1608, %v1738
      %v1793 = vadd.f32 %v1609, %v1743
      %v1794 = vadd.f32 %v1610, %v1746
      %v1795 = vadd.f32 %v1611, %v1751
      %v1796 = vadd.f32 %v1612, %v1754
      %v1797 = vadd.f32 %v1613, %v1759
      %v1798 = vadd.f32 %v1614, %v1762
      %v1799 = vadd.f32 %v1615, %v1767
      %v1800 = vadd.f32 %v1616, %v1770
      %v1801 = vadd.f32 %v1617, %v1775
      %v1802 = vadd.f32 %v1618, %v1778
      %v1803 = vadd.f32 %v1619, %v1783
      %v1804 = vadd.f32 %v1620, %v1786
      %s1805 = scalar_lea.vmem %s4, 80
      %v1806 = vld [vmem:[%s1805] sm:$0xf]
      %v1807 = vld [vmem:[%s1805 + $0x4] sm:$0xf]
      %v1808 = vld [vmem:[%s1805 + $0x8] sm:$0xf]
      %v1809 = vld [vmem:[%s1805 + $0xc] sm:$0xf]
      %v1814 = vunpack.c.l.b16 %v1806
      %v1815 = vunpack.c.l.b16 %v1807
      %v1816 = vunpack.c.l.b16 %v1808
      %v1817 = vunpack.c.l.b16 %v1809
      %v1818 = vpack.c.b16 %v1815, %v1814
      %v1819 = vpack.c.b16 %v1817, %v1816
      %v1823 = vsel %vm736, %v1649, 0
      %1825 = vmatprep.subr.bf16.mxu0 0
      %1826 = vmatpush1.bf16.msra.mxu0 %v1818
      %1827 = vmatprep.subr.bf16.mxu0 0
      %1828 = vmatpush1.bf16.msra.mxu0 %v1819
      %1829 = vmatprep.subr.bf16.mxu0 0
      %1830 = vmatpush1.bf16.msra.mxu0 0
      %1831 = vmatprep.subr.bf16.mxu0 0
      %1832 = vmatpush1.bf16.msra.mxu0 0
      %1833 = vmatprep.subr.bf16.mxu0 0
      %1834 = vmatpush1.bf16.msra.mxu0 0
      %1835 = vmatprep.subr.bf16.mxu0 0
      %1836 = vmatpush1.bf16.msra.mxu0 0
      %1837 = vmatprep.subr.bf16.mxu0 0
      %1838 = vmatpush1.bf16.msra.mxu0 0
      %1839 = vmatprep.subr.bf16.mxu0 0
      %1840 = vmatpush1.bf16.msra.mxu0 0
      %1841 = vmatprep.subr.bf16.mxu0 0
      %1842 = vmatpush1.bf16.msra.mxu0 0
      %1843 = vmatprep.subr.bf16.mxu0 0
      %1844 = vmatpush1.bf16.msra.mxu0 0
      %1845 = vmatprep.subr.bf16.mxu0 0
      %1846 = vmatpush1.bf16.msra.mxu0 0
      %1847 = vmatprep.subr.bf16.mxu0 0
      %1848 = vmatpush1.bf16.msra.mxu0 0
      %1849 = vmatprep.subr.bf16.mxu0 0
      %1850 = vmatpush1.bf16.msra.mxu0 0
      %1851 = vmatprep.subr.bf16.mxu0 0
      %1852 = vmatpush1.bf16.msra.mxu0 0
      %1853 = vmatprep.subr.bf16.mxu0 0
      %1854 = vmatpush1.bf16.msra.mxu0 0
      %1855 = vmatprep.subr.bf16.mxu0 0
      %1856 = vmatpush1.bf16.msra.mxu0 0
      %1857 = vmatprep.mubr.bf16.mxu0 0
      %1858 = vmatmul.mubr.bf16.gmra.mrb[0].mxu0 %v1672
      %v1859 = vpop.f32.mrb[0].mxu0
      %v1860 = vadd.f32 0.0, %v1859
      %v1861 = vpop.f32.mrb[0].mxu0
      %v1862 = vpop.f32.mrb[0].mxu0
      %v1863 = vadd.f32 0.0, %v1862
      %v1864 = vpop.f32.mrb[0].mxu0
      %1865 = vmatprep.mubr.bf16.mxu0 0
      %1866 = vmatmul.mubr.bf16.gmra.mrb[0].mxu0 %v1675
      %v1867 = vpop.f32.mrb[0].mxu0
      %v1868 = vadd.f32 0.0, %v1867
      %v1869 = vpop.f32.mrb[0].mxu0
      %v1870 = vpop.f32.mrb[0].mxu0
      %v1871 = vadd.f32 0.0, %v1870
      %v1872 = vpop.f32.mrb[0].mxu0
      %1873 = vmatprep.mubr.bf16.mxu0 0
      %1874 = vmatmul.mubr.bf16.gmra.mrb[0].mxu0 %v1678
      %v1875 = vpop.f32.mrb[0].mxu0
      %v1876 = vadd.f32 0.0, %v1875
      %v1877 = vpop.f32.mrb[0].mxu0
      %v1878 = vpop.f32.mrb[0].mxu0
      %v1879 = vadd.f32 0.0, %v1878
      %v1880 = vpop.f32.mrb[0].mxu0
      %1881 = vmatprep.mubr.bf16.mxu0 0
      %1882 = vmatmul.mubr.bf16.gmra.mrb[0].mxu0 %v1681
      %v1883 = vpop.f32.mrb[0].mxu0
      %v1884 = vadd.f32 0.0, %v1883
      %v1885 = vpop.f32.mrb[0].mxu0
      %v1886 = vpop.f32.mrb[0].mxu0
      %v1887 = vadd.f32 0.0, %v1886
      %v1888 = vpop.f32.mrb[0].mxu0
      %1889 = vmatprep.mubr.bf16.mxu0 0
      %1890 = vmatmul.mubr.bf16.gmra.mrb[0].mxu0 %v1684
      %v1891 = vpop.f32.mrb[0].mxu0
      %v1892 = vadd.f32 0.0, %v1891
      %v1893 = vpop.f32.mrb[0].mxu0
      %v1894 = vpop.f32.mrb[0].mxu0
      %v1895 = vadd.f32 0.0, %v1894
      %v1896 = vpop.f32.mrb[0].mxu0
      %1897 = vmatprep.mubr.bf16.mxu0 0
      %1898 = vmatmul.mubr.bf16.gmra.mrb[0].mxu0 %v1687
      %v1899 = vpop.f32.mrb[0].mxu0
      %v1900 = vadd.f32 0.0, %v1899
      %v1901 = vpop.f32.mrb[0].mxu0
      %v1902 = vpop.f32.mrb[0].mxu0
      %v1903 = vadd.f32 0.0, %v1902
      %v1904 = vpop.f32.mrb[0].mxu0
      %1905 = vmatprep.mubr.bf16.mxu0 0
      %1906 = vmatmul.mubr.bf16.gmra.mrb[0].mxu0 %v1690
      %v1907 = vpop.f32.mrb[0].mxu0
      %v1908 = vadd.f32 0.0, %v1907
      %v1909 = vpop.f32.mrb[0].mxu0
      %v1910 = vpop.f32.mrb[0].mxu0
      %v1911 = vadd.f32 0.0, %v1910
      %v1912 = vpop.f32.mrb[0].mxu0
      %1913 = vmatprep.mubr.bf16.mxu0 0
      %1914 = vmatmul.mubr.bf16.gmra.mrb[0].mxu0 %v1823
      %v1915 = vpop.f32.mrb[0].mxu0
      %v1916 = vadd.f32 0.0, %v1915
      %v1917 = vpop.f32.mrb[0].mxu0
      %v1918 = vpop.f32.mrb[0].mxu0
      %v1919 = vadd.f32 0.0, %v1918
      %v1920 = vpop.f32.mrb[0].mxu0
      %1921 = vdwg.mxu0
      %v1922 = vadd.f32 %v1789, %v1860
      %v1923 = vadd.f32 %v1790, %v1863
      %v1924 = vadd.f32 %v1791, %v1868
      %v1925 = vadd.f32 %v1792, %v1871
      %v1926 = vadd.f32 %v1793, %v1876
      %v1927 = vadd.f32 %v1794, %v1879
      %v1928 = vadd.f32 %v1795, %v1884
      %v1929 = vadd.f32 %v1796, %v1887
      %v1930 = vadd.f32 %v1797, %v1892
      %v1931 = vadd.f32 %v1798, %v1895
      %v1932 = vadd.f32 %v1799, %v1900
      %v1933 = vadd.f32 %v1800, %v1903
      %v1934 = vadd.f32 %v1801, %v1908
      %v1935 = vadd.f32 %v1802, %v1911
      %v1936 = vadd.f32 %v1803, %v1916
      %v1937 = vadd.f32 %v1804, %v1919
      %s1938 = scalar_lea.vmem %s4, 128
      %v1939 = vld [vmem:[%s1938] sm:$0xf]
      %v1940 = vld [vmem:[%s1938 + $0x4] sm:$0xf]
      %v1941 = vld [vmem:[%s1938 + $0x8] sm:$0xf]
      %v1942 = vld [vmem:[%s1938 + $0xc] sm:$0xf]
      %v1947 = vunpack.c.l.b16 %v1939
      %v1948 = vunpack.c.l.b16 %v1940
      %v1949 = vunpack.c.l.b16 %v1941
      %v1950 = vunpack.c.l.b16 %v1942
      %v1951 = vpack.c.b16 %v1948, %v1947
      %v1952 = vpack.c.b16 %v1950, %v1949
      %v1956 = vsel %vm736, %v1650, 0
      %1958 = vmatprep.subr.bf16.mxu0 0
      %1959 = vmatpush1.bf16.msra.mxu0 %v1951
      %1960 = vmatprep.subr.bf16.mxu0 0
      %1961 = vmatpush1.bf16.msra.mxu0 %v1952
      %1962 = vmatprep.subr.bf16.mxu0 0
      %1963 = vmatpush1.bf16.msra.mxu0 0
      %1964 = vmatprep.subr.bf16.mxu0 0
      %1965 = vmatpush1.bf16.msra.mxu0 0
      %1966 = vmatprep.subr.bf16.mxu0 0
      %1967 = vmatpush1.bf16.msra.mxu0 0
      %1968 = vmatprep.subr.bf16.mxu0 0
      %1969 = vmatpush1.bf16.msra.mxu0 0
      %1970 = vmatprep.subr.bf16.mxu0 0
      %1971 = vmatpush1.bf16.msra.mxu0 0
      %1972 = vmatprep.subr.bf16.mxu0 0
      %1973 = vmatpush1.bf16.msra.mxu0 0
      %1974 = vmatprep.subr.bf16.mxu0 0
      %1975 = vmatpush1.bf16.msra.mxu0 0
      %1976 = vmatprep.subr.bf16.mxu0 0
      %1977 = vmatpush1.bf16.msra.mxu0 0
      %1978 = vmatprep.subr.bf16.mxu0 0
      %1979 = vmatpush1.bf16.msra.mxu0 0
      %1980 = vmatprep.subr.bf16.mxu0 0
      %1981 = vmatpush1.bf16.msra.mxu0 0
      %1982 = vmatprep.subr.bf16.mxu0 0
      %1983 = vmatpush1.bf16.msra.mxu0 0
      %1984 = vmatprep.subr.bf16.mxu0 0
      %1985 = vmatpush1.bf16.msra.mxu0 0
      %1986 = vmatprep.subr.bf16.mxu0 0
      %1987 = vmatpush1.bf16.msra.mxu0 0
      %1988 = vmatprep.subr.bf16.mxu0 0
      %1989 = vmatpush1.bf16.msra.mxu0 0
      %1990 = vmatprep.mubr.bf16.mxu0 0
      %1991 = vmatmul.mubr.bf16.gmra.mrb[0].mxu0 %v1675
      %v1992 = vpop.f32.mrb[0].mxu0
      %v1993 = vadd.f32 0.0, %v1992
      %v1994 = vpop.f32.mrb[0].mxu0
      %v1995 = vpop.f32.mrb[0].mxu0
      %v1996 = vadd.f32 0.0, %v1995
      %v1997 = vpop.f32.mrb[0].mxu0
      %1998 = vmatprep.mubr.bf16.mxu0 0
      %1999 = vmatmul.mubr.bf16.gmra.mrb[0].mxu0 %v1678
      %v2000 = vpop.f32.mrb[0].mxu0
      %v2001 = vadd.f32 0.0, %v2000
      %v2002 = vpop.f32.mrb[0].mxu0
      %v2003 = vpop.f32.mrb[0].mxu0
      %v2004 = vadd.f32 0.0, %v2003
      %v2005 = vpop.f32.mrb[0].mxu0
      %2006 = vmatprep.mubr.bf16.mxu0 0
      %2007 = vmatmul.mubr.bf16.gmra.mrb[0].mxu0 %v1681
      %v2008 = vpop.f32.mrb[0].mxu0
      %v2009 = vadd.f32 0.0, %v2008
      %v2010 = vpop.f32.mrb[0].mxu0
      %v2011 = vpop.f32.mrb[0].mxu0
      %v2012 = vadd.f32 0.0, %v2011
      %v2013 = vpop.f32.mrb[0].mxu0
      %2014 = vmatprep.mubr.bf16.mxu0 0
      %2015 = vmatmul.mubr.bf16.gmra.mrb[0].mxu0 %v1684
      %v2016 = vpop.f32.mrb[0].mxu0
      %v2017 = vadd.f32 0.0, %v2016
      %v2018 = vpop.f32.mrb[0].mxu0
      %v2019 = vpop.f32.mrb[0].mxu0
      %v2020 = vadd.f32 0.0, %v2019
      %v2021 = vpop.f32.mrb[0].mxu0
      %2022 = vmatprep.mubr.bf16.mxu0 0
      %2023 = vmatmul.mubr.bf16.gmra.mrb[0].mxu0 %v1687
      %v2024 = vpop.f32.mrb[0].mxu0
      %v2025 = vadd.f32 0.0, %v2024
      %v2026 = vpop.f32.mrb[0].mxu0
      %v2027 = vpop.f32.mrb[0].mxu0
      %v2028 = vadd.f32 0.0, %v2027
      %v2029 = vpop.f32.mrb[0].mxu0
      %2030 = vmatprep.mubr.bf16.mxu0 0
      %2031 = vmatmul.mubr.bf16.gmra.mrb[0].mxu0 %v1690
      %v2032 = vpop.f32.mrb[0].mxu0
      %v2033 = vadd.f32 0.0, %v2032
      %v2034 = vpop.f32.mrb[0].mxu0
      %v2035 = vpop.f32.mrb[0].mxu0
      %v2036 = vadd.f32 0.0, %v2035
      %v2037 = vpop.f32.mrb[0].mxu0
      %2038 = vmatprep.mubr.bf16.mxu0 0
      %2039 = vmatmul.mubr.bf16.gmra.mrb[0].mxu0 %v1823
      %v2040 = vpop.f32.mrb[0].mxu0
      %v2041 = vadd.f32 0.0, %v2040
      %v2042 = vpop.f32.mrb[0].mxu0
      %v2043 = vpop.f32.mrb[0].mxu0
      %v2044 = vadd.f32 0.0, %v2043
      %v2045 = vpop.f32.mrb[0].mxu0
      %2046 = vmatprep.mubr.bf16.mxu0 0
      %2047 = vmatmul.mubr.bf16.gmra.mrb[0].mxu0 %v1956
      %v2048 = vpop.f32.mrb[0].mxu0
      %v2049 = vadd.f32 0.0, %v2048
      %v2050 = vpop.f32.mrb[0].mxu0
      %v2051 = vpop.f32.mrb[0].mxu0
      %v2052 = vadd.f32 0.0, %v2051
      %v2053 = vpop.f32.mrb[0].mxu0
      %2054 = vdwg.mxu0
      %v2055 = vadd.f32 %v1922, %v1993
      %v2056 = vadd.f32 %v1923, %v1996
      %v2057 = vadd.f32 %v1924, %v2001
      %v2058 = vadd.f32 %v1925, %v2004
      %v2059 = vadd.f32 %v1926, %v2009
      %v2060 = vadd.f32 %v1927, %v2012
      %v2061 = vadd.f32 %v1928, %v2017
      %v2062 = vadd.f32 %v1929, %v2020
      %v2063 = vadd.f32 %v1930, %v2025
      %v2064 = vadd.f32 %v1931, %v2028
      %v2065 = vadd.f32 %v1932, %v2033
      %v2066 = vadd.f32 %v1933, %v2036
      %v2067 = vadd.f32 %v1934, %v2041
      %v2068 = vadd.f32 %v1935, %v2044
      %v2069 = vadd.f32 %v1936, %v2049
      %v2070 = vadd.f32 %v1937, %v2052
      %v2072 = vlaneseq
      %v2073 = vshrl.u32 %v2072, 7
      %v2074 = vsub.s32 0, %v2073
      %v2075 = vrot.slane %v753, %v2074
      %v2077 = vadd.f32 %v2055, %v2075
      %v2078 = vadd.f32 %v2056, %v2075
      %v2079 = vadd.f32 %v2057, %v2075
      %v2080 = vadd.f32 %v2058, %v2075
      %v2081 = vadd.f32 %v2059, %v2075
      %v2082 = vadd.f32 %v2060, %v2075
      %v2083 = vadd.f32 %v2061, %v2075
      %v2084 = vadd.f32 %v2062, %v2075
      %v2085 = vadd.f32 %v2063, %v2075
      %v2086 = vadd.f32 %v2064, %v2075
      %v2087 = vadd.f32 %v2065, %v2075
      %v2088 = vadd.f32 %v2066, %v2075
      %v2089 = vadd.f32 %v2067, %v2075
      %v2090 = vadd.f32 %v2068, %v2075
      %v2091 = vadd.f32 %v2069, %v2075
      %v2092 = vadd.f32 %v2070, %v2075
      %v2093 = vpack.c.bf16 %v2078, %v2077
      %v2094 = vpack.c.bf16 %v2080, %v2079
      %v2095 = vpack.c.bf16 %v2082, %v2081
      %v2096 = vpack.c.bf16 %v2084, %v2083
      %v2097 = vpack.c.bf16 %v2086, %v2085
      %v2098 = vpack.c.bf16 %v2088, %v2087
      %v2099 = vpack.c.bf16 %v2090, %v2089
      %v2100 = vpack.c.bf16 %v2092, %v2091
      %v2109 = vunpack.c.l.b16 %v2093
      %v2110 = vunpack.c.h.b16 %v2093
      %v2111 = vunpack.c.l.b16 %v2094
      %v2112 = vunpack.c.h.b16 %v2094
      %v2113 = vunpack.c.l.b16 %v2095
      %v2114 = vunpack.c.h.b16 %v2095
      %v2115 = vunpack.c.l.b16 %v2096
      %v2116 = vunpack.c.h.b16 %v2096
      %v2117 = vunpack.c.l.b16 %v2097
      %v2118 = vunpack.c.h.b16 %v2097
      %v2119 = vunpack.c.l.b16 %v2098
      %v2120 = vunpack.c.h.b16 %v2098
      %v2121 = vunpack.c.l.b16 %v2099
      %v2122 = vunpack.c.h.b16 %v2099
      %v2123 = vunpack.c.l.b16 %v2100
      %v2124 = vunpack.c.h.b16 %v2100
      %v2125 = vpack.c.b16 %v2109, %v2109
      %v2126 = vpack.c.b16 %v2110, %v2110
      %v2127 = vpack.c.b16 %v2111, %v2111
      %v2128 = vpack.c.b16 %v2112, %v2112
      %v2129 = vpack.c.b16 %v2113, %v2113
      %v2130 = vpack.c.b16 %v2114, %v2114
      %v2131 = vpack.c.b16 %v2115, %v2115
      %v2132 = vpack.c.b16 %v2116, %v2116
      %v2133 = vpack.c.b16 %v2117, %v2117
      %v2134 = vpack.c.b16 %v2118, %v2118
      %v2135 = vpack.c.b16 %v2119, %v2119
      %v2136 = vpack.c.b16 %v2120, %v2120
      %v2137 = vpack.c.b16 %v2121, %v2121
      %v2138 = vpack.c.b16 %v2122, %v2122
      %v2139 = vpack.c.b16 %v2123, %v2123
      %v2140 = vpack.c.b16 %v2124, %v2124
      %vm2157 = vcmask 519168
      %2158 = vst.msk [vmem:[%s435] sm:$0xf] %vm2157, %v2125
      %2159 = vst.msk [vmem:[%s435 + $0x4] sm:$0xf] %vm2157, %v2126
      %2160 = vst.msk [vmem:[%s435 + $0x8] sm:$0xf] %vm2157, %v2127
      %2161 = vst.msk [vmem:[%s435 + $0xc] sm:$0xf] %vm2157, %v2128
      %2162 = vst.msk [vmem:[%s435 + $0x10] sm:$0xf] %vm2157, %v2129
      %2163 = vst.msk [vmem:[%s435 + $0x14] sm:$0xf] %vm2157, %v2130
      %2164 = vst.msk [vmem:[%s435 + $0x18] sm:$0xf] %vm2157, %v2131
      %2165 = vst.msk [vmem:[%s435 + $0x1c] sm:$0xf] %vm2157, %v2132
      %2166 = vst.msk [vmem:[%s435 + $0x20] sm:$0xf] %vm2157, %v2133
      %2167 = vst.msk [vmem:[%s435 + $0x24] sm:$0xf] %vm2157, %v2134
      %2168 = vst.msk [vmem:[%s435 + $0x28] sm:$0xf] %vm2157, %v2135
      %2169 = vst.msk [vmem:[%s435 + $0x2c] sm:$0xf] %vm2157, %v2136
      %2170 = vst.msk [vmem:[%s435 + $0x30] sm:$0xf] %vm2157, %v2137
      %2171 = vst.msk [vmem:[%s435 + $0x34] sm:$0xf] %vm2157, %v2138
      %2172 = vst.msk [vmem:[%s435 + $0x38] sm:$0xf] %vm2157, %v2139
      %2173 = vst.msk [vmem:[%s435 + $0x3c] sm:$0xf] %vm2157, %v2140
      %s2174 = smul.u32 8, %s22
      %p2175 = scmp.lt.s32.totalorder %s21, 1
      %s2176 = scalar_select %p2175, %s21, 1
      %p2177 = scmp.lt.s32.totalorder %s2174, 15
      %s2178 = scalar_select %p2177, %s2174, 15
      %s2179 = smul.addr %s2178, 2
      %s2180 = smul.addr %s2176, 32
      %s2181 = sadd.s32 %s2179, %s2180
      %s2182 = smul.addr %s2181, 4
      %s2183 = scalar_lea.vmem %s6, %s2182
      // Predicated region
      $region61: #{resnet_block_forward.5} parent=43 // pred_check
        %p2184 = pneg %p217
      $region62: #{resnet_block_forward.5} parent=43 // pred_check_branch
        %2186 = sbr.rel (%p2184) target = $region64
      $region63: #{resnet_block_forward.5} parent=43 // pred_region
        %s2187 = smul.u32 8, %s22
      $region64: #{resnet_block_forward.5} parent=43 // pred_fallthru
        _
    $region44: #{resnet_block_forward.5} parent=5 // pred_fallthru
      _
    %p2188 = scmp.le.s32.totalorder 2, %s12
    // Predicated region
    $region65: #{resnet_block_forward.5} parent=5 // pred_check
      %p2189 = pneg %p2188
    $region66: #{resnet_block_forward.5} parent=5 // pred_check_branch
      %2191 = sbr.rel (%p2189) target = $region68
    $region67: #{resnet_block_forward.5} parent=5 // pred_region
      %s2192 = ssub.s32 %s12, 2
      // Predicated region
      $region69: #{resnet_block_forward.5} parent=67 // pred_check
        %p2193 = pneg %p223
      $region70: #{resnet_block_forward.5} parent=67 // pred_check_branch
        %2195 = sbr.rel (%p2193) target = $region72
      $region71: #{resnet_block_forward.5} parent=67 // pred_region
        %s2196 = smul.u32 8, %s24
        %p2197 = scmp.lt.s32.totalorder %s23, 1
        %s2198 = scalar_select %p2197, %s23, 1
        %p2199 = scmp.lt.s32.totalorder %s2196, 15
        %s2200 = scalar_select %p2199, %s2196, 15
        %s2201 = smul.addr %s2200, 2
        %s2202 = smul.addr %s2198, 32
        %s2203 = sadd.s32 %s2201, %s2202
        %s2204 = smul.addr %s2203, 4
        %s2205 = scalar_lea.vmem %s6, %s2204
      $region72: #{resnet_block_forward.5} parent=67 // pred_fallthru
        _
    $region68: #{resnet_block_forward.5} parent=5 // pred_fallthru
      _
  $region6: #{resnet_block_forward.5} parent=0 // loop_footer
    %s16 = sadd.s32 1, %s12
  $region7: #{resnet_block_forward.5} parent=0 // loop_footer_branch
    %11 = sbr.rel target = $region3
  $region8: #{resnet_block_forward.5} parent=0 // loop_exit
    _

// kernel: resnet_block_forward.7
$region0: #{resnet_block_forward.7}
  #allocation0 [shape = 'u32[]', space=smem, size = 0x4, offset = 0x4, fixed_abs, tag = 'smem constant byte address 0x4 - core index']
  #allocation1 [shape = 'u32[144,128]{1,0:T(1,128)}', space=vmem, size = 0x12000, scoped, tag = 'internal scratch']
  #allocation2 [shape = 'f32[10,32,64]{2,1,0:T(8,128)}', space=vmem, size = 0x28000, scoped, tag = 'scratch operand']
  %s0 = inlined_call_operand.vmem [shape: bf16[2,16,16,64], index: 0, kind: input, shape index: {}, may-alias: {0,1,2}]
  %s1 = inlined_call_operand.vmem [shape: bf16[2,16,16,64], index: 1, kind: input, shape index: {}, may-alias: {0,1,2}]
  %s2 = inlined_call_operand.vmem [shape: bf16[2,16,16,64], index: 2, kind: input, shape index: {}, may-alias: {0,1,2}]
  %s3 = inlined_call_operand.vmem [shape: f32[2,2,64], index: 3, kind: input, shape index: {}]
  %s4 = inlined_call_operand.vmem [shape: bf16[9,64,64], index: 4, kind: input, shape index: {}]
  %s5 = inlined_call_operand.vmem [shape: f32[1,64], index: 5, kind: input, shape index: {}]
  %s6 = inlined_call_operand.vmem [shape: bf16[2,16,16,32], index: 6, kind: input, shape index: {}]
  %s7 = inlined_call_operand.vmem [shape: bf16[32,64], index: 7, kind: input, shape index: {}]
  %s8 = inlined_call_operand.vmem [shape: f32[1,64], index: 8, kind: input, shape index: {}]
  %s9 = inlined_call_operand.hbm [shape: f32[2,16,16,64], index: 9, kind: output, shape index: {}]
  %s10 = sld [smem:[#allocation0]]
  $region85: #{resnet_block_forward.7} parent=0
    _
  %s12 = ssub.s32 1, %s10
  %s13 = scalar_select 0, %s12, %s10
  $region1: #{resnet_block_forward.7} parent=0
    #allocation3 [shape = 'u8[131072]{0}', space=vmem, size = 0x20000, scoped, tag = 'output window, operand 0']
    #allocation4 [shape = 's32[2]{0}', space=sflag, size = 0x8, scoped, tag = 'scoped memory for resnet_block_forward.7']
    %14 = vsyncpa [#allocation4], 0
    %s15 = scalar_lea.sflag [#allocation4], 1
    %16 = vsyncpa %s15, 0
    loop: start=0, step=1, limit=6
    $region2: #{resnet_block_forward.7} parent=1 // loop_pre_header
      _
    $region3: #{resnet_block_forward.7} parent=1 // loop_header
      %s18 = sphi 0, %s22
      %p19 = scmp.ge.s32.totalorder %s18, 6
      %s25 = sphi 0, %s37
      %s26 = sphi 0, %s33
      %s27 = sphi 0, %s25
      %s28 = sphi 0, %s26
      %s29 = sphi 0, %s27
      %s30 = sphi 0, %s28
      %s42 = sphi 0, %s44
      %s45 = sphi 0, %s42
      %s46 = sphi 0, %s45
      %s62 = sphi 0, %s46
      %s78 = sphi 0, %s80
      %s81 = sphi 0, %s78
      %s82 = sphi 0, %s81
      %s98 = sphi 0, %s82
      %s114 = sphi 0, %s116
      %s117 = sphi 0, %s114
      %s118 = sphi 0, %s117
      %s134 = sphi 0, %s118
      %s140 = sphi 0, %s142
      %s143 = sphi 0, %s140
      %s144 = sphi 0, %s143
      %s160 = sphi 0, %s144
      %s164 = sphi 0, %s164
      %s166 = sphi 0, %s164
      %s167 = sphi 0, %s166
      %s181 = sphi 0, %s167
      %s185 = sphi 0, %s185
      %s187 = sphi 0, %s185
      %s188 = sphi 0, %s187
      %s202 = sphi 0, %s188
      %s210 = sphi 0, %s212
      %s213 = sphi 0, %s210
      %s214 = sphi 0, %s213
      %s230 = sphi 0, %s214
      %s234 = sphi 0, %s234
      %s236 = sphi 0, %s234
      %s237 = sphi 0, %s236
      %s251 = sphi 0, %s237
      %s255 = sphi 0, %s255
      %s257 = sphi 0, %s255
      %s258 = sphi 0, %s257
      %s272 = sphi 0, %s258
      %s280 = sphi 0, %s282
      %s283 = sphi 0, %s280
      %s284 = sphi 0, %s283
      %s300 = sphi 0, %s284
    $region4: #{resnet_block_forward.7} parent=1 // loop_header_branch
      %21 = sbr.rel (%p19) target = $region8
    $region5: #{resnet_block_forward.7} parent=1 // loop_body
      %s23 = ssub.s32 %s18, 1
      %s24 = ssub.s32 %s18, 2
      %s31 = sadd.s32 1, %s26
      %p32 = scmp.ge.s32.totalorder %s31, 2
      %s33 = scalar_select %p32, 0, %s31
      %s34 = sadd.s32 1, %s25
      %s35 = scalar_select %p32, %s34, %s25
      %p36 = scmp.ge.s32.totalorder %s35, 2
      %s37 = scalar_select %p36, 0, %s35
      %s38 = ssub.s32 %s25, %s37
      %s39 = ssub.s32 %s26, %s33
      %s40 = sor.u32 %s38, %s39
      %p41 = scmp.eq.s32.totalorder %s40, 0
      %s43 = sadd.s32 %s42, 1
      %s44 = scalar_select %p41, %s42, %s43
      %p47 = pneg %p41
      %p48 = scmp.eq.s32.totalorder %s18, 3
      %p49 = por %p47, %p48
      %p50 = scmp.ne.s32.totalorder %s42, %s45
      %p51 = scmp.eq.s32.totalorder %s18, 0
      %p52 = por %p50, %p51
      %p53 = scmp.ne.s32.totalorder %s42, %s45
      %p54 = scmp.eq.s32.totalorder %s23, 3
      %p55 = por %p53, %p54
      %p56 = scmp.ne.s32.totalorder %s45, %s46
      %p57 = scmp.eq.s32.totalorder %s23, 0
      %p58 = por %p56, %p57
      %p59 = scmp.ne.s32.totalorder %s45, %s46
      %p60 = scmp.eq.s32.totalorder %s24, 3
      %p61 = por %p59, %p60
      %p63 = scmp.ne.s32.totalorder %s46, %s62
      %p64 = scmp.eq.s32.totalorder %s24, 0
      %p65 = por %p63, %p64
      %s66 = smul.u32 %s26, 8
      %s67 = ssub.s32 %s66, 1
      %p68 = scmp.gt.s32.totalorder %s67, 0
      %s69 = scalar_select %p68, %s67, 0
      %s70 = smul.u32 %s33, 8
      %s71 = ssub.s32 %s70, 1
      %p72 = scmp.gt.s32.totalorder %s71, 0
      %s73 = scalar_select %p72, %s71, 0
      %s74 = ssub.s32 %s25, %s37
      %s75 = ssub.s32 %s69, %s73
      %s76 = sor.u32 %s74, %s75
      %p77 = scmp.eq.s32.totalorder %s76, 0
      %s79 = sadd.s32 %s78, 1
      %s80 = scalar_select %p77, %s78, %s79
      %p83 = pneg %p77
      %p84 = scmp.eq.s32.totalorder %s18, 3
      %p85 = por %p83, %p84
      %p86 = scmp.ne.s32.totalorder %s78, %s81
      %p87 = scmp.eq.s32.totalorder %s18, 0
      %p88 = por %p86, %p87
      %p89 = scmp.ne.s32.totalorder %s78, %s81
      %p90 = scmp.eq.s32.totalorder %s23, 3
      %p91 = por %p89, %p90
      %p92 = scmp.ne.s32.totalorder %s81, %s82
      %p93 = scmp.eq.s32.totalorder %s23, 0
      %p94 = por %p92, %p93
      %p95 = scmp.ne.s32.totalorder %s81, %s82
      %p96 = scmp.eq.s32.totalorder %s24, 3
      %p97 = por %p95, %p96
      %p99 = scmp.ne.s32.totalorder %s82, %s98
      %p100 = scmp.eq.s32.totalorder %s24, 0
      %p101 = por %p99, %p100
      %s102 = sadd.s32 %s26, 1
      %s103 = smul.u32 %s102, 8
      %p104 = scmp.lt.s32.totalorder %s103, 15
      %s105 = scalar_select %p104, %s103, 15
      %s106 = sadd.s32 %s33, 1
      %s107 = smul.u32 %s106, 8
      %p108 = scmp.lt.s32.totalorder %s107, 15
      %s109 = scalar_select %p108, %s107, 15
      %s110 = ssub.s32 %s25, %s37
      %s111 = ssub.s32 %s105, %s109
      %s112 = sor.u32 %s110, %s111
      %p113 = scmp.eq.s32.totalorder %s112, 0
      %s115 = sadd.s32 %s114, 1
      %s116 = scalar_select %p113, %s114, %s115
      %p119 = pneg %p113
      %p120 = scmp.eq.s32.totalorder %s18, 3
      %p121 = por %p119, %p120
      %p122 = scmp.ne.s32.totalorder %s114, %s117
      %p123 = scmp.eq.s32.totalorder %s18, 0
      %p124 = por %p122, %p123
      %p125 = scmp.ne.s32.totalorder %s114, %s117
      %p126 = scmp.eq.s32.totalorder %s23, 3
      %p127 = por %p125, %p126
      %p128 = scmp.ne.s32.totalorder %s117, %s118
      %p129 = scmp.eq.s32.totalorder %s23, 0
      %p130 = por %p128, %p129
      %p131 = scmp.ne.s32.totalorder %s117, %s118
      %p132 = scmp.eq.s32.totalorder %s24, 3
      %p133 = por %p131, %p132
      %p135 = scmp.ne.s32.totalorder %s118, %s134
      %p136 = scmp.eq.s32.totalorder %s24, 0
      %p137 = por %p135, %p136
      %s138 = ssub.s32 %s25, %s37
      %p139 = scmp.eq.s32.totalorder %s138, 0
      %s141 = sadd.s32 %s140, 1
      %s142 = scalar_select %p139, %s140, %s141
      %p145 = pneg %p139
      %p146 = scmp.eq.s32.totalorder %s18, 3
      %p147 = por %p145, %p146
      %p148 = scmp.ne.s32.totalorder %s140, %s143
      %p149 = scmp.eq.s32.totalorder %s18, 0
      %p150 = por %p148, %p149
      %p151 = scmp.ne.s32.totalorder %s140, %s143
      %p152 = scmp.eq.s32.totalorder %s23, 3
      %p153 = por %p151, %p152
      %p154 = scmp.ne.s32.totalorder %s143, %s144
      %p155 = scmp.eq.s32.totalorder %s23, 0
      %p156 = por %p154, %p155
      %p157 = scmp.ne.s32.totalorder %s143, %s144
      %p158 = scmp.eq.s32.totalorder %s24, 3
      %p159 = por %p157, %p158
      %p161 = scmp.ne.s32.totalorder %s144, %s160
      %p162 = scmp.eq.s32.totalorder %s24, 0
      %p163 = por %p161, %p162
      %s165 = sadd.s32 %s164, 1
      %p168 = scmp.eq.s32.totalorder %s18, 3
      %p169 = scmp.ne.s32.totalorder %s164, %s166
      %p170 = scmp.eq.s32.totalorder %s18, 0
      %p171 = por %p169, %p170
      %p172 = scmp.ne.s32.totalorder %s164, %s166
      %p173 = scmp.eq.s32.totalorder %s23, 3
      %p174 = por %p172, %p173
      %p175 = scmp.ne.s32.totalorder %s166, %s167
      %p176 = scmp.eq.s32.totalorder %s23, 0
      %p177 = por %p175, %p176
      %p178 = scmp.ne.s32.totalorder %s166, %s167
      %p179 = scmp.eq.s32.totalorder %s24, 3
      %p180 = por %p178, %p179
      %p182 = scmp.ne.s32.totalorder %s167, %s181
      %p183 = scmp.eq.s32.totalorder %s24, 0
      %p184 = por %p182, %p183
      %s186 = sadd.s32 %s185, 1
      %p189 = scmp.eq.s32.totalorder %s18, 3
      %p190 = scmp.ne.s32.totalorder %s185, %s187
      %p191 = scmp.eq.s32.totalorder %s18, 0
      %p192 = por %p190, %p191
      %p193 = scmp.ne.s32.totalorder %s185, %s187
      %p194 = scmp.eq.s32.totalorder %s23, 3
      %p195 = por %p193, %p194
      %p196 = scmp.ne.s32.totalorder %s187, %s188
      %p197 = scmp.eq.s32.totalorder %s23, 0
      %p198 = por %p196, %p197
      %p199 = scmp.ne.s32.totalorder %s187, %s188
      %p200 = scmp.eq.s32.totalorder %s24, 3
      %p201 = por %p199, %p200
      %p203 = scmp.ne.s32.totalorder %s188, %s202
      %p204 = scmp.eq.s32.totalorder %s24, 0
      %p205 = por %p203, %p204
      %s206 = ssub.s32 %s25, %s37
      %s207 = ssub.s32 %s26, %s33
      %s208 = sor.u32 %s206, %s207
      %p209 = scmp.eq.s32.totalorder %s208, 0
      %s211 = sadd.s32 %s210, 1
      %s212 = scalar_select %p209, %s210, %s211
      %p215 = pneg %p209
      %p216 = scmp.eq.s32.totalorder %s18, 3
      %p217 = por %p215, %p216
      %p218 = scmp.ne.s32.totalorder %s210, %s213
      %p219 = scmp.eq.s32.totalorder %s18, 0
      %p220 = por %p218, %p219
      %p221 = scmp.ne.s32.totalorder %s210, %s213
      %p222 = scmp.eq.s32.totalorder %s23, 3
      %p223 = por %p221, %p222
      %p224 = scmp.ne.s32.totalorder %s213, %s214
      %p225 = scmp.eq.s32.totalorder %s23, 0
      %p226 = por %p224, %p225
      %p227 = scmp.ne.s32.totalorder %s213, %s214
      %p228 = scmp.eq.s32.totalorder %s24, 3
      %p229 = por %p227, %p228
      %p231 = scmp.ne.s32.totalorder %s214, %s230
      %p232 = scmp.eq.s32.totalorder %s24, 0
      %p233 = por %p231, %p232
      %s235 = sadd.s32 %s234, 1
      %p238 = scmp.eq.s32.totalorder %s18, 3
      %p239 = scmp.ne.s32.totalorder %s234, %s236
      %p240 = scmp.eq.s32.totalorder %s18, 0
      %p241 = por %p239, %p240
      %p242 = scmp.ne.s32.totalorder %s234, %s236
      %p243 = scmp.eq.s32.totalorder %s23, 3
      %p244 = por %p242, %p243
      %p245 = scmp.ne.s32.totalorder %s236, %s237
      %p246 = scmp.eq.s32.totalorder %s23, 0
      %p247 = por %p245, %p246
      %p248 = scmp.ne.s32.totalorder %s236, %s237
      %p249 = scmp.eq.s32.totalorder %s24, 3
      %p250 = por %p248, %p249
      %p252 = scmp.ne.s32.totalorder %s237, %s251
      %p253 = scmp.eq.s32.totalorder %s24, 0
      %p254 = por %p252, %p253
      %s256 = sadd.s32 %s255, 1
      %p259 = scmp.eq.s32.totalorder %s18, 3
      %p260 = scmp.ne.s32.totalorder %s255, %s257
      %p261 = scmp.eq.s32.totalorder %s18, 0
      %p262 = por %p260, %p261
      %p263 = scmp.ne.s32.totalorder %s255, %s257
      %p264 = scmp.eq.s32.totalorder %s23, 3
      %p265 = por %p263, %p264
      %p266 = scmp.ne.s32.totalorder %s257, %s258
      %p267 = scmp.eq.s32.totalorder %s23, 0
      %p268 = por %p266, %p267
      %p269 = scmp.ne.s32.totalorder %s257, %s258
      %p270 = scmp.eq.s32.totalorder %s24, 3
      %p271 = por %p269, %p270
      %p273 = scmp.ne.s32.totalorder %s258, %s272
      %p274 = scmp.eq.s32.totalorder %s24, 0
      %p275 = por %p273, %p274
      %s276 = ssub.s32 %s25, %s37
      %s277 = ssub.s32 %s26, %s33
      %s278 = sor.u32 %s276, %s277
      %p279 = scmp.eq.s32.totalorder %s278, 0
      %s281 = sadd.s32 %s280, 1
      %s282 = scalar_select %p279, %s280, %s281
      %p285 = pneg %p279
      %p286 = scmp.eq.s32.totalorder %s18, 3
      %p287 = por %p285, %p286
      %p288 = scmp.ne.s32.totalorder %s280, %s283
      %p289 = scmp.eq.s32.totalorder %s18, 0
      %p290 = por %p288, %p289
      %p291 = scmp.ne.s32.totalorder %s280, %s283
      %p292 = scmp.eq.s32.totalorder %s23, 3
      %p293 = por %p291, %p292
      %p294 = scmp.ne.s32.totalorder %s283, %s284
      %p295 = scmp.eq.s32.totalorder %s23, 0
      %p296 = por %p294, %p295
      %p297 = scmp.ne.s32.totalorder %s283, %s284
      %p298 = scmp.eq.s32.totalorder %s24, 3
      %p299 = por %p297, %p298
      %p301 = scmp.ne.s32.totalorder %s284, %s300
      %p302 = scmp.eq.s32.totalorder %s24, 0
      %p303 = por %p301, %p302
      %p304 = scmp.le.s32.totalorder 1, %s18
      %p305 = scmp.lt.s32.totalorder %s18, 5
      %p306 = pnand %p304, %p305
      %p307 = pneg %p306
      // Predicated region
      $region9: #{resnet_block_forward.7} parent=5 // pred_check
        _
      $region10: #{resnet_block_forward.7} parent=5 // pred_check_branch
        %309 = sbr.rel (%p306) target = $region12
      $region11: #{resnet_block_forward.7} parent=5 // pred_region
        %s310 = ssub.s32 %s18, 1
        // Predicated region
        $region13: #{resnet_block_forward.7} parent=11 // pred_check
          %p311 = pneg %p177
        $region14: #{resnet_block_forward.7} parent=11 // pred_check_branch
          %313 = sbr.rel (%p311) target = $region16
        $region15: #{resnet_block_forward.7} parent=11 // pred_region
          _
        $region16: #{resnet_block_forward.7} parent=11 // pred_fallthru
          _
        // Predicated region
        $region17: #{resnet_block_forward.7} parent=11 // pred_check
          %p314 = pneg %p198
        $region18: #{resnet_block_forward.7} parent=11 // pred_check_branch
          %316 = sbr.rel (%p314) target = $region20
        $region19: #{resnet_block_forward.7} parent=11 // pred_region
          _
        $region20: #{resnet_block_forward.7} parent=11 // pred_fallthru
          _
        // Predicated region
        $region21: #{resnet_block_forward.7} parent=11 // pred_check
          %p317 = pneg %p247
        $region22: #{resnet_block_forward.7} parent=11 // pred_check_branch
          %319 = sbr.rel (%p317) target = $region24
        $region23: #{resnet_block_forward.7} parent=11 // pred_region
          _
        $region24: #{resnet_block_forward.7} parent=11 // pred_fallthru
          _
        // Predicated region
        $region25: #{resnet_block_forward.7} parent=11 // pred_check
          %p320 = pneg %p268
        $region26: #{resnet_block_forward.7} parent=11 // pred_check_branch
          %322 = sbr.rel (%p320) target = $region28
        $region27: #{resnet_block_forward.7} parent=11 // pred_region
          _
        $region28: #{resnet_block_forward.7} parent=11 // pred_fallthru
          _
      $region12: #{resnet_block_forward.7} parent=5 // pred_fallthru
        _
      %p323 = scmp.lt.s32.totalorder %s18, 4
      // Predicated region
      $region29: #{resnet_block_forward.7} parent=5 // pred_check
        %p324 = pneg %p323
      $region30: #{resnet_block_forward.7} parent=5 // pred_check_branch
        %326 = sbr.rel (%p324) target = $region32
      $region31: #{resnet_block_forward.7} parent=5 // pred_region
        // Predicated region
        $region33: #{resnet_block_forward.7} parent=31 // pred_check
          %p327 = pneg %p52
        $region34: #{resnet_block_forward.7} parent=31 // pred_check_branch
          %329 = sbr.rel (%p327) target = $region36
        $region35: #{resnet_block_forward.7} parent=31 // pred_region
          %s330 = smul.u32 8, %s26
          %p331 = scmp.lt.s32.totalorder %s25, 1
          %s332 = scalar_select %p331, %s25, 1
          %p333 = scmp.lt.s32.totalorder %s330, 15
          %s334 = scalar_select %p333, %s330, 15
          %s335 = smul.addr %s334, 2
          %s336 = smul.addr %s332, 32
          %s337 = sadd.s32 %s335, %s336
          %s338 = smul.addr %s337, 4
          %s339 = scalar_lea.vmem %s0, %s338
          %s340 = smul.u32 8, %s26
        $region36: #{resnet_block_forward.7} parent=31 // pred_fallthru
          _
        // Predicated region
        $region37: #{resnet_block_forward.7} parent=31 // pred_check
          %p341 = pneg %p88
        $region38: #{resnet_block_forward.7} parent=31 // pred_check_branch
          %343 = sbr.rel (%p341) target = $region40
        $region39: #{resnet_block_forward.7} parent=31 // pred_region
          %s344 = smul.u32 %s26, 8
          %s345 = ssub.s32 %s344, 1
          %p346 = scmp.gt.s32.totalorder %s345, 0
          %s347 = scalar_select %p346, %s345, 0
          %p348 = scmp.lt.s32.totalorder %s25, 1
          %s349 = scalar_select %p348, %s25, 1
          %p350 = scmp.lt.s32.totalorder %s347, 15
          %s351 = scalar_select %p350, %s347, 15
          %s352 = smul.addr %s351, 2
          %s353 = smul.addr %s349, 32
          %s354 = sadd.s32 %s352, %s353
          %s355 = smul.addr %s354, 4
          %s356 = scalar_lea.vmem %s1, %s355
          %s357 = smul.u32 %s26, 8
          %s358 = ssub.s32 %s357, 1
          %p359 = scmp.gt.s32.totalorder %s358, 0
          %s360 = scalar_select %p359, %s358, 0
        $region40: #{resnet_block_forward.7} parent=31 // pred_fallthru
          _
        // Predicated region
        $region41: #{resnet_block_forward.7} parent=31 // pred_check
          %p361 = pneg %p124
        $region42: #{resnet_block_forward.7} parent=31 // pred_check_branch
          %363 = sbr.rel (%p361) target = $region44
        $region43: #{resnet_block_forward.7} parent=31 // pred_region
          %s364 = sadd.s32 %s26, 1
          %s365 = smul.u32 %s364, 8
          %p366 = scmp.lt.s32.totalorder %s365, 15
          %s367 = scalar_select %p366, %s365, 15
          %p368 = scmp.lt.s32.totalorder %s25, 1
          %s369 = scalar_select %p368, %s25, 1
          %p370 = scmp.lt.s32.totalorder %s367, 15
          %s371 = scalar_select %p370, %s367, 15
          %s372 = smul.addr %s371, 2
          %s373 = smul.addr %s369, 32
          %s374 = sadd.s32 %s372, %s373
          %s375 = smul.addr %s374, 4
          %s376 = scalar_lea.vmem %s2, %s375
          %s377 = sadd.s32 %s26, 1
          %s378 = smul.u32 %s377, 8
          %p379 = scmp.lt.s32.totalorder %s378, 15
          %s380 = scalar_select %p379, %s378, 15
        $region44: #{resnet_block_forward.7} parent=31 // pred_fallthru
          _
        // Predicated region
        $region45: #{resnet_block_forward.7} parent=31 // pred_check
          %p381 = pneg %p150
        $region46: #{resnet_block_forward.7} parent=31 // pred_check_branch
          %383 = sbr.rel (%p381) target = $region48
        $region47: #{resnet_block_forward.7} parent=31 // pred_region
          %p384 = scmp.lt.s32.totalorder %s25, 1
          %s385 = scalar_select %p384, %s25, 1
          %s386 = smul.addr %s385, 2
          %s387 = scalar_lea.vmem %s3, %s386
        $region48: #{resnet_block_forward.7} parent=31 // pred_fallthru
          _
        // Predicated region
        $region49: #{resnet_block_forward.7} parent=31 // pred_check
          %p388 = pneg %p220
        $region50: #{resnet_block_forward.7} parent=31 // pred_check_branch
          %390 = sbr.rel (%p388) target = $region52
        $region51: #{resnet_block_forward.7} parent=31 // pred_region
          %s391 = smul.u32 8, %s26
          %p392 = scmp.lt.s32.totalorder %s25, 1
          %s393 = scalar_select %p392, %s25, 1
          %p394 = scmp.lt.s32.totalorder %s391, 15
          %s395 = scalar_select %p394, %s391, 15
          %s396 = smul.addr %s395, 2
          %s397 = smul.addr %s393, 32
          %s398 = sadd.s32 %s396, %s397
          %s399 = smul.addr %s398, 4
          %s400 = scalar_lea.vmem %s6, %s399
          %s401 = smul.u32 8, %s26
        $region52: #{resnet_block_forward.7} parent=31 // pred_fallthru
          _
      $region32: #{resnet_block_forward.7} parent=5 // pred_fallthru
        _
      %p402 = scmp.le.s32.totalorder 1, %s18
      %p403 = scmp.lt.s32.totalorder %s18, 5
      %p404 = pnand %p402, %p403
      %p405 = pneg %p404
      // Predicated region
      $region53: #{resnet_block_forward.7} parent=5 // pred_check
        _
      $region54: #{resnet_block_forward.7} parent=5 // pred_check_branch
        %407 = sbr.rel (%p404) target = $region56
      $region55: #{resnet_block_forward.7} parent=5 // pred_region
        %s408 = ssub.s32 %s18, 1
        %s409 = smul.u32 8, %s28
        %p410 = scmp.lt.s32.totalorder %s27, 1
        %s411 = scalar_select %p410, %s27, 1
        %p412 = scmp.lt.s32.totalorder %s409, 15
        %s413 = scalar_select %p412, %s409, 15
        %s414 = smul.addr %s413, 2
        %s415 = smul.addr %s411, 32
        %s416 = sadd.s32 %s414, %s415
        %s417 = smul.addr %s416, 4
        %s418 = scalar_lea.vmem %s0, %s417
        %p419 = pneg %p58
        %p420 = pneg %p55
        %s421 = smul.u32 %s28, 8
        %s422 = ssub.s32 %s421, 1
        %p423 = scmp.gt.s32.totalorder %s422, 0
        %s424 = scalar_select %p423, %s422, 0
        %p425 = scmp.lt.s32.totalorder %s27, 1
        %s426 = scalar_select %p425, %s27, 1
        %p427 = scmp.lt.s32.totalorder %s424, 15
        %s428 = scalar_select %p427, %s424, 15
        %s429 = smul.addr %s428, 2
        %s430 = smul.addr %s426, 32
        %s431 = sadd.s32 %s429, %s430
        %s432 = smul.addr %s431, 4
        %s433 = scalar_lea.vmem %s1, %s432
        %p434 = pneg %p94
        %p435 = pneg %p91
        %s436 = sadd.s32 %s28, 1
        %s437 = smul.u32 %s436, 8
        %p438 = scmp.lt.s32.totalorder %s437, 15
        %s439 = scalar_select %p438, %s437, 15
        %p440 = scmp.lt.s32.totalorder %s27, 1
        %s441 = scalar_select %p440, %s27, 1
        %p442 = scmp.lt.s32.totalorder %s439, 15
        %s443 = scalar_select %p442, %s439, 15
        %s444 = smul.addr %s443, 2
        %s445 = smul.addr %s441, 32
        %s446 = sadd.s32 %s444, %s445
        %s447 = smul.addr %s446, 4
        %s448 = scalar_lea.vmem %s2, %s447
        %p449 = pneg %p130
        %p450 = pneg %p127
        %p451 = scmp.lt.s32.totalorder %s27, 1
        %s452 = scalar_select %p451, %s27, 1
        %s453 = smul.addr %s452, 2
        %s454 = scalar_lea.vmem %s3, %s453
        %p455 = pneg %p156
        %p456 = pneg %p153
        %p457 = pneg %p177
        %p458 = pneg %p174
        %p459 = pneg %p198
        %p460 = pneg %p195
        %s461 = smul.u32 8, %s28
        %p462 = scmp.lt.s32.totalorder %s27, 1
        %s463 = scalar_select %p462, %s27, 1
        %p464 = scmp.lt.s32.totalorder %s461, 15
        %s465 = scalar_select %p464, %s461, 15
        %s466 = smul.addr %s465, 2
        %s467 = smul.addr %s463, 32
        %s468 = sadd.s32 %s466, %s467
        %s469 = smul.addr %s468, 4
        %s470 = scalar_lea.vmem %s6, %s469
        %p471 = pneg %p226
        %p472 = pneg %p223
        %p473 = pneg %p247
        %p474 = pneg %p244
        %p475 = pneg %p268
        %p476 = pneg %p265
        %p477 = pneg %p296
        %p478 = pneg %p293
        %s479 = sand.u32 %s283, 1
        %s480 = scalar_lea.sflag [#allocation4], %s479
        %s481 = sand.u32 %s283, 1
        %s482 = smul.addr %s481, 128
        %s483 = scalar_lea.vmem [#allocation3], %s482
        %s484 = smul.u32 8, %s28
        %p485 = scmp.lt.s32.totalorder %s27, 1
        %s486 = scalar_select %p485, %s27, 1
        %p487 = scmp.lt.s32.totalorder %s484, 15
        %s488 = scalar_select %p487, %s484, 15
        %s489 = smul.addr %s488, 2
        %s490 = smul.addr %s486, 32
        %s491 = sadd.s32 %s489, %s490
        %s492 = smul.addr %s491, 4
        %s493 = scalar_lea.vmem %s0, %s492
        %s494 = smul.u32 8, %s28
        %s495 = smul.u32 %s28, 8
        %s496 = ssub.s32 %s495, 1
        %p497 = scmp.gt.s32.totalorder %s496, 0
        %s498 = scalar_select %p497, %s496, 0
        %p499 = scmp.lt.s32.totalorder %s27, 1
        %s500 = scalar_select %p499, %s27, 1
        %p501 = scmp.lt.s32.totalorder %s498, 15
        %s502 = scalar_select %p501, %s498, 15
        %s503 = smul.addr %s502, 2
        %s504 = smul.addr %s500, 32
        %s505 = sadd.s32 %s503, %s504
        %s506 = smul.addr %s505, 4
        %s507 = scalar_lea.vmem %s1, %s506
        %s508 = smul.u32 %s28, 8
        %s509 = ssub.s32 %s508, 1
        %p510 = scmp.gt.s32.totalorder %s509, 0
        %s511 = scalar_select %p510, %s509, 0
        %s512 = sadd.s32 %s28, 1
        %s513 = smul.u32 %s512, 8
        %p514 = scmp.lt.s32.totalorder %s513, 15
        %s515 = scalar_select %p514, %s513, 15
        %p516 = scmp.lt.s32.totalorder %s27, 1
        %s517 = scalar_select %p516, %s27, 1
        %p518 = scmp.lt.s32.totalorder %s515, 15
        %s519 = scalar_select %p518, %s515, 15
        %s520 = smul.addr %s519, 2
        %s521 = smul.addr %s517, 32
        %s522 = sadd.s32 %s520, %s521
        %s523 = smul.addr %s522, 4
        %s524 = scalar_lea.vmem %s2, %s523
        %s525 = sadd.s32 %s28, 1
        %s526 = smul.u32 %s525, 8
        %p527 = scmp.lt.s32.totalorder %s526, 15
        %s528 = scalar_select %p527, %s526, 15
        %p529 = scmp.lt.s32.totalorder %s27, 1
        %s530 = scalar_select %p529, %s27, 1
        %s531 = smul.addr %s530, 2
        %s532 = scalar_lea.vmem %s3, %s531
        %s533 = smul.u32 8, %s28
        %p534 = scmp.lt.s32.totalorder %s27, 1
        %s535 = scalar_select %p534, %s27, 1
        %p536 = scmp.lt.s32.totalorder %s533, 15
        %s537 = scalar_select %p536, %s533, 15
        %s538 = smul.addr %s537, 2
        %s539 = smul.addr %s535, 32
        %s540 = sadd.s32 %s538, %s539
        %s541 = smul.addr %s540, 4
        %s542 = scalar_lea.vmem %s6, %s541
        %s543 = smul.u32 8, %s28
        %s544 = smul.u32 8, %s28
        %v546 = vld [vmem:[%s532] sm:$0x1]
        %v547 = vld [vmem:[%s532 + $0x1] sm:$0x1]
        %vm548 = vcmask 516096
        %549 = vst.msk [vmem:[#allocation2 + $0x7] sm:$0x1] %vm548, 0.0
        %550 = vst.msk [vmem:[#allocation2 + $0x27] sm:$0x1] %vm548, 0.0
        %551 = vst.msk [vmem:[#allocation2 + $0x47] sm:$0x1] %vm548, 0.0
        %552 = vst.msk [vmem:[#allocation2 + $0x67] sm:$0x1] %vm548, 0.0
        %553 = vst.msk [vmem:[#allocation2 + $0x87] sm:$0x1] %vm548, 0.0
        %554 = vst.msk [vmem:[#allocation2 + $0xa7] sm:$0x1] %vm548, 0.0
        %555 = vst.msk [vmem:[#allocation2 + $0xc7] sm:$0x1] %vm548, 0.0
        %556 = vst.msk [vmem:[#allocation2 + $0xe7] sm:$0x1] %vm548, 0.0
        %557 = vst.msk [vmem:[#allocation2 + $0x107] sm:$0x1] %vm548, 0.0
        %558 = vst.msk [vmem:[#allocation2 + $0x127] sm:$0x1] %vm548, 0.0
        %559 = vst.msk [vmem:[#allocation2 + $0x18] sm:$0x1] %vm548, 0.0
        %560 = vst.msk [vmem:[#allocation2 + $0x38] sm:$0x1] %vm548, 0.0
        %561 = vst.msk [vmem:[#allocation2 + $0x58] sm:$0x1] %vm548, 0.0
        %562 = vst.msk [vmem:[#allocation2 + $0x78] sm:$0x1] %vm548, 0.0
        %563 = vst.msk [vmem:[#allocation2 + $0x98] sm:$0x1] %vm548, 0.0
        %564 = vst.msk [vmem:[#allocation2 + $0xb8] sm:$0x1] %vm548, 0.0
        %565 = vst.msk [vmem:[#allocation2 + $0xd8] sm:$0x1] %vm548, 0.0
        %566 = vst.msk [vmem:[#allocation2 + $0xf8] sm:$0x1] %vm548, 0.0
        %567 = vst.msk [vmem:[#allocation2 + $0x118] sm:$0x1] %vm548, 0.0
        %568 = vst.msk [vmem:[#allocation2 + $0x138] sm:$0x1] %vm548, 0.0
        %p569 = scmp.gt.s32.totalorder %s28, 0
        // Predicated region
        $region57: #{resnet_block_forward.7} parent=55 // pred_check
          %p570 = pneg %p569
        $region58: #{resnet_block_forward.7} parent=55 // pred_check_branch
          %572 = sbr.rel (%p570) target = $region60
        $region59: #{resnet_block_forward.7} parent=55 // pred_region
          %v573 = vld [vmem:[%s507] sm:$0xf]
          %v574 = vld [vmem:[%s507 + $0x4] sm:$0xf]
          %v575 = vunpack.c.l.bf16 %v573
          %v576 = vunpack.c.l.bf16 %v574
          %v577 = vlaneseq
          %v578 = vshrl.u32 %v577, 7
          %v579 = vsub.s32 0, %v578
          %v580 = vrot.slane %v546, %v579
          %v581 = vmul.f32 %v575, %v580
          %v582 = vmul.f32 %v576, %v580
          %v583 = vlaneseq
          %v584 = vshrl.u32 %v583, 7
          %v585 = vsub.s32 0, %v584
          %v586 = vrot.slane %v547, %v585
          %v587 = vadd.f32 %v581, %v586
          %v588 = vadd.f32 %v582, %v586
          %v589 = vxor.u32 %v587, 2147483648
          %v590 = vxor.u32 %v588, 2147483648
          %v591 = vmul.f32 %v589, 1.442695
          %v592 = vpow.pop %v591
          %v593 = vmul.f32 %v590, 1.442695
          %v594 = vpow.pop %v593
          %v595 = vadd.f32 %v592, 1.0
          %v596 = vadd.f32 %v594, 1.0
          %v597 = vrcp.pop %v595
          %v598 = vmul.f32 1.0, %v597
          %v599 = vrcp.pop %v596
          %v600 = vmul.f32 1.0, %v599
          %v601 = vmul.f32 %v587, %v598
          %v602 = vmul.f32 %v588, %v600
          %vm603 = vcmask 523264
          %604 = vst.msk [vmem:[#allocation2 + $0x8] sm:$0xff] %vm603, %v601
          %605 = vst.msk [vmem:[#allocation2 + $0x10] sm:$0xff] %vm603, %v602
        $region60: #{resnet_block_forward.7} parent=55 // pred_fallthru
          _
        %p606 = scmp.eq.s32.totalorder %s28, 0
        // Predicated region
        $region61: #{resnet_block_forward.7} parent=55 // pred_check
          %p607 = pneg %p606
        $region62: #{resnet_block_forward.7} parent=55 // pred_check_branch
          %609 = sbr.rel (%p607) target = $region64
        $region63: #{resnet_block_forward.7} parent=55 // pred_region
          %vm610 = vcmask 523264
          %611 = vst.msk [vmem:[#allocation2 + $0x8] sm:$0xff] %vm610, 0.0
          %612 = vst.msk [vmem:[#allocation2 + $0x10] sm:$0xff] %vm610, 0.0
        $region64: #{resnet_block_forward.7} parent=55 // pred_fallthru
          _
        %p613 = scmp.lt.s32.totalorder %s28, 1
        // Predicated region
        $region65: #{resnet_block_forward.7} parent=55 // pred_check
          %p614 = pneg %p613
        $region66: #{resnet_block_forward.7} parent=55 // pred_check_branch
          %616 = sbr.rel (%p614) target = $region68
        $region67: #{resnet_block_forward.7} parent=55 // pred_region
          %v617 = vld [vmem:[%s524] sm:$0xf]
          %v618 = vld [vmem:[%s524 + $0x4] sm:$0xf]
          %v619 = vunpack.c.l.bf16 %v617
          %v620 = vunpack.c.l.bf16 %v618
          %v621 = vlaneseq
          %v622 = vshrl.u32 %v621, 7
          %v623 = vsub.s32 0, %v622
          %v624 = vrot.slane %v546, %v623
          %v625 = vmul.f32 %v619, %v624
          %v626 = vmul.f32 %v620, %v624
          %v627 = vlaneseq
          %v628 = vshrl.u32 %v627, 7
          %v629 = vsub.s32 0, %v628
          %v630 = vrot.slane %v547, %v629
          %v631 = vadd.f32 %v625, %v630
          %v632 = vadd.f32 %v626, %v630
          %v633 = vxor.u32 %v631, 2147483648
          %v634 = vxor.u32 %v632, 2147483648
          %v635 = vmul.f32 %v633, 1.442695
          %v636 = vpow.pop %v635
          %v637 = vmul.f32 %v634, 1.442695
          %v638 = vpow.pop %v637
          %v639 = vadd.f32 %v636, 1.0
          %v640 = vadd.f32 %v638, 1.0
          %v641 = vrcp.pop %v639
          %v642 = vmul.f32 1.0, %v641
          %v643 = vrcp.pop %v640
          %v644 = vmul.f32 1.0, %v643
          %v645 = vmul.f32 %v631, %v642
          %v646 = vmul.f32 %v632, %v644
          %s647 = scalar_lea.vmem [#allocation2], 288
          %vm648 = vcmask 523264
          %649 = vst.msk [vmem:[%s647 + $0x8] sm:$0xff] %vm648, %v645
          %650 = vst.msk [vmem:[%s647 + $0x10] sm:$0xff] %vm648, %v646
        $region68: #{resnet_block_forward.7} parent=55 // pred_fallthru
          _
        %p651 = scmp.eq.s32.totalorder %s28, 1
        // Predicated region
        $region69: #{resnet_block_forward.7} parent=55 // pred_check
          %p652 = pneg %p651
        $region70: #{resnet_block_forward.7} parent=55 // pred_check_branch
          %654 = sbr.rel (%p652) target = $region72
        $region71: #{resnet_block_forward.7} parent=55 // pred_region
          %s655 = scalar_lea.vmem [#allocation2], 288
          %vm656 = vcmask 523264
          %657 = vst.msk [vmem:[%s655 + $0x8] sm:$0xff] %vm656, 0.0
          %658 = vst.msk [vmem:[%s655 + $0x10] sm:$0xff] %vm656, 0.0
        $region72: #{resnet_block_forward.7} parent=55 // pred_fallthru
          _
        %v659 = vld [vmem:[%s493] sm:$0xf]
        %v660 = vld [vmem:[%s493 + $0x4] sm:$0xf]
        %v661 = vld [vmem:[%s493 + $0x8] sm:$0xf]
        %v662 = vld [vmem:[%s493 + $0xc] sm:$0xf]
        %v663 = vld [vmem:[%s493 + $0x10] sm:$0xf]
        %v664 = vld [vmem:[%s493 + $0x14] sm:$0xf]
        %v665 = vld [vmem:[%s493 + $0x18] sm:$0xf]
        %v666 = vld [vmem:[%s493 + $0x1c] sm:$0xf]
        %v667 = vld [vmem:[%s493 + $0x20] sm:$0xf]
        %v668 = vld [vmem:[%s493 + $0x24] sm:$0xf]
        %v669 = vld [vmem:[%s493 + $0x28] sm:$0xf]
        %v670 = vld [vmem:[%s493 + $0x2c] sm:$0xf]
        %v671 = vld [vmem:[%s493 + $0x30] sm:$0xf]
        %v672 = vld [vmem:[%s493 + $0x34] sm:$0xf]
        %v673 = vld [vmem:[%s493 + $0x38] sm:$0xf]
        %v674 = vld [vmem:[%s493 + $0x3c] sm:$0xf]
        %v675 = vunpack.c.l.bf16 %v659
        %v676 = vunpack.c.l.bf16 %v660
        %v677 = vunpack.c.l.bf16 %v661
        %v678 = vunpack.c.l.bf16 %v662
        %v679 = vunpack.c.l.bf16 %v663
        %v680 = vunpack.c.l.bf16 %v664
        %v681 = vunpack.c.l.bf16 %v665
        %v682 = vunpack.c.l.bf16 %v666
        %v683 = vunpack.c.l.bf16 %v667
        %v684 = vunpack.c.l.bf16 %v668
        %v685 = vunpack.c.l.bf16 %v669
        %v686 = vunpack.c.l.bf16 %v670
        %v687 = vunpack.c.l.bf16 %v671
        %v688 = vunpack.c.l.bf16 %v672
        %v689 = vunpack.c.l.bf16 %v673
        %v690 = vunpack.c.l.bf16 %v674
        %v691 = vlaneseq
        %v692 = vshrl.u32 %v691, 7
        %v693 = vsub.s32 0, %v692
        %v694 = vrot.slane %v546, %v693
        %v695 = vmul.f32 %v675, %v694
        %v696 = vmul.f32 %v676, %v694
        %v697 = vmul.f32 %v677, %v694
        %v698 = vmul.f32 %v678, %v694
        %v699 = vmul.f32 %v679, %v694
        %v700 = vmul.f32 %v680, %v694
        %v701 = vmul.f32 %v681, %v694
        %v702 = vmul.f32 %v682, %v694
        %v703 = vmul.f32 %v683, %v694
        %v704 = vmul.f32 %v684, %v694
        %v705 = vmul.f32 %v685, %v694
        %v706 = vmul.f32 %v686, %v694
        %v707 = vmul.f32 %v687, %v694
        %v708 = vmul.f32 %v688, %v694
        %v709 = vmul.f32 %v689, %v694
        %v710 = vmul.f32 %v690, %v694
        %v711 = vlaneseq
        %v712 = vshrl.u32 %v711, 7
        %v713 = vsub.s32 0, %v712
        %v714 = vrot.slane %v547, %v713
        %v715 = vadd.f32 %v695, %v714
        %v716 = vadd.f32 %v696, %v714
        %v717 = vadd.f32 %v697, %v714
        %v718 = vadd.f32 %v698, %v714
        %v719 = vadd.f32 %v699, %v714
        %v720 = vadd.f32 %v700, %v714
        %v721 = vadd.f32 %v701, %v714
        %v722 = vadd.f32 %v702, %v714
        %v723 = vadd.f32 %v703, %v714
        %v724 = vadd.f32 %v704, %v714
        %v725 = vadd.f32 %v705, %v714
        %v726 = vadd.f32 %v706, %v714
        %v727 = vadd.f32 %v707, %v714
        %v728 = vadd.f32 %v708, %v714
        %v729 = vadd.f32 %v709, %v714
        %v730 = vadd.f32 %v710, %v714
        %v731 = vxor.u32 %v715, 2147483648
        %v732 = vxor.u32 %v716, 2147483648
        %v733 = vxor.u32 %v717, 2147483648
        %v734 = vxor.u32 %v718, 2147483648
        %v735 = vxor.u32 %v719, 2147483648
        %v736 = vxor.u32 %v720, 2147483648
        %v737 = vxor.u32 %v721, 2147483648
        %v738 = vxor.u32 %v722, 2147483648
        %v739 = vxor.u32 %v723, 2147483648
        %v740 = vxor.u32 %v724, 2147483648
        %v741 = vxor.u32 %v725, 2147483648
        %v742 = vxor.u32 %v726, 2147483648
        %v743 = vxor.u32 %v727, 2147483648
        %v744 = vxor.u32 %v728, 2147483648
        %v745 = vxor.u32 %v729, 2147483648
        %v746 = vxor.u32 %v730, 2147483648
        %v747 = vmul.f32 %v731, 1.442695
        %v748 = vpow.pop %v747
        %v749 = vmul.f32 %v732, 1.442695
        %v750 = vpow.pop %v749
        %v751 = vmul.f32 %v733, 1.442695
        %v752 = vpow.pop %v751
        %v753 = vmul.f32 %v734, 1.442695
        %v754 = vpow.pop %v753
        %v755 = vmul.f32 %v735, 1.442695
        %v756 = vpow.pop %v755
        %v757 = vmul.f32 %v736, 1.442695
        %v758 = vpow.pop %v757
        %v759 = vmul.f32 %v737, 1.442695
        %v760 = vpow.pop %v759
        %v761 = vmul.f32 %v738, 1.442695
        %v762 = vpow.pop %v761
        %v763 = vmul.f32 %v739, 1.442695
        %v764 = vpow.pop %v763
        %v765 = vmul.f32 %v740, 1.442695
        %v766 = vpow.pop %v765
        %v767 = vmul.f32 %v741, 1.442695
        %v768 = vpow.pop %v767
        %v769 = vmul.f32 %v742, 1.442695
        %v770 = vpow.pop %v769
        %v771 = vmul.f32 %v743, 1.442695
        %v772 = vpow.pop %v771
        %v773 = vmul.f32 %v744, 1.442695
        %v774 = vpow.pop %v773
        %v775 = vmul.f32 %v745, 1.442695
        %v776 = vpow.pop %v775
        %v777 = vmul.f32 %v746, 1.442695
        %v778 = vpow.pop %v777
        %v779 = vadd.f32 %v748, 1.0
        %v780 = vadd.f32 %v750, 1.0
        %v781 = vadd.f32 %v752, 1.0
        %v782 = vadd.f32 %v754, 1.0
        %v783 = vadd.f32 %v756, 1.0
        %v784 = vadd.f32 %v758, 1.0
        %v785 = vadd.f32 %v760, 1.0
        %v786 = vadd.f32 %v762, 1.0
        %v787 = vadd.f32 %v764, 1.0
        %v788 = vadd.f32 %v766, 1.0
        %v789 = vadd.f32 %v768, 1.0
        %v790 = vadd.f32 %v770, 1.0
        %v791 = vadd.f32 %v772, 1.0
        %v792 = vadd.f32 %v774, 1.0
        %v793 = vadd.f32 %v776, 1.0
        %v794 = vadd.f32 %v778, 1.0
        %v795 = vrcp.pop %v779
        %v796 = vmul.f32 1.0, %v795
        %v797 = vrcp.pop %v780
        %v798 = vmul.f32 1.0, %v797
        %v799 = vrcp.pop %v781
        %v800 = vmul.f32 1.0, %v799
        %v801 = vrcp.pop %v782
        %v802 = vmul.f32 1.0, %v801
        %v803 = vrcp.pop %v783
        %v804 = vmul.f32 1.0, %v803
        %v805 = vrcp.pop %v784
        %v806 = vmul.f32 1.0, %v805
        %v807 = vrcp.pop %v785
        %v808 = vmul.f32 1.0, %v807
        %v809 = vrcp.pop %v786
        %v810 = vmul.f32 1.0, %v809
        %v811 = vrcp.pop %v787
        %v812 = vmul.f32 1.0, %v811
        %v813 = vrcp.pop %v788
        %v814 = vmul.f32 1.0, %v813
        %v815 = vrcp.pop %v789
        %v816 = vmul.f32 1.0, %v815
        %v817 = vrcp.pop %v790
        %v818 = vmul.f32 1.0, %v817
        %v819 = vrcp.pop %v791
        %v820 = vmul.f32 1.0, %v819
        %v821 = vrcp.pop %v792
        %v822 = vmul.f32 1.0, %v821
        %v823 = vrcp.pop %v793
        %v824 = vmul.f32 1.0, %v823
        %v825 = vrcp.pop %v794
        %v826 = vmul.f32 1.0, %v825
        %v827 = vmul.f32 %v715, %v796
        %v828 = vmul.f32 %v716, %v798
        %v829 = vmul.f32 %v717, %v800
        %v830 = vmul.f32 %v718, %v802
        %v831 = vmul.f32 %v719, %v804
        %v832 = vmul.f32 %v720, %v806
        %v833 = vmul.f32 %v721, %v808
        %v834 = vmul.f32 %v722, %v810
        %v835 = vmul.f32 %v723, %v812
        %v836 = vmul.f32 %v724, %v814
        %v837 = vmul.f32 %v725, %v816
        %v838 = vmul.f32 %v726, %v818
        %v839 = vmul.f32 %v727, %v820
        %v840 = vmul.f32 %v728, %v822
        %v841 = vmul.f32 %v729, %v824
        %v842 = vmul.f32 %v730, %v826
        %s843 = scalar_lea.vmem [#allocation2], 32
        %vm844 = vcmask 523264
        %845 = vst.msk [vmem:[%s843 + $0x8] sm:$0xff] %vm844, %v827
        %846 = vst.msk [vmem:[%s843 + $0x10] sm:$0xff] %vm844, %v828
        %847 = vst.msk [vmem:[%s843 + $0x28] sm:$0xff] %vm844, %v829
        %848 = vst.msk [vmem:[%s843 + $0x30] sm:$0xff] %vm844, %v830
        %849 = vst.msk [vmem:[%s843 + $0x48] sm:$0xff] %vm844, %v831
        %850 = vst.msk [vmem:[%s843 + $0x50] sm:$0xff] %vm844, %v832
        %851 = vst.msk [vmem:[%s843 + $0x68] sm:$0xff] %vm844, %v833
        %852 = vst.msk [vmem:[%s843 + $0x70] sm:$0xff] %vm844, %v834
        %853 = vst.msk [vmem:[%s843 + $0x88] sm:$0xff] %vm844, %v835
        %854 = vst.msk [vmem:[%s843 + $0x90] sm:$0xff] %vm844, %v836
        %855 = vst.msk [vmem:[%s843 + $0xa8] sm:$0xff] %vm844, %v837
        %856 = vst.msk [vmem:[%s843 + $0xb0] sm:$0xff] %vm844, %v838
        %857 = vst.msk [vmem:[%s843 + $0xc8] sm:$0xff] %vm844, %v839
        %858 = vst.msk [vmem:[%s843 + $0xd0] sm:$0xff] %vm844, %v840
        %859 = vst.msk [vmem:[%s843 + $0xe8] sm:$0xff] %vm844, %v841
        %860 = vst.msk [vmem:[%s843 + $0xf0] sm:$0xff] %vm844, %v842
        %v861 = vld [vmem:[%s5] sm:$0x1]
        %v862 = vld [vmem:[%s542] sm:$0xf]
        %v863 = vld [vmem:[%s542 + $0x4] sm:$0xf]
        %v864 = vld [vmem:[%s542 + $0x8] sm:$0xf]
        %v865 = vld [vmem:[%s542 + $0xc] sm:$0xf]
        %v866 = vld [vmem:[%s542 + $0x10] sm:$0xf]
        %v867 = vld [vmem:[%s542 + $0x14] sm:$0xf]
        %v868 = vld [vmem:[%s542 + $0x18] sm:$0xf]
        %v869 = vld [vmem:[%s542 + $0x1c] sm:$0xf]
        %v870 = vld [vmem:[%s542 + $0x20] sm:$0xf]
        %v871 = vld [vmem:[%s542 + $0x24] sm:$0xf]
        %v872 = vld [vmem:[%s542 + $0x28] sm:$0xf]
        %v873 = vld [vmem:[%s542 + $0x2c] sm:$0xf]
        %v874 = vld [vmem:[%s542 + $0x30] sm:$0xf]
        %v875 = vld [vmem:[%s542 + $0x34] sm:$0xf]
        %v876 = vld [vmem:[%s542 + $0x38] sm:$0xf]
        %v877 = vld [vmem:[%s542 + $0x3c] sm:$0xf]
        %v878 = vld [vmem:[#allocation2 + $0x7] sm:$0xff]
        %v879 = vld [vmem:[#allocation2 + $0xf] sm:$0xff]
        %v880 = vld [vmem:[#allocation2 + $0x27] sm:$0xff]
        %v881 = vld [vmem:[#allocation2 + $0x2f] sm:$0xff]
        %v882 = vld [vmem:[#allocation2 + $0x47] sm:$0xff]
        %v883 = vld [vmem:[#allocation2 + $0x4f] sm:$0xff]
        %v884 = vld [vmem:[#allocation2 + $0x67] sm:$0xff]
        %v885 = vld [vmem:[#allocation2 + $0x6f] sm:$0xff]
        %v886 = vld [vmem:[#allocation2 + $0x87] sm:$0xff]
        %v887 = vld [vmem:[#allocation2 + $0x8f] sm:$0xff]
        %v888 = vld [vmem:[#allocation2 + $0xa7] sm:$0xff]
        %v889 = vld [vmem:[#allocation2 + $0xaf] sm:$0xff]
        %v890 = vld [vmem:[#allocation2 + $0xc7] sm:$0xff]
        %v891 = vld [vmem:[#allocation2 + $0xcf] sm:$0xff]
        %v892 = vld [vmem:[#allocation2 + $0xe7] sm:$0xff]
        %v893 = vld [vmem:[#allocation2 + $0xef] sm:$0xff]
        %v894 = vld [vmem:[#allocation2 + $0x107] sm:$0xff]
        %v895 = vld [vmem:[#allocation2 + $0x10f] sm:$0xff]
        %v896 = vld [vmem:[#allocation2 + $0x127] sm:$0xff]
        %v897 = vld [vmem:[#allocation2 + $0x12f] sm:$0xff]
        %v898 = vpack.c.bf16 %v879, %v878
        %v899 = vpack.c.bf16 %v881, %v880
        %v900 = vpack.c.bf16 %v883, %v882
        %v901 = vpack.c.bf16 %v885, %v884
        %v902 = vpack.c.bf16 %v887, %v886
        %v903 = vpack.c.bf16 %v889, %v888
        %v904 = vpack.c.bf16 %v891, %v890
        %v905 = vpack.c.bf16 %v893, %v892
        %v906 = vpack.c.bf16 %v895, %v894
        %v907 = vpack.c.bf16 %v897, %v896
        %v908 = vld [vmem:[%s4] sm:$0xf]
        %v909 = vld [vmem:[%s4 + $0x4] sm:$0xf]
        %v910 = vld [vmem:[%s4 + $0x8] sm:$0xf]
        %v911 = vld [vmem:[%s4 + $0xc] sm:$0xf]
        %v912 = vld [vmem:[%s4 + $0x10] sm:$0xf]
        %v913 = vld [vmem:[%s4 + $0x14] sm:$0xf]
        %v914 = vld [vmem:[%s4 + $0x18] sm:$0xf]
        %v915 = vld [vmem:[%s4 + $0x1c] sm:$0xf]
        %s916 = scalar_lea.vmem %s4, 96
        %v917 = vld [vmem:[%s916] sm:$0xf]
        %v918 = vld [vmem:[%s916 + $0x4] sm:$0xf]
        %v919 = vld [vmem:[%s916 + $0x8] sm:$0xf]
        %v920 = vld [vmem:[%s916 + $0xc] sm:$0xf]
        %v921 = vld [vmem:[%s916 + $0x10] sm:$0xf]
        %v922 = vld [vmem:[%s916 + $0x14] sm:$0xf]
        %v923 = vld [vmem:[%s916 + $0x18] sm:$0xf]
        %v924 = vld [vmem:[%s916 + $0x1c] sm:$0xf]
        %v933 = vunpack.c.l.b16 %v917
        %v934 = vunpack.c.l.b16 %v918
        %v935 = vunpack.c.l.b16 %v919
        %v936 = vunpack.c.l.b16 %v920
        %v937 = vunpack.c.l.b16 %v921
        %v938 = vunpack.c.l.b16 %v922
        %v939 = vunpack.c.l.b16 %v923
        %v940 = vunpack.c.l.b16 %v924
        %v941 = vpack.c.b16 %v934, %v933
        %v942 = vpack.c.b16 %v936, %v935
        %v943 = vpack.c.b16 %v938, %v937
        %v944 = vpack.c.b16 %v940, %v939
        %v950 = vsel %vm844, %v899, 0
        %v953 = vsel %vm844, %v900, 0
        %v956 = vsel %vm844, %v901, 0
        %v959 = vsel %vm844, %v902, 0
        %v962 = vsel %vm844, %v903, 0
        %v965 = vsel %vm844, %v904, 0
        %v968 = vsel %vm844, %v905, 0
        %v971 = vsel %vm844, %v906, 0
        %973 = vmatprep.subr.bf16.mxu0 0
        %974 = vmatpush1.bf16.msra.mxu0 %v941
        %975 = vmatprep.subr.bf16.mxu0 0
        %976 = vmatpush1.bf16.msra.mxu0 %v942
        %977 = vmatprep.subr.bf16.mxu0 0
        %978 = vmatpush1.bf16.msra.mxu0 %v943
        %979 = vmatprep.subr.bf16.mxu0 0
        %980 = vmatpush1.bf16.msra.mxu0 %v944
        %981 = vmatprep.subr.bf16.mxu0 0
        %982 = vmatpush1.bf16.msra.mxu0 0
        %983 = vmatprep.subr.bf16.mxu0 0
        %984 = vmatpush1.bf16.msra.mxu0 0
        %985 = vmatprep.subr.bf16.mxu0 0
        %986 = vmatpush1.bf16.msra.mxu0 0
        %987 = vmatprep.subr.bf16.mxu0 0
        %988 = vmatpush1.bf16.msra.mxu0 0
        %989 = vmatprep.subr.bf16.mxu0 0
        %990 = vmatpush1.bf16.msra.mxu0 0
        %991 = vmatprep.subr.bf16.mxu0 0
        %992 = vmatpush1.bf16.msra.mxu0 0
        %993 = vmatprep.subr.bf16.mxu0 0
        %994 = vmatpush1.bf16.msra.mxu0 0
        %995 = vmatprep.subr.bf16.mxu0 0
        %996 = vmatpush1.bf16.msra.mxu0 0
        %997 = vmatprep.subr.bf16.mxu0 0
        %998 = vmatpush1.bf16.msra.mxu0 0
        %999 = vmatprep.subr.bf16.mxu0 0
        %1000 = vmatpush1.bf16.msra.mxu0 0
        %1001 = vmatprep.subr.bf16.mxu0 0
        %1002 = vmatpush1.bf16.msra.mxu0 0
        %1003 = vmatprep.subr.bf16.mxu0 0
        %1004 = vmatpush1.bf16.msra.mxu0 0
        %1005 = vmatprep.mubr.bf16.mxu0 0
        %1006 = vmatmul.mubr.bf16.gmra.mrb[0].mxu0 %v950
        %v1007 = vpop.f32.mrb[0].mxu0
        %v1008 = vadd.f32 0.0, %v1007
        %v1009 = vpop.f32.mrb[0].mxu0
        %v1010 = vpop.f32.mrb[0].mxu0
        %v1011 = vadd.f32 0.0, %v1010
        %v1012 = vpop.f32.mrb[0].mxu0
        %1013 = vmatprep.mubr.bf16.mxu0 0
        %1014 = vmatmul.mubr.bf16.gmra.mrb[0].mxu0 %v953
        %v1015 = vpop.f32.mrb[0].mxu0
        %v1016 = vadd.f32 0.0, %v1015
        %v1017 = vpop.f32.mrb[0].mxu0
        %v1018 = vpop.f32.mrb[0].mxu0
        %v1019 = vadd.f32 0.0, %v1018
        %v1020 = vpop.f32.mrb[0].mxu0
        %1021 = vmatprep.mubr.bf16.mxu0 0
        %1022 = vmatmul.mubr.bf16.gmra.mrb[0].mxu0 %v956
        %v1023 = vpop.f32.mrb[0].mxu0
        %v1024 = vadd.f32 0.0, %v1023
        %v1025 = vpop.f32.mrb[0].mxu0
        %v1026 = vpop.f32.mrb[0].mxu0
        %v1027 = vadd.f32 0.0, %v1026
        %v1028 = vpop.f32.mrb[0].mxu0
        %1029 = vmatprep.mubr.bf16.mxu0 0
        %1030 = vmatmul.mubr.bf16.gmra.mrb[0].mxu0 %v959
        %v1031 = vpop.f32.mrb[0].mxu0
        %v1032 = vadd.f32 0.0, %v1031
        %v1033 = vpop.f32.mrb[0].mxu0
        %v1034 = vpop.f32.mrb[0].mxu0
        %v1035 = vadd.f32 0.0, %v1034
        %v1036 = vpop.f32.mrb[0].mxu0
        %1037 = vmatprep.mubr.bf16.mxu0 0
        %1038 = vmatmul.mubr.bf16.gmra.mrb[0].mxu0 %v962
        %v1039 = vpop.f32.mrb[0].mxu0
        %v1040 = vadd.f32 0.0, %v1039
        %v1041 = vpop.f32.mrb[0].mxu0
        %v1042 = vpop.f32.mrb[0].mxu0
        %v1043 = vadd.f32 0.0, %v1042
        %v1044 = vpop.f32.mrb[0].mxu0
        %1045 = vmatprep.mubr.bf16.mxu0 0
        %1046 = vmatmul.mubr.bf16.gmra.mrb[0].mxu0 %v965
        %v1047 = vpop.f32.mrb[0].mxu0
        %v1048 = vadd.f32 0.0, %v1047
        %v1049 = vpop.f32.mrb[0].mxu0
        %v1050 = vpop.f32.mrb[0].mxu0
        %v1051 = vadd.f32 0.0, %v1050
        %v1052 = vpop.f32.mrb[0].mxu0
        %1053 = vmatprep.mubr.bf16.mxu0 0
        %1054 = vmatmul.mubr.bf16.gmra.mrb[0].mxu0 %v968
        %v1055 = vpop.f32.mrb[0].mxu0
        %v1056 = vadd.f32 0.0, %v1055
        %v1057 = vpop.f32.mrb[0].mxu0
        %v1058 = vpop.f32.mrb[0].mxu0
        %v1059 = vadd.f32 0.0, %v1058
        %v1060 = vpop.f32.mrb[0].mxu0
        %1061 = vmatprep.mubr.bf16.mxu0 0
        %1062 = vmatmul.mubr.bf16.gmra.mrb[0].mxu0 %v971
        %v1063 = vpop.f32.mrb[0].mxu0
        %v1064 = vadd.f32 0.0, %v1063
        %v1065 = vpop.f32.mrb[0].mxu0
        %v1066 = vpop.f32.mrb[0].mxu0
        %v1067 = vadd.f32 0.0, %v1066
        %v1068 = vpop.f32.mrb[0].mxu0
        %1069 = vdwg.mxu0
        %v1078 = vunpack.c.l.b16 %v908
        %v1079 = vunpack.c.l.b16 %v909
        %v1080 = vunpack.c.l.b16 %v910
        %v1081 = vunpack.c.l.b16 %v911
        %v1082 = vunpack.c.l.b16 %v912
        %v1083 = vunpack.c.l.b16 %v913
        %v1084 = vunpack.c.l.b16 %v914
        %v1085 = vunpack.c.l.b16 %v915
        %v1086 = vpack.c.b16 %v1079, %v1078
        %v1087 = vpack.c.b16 %v1081, %v1080
        %v1088 = vpack.c.b16 %v1083, %v1082
        %v1089 = vpack.c.b16 %v1085, %v1084
        %v1095 = vsel %vm844, %v898, 0
        %1097 = vmatprep.subr.bf16.mxu0 0
        %1098 = vmatpush1.bf16.msra.mxu0 %v1086
        %1099 = vmatprep.subr.bf16.mxu0 0
        %1100 = vmatpush1.bf16.msra.mxu0 %v1087
        %1101 = vmatprep.subr.bf16.mxu0 0
        %1102 = vmatpush1.bf16.msra.mxu0 %v1088
        %1103 = vmatprep.subr.bf16.mxu0 0
        %1104 = vmatpush1.bf16.msra.mxu0 %v1089
        %1105 = vmatprep.subr.bf16.mxu0 0
        %1106 = vmatpush1.bf16.msra.mxu0 0
        %1107 = vmatprep.subr.bf16.mxu0 0
        %1108 = vmatpush1.bf16.msra.mxu0 0
        %1109 = vmatprep.subr.bf16.mxu0 0
        %1110 = vmatpush1.bf16.msra.mxu0 0
        %1111 = vmatprep.subr.bf16.mxu0 0
        %1112 = vmatpush1.bf16.msra.mxu0 0
        %1113 = vmatprep.subr.bf16.mxu0 0
        %1114 = vmatpush1.bf16.msra.mxu0 0
        %1115 = vmatprep.subr.bf16.mxu0 0
        %1116 = vmatpush1.bf16.msra.mxu0 0
        %1117 = vmatprep.subr.bf16.mxu0 0
        %1118 = vmatpush1.bf16.msra.mxu0 0
        %1119 = vmatprep.subr.bf16.mxu0 0
        %1120 = vmatpush1.bf16.msra.mxu0 0
        %1121 = vmatprep.subr.bf16.mxu0 0
        %1122 = vmatpush1.bf16.msra.mxu0 0
        %1123 = vmatprep.subr.bf16.mxu0 0
        %1124 = vmatpush1.bf16.msra.mxu0 0
        %1125 = vmatprep.subr.bf16.mxu0 0
        %1126 = vmatpush1.bf16.msra.mxu0 0
        %1127 = vmatprep.subr.bf16.mxu0 0
        %1128 = vmatpush1.bf16.msra.mxu0 0
        %1129 = vmatprep.mubr.bf16.mxu0 0
        %1130 = vmatmul.mubr.bf16.gmra.mrb[0].mxu0 %v1095
        %v1131 = vpop.f32.mrb[0].mxu0
        %v1132 = vadd.f32 %v1008, %v1131
        %v1133 = vpop.f32.mrb[0].mxu0
        %v1134 = vpop.f32.mrb[0].mxu0
        %v1135 = vadd.f32 %v1011, %v1134
        %v1136 = vpop.f32.mrb[0].mxu0
        %1137 = vmatprep.mubr.bf16.mxu0 0
        %1138 = vmatmul.mubr.bf16.gmra.mrb[0].mxu0 %v950
        %v1139 = vpop.f32.mrb[0].mxu0
        %v1140 = vadd.f32 %v1016, %v1139
        %v1141 = vpop.f32.mrb[0].mxu0
        %v1142 = vpop.f32.mrb[0].mxu0
        %v1143 = vadd.f32 %v1019, %v1142
        %v1144 = vpop.f32.mrb[0].mxu0
        %1145 = vmatprep.mubr.bf16.mxu0 0
        %1146 = vmatmul.mubr.bf16.gmra.mrb[0].mxu0 %v953
        %v1147 = vpop.f32.mrb[0].mxu0
        %v1148 = vadd.f32 %v1024, %v1147
        %v1149 = vpop.f32.mrb[0].mxu0
        %v1150 = vpop.f32.mrb[0].mxu0
        %v1151 = vadd.f32 %v1027, %v1150
        %v1152 = vpop.f32.mrb[0].mxu0
        %1153 = vmatprep.mubr.bf16.mxu0 0
        %1154 = vmatmul.mubr.bf16.gmra.mrb[0].mxu0 %v956
        %v1155 = vpop.f32.mrb[0].mxu0
        %v1156 = vadd.f32 %v1032, %v1155
        %v1157 = vpop.f32.mrb[0].mxu0
        %v1158 = vpop.f32.mrb[0].mxu0
        %v1159 = vadd.f32 %v1035, %v1158
        %v1160 = vpop.f32.mrb[0].mxu0
        %1161 = vmatprep.mubr.bf16.mxu0 0
        %1162 = vmatmul.mubr.bf16.gmra.mrb[0].mxu0 %v959
        %v1163 = vpop.f32.mrb[0].mxu0
        %v1164 = vadd.f32 %v1040, %v1163
        %v1165 = vpop.f32.mrb[0].mxu0
        %v1166 = vpop.f32.mrb[0].mxu0
        %v1167 = vadd.f32 %v1043, %v1166
        %v1168 = vpop.f32.mrb[0].mxu0
        %1169 = vmatprep.mubr.bf16.mxu0 0
        %1170 = vmatmul.mubr.bf16.gmra.mrb[0].mxu0 %v962
        %v1171 = vpop.f32.mrb[0].mxu0
        %v1172 = vadd.f32 %v1048, %v1171
        %v1173 = vpop.f32.mrb[0].mxu0
        %v1174 = vpop.f32.mrb[0].mxu0
        %v1175 = vadd.f32 %v1051, %v1174
        %v1176 = vpop.f32.mrb[0].mxu0
        %1177 = vmatprep.mubr.bf16.mxu0 0
        %1178 = vmatmul.mubr.bf16.gmra.mrb[0].mxu0 %v965
        %v1179 = vpop.f32.mrb[0].mxu0
        %v1180 = vadd.f32 %v1056, %v1179
        %v1181 = vpop.f32.mrb[0].mxu0
        %v1182 = vpop.f32.mrb[0].mxu0
        %v1183 = vadd.f32 %v1059, %v1182
        %v1184 = vpop.f32.mrb[0].mxu0
        %1185 = vmatprep.mubr.bf16.mxu0 0
        %1186 = vmatmul.mubr.bf16.gmra.mrb[0].mxu0 %v968
        %v1187 = vpop.f32.mrb[0].mxu0
        %v1188 = vadd.f32 %v1064, %v1187
        %v1189 = vpop.f32.mrb[0].mxu0
        %v1190 = vpop.f32.mrb[0].mxu0
        %v1191 = vadd.f32 %v1067, %v1190
        %v1192 = vpop.f32.mrb[0].mxu0
        %1193 = vdwg.mxu0
        %s1194 = scalar_lea.vmem %s4, 192
        %v1195 = vld [vmem:[%s1194] sm:$0xf]
        %v1196 = vld [vmem:[%s1194 + $0x4] sm:$0xf]
        %v1197 = vld [vmem:[%s1194 + $0x8] sm:$0xf]
        %v1198 = vld [vmem:[%s1194 + $0xc] sm:$0xf]
        %v1199 = vld [vmem:[%s1194 + $0x10] sm:$0xf]
        %v1200 = vld [vmem:[%s1194 + $0x14] sm:$0xf]
        %v1201 = vld [vmem:[%s1194 + $0x18] sm:$0xf]
        %v1202 = vld [vmem:[%s1194 + $0x1c] sm:$0xf]
        %v1211 = vunpack.c.l.b16 %v1195
        %v1212 = vunpack.c.l.b16 %v1196
        %v1213 = vunpack.c.l.b16 %v1197
        %v1214 = vunpack.c.l.b16 %v1198
        %v1215 = vunpack.c.l.b16 %v1199
        %v1216 = vunpack.c.l.b16 %v1200
        %v1217 = vunpack.c.l.b16 %v1201
        %v1218 = vunpack.c.l.b16 %v1202
        %v1219 = vpack.c.b16 %v1212, %v1211
        %v1220 = vpack.c.b16 %v1214, %v1213
        %v1221 = vpack.c.b16 %v1216, %v1215
        %v1222 = vpack.c.b16 %v1218, %v1217
        %v1228 = vsel %vm844, %v907, 0
        %1230 = vmatprep.subr.bf16.mxu0 0
        %1231 = vmatpush1.bf16.msra.mxu0 %v1219
        %1232 = vmatprep.subr.bf16.mxu0 0
        %1233 = vmatpush1.bf16.msra.mxu0 %v1220
        %1234 = vmatprep.subr.bf16.mxu0 0
        %1235 = vmatpush1.bf16.msra.mxu0 %v1221
        %1236 = vmatprep.subr.bf16.mxu0 0
        %1237 = vmatpush1.bf16.msra.mxu0 %v1222
        %1238 = vmatprep.subr.bf16.mxu0 0
        %1239 = vmatpush1.bf16.msra.mxu0 0
        %1240 = vmatprep.subr.bf16.mxu0 0
        %1241 = vmatpush1.bf16.msra.mxu0 0
        %1242 = vmatprep.subr.bf16.mxu0 0
        %1243 = vmatpush1.bf16.msra.mxu0 0
        %1244 = vmatprep.subr.bf16.mxu0 0
        %1245 = vmatpush1.bf16.msra.mxu0 0
        %1246 = vmatprep.subr.bf16.mxu0 0
        %1247 = vmatpush1.bf16.msra.mxu0 0
        %1248 = vmatprep.subr.bf16.mxu0 0
        %1249 = vmatpush1.bf16.msra.mxu0 0
        %1250 = vmatprep.subr.bf16.mxu0 0
        %1251 = vmatpush1.bf16.msra.mxu0 0
        %1252 = vmatprep.subr.bf16.mxu0 0
        %1253 = vmatpush1.bf16.msra.mxu0 0
        %1254 = vmatprep.subr.bf16.mxu0 0
        %1255 = vmatpush1.bf16.msra.mxu0 0
        %1256 = vmatprep.subr.bf16.mxu0 0
        %1257 = vmatpush1.bf16.msra.mxu0 0
        %1258 = vmatprep.subr.bf16.mxu0 0
        %1259 = vmatpush1.bf16.msra.mxu0 0
        %1260 = vmatprep.subr.bf16.mxu0 0
        %1261 = vmatpush1.bf16.msra.mxu0 0
        %1262 = vmatprep.mubr.bf16.mxu0 0
        %1263 = vmatmul.mubr.bf16.gmra.mrb[0].mxu0 %v953
        %v1264 = vpop.f32.mrb[0].mxu0
        %v1265 = vadd.f32 0.0, %v1264
        %v1266 = vpop.f32.mrb[0].mxu0
        %v1267 = vpop.f32.mrb[0].mxu0
        %v1268 = vadd.f32 0.0, %v1267
        %v1269 = vpop.f32.mrb[0].mxu0
        %1270 = vmatprep.mubr.bf16.mxu0 0
        %1271 = vmatmul.mubr.bf16.gmra.mrb[0].mxu0 %v956
        %v1272 = vpop.f32.mrb[0].mxu0
        %v1273 = vadd.f32 0.0, %v1272
        %v1274 = vpop.f32.mrb[0].mxu0
        %v1275 = vpop.f32.mrb[0].mxu0
        %v1276 = vadd.f32 0.0, %v1275
        %v1277 = vpop.f32.mrb[0].mxu0
        %1278 = vmatprep.mubr.bf16.mxu0 0
        %1279 = vmatmul.mubr.bf16.gmra.mrb[0].mxu0 %v959
        %v1280 = vpop.f32.mrb[0].mxu0
        %v1281 = vadd.f32 0.0, %v1280
        %v1282 = vpop.f32.mrb[0].mxu0
        %v1283 = vpop.f32.mrb[0].mxu0
        %v1284 = vadd.f32 0.0, %v1283
        %v1285 = vpop.f32.mrb[0].mxu0
        %1286 = vmatprep.mubr.bf16.mxu0 0
        %1287 = vmatmul.mubr.bf16.gmra.mrb[0].mxu0 %v962
        %v1288 = vpop.f32.mrb[0].mxu0
        %v1289 = vadd.f32 0.0, %v1288
        %v1290 = vpop.f32.mrb[0].mxu0
        %v1291 = vpop.f32.mrb[0].mxu0
        %v1292 = vadd.f32 0.0, %v1291
        %v1293 = vpop.f32.mrb[0].mxu0
        %1294 = vmatprep.mubr.bf16.mxu0 0
        %1295 = vmatmul.mubr.bf16.gmra.mrb[0].mxu0 %v965
        %v1296 = vpop.f32.mrb[0].mxu0
        %v1297 = vadd.f32 0.0, %v1296
        %v1298 = vpop.f32.mrb[0].mxu0
        %v1299 = vpop.f32.mrb[0].mxu0
        %v1300 = vadd.f32 0.0, %v1299
        %v1301 = vpop.f32.mrb[0].mxu0
        %1302 = vmatprep.mubr.bf16.mxu0 0
        %1303 = vmatmul.mubr.bf16.gmra.mrb[0].mxu0 %v968
        %v1304 = vpop.f32.mrb[0].mxu0
        %v1305 = vadd.f32 0.0, %v1304
        %v1306 = vpop.f32.mrb[0].mxu0
        %v1307 = vpop.f32.mrb[0].mxu0
        %v1308 = vadd.f32 0.0, %v1307
        %v1309 = vpop.f32.mrb[0].mxu0
        %1310 = vmatprep.mubr.bf16.mxu0 0
        %1311 = vmatmul.mubr.bf16.gmra.mrb[0].mxu0 %v971
        %v1312 = vpop.f32.mrb[0].mxu0
        %v1313 = vadd.f32 0.0, %v1312
        %v1314 = vpop.f32.mrb[0].mxu0
        %v1315 = vpop.f32.mrb[0].mxu0
        %v1316 = vadd.f32 0.0, %v1315
        %v1317 = vpop.f32.mrb[0].mxu0
        %1318 = vmatprep.mubr.bf16.mxu0 0
        %1319 = vmatmul.mubr.bf16.gmra.mrb[0].mxu0 %v1228
        %v1320 = vpop.f32.mrb[0].mxu0
        %v1321 = vadd.f32 0.0, %v1320
        %v1322 = vpop.f32.mrb[0].mxu0
        %v1323 = vpop.f32.mrb[0].mxu0
        %v1324 = vadd.f32 0.0, %v1323
        %v1325 = vpop.f32.mrb[0].mxu0
        %1326 = vdwg.mxu0
        %v1327 = vadd.f32 %v1132, %v1265
        %v1328 = vadd.f32 %v1135, %v1268
        %v1329 = vadd.f32 %v1140, %v1273
        %v1330 = vadd.f32 %v1143, %v1276
        %v1331 = vadd.f32 %v1148, %v1281
        %v1332 = vadd.f32 %v1151, %v1284
        %v1333 = vadd.f32 %v1156, %v1289
        %v1334 = vadd.f32 %v1159, %v1292
        %v1335 = vadd.f32 %v1164, %v1297
        %v1336 = vadd.f32 %v1167, %v1300
        %v1337 = vadd.f32 %v1172, %v1305
        %v1338 = vadd.f32 %v1175, %v1308
        %v1339 = vadd.f32 %v1180, %v1313
        %v1340 = vadd.f32 %v1183, %v1316
        %v1341 = vadd.f32 %v1188, %v1321
        %v1342 = vadd.f32 %v1191, %v1324
        %v1343 = vld [vmem:[#allocation2 + $0x8] sm:$0xff]
        %v1344 = vld [vmem:[#allocation2 + $0x10] sm:$0xff]
        %v1345 = vld [vmem:[#allocation2 + $0x28] sm:$0xff]
        %v1346 = vld [vmem:[#allocation2 + $0x30] sm:$0xff]
        %v1347 = vld [vmem:[#allocation2 + $0x48] sm:$0xff]
        %v1348 = vld [vmem:[#allocation2 + $0x50] sm:$0xff]
        %v1349 = vld [vmem:[#allocation2 + $0x68] sm:$0xff]
        %v1350 = vld [vmem:[#allocation2 + $0x70] sm:$0xff]
        %v1351 = vld [vmem:[#allocation2 + $0x88] sm:$0xff]
        %v1352 = vld [vmem:[#allocation2 + $0x90] sm:$0xff]
        %v1353 = vld [vmem:[#allocation2 + $0xa8] sm:$0xff]
        %v1354 = vld [vmem:[#allocation2 + $0xb0] sm:$0xff]
        %v1355 = vld [vmem:[#allocation2 + $0xc8] sm:$0xff]
        %v1356 = vld [vmem:[#allocation2 + $0xd0] sm:$0xff]
        %v1357 = vld [vmem:[#allocation2 + $0xe8] sm:$0xff]
        %v1358 = vld [vmem:[#allocation2 + $0xf0] sm:$0xff]
        %v1359 = vld [vmem:[#allocation2 + $0x108] sm:$0xff]
        %v1360 = vld [vmem:[#allocation2 + $0x110] sm:$0xff]
        %v1361 = vld [vmem:[#allocation2 + $0x128] sm:$0xff]
        %v1362 = vld [vmem:[#allocation2 + $0x130] sm:$0xff]
        %v1363 = vpack.c.bf16 %v1344, %v1343
        %v1364 = vpack.c.bf16 %v1346, %v1345
        %v1365 = vpack.c.bf16 %v1348, %v1347
        %v1366 = vpack.c.bf16 %v1350, %v1349
        %v1367 = vpack.c.bf16 %v1352, %v1351
        %v1368 = vpack.c.bf16 %v1354, %v1353
        %v1369 = vpack.c.bf16 %v1356, %v1355
        %v1370 = vpack.c.bf16 %v1358, %v1357
        %v1371 = vpack.c.bf16 %v1360, %v1359
        %v1372 = vpack.c.bf16 %v1362, %v1361
        %s1373 = scalar_lea.vmem %s4, 32
        %v1374 = vld [vmem:[%s1373] sm:$0xf]
        %v1375 = vld [vmem:[%s1373 + $0x4] sm:$0xf]
        %v1376 = vld [vmem:[%s1373 + $0x8] sm:$0xf]
        %v1377 = vld [vmem:[%s1373 + $0xc] sm:$0xf]
        %v1378 = vld [vmem:[%s1373 + $0x10] sm:$0xf]
        %v1379 = vld [vmem:[%s1373 + $0x14] sm:$0xf]
        %v1380 = vld [vmem:[%s1373 + $0x18] sm:$0xf]
        %v1381 = vld [vmem:[%s1373 + $0x1c] sm:$0xf]
        %v1390 = vunpack.c.l.b16 %v1374
        %v1391 = vunpack.c.l.b16 %v1375
        %v1392 = vunpack.c.l.b16 %v1376
        %v1393 = vunpack.c.l.b16 %v1377
        %v1394 = vunpack.c.l.b16 %v1378
        %v1395 = vunpack.c.l.b16 %v1379
        %v1396 = vunpack.c.l.b16 %v1380
        %v1397 = vunpack.c.l.b16 %v1381
        %v1398 = vpack.c.b16 %v1391, %v1390
        %v1399 = vpack.c.b16 %v1393, %v1392
        %v1400 = vpack.c.b16 %v1395, %v1394
        %v1401 = vpack.c.b16 %v1397, %v1396
        %v1407 = vsel %vm844, %v1363, 0
        %v1410 = vsel %vm844, %v1364, 0
        %v1413 = vsel %vm844, %v1365, 0
        %v1416 = vsel %vm844, %v1366, 0
        %v1419 = vsel %vm844, %v1367, 0
        %v1422 = vsel %vm844, %v1368, 0
        %v1425 = vsel %vm844, %v1369, 0
        %v1428 = vsel %vm844, %v1370, 0
        %1430 = vmatprep.subr.bf16.mxu0 0
        %1431 = vmatpush1.bf16.msra.mxu0 %v1398
        %1432 = vmatprep.subr.bf16.mxu0 0
        %1433 = vmatpush1.bf16.msra.mxu0 %v1399
        %1434 = vmatprep.subr.bf16.mxu0 0
        %1435 = vmatpush1.bf16.msra.mxu0 %v1400
        %1436 = vmatprep.subr.bf16.mxu0 0
        %1437 = vmatpush1.bf16.msra.mxu0 %v1401
        %1438 = vmatprep.subr.bf16.mxu0 0
        %1439 = vmatpush1.bf16.msra.mxu0 0
        %1440 = vmatprep.subr.bf16.mxu0 0
        %1441 = vmatpush1.bf16.msra.mxu0 0
        %1442 = vmatprep.subr.bf16.mxu0 0
        %1443 = vmatpush1.bf16.msra.mxu0 0
        %1444 = vmatprep.subr.bf16.mxu0 0
        %1445 = vmatpush1.bf16.msra.mxu0 0
        %1446 = vmatprep.subr.bf16.mxu0 0
        %1447 = vmatpush1.bf16.msra.mxu0 0
        %1448 = vmatprep.subr.bf16.mxu0 0
        %1449 = vmatpush1.bf16.msra.mxu0 0
        %1450 = vmatprep.subr.bf16.mxu0 0
        %1451 = vmatpush1.bf16.msra.mxu0 0
        %1452 = vmatprep.subr.bf16.mxu0 0
        %1453 = vmatpush1.bf16.msra.mxu0 0
        %1454 = vmatprep.subr.bf16.mxu0 0
        %1455 = vmatpush1.bf16.msra.mxu0 0
        %1456 = vmatprep.subr.bf16.mxu0 0
        %1457 = vmatpush1.bf16.msra.mxu0 0
        %1458 = vmatprep.subr.bf16.mxu0 0
        %1459 = vmatpush1.bf16.msra.mxu0 0
        %1460 = vmatprep.subr.bf16.mxu0 0
        %1461 = vmatpush1.bf16.msra.mxu0 0
        %1462 = vmatprep.mubr.bf16.mxu0 0
        %1463 = vmatmul.mubr.bf16.gmra.mrb[0].mxu0 %v1407
        %v1464 = vpop.f32.mrb[0].mxu0
        %v1465 = vadd.f32 0.0, %v1464
        %v1466 = vpop.f32.mrb[0].mxu0
        %v1467 = vpop.f32.mrb[0].mxu0
        %v1468 = vadd.f32 0.0, %v1467
        %v1469 = vpop.f32.mrb[0].mxu0
        %1470 = vmatprep.mubr.bf16.mxu0 0
        %1471 = vmatmul.mubr.bf16.gmra.mrb[0].mxu0 %v1410
        %v1472 = vpop.f32.mrb[0].mxu0
        %v1473 = vadd.f32 0.0, %v1472
        %v1474 = vpop.f32.mrb[0].mxu0
        %v1475 = vpop.f32.mrb[0].mxu0
        %v1476 = vadd.f32 0.0, %v1475
        %v1477 = vpop.f32.mrb[0].mxu0
        %1478 = vmatprep.mubr.bf16.mxu0 0
        %1479 = vmatmul.mubr.bf16.gmra.mrb[0].mxu0 %v1413
        %v1480 = vpop.f32.mrb[0].mxu0
        %v1481 = vadd.f32 0.0, %v1480
        %v1482 = vpop.f32.mrb[0].mxu0
        %v1483 = vpop.f32.mrb[0].mxu0
        %v1484 = vadd.f32 0.0, %v1483
        %v1485 = vpop.f32.mrb[0].mxu0
        %1486 = vmatprep.mubr.bf16.mxu0 0
        %1487 = vmatmul.mubr.bf16.gmra.mrb[0].mxu0 %v1416
        %v1488 = vpop.f32.mrb[0].mxu0
        %v1489 = vadd.f32 0.0, %v1488
        %v1490 = vpop.f32.mrb[0].mxu0
        %v1491 = vpop.f32.mrb[0].mxu0
        %v1492 = vadd.f32 0.0, %v1491
        %v1493 = vpop.f32.mrb[0].mxu0
        %1494 = vmatprep.mubr.bf16.mxu0 0
        %1495 = vmatmul.mubr.bf16.gmra.mrb[0].mxu0 %v1419
        %v1496 = vpop.f32.mrb[0].mxu0
        %v1497 = vadd.f32 0.0, %v1496
        %v1498 = vpop.f32.mrb[0].mxu0
        %v1499 = vpop.f32.mrb[0].mxu0
        %v1500 = vadd.f32 0.0, %v1499
        %v1501 = vpop.f32.mrb[0].mxu0
        %1502 = vmatprep.mubr.bf16.mxu0 0
        %1503 = vmatmul.mubr.bf16.gmra.mrb[0].mxu0 %v1422
        %v1504 = vpop.f32.mrb[0].mxu0
        %v1505 = vadd.f32 0.0, %v1504
        %v1506 = vpop.f32.mrb[0].mxu0
        %v1507 = vpop.f32.mrb[0].mxu0
        %v1508 = vadd.f32 0.0, %v1507
        %v1509 = vpop.f32.mrb[0].mxu0
        %1510 = vmatprep.mubr.bf16.mxu0 0
        %1511 = vmatmul.mubr.bf16.gmra.mrb[0].mxu0 %v1425
        %v1512 = vpop.f32.mrb[0].mxu0
        %v1513 = vadd.f32 0.0, %v1512
        %v1514 = vpop.f32.mrb[0].mxu0
        %v1515 = vpop.f32.mrb[0].mxu0
        %v1516 = vadd.f32 0.0, %v1515
        %v1517 = vpop.f32.mrb[0].mxu0
        %1518 = vmatprep.mubr.bf16.mxu0 0
        %1519 = vmatmul.mubr.bf16.gmra.mrb[0].mxu0 %v1428
        %v1520 = vpop.f32.mrb[0].mxu0
        %v1521 = vadd.f32 0.0, %v1520
        %v1522 = vpop.f32.mrb[0].mxu0
        %v1523 = vpop.f32.mrb[0].mxu0
        %v1524 = vadd.f32 0.0, %v1523
        %v1525 = vpop.f32.mrb[0].mxu0
        %1526 = vdwg.mxu0
        %v1527 = vadd.f32 %v1327, %v1465
        %v1528 = vadd.f32 %v1328, %v1468
        %v1529 = vadd.f32 %v1329, %v1473
        %v1530 = vadd.f32 %v1330, %v1476
        %v1531 = vadd.f32 %v1331, %v1481
        %v1532 = vadd.f32 %v1332, %v1484
        %v1533 = vadd.f32 %v1333, %v1489
        %v1534 = vadd.f32 %v1334, %v1492
        %v1535 = vadd.f32 %v1335, %v1497
        %v1536 = vadd.f32 %v1336, %v1500
        %v1537 = vadd.f32 %v1337, %v1505
        %v1538 = vadd.f32 %v1338, %v1508
        %v1539 = vadd.f32 %v1339, %v1513
        %v1540 = vadd.f32 %v1340, %v1516
        %v1541 = vadd.f32 %v1341, %v1521
        %v1542 = vadd.f32 %v1342, %v1524
        %s1543 = scalar_lea.vmem %s4, 128
        %v1544 = vld [vmem:[%s1543] sm:$0xf]
        %v1545 = vld [vmem:[%s1543 + $0x4] sm:$0xf]
        %v1546 = vld [vmem:[%s1543 + $0x8] sm:$0xf]
        %v1547 = vld [vmem:[%s1543 + $0xc] sm:$0xf]
        %v1548 = vld [vmem:[%s1543 + $0x10] sm:$0xf]
        %v1549 = vld [vmem:[%s1543 + $0x14] sm:$0xf]
        %v1550 = vld [vmem:[%s1543 + $0x18] sm:$0xf]
        %v1551 = vld [vmem:[%s1543 + $0x1c] sm:$0xf]
        %v1560 = vunpack.c.l.b16 %v1544
        %v1561 = vunpack.c.l.b16 %v1545
        %v1562 = vunpack.c.l.b16 %v1546
        %v1563 = vunpack.c.l.b16 %v1547
        %v1564 = vunpack.c.l.b16 %v1548
        %v1565 = vunpack.c.l.b16 %v1549
        %v1566 = vunpack.c.l.b16 %v1550
        %v1567 = vunpack.c.l.b16 %v1551
        %v1568 = vpack.c.b16 %v1561, %v1560
        %v1569 = vpack.c.b16 %v1563, %v1562
        %v1570 = vpack.c.b16 %v1565, %v1564
        %v1571 = vpack.c.b16 %v1567, %v1566
        %v1577 = vsel %vm844, %v1371, 0
        %1579 = vmatprep.subr.bf16.mxu0 0
        %1580 = vmatpush1.bf16.msra.mxu0 %v1568
        %1581 = vmatprep.subr.bf16.mxu0 0
        %1582 = vmatpush1.bf16.msra.mxu0 %v1569
        %1583 = vmatprep.subr.bf16.mxu0 0
        %1584 = vmatpush1.bf16.msra.mxu0 %v1570
        %1585 = vmatprep.subr.bf16.mxu0 0
        %1586 = vmatpush1.bf16.msra.mxu0 %v1571
        %1587 = vmatprep.subr.bf16.mxu0 0
        %1588 = vmatpush1.bf16.msra.mxu0 0
        %1589 = vmatprep.subr.bf16.mxu0 0
        %1590 = vmatpush1.bf16.msra.mxu0 0
        %1591 = vmatprep.subr.bf16.mxu0 0
        %1592 = vmatpush1.bf16.msra.mxu0 0
        %1593 = vmatprep.subr.bf16.mxu0 0
        %1594 = vmatpush1.bf16.msra.mxu0 0
        %1595 = vmatprep.subr.bf16.mxu0 0
        %1596 = vmatpush1.bf16.msra.mxu0 0
        %1597 = vmatprep.subr.bf16.mxu0 0
        %1598 = vmatpush1.bf16.msra.mxu0 0
        %1599 = vmatprep.subr.bf16.mxu0 0
        %1600 = vmatpush1.bf16.msra.mxu0 0
        %1601 = vmatprep.subr.bf16.mxu0 0
        %1602 = vmatpush1.bf16.msra.mxu0 0
        %1603 = vmatprep.subr.bf16.mxu0 0
        %1604 = vmatpush1.bf16.msra.mxu0 0
        %1605 = vmatprep.subr.bf16.mxu0 0
        %1606 = vmatpush1.bf16.msra.mxu0 0
        %1607 = vmatprep.subr.bf16.mxu0 0
        %1608 = vmatpush1.bf16.msra.mxu0 0
        %1609 = vmatprep.subr.bf16.mxu0 0
        %1610 = vmatpush1.bf16.msra.mxu0 0
        %1611 = vmatprep.mubr.bf16.mxu0 0
        %1612 = vmatmul.mubr.bf16.gmra.mrb[0].mxu0 %v1410
        %v1613 = vpop.f32.mrb[0].mxu0
        %v1614 = vadd.f32 0.0, %v1613
        %v1615 = vpop.f32.mrb[0].mxu0
        %v1616 = vpop.f32.mrb[0].mxu0
        %v1617 = vadd.f32 0.0, %v1616
        %v1618 = vpop.f32.mrb[0].mxu0
        %1619 = vmatprep.mubr.bf16.mxu0 0
        %1620 = vmatmul.mubr.bf16.gmra.mrb[0].mxu0 %v1413
        %v1621 = vpop.f32.mrb[0].mxu0
        %v1622 = vadd.f32 0.0, %v1621
        %v1623 = vpop.f32.mrb[0].mxu0
        %v1624 = vpop.f32.mrb[0].mxu0
        %v1625 = vadd.f32 0.0, %v1624
        %v1626 = vpop.f32.mrb[0].mxu0
        %1627 = vmatprep.mubr.bf16.mxu0 0
        %1628 = vmatmul.mubr.bf16.gmra.mrb[0].mxu0 %v1416
        %v1629 = vpop.f32.mrb[0].mxu0
        %v1630 = vadd.f32 0.0, %v1629
        %v1631 = vpop.f32.mrb[0].mxu0
        %v1632 = vpop.f32.mrb[0].mxu0
        %v1633 = vadd.f32 0.0, %v1632
        %v1634 = vpop.f32.mrb[0].mxu0
        %1635 = vmatprep.mubr.bf16.mxu0 0
        %1636 = vmatmul.mubr.bf16.gmra.mrb[0].mxu0 %v1419
        %v1637 = vpop.f32.mrb[0].mxu0
        %v1638 = vadd.f32 0.0, %v1637
        %v1639 = vpop.f32.mrb[0].mxu0
        %v1640 = vpop.f32.mrb[0].mxu0
        %v1641 = vadd.f32 0.0, %v1640
        %v1642 = vpop.f32.mrb[0].mxu0
        %1643 = vmatprep.mubr.bf16.mxu0 0
        %1644 = vmatmul.mubr.bf16.gmra.mrb[0].mxu0 %v1422
        %v1645 = vpop.f32.mrb[0].mxu0
        %v1646 = vadd.f32 0.0, %v1645
        %v1647 = vpop.f32.mrb[0].mxu0
        %v1648 = vpop.f32.mrb[0].mxu0
        %v1649 = vadd.f32 0.0, %v1648
        %v1650 = vpop.f32.mrb[0].mxu0
        %1651 = vmatprep.mubr.bf16.mxu0 0
        %1652 = vmatmul.mubr.bf16.gmra.mrb[0].mxu0 %v1425
        %v1653 = vpop.f32.mrb[0].mxu0
        %v1654 = vadd.f32 0.0, %v1653
        %v1655 = vpop.f32.mrb[0].mxu0
        %v1656 = vpop.f32.mrb[0].mxu0
        %v1657 = vadd.f32 0.0, %v1656
        %v1658 = vpop.f32.mrb[0].mxu0
        %1659 = vmatprep.mubr.bf16.mxu0 0
        %1660 = vmatmul.mubr.bf16.gmra.mrb[0].mxu0 %v1428
        %v1661 = vpop.f32.mrb[0].mxu0
        %v1662 = vadd.f32 0.0, %v1661
        %v1663 = vpop.f32.mrb[0].mxu0
        %v1664 = vpop.f32.mrb[0].mxu0
        %v1665 = vadd.f32 0.0, %v1664
        %v1666 = vpop.f32.mrb[0].mxu0
        %1667 = vmatprep.mubr.bf16.mxu0 0
        %1668 = vmatmul.mubr.bf16.gmra.mrb[0].mxu0 %v1577
        %v1669 = vpop.f32.mrb[0].mxu0
        %v1670 = vadd.f32 0.0, %v1669
        %v1671 = vpop.f32.mrb[0].mxu0
        %v1672 = vpop.f32.mrb[0].mxu0
        %v1673 = vadd.f32 0.0, %v1672
        %v1674 = vpop.f32.mrb[0].mxu0
        %1675 = vdwg.mxu0
        %v1676 = vadd.f32 %v1527, %v1614
        %v1677 = vadd.f32 %v1528, %v1617
        %v1678 = vadd.f32 %v1529, %v1622
        %v1679 = vadd.f32 %v1530, %v1625
        %v1680 = vadd.f32 %v1531, %v1630
        %v1681 = vadd.f32 %v1532, %v1633
        %v1682 = vadd.f32 %v1533, %v1638
        %v1683 = vadd.f32 %v1534, %v1641
        %v1684 = vadd.f32 %v1535, %v1646
        %v1685 = vadd.f32 %v1536, %v1649
        %v1686 = vadd.f32 %v1537, %v1654
        %v1687 = vadd.f32 %v1538, %v1657
        %v1688 = vadd.f32 %v1539, %v1662
        %v1689 = vadd.f32 %v1540, %v1665
        %v1690 = vadd.f32 %v1541, %v1670
        %v1691 = vadd.f32 %v1542, %v1673
        %s1692 = scalar_lea.vmem %s4, 224
        %v1693 = vld [vmem:[%s1692] sm:$0xf]
        %v1694 = vld [vmem:[%s1692 + $0x4] sm:$0xf]
        %v1695 = vld [vmem:[%s1692 + $0x8] sm:$0xf]
        %v1696 = vld [vmem:[%s1692 + $0xc] sm:$0xf]
        %v1697 = vld [vmem:[%s1692 + $0x10] sm:$0xf]
        %v1698 = vld [vmem:[%s1692 + $0x14] sm:$0xf]
        %v1699 = vld [vmem:[%s1692 + $0x18] sm:$0xf]
        %v1700 = vld [vmem:[%s1692 + $0x1c] sm:$0xf]
        %v1709 = vunpack.c.l.b16 %v1693
        %v1710 = vunpack.c.l.b16 %v1694
        %v1711 = vunpack.c.l.b16 %v1695
        %v1712 = vunpack.c.l.b16 %v1696
        %v1713 = vunpack.c.l.b16 %v1697
        %v1714 = vunpack.c.l.b16 %v1698
        %v1715 = vunpack.c.l.b16 %v1699
        %v1716 = vunpack.c.l.b16 %v1700
        %v1717 = vpack.c.b16 %v1710, %v1709
        %v1718 = vpack.c.b16 %v1712, %v1711
        %v1719 = vpack.c.b16 %v1714, %v1713
        %v1720 = vpack.c.b16 %v1716, %v1715
        %v1726 = vsel %vm844, %v1372, 0
        %1728 = vmatprep.subr.bf16.mxu0 0
        %1729 = vmatpush1.bf16.msra.mxu0 %v1717
        %1730 = vmatprep.subr.bf16.mxu0 0
        %1731 = vmatpush1.bf16.msra.mxu0 %v1718
        %1732 = vmatprep.subr.bf16.mxu0 0
        %1733 = vmatpush1.bf16.msra.mxu0 %v1719
        %1734 = vmatprep.subr.bf16.mxu0 0
        %1735 = vmatpush1.bf16.msra.mxu0 %v1720
        %1736 = vmatprep.subr.bf16.mxu0 0
        %1737 = vmatpush1.bf16.msra.mxu0 0
        %1738 = vmatprep.subr.bf16.mxu0 0
        %1739 = vmatpush1.bf16.msra.mxu0 0
        %1740 = vmatprep.subr.bf16.mxu0 0
        %1741 = vmatpush1.bf16.msra.mxu0 0
        %1742 = vmatprep.subr.bf16.mxu0 0
        %1743 = vmatpush1.bf16.msra.mxu0 0
        %1744 = vmatprep.subr.bf16.mxu0 0
        %1745 = vmatpush1.bf16.msra.mxu0 0
        %1746 = vmatprep.subr.bf16.mxu0 0
        %1747 = vmatpush1.bf16.msra.mxu0 0
        %1748 = vmatprep.subr.bf16.mxu0 0
        %1749 = vmatpush1.bf16.msra.mxu0 0
        %1750 = vmatprep.subr.bf16.mxu0 0
        %1751 = vmatpush1.bf16.msra.mxu0 0
        %1752 = vmatprep.subr.bf16.mxu0 0
        %1753 = vmatpush1.bf16.msra.mxu0 0
        %1754 = vmatprep.subr.bf16.mxu0 0
        %1755 = vmatpush1.bf16.msra.mxu0 0
        %1756 = vmatprep.subr.bf16.mxu0 0
        %1757 = vmatpush1.bf16.msra.mxu0 0
        %1758 = vmatprep.subr.bf16.mxu0 0
        %1759 = vmatpush1.bf16.msra.mxu0 0
        %1760 = vmatprep.mubr.bf16.mxu0 0
        %1761 = vmatmul.mubr.bf16.gmra.mrb[0].mxu0 %v1413
        %v1762 = vpop.f32.mrb[0].mxu0
        %v1763 = vadd.f32 0.0, %v1762
        %v1764 = vpop.f32.mrb[0].mxu0
        %v1765 = vpop.f32.mrb[0].mxu0
        %v1766 = vadd.f32 0.0, %v1765
        %v1767 = vpop.f32.mrb[0].mxu0
        %1768 = vmatprep.mubr.bf16.mxu0 0
        %1769 = vmatmul.mubr.bf16.gmra.mrb[0].mxu0 %v1416
        %v1770 = vpop.f32.mrb[0].mxu0
        %v1771 = vadd.f32 0.0, %v1770
        %v1772 = vpop.f32.mrb[0].mxu0
        %v1773 = vpop.f32.mrb[0].mxu0
        %v1774 = vadd.f32 0.0, %v1773
        %v1775 = vpop.f32.mrb[0].mxu0
        %1776 = vmatprep.mubr.bf16.mxu0 0
        %1777 = vmatmul.mubr.bf16.gmra.mrb[0].mxu0 %v1419
        %v1778 = vpop.f32.mrb[0].mxu0
        %v1779 = vadd.f32 0.0, %v1778
        %v1780 = vpop.f32.mrb[0].mxu0
        %v1781 = vpop.f32.mrb[0].mxu0
        %v1782 = vadd.f32 0.0, %v1781
        %v1783 = vpop.f32.mrb[0].mxu0
        %1784 = vmatprep.mubr.bf16.mxu0 0
        %1785 = vmatmul.mubr.bf16.gmra.mrb[0].mxu0 %v1422
        %v1786 = vpop.f32.mrb[0].mxu0
        %v1787 = vadd.f32 0.0, %v1786
        %v1788 = vpop.f32.mrb[0].mxu0
        %v1789 = vpop.f32.mrb[0].mxu0
        %v1790 = vadd.f32 0.0, %v1789
        %v1791 = vpop.f32.mrb[0].mxu0
        %1792 = vmatprep.mubr.bf16.mxu0 0
        %1793 = vmatmul.mubr.bf16.gmra.mrb[0].mxu0 %v1425
        %v1794 = vpop.f32.mrb[0].mxu0
        %v1795 = vadd.f32 0.0, %v1794
        %v1796 = vpop.f32.mrb[0].mxu0
        %v1797 = vpop.f32.mrb[0].mxu0
        %v1798 = vadd.f32 0.0, %v1797
        %v1799 = vpop.f32.mrb[0].mxu0
        %1800 = vmatprep.mubr.bf16.mxu0 0
        %1801 = vmatmul.mubr.bf16.gmra.mrb[0].mxu0 %v1428
        %v1802 = vpop.f32.mrb[0].mxu0
        %v1803 = vadd.f32 0.0, %v1802
        %v1804 = vpop.f32.mrb[0].mxu0
        %v1805 = vpop.f32.mrb[0].mxu0
        %v1806 = vadd.f32 0.0, %v1805
        %v1807 = vpop.f32.mrb[0].mxu0
        %1808 = vmatprep.mubr.bf16.mxu0 0
        %1809 = vmatmul.mubr.bf16.gmra.mrb[0].mxu0 %v1577
        %v1810 = vpop.f32.mrb[0].mxu0
        %v1811 = vadd.f32 0.0, %v1810
        %v1812 = vpop.f32.mrb[0].mxu0
        %v1813 = vpop.f32.mrb[0].mxu0
        %v1814 = vadd.f32 0.0, %v1813
        %v1815 = vpop.f32.mrb[0].mxu0
        %1816 = vmatprep.mubr.bf16.mxu0 0
        %1817 = vmatmul.mubr.bf16.gmra.mrb[0].mxu0 %v1726
        %v1818 = vpop.f32.mrb[0].mxu0
        %v1819 = vadd.f32 0.0, %v1818
        %v1820 = vpop.f32.mrb[0].mxu0
        %v1821 = vpop.f32.mrb[0].mxu0
        %v1822 = vadd.f32 0.0, %v1821
        %v1823 = vpop.f32.mrb[0].mxu0
        %1824 = vdwg.mxu0
        %v1825 = vadd.f32 %v1676, %v1763
        %v1826 = vadd.f32 %v1677, %v1766
        %v1827 = vadd.f32 %v1678, %v1771
        %v1828 = vadd.f32 %v1679, %v1774
        %v1829 = vadd.f32 %v1680, %v1779
        %v1830 = vadd.f32 %v1681, %v1782
        %v1831 = vadd.f32 %v1682, %v1787
        %v1832 = vadd.f32 %v1683, %v1790
        %v1833 = vadd.f32 %v1684, %v1795
        %v1834 = vadd.f32 %v1685, %v1798
        %v1835 = vadd.f32 %v1686, %v1803
        %v1836 = vadd.f32 %v1687, %v1806
        %v1837 = vadd.f32 %v1688, %v1811
        %v1838 = vadd.f32 %v1689, %v1814
        %v1839 = vadd.f32 %v1690, %v1819
        %v1840 = vadd.f32 %v1691, %v1822
        %v1841 = vld [vmem:[#allocation2 + $0x9] sm:$0xff]
        %v1842 = vld [vmem:[#allocation2 + $0x11] sm:$0xff]
        %v1843 = vld [vmem:[#allocation2 + $0x29] sm:$0xff]
        %v1844 = vld [vmem:[#allocation2 + $0x31] sm:$0xff]
        %v1845 = vld [vmem:[#allocation2 + $0x49] sm:$0xff]
        %v1846 = vld [vmem:[#allocation2 + $0x51] sm:$0xff]
        %v1847 = vld [vmem:[#allocation2 + $0x69] sm:$0xff]
        %v1848 = vld [vmem:[#allocation2 + $0x71] sm:$0xff]
        %v1849 = vld [vmem:[#allocation2 + $0x89] sm:$0xff]
        %v1850 = vld [vmem:[#allocation2 + $0x91] sm:$0xff]
        %v1851 = vld [vmem:[#allocation2 + $0xa9] sm:$0xff]
        %v1852 = vld [vmem:[#allocation2 + $0xb1] sm:$0xff]
        %v1853 = vld [vmem:[#allocation2 + $0xc9] sm:$0xff]
        %v1854 = vld [vmem:[#allocation2 + $0xd1] sm:$0xff]
        %v1855 = vld [vmem:[#allocation2 + $0xe9] sm:$0xff]
        %v1856 = vld [vmem:[#allocation2 + $0xf1] sm:$0xff]
        %v1857 = vld [vmem:[#allocation2 + $0x109] sm:$0xff]
        %v1858 = vld [vmem:[#allocation2 + $0x111] sm:$0xff]
        %v1859 = vld [vmem:[#allocation2 + $0x129] sm:$0xff]
        %v1860 = vld [vmem:[#allocation2 + $0x131] sm:$0xff]
        %v1861 = vpack.c.bf16 %v1842, %v1841
        %v1862 = vpack.c.bf16 %v1844, %v1843
        %v1863 = vpack.c.bf16 %v1846, %v1845
        %v1864 = vpack.c.bf16 %v1848, %v1847
        %v1865 = vpack.c.bf16 %v1850, %v1849
        %v1866 = vpack.c.bf16 %v1852, %v1851
        %v1867 = vpack.c.bf16 %v1854, %v1853
        %v1868 = vpack.c.bf16 %v1856, %v1855
        %v1869 = vpack.c.bf16 %v1858, %v1857
        %v1870 = vpack.c.bf16 %v1860, %v1859
        %s1871 = scalar_lea.vmem %s4, 64
        %v1872 = vld [vmem:[%s1871] sm:$0xf]
        %v1873 = vld [vmem:[%s1871 + $0x4] sm:$0xf]
        %v1874 = vld [vmem:[%s1871 + $0x8] sm:$0xf]
        %v1875 = vld [vmem:[%s1871 + $0xc] sm:$0xf]
        %v1876 = vld [vmem:[%s1871 + $0x10] sm:$0xf]
        %v1877 = vld [vmem:[%s1871 + $0x14] sm:$0xf]
        %v1878 = vld [vmem:[%s1871 + $0x18] sm:$0xf]
        %v1879 = vld [vmem:[%s1871 + $0x1c] sm:$0xf]
        %v1888 = vunpack.c.l.b16 %v1872
        %v1889 = vunpack.c.l.b16 %v1873
        %v1890 = vunpack.c.l.b16 %v1874
        %v1891 = vunpack.c.l.b16 %v1875
        %v1892 = vunpack.c.l.b16 %v1876
        %v1893 = vunpack.c.l.b16 %v1877
        %v1894 = vunpack.c.l.b16 %v1878
        %v1895 = vunpack.c.l.b16 %v1879
        %v1896 = vpack.c.b16 %v1889, %v1888
        %v1897 = vpack.c.b16 %v1891, %v1890
        %v1898 = vpack.c.b16 %v1893, %v1892
        %v1899 = vpack.c.b16 %v1895, %v1894
        %v1905 = vsel %vm844, %v1861, 0
        %v1908 = vsel %vm844, %v1862, 0
        %v1911 = vsel %vm844, %v1863, 0
        %v1914 = vsel %vm844, %v1864, 0
        %v1917 = vsel %vm844, %v1865, 0
        %v1920 = vsel %vm844, %v1866, 0
        %v1923 = vsel %vm844, %v1867, 0
        %v1926 = vsel %vm844, %v1868, 0
        %1928 = vmatprep.subr.bf16.mxu0 0
        %1929 = vmatpush1.bf16.msra.mxu0 %v1896
        %1930 = vmatprep.subr.bf16.mxu0 0
        %1931 = vmatpush1.bf16.msra.mxu0 %v1897
        %1932 = vmatprep.subr.bf16.mxu0 0
        %1933 = vmatpush1.bf16.msra.mxu0 %v1898
        %1934 = vmatprep.subr.bf16.mxu0 0
        %1935 = vmatpush1.bf16.msra.mxu0 %v1899
        %1936 = vmatprep.subr.bf16.mxu0 0
        %1937 = vmatpush1.bf16.msra.mxu0 0
        %1938 = vmatprep.subr.bf16.mxu0 0
        %1939 = vmatpush1.bf16.msra.mxu0 0
        %1940 = vmatprep.subr.bf16.mxu0 0
        %1941 = vmatpush1.bf16.msra.mxu0 0
        %1942 = vmatprep.subr.bf16.mxu0 0
        %1943 = vmatpush1.bf16.msra.mxu0 0
        %1944 = vmatprep.subr.bf16.mxu0 0
        %1945 = vmatpush1.bf16.msra.mxu0 0
        %1946 = vmatprep.subr.bf16.mxu0 0
        %1947 = vmatpush1.bf16.msra.mxu0 0
        %1948 = vmatprep.subr.bf16.mxu0 0
        %1949 = vmatpush1.bf16.msra.mxu0 0
        %1950 = vmatprep.subr.bf16.mxu0 0
        %1951 = vmatpush1.bf16.msra.mxu0 0
        %1952 = vmatprep.subr.bf16.mxu0 0
        %1953 = vmatpush1.bf16.msra.mxu0 0
        %1954 = vmatprep.subr.bf16.mxu0 0
        %1955 = vmatpush1.bf16.msra.mxu0 0
        %1956 = vmatprep.subr.bf16.mxu0 0
        %1957 = vmatpush1.bf16.msra.mxu0 0
        %1958 = vmatprep.subr.bf16.mxu0 0
        %1959 = vmatpush1.bf16.msra.mxu0 0
        %1960 = vmatprep.mubr.bf16.mxu0 0
        %1961 = vmatmul.mubr.bf16.gmra.mrb[0].mxu0 %v1905
        %v1962 = vpop.f32.mrb[0].mxu0
        %v1963 = vadd.f32 0.0, %v1962
        %v1964 = vpop.f32.mrb[0].mxu0
        %v1965 = vpop.f32.mrb[0].mxu0
        %v1966 = vadd.f32 0.0, %v1965
        %v1967 = vpop.f32.mrb[0].mxu0
        %1968 = vmatprep.mubr.bf16.mxu0 0
        %1969 = vmatmul.mubr.bf16.gmra.mrb[0].mxu0 %v1908
        %v1970 = vpop.f32.mrb[0].mxu0
        %v1971 = vadd.f32 0.0, %v1970
        %v1972 = vpop.f32.mrb[0].mxu0
        %v1973 = vpop.f32.mrb[0].mxu0
        %v1974 = vadd.f32 0.0, %v1973
        %v1975 = vpop.f32.mrb[0].mxu0
        %1976 = vmatprep.mubr.bf16.mxu0 0
        %1977 = vmatmul.mubr.bf16.gmra.mrb[0].mxu0 %v1911
        %v1978 = vpop.f32.mrb[0].mxu0
        %v1979 = vadd.f32 0.0, %v1978
        %v1980 = vpop.f32.mrb[0].mxu0
        %v1981 = vpop.f32.mrb[0].mxu0
        %v1982 = vadd.f32 0.0, %v1981
        %v1983 = vpop.f32.mrb[0].mxu0
        %1984 = vmatprep.mubr.bf16.mxu0 0
        %1985 = vmatmul.mubr.bf16.gmra.mrb[0].mxu0 %v1914
        %v1986 = vpop.f32.mrb[0].mxu0
        %v1987 = vadd.f32 0.0, %v1986
        %v1988 = vpop.f32.mrb[0].mxu0
        %v1989 = vpop.f32.mrb[0].mxu0
        %v1990 = vadd.f32 0.0, %v1989
        %v1991 = vpop.f32.mrb[0].mxu0
        %1992 = vmatprep.mubr.bf16.mxu0 0
        %1993 = vmatmul.mubr.bf16.gmra.mrb[0].mxu0 %v1917
        %v1994 = vpop.f32.mrb[0].mxu0
        %v1995 = vadd.f32 0.0, %v1994
        %v1996 = vpop.f32.mrb[0].mxu0
        %v1997 = vpop.f32.mrb[0].mxu0
        %v1998 = vadd.f32 0.0, %v1997
        %v1999 = vpop.f32.mrb[0].mxu0
        %2000 = vmatprep.mubr.bf16.mxu0 0
        %2001 = vmatmul.mubr.bf16.gmra.mrb[0].mxu0 %v1920
        %v2002 = vpop.f32.mrb[0].mxu0
        %v2003 = vadd.f32 0.0, %v2002
        %v2004 = vpop.f32.mrb[0].mxu0
        %v2005 = vpop.f32.mrb[0].mxu0
        %v2006 = vadd.f32 0.0, %v2005
        %v2007 = vpop.f32.mrb[0].mxu0
        %2008 = vmatprep.mubr.bf16.mxu0 0
        %2009 = vmatmul.mubr.bf16.gmra.mrb[0].mxu0 %v1923
        %v2010 = vpop.f32.mrb[0].mxu0
        %v2011 = vadd.f32 0.0, %v2010
        %v2012 = vpop.f32.mrb[0].mxu0
        %v2013 = vpop.f32.mrb[0].mxu0
        %v2014 = vadd.f32 0.0, %v2013
        %v2015 = vpop.f32.mrb[0].mxu0
        %2016 = vmatprep.mubr.bf16.mxu0 0
        %2017 = vmatmul.mubr.bf16.gmra.mrb[0].mxu0 %v1926
        %v2018 = vpop.f32.mrb[0].mxu0
        %v2019 = vadd.f32 0.0, %v2018
        %v2020 = vpop.f32.mrb[0].mxu0
        %v2021 = vpop.f32.mrb[0].mxu0
        %v2022 = vadd.f32 0.0, %v2021
        %v2023 = vpop.f32.mrb[0].mxu0
        %2024 = vdwg.mxu0
        %v2025 = vadd.f32 %v1825, %v1963
        %v2026 = vadd.f32 %v1826, %v1966
        %v2027 = vadd.f32 %v1827, %v1971
        %v2028 = vadd.f32 %v1828, %v1974
        %v2029 = vadd.f32 %v1829, %v1979
        %v2030 = vadd.f32 %v1830, %v1982
        %v2031 = vadd.f32 %v1831, %v1987
        %v2032 = vadd.f32 %v1832, %v1990
        %v2033 = vadd.f32 %v1833, %v1995
        %v2034 = vadd.f32 %v1834, %v1998
        %v2035 = vadd.f32 %v1835, %v2003
        %v2036 = vadd.f32 %v1836, %v2006
        %v2037 = vadd.f32 %v1837, %v2011
        %v2038 = vadd.f32 %v1838, %v2014
        %v2039 = vadd.f32 %v1839, %v2019
        %v2040 = vadd.f32 %v1840, %v2022
        %s2041 = scalar_lea.vmem %s4, 160
        %v2042 = vld [vmem:[%s2041] sm:$0xf]
        %v2043 = vld [vmem:[%s2041 + $0x4] sm:$0xf]
        %v2044 = vld [vmem:[%s2041 + $0x8] sm:$0xf]
        %v2045 = vld [vmem:[%s2041 + $0xc] sm:$0xf]
        %v2046 = vld [vmem:[%s2041 + $0x10] sm:$0xf]
        %v2047 = vld [vmem:[%s2041 + $0x14] sm:$0xf]
        %v2048 = vld [vmem:[%s2041 + $0x18] sm:$0xf]
        %v2049 = vld [vmem:[%s2041 + $0x1c] sm:$0xf]
        %v2058 = vunpack.c.l.b16 %v2042
        %v2059 = vunpack.c.l.b16 %v2043
        %v2060 = vunpack.c.l.b16 %v2044
        %v2061 = vunpack.c.l.b16 %v2045
        %v2062 = vunpack.c.l.b16 %v2046
        %v2063 = vunpack.c.l.b16 %v2047
        %v2064 = vunpack.c.l.b16 %v2048
        %v2065 = vunpack.c.l.b16 %v2049
        %v2066 = vpack.c.b16 %v2059, %v2058
        %v2067 = vpack.c.b16 %v2061, %v2060
        %v2068 = vpack.c.b16 %v2063, %v2062
        %v2069 = vpack.c.b16 %v2065, %v2064
        %v2075 = vsel %vm844, %v1869, 0
        %2077 = vmatprep.subr.bf16.mxu0 0
        %2078 = vmatpush1.bf16.msra.mxu0 %v2066
        %2079 = vmatprep.subr.bf16.mxu0 0
        %2080 = vmatpush1.bf16.msra.mxu0 %v2067
        %2081 = vmatprep.subr.bf16.mxu0 0
        %2082 = vmatpush1.bf16.msra.mxu0 %v2068
        %2083 = vmatprep.subr.bf16.mxu0 0
        %2084 = vmatpush1.bf16.msra.mxu0 %v2069
        %2085 = vmatprep.subr.bf16.mxu0 0
        %2086 = vmatpush1.bf16.msra.mxu0 0
        %2087 = vmatprep.subr.bf16.mxu0 0
        %2088 = vmatpush1.bf16.msra.mxu0 0
        %2089 = vmatprep.subr.bf16.mxu0 0
        %2090 = vmatpush1.bf16.msra.mxu0 0
        %2091 = vmatprep.subr.bf16.mxu0 0
        %2092 = vmatpush1.bf16.msra.mxu0 0
        %2093 = vmatprep.subr.bf16.mxu0 0
        %2094 = vmatpush1.bf16.msra.mxu0 0
        %2095 = vmatprep.subr.bf16.mxu0 0
        %2096 = vmatpush1.bf16.msra.mxu0 0
        %2097 = vmatprep.subr.bf16.mxu0 0
        %2098 = vmatpush1.bf16.msra.mxu0 0
        %2099 = vmatprep.subr.bf16.mxu0 0
        %2100 = vmatpush1.bf16.msra.mxu0 0
        %2101 = vmatprep.subr.bf16.mxu0 0
        %2102 = vmatpush1.bf16.msra.mxu0 0
        %2103 = vmatprep.subr.bf16.mxu0 0
        %2104 = vmatpush1.bf16.msra.mxu0 0
        %2105 = vmatprep.subr.bf16.mxu0 0
        %2106 = vmatpush1.bf16.msra.mxu0 0
        %2107 = vmatprep.subr.bf16.mxu0 0
        %2108 = vmatpush1.bf16.msra.mxu0 0
        %2109 = vmatprep.mubr.bf16.mxu0 0
        %2110 = vmatmul.mubr.bf16.gmra.mrb[0].mxu0 %v1908
        %v2111 = vpop.f32.mrb[0].mxu0
        %v2112 = vadd.f32 0.0, %v2111
        %v2113 = vpop.f32.mrb[0].mxu0
        %v2114 = vpop.f32.mrb[0].mxu0
        %v2115 = vadd.f32 0.0, %v2114
        %v2116 = vpop.f32.mrb[0].mxu0
        %2117 = vmatprep.mubr.bf16.mxu0 0
        %2118 = vmatmul.mubr.bf16.gmra.mrb[0].mxu0 %v1911
        %v2119 = vpop.f32.mrb[0].mxu0
        %v2120 = vadd.f32 0.0, %v2119
        %v2121 = vpop.f32.mrb[0].mxu0
        %v2122 = vpop.f32.mrb[0].mxu0
        %v2123 = vadd.f32 0.0, %v2122
        %v2124 = vpop.f32.mrb[0].mxu0
        %2125 = vmatprep.mubr.bf16.mxu0 0
        %2126 = vmatmul.mubr.bf16.gmra.mrb[0].mxu0 %v1914
        %v2127 = vpop.f32.mrb[0].mxu0
        %v2128 = vadd.f32 0.0, %v2127
        %v2129 = vpop.f32.mrb[0].mxu0
        %v2130 = vpop.f32.mrb[0].mxu0
        %v2131 = vadd.f32 0.0, %v2130
        %v2132 = vpop.f32.mrb[0].mxu0
        %2133 = vmatprep.mubr.bf16.mxu0 0
        %2134 = vmatmul.mubr.bf16.gmra.mrb[0].mxu0 %v1917
        %v2135 = vpop.f32.mrb[0].mxu0
        %v2136 = vadd.f32 0.0, %v2135
        %v2137 = vpop.f32.mrb[0].mxu0
        %v2138 = vpop.f32.mrb[0].mxu0
        %v2139 = vadd.f32 0.0, %v2138
        %v2140 = vpop.f32.mrb[0].mxu0
        %2141 = vmatprep.mubr.bf16.mxu0 0
        %2142 = vmatmul.mubr.bf16.gmra.mrb[0].mxu0 %v1920
        %v2143 = vpop.f32.mrb[0].mxu0
        %v2144 = vadd.f32 0.0, %v2143
        %v2145 = vpop.f32.mrb[0].mxu0
        %v2146 = vpop.f32.mrb[0].mxu0
        %v2147 = vadd.f32 0.0, %v2146
        %v2148 = vpop.f32.mrb[0].mxu0
        %2149 = vmatprep.mubr.bf16.mxu0 0
        %2150 = vmatmul.mubr.bf16.gmra.mrb[0].mxu0 %v1923
        %v2151 = vpop.f32.mrb[0].mxu0
        %v2152 = vadd.f32 0.0, %v2151
        %v2153 = vpop.f32.mrb[0].mxu0
        %v2154 = vpop.f32.mrb[0].mxu0
        %v2155 = vadd.f32 0.0, %v2154
        %v2156 = vpop.f32.mrb[0].mxu0
        %2157 = vmatprep.mubr.bf16.mxu0 0
        %2158 = vmatmul.mubr.bf16.gmra.mrb[0].mxu0 %v1926
        %v2159 = vpop.f32.mrb[0].mxu0
        %v2160 = vadd.f32 0.0, %v2159
        %v2161 = vpop.f32.mrb[0].mxu0
        %v2162 = vpop.f32.mrb[0].mxu0
        %v2163 = vadd.f32 0.0, %v2162
        %v2164 = vpop.f32.mrb[0].mxu0
        %2165 = vmatprep.mubr.bf16.mxu0 0
        %2166 = vmatmul.mubr.bf16.gmra.mrb[0].mxu0 %v2075
        %v2167 = vpop.f32.mrb[0].mxu0
        %v2168 = vadd.f32 0.0, %v2167
        %v2169 = vpop.f32.mrb[0].mxu0
        %v2170 = vpop.f32.mrb[0].mxu0
        %v2171 = vadd.f32 0.0, %v2170
        %v2172 = vpop.f32.mrb[0].mxu0
        %2173 = vdwg.mxu0
        %v2174 = vadd.f32 %v2025, %v2112
        %v2175 = vadd.f32 %v2026, %v2115
        %v2176 = vadd.f32 %v2027, %v2120
        %v2177 = vadd.f32 %v2028, %v2123
        %v2178 = vadd.f32 %v2029, %v2128
        %v2179 = vadd.f32 %v2030, %v2131
        %v2180 = vadd.f32 %v2031, %v2136
        %v2181 = vadd.f32 %v2032, %v2139
        %v2182 = vadd.f32 %v2033, %v2144
        %v2183 = vadd.f32 %v2034, %v2147
        %v2184 = vadd.f32 %v2035, %v2152
        %v2185 = vadd.f32 %v2036, %v2155
        %v2186 = vadd.f32 %v2037, %v2160
        %v2187 = vadd.f32 %v2038, %v2163
        %v2188 = vadd.f32 %v2039, %v2168
        %v2189 = vadd.f32 %v2040, %v2171
        %s2190 = scalar_lea.vmem %s4, 256
        %v2191 = vld [vmem:[%s2190] sm:$0xf]
        %v2192 = vld [vmem:[%s2190 + $0x4] sm:$0xf]
        %v2193 = vld [vmem:[%s2190 + $0x8] sm:$0xf]
        %v2194 = vld [vmem:[%s2190 + $0xc] sm:$0xf]
        %v2195 = vld [vmem:[%s2190 + $0x10] sm:$0xf]
        %v2196 = vld [vmem:[%s2190 + $0x14] sm:$0xf]
        %v2197 = vld [vmem:[%s2190 + $0x18] sm:$0xf]
        %v2198 = vld [vmem:[%s2190 + $0x1c] sm:$0xf]
        %v2207 = vunpack.c.l.b16 %v2191
        %v2208 = vunpack.c.l.b16 %v2192
        %v2209 = vunpack.c.l.b16 %v2193
        %v2210 = vunpack.c.l.b16 %v2194
        %v2211 = vunpack.c.l.b16 %v2195
        %v2212 = vunpack.c.l.b16 %v2196
        %v2213 = vunpack.c.l.b16 %v2197
        %v2214 = vunpack.c.l.b16 %v2198
        %v2215 = vpack.c.b16 %v2208, %v2207
        %v2216 = vpack.c.b16 %v2210, %v2209
        %v2217 = vpack.c.b16 %v2212, %v2211
        %v2218 = vpack.c.b16 %v2214, %v2213
        %v2224 = vsel %vm844, %v1870, 0
        %2226 = vmatprep.subr.bf16.mxu0 0
        %2227 = vmatpush1.bf16.msra.mxu0 %v2215
        %2228 = vmatprep.subr.bf16.mxu0 0
        %2229 = vmatpush1.bf16.msra.mxu0 %v2216
        %2230 = vmatprep.subr.bf16.mxu0 0
        %2231 = vmatpush1.bf16.msra.mxu0 %v2217
        %2232 = vmatprep.subr.bf16.mxu0 0
        %2233 = vmatpush1.bf16.msra.mxu0 %v2218
        %2234 = vmatprep.subr.bf16.mxu0 0
        %2235 = vmatpush1.bf16.msra.mxu0 0
        %2236 = vmatprep.subr.bf16.mxu0 0
        %2237 = vmatpush1.bf16.msra.mxu0 0
        %2238 = vmatprep.subr.bf16.mxu0 0
        %2239 = vmatpush1.bf16.msra.mxu0 0
        %2240 = vmatprep.subr.bf16.mxu0 0
        %2241 = vmatpush1.bf16.msra.mxu0 0
        %2242 = vmatprep.subr.bf16.mxu0 0
        %2243 = vmatpush1.bf16.msra.mxu0 0
        %2244 = vmatprep.subr.bf16.mxu0 0
        %2245 = vmatpush1.bf16.msra.mxu0 0
        %2246 = vmatprep.subr.bf16.mxu0 0
        %2247 = vmatpush1.bf16.msra.mxu0 0
        %2248 = vmatprep.subr.bf16.mxu0 0
        %2249 = vmatpush1.bf16.msra.mxu0 0
        %2250 = vmatprep.subr.bf16.mxu0 0
        %2251 = vmatpush1.bf16.msra.mxu0 0
        %2252 = vmatprep.subr.bf16.mxu0 0
        %2253 = vmatpush1.bf16.msra.mxu0 0
        %2254 = vmatprep.subr.bf16.mxu0 0
        %2255 = vmatpush1.bf16.msra.mxu0 0
        %2256 = vmatprep.subr.bf16.mxu0 0
        %2257 = vmatpush1.bf16.msra.mxu0 0
        %2258 = vmatprep.mubr.bf16.mxu0 0
        %2259 = vmatmul.mubr.bf16.gmra.mrb[0].mxu0 %v1911
        %v2260 = vpop.f32.mrb[0].mxu0
        %v2261 = vadd.f32 0.0, %v2260
        %v2262 = vpop.f32.mrb[0].mxu0
        %v2263 = vpop.f32.mrb[0].mxu0
        %v2264 = vadd.f32 0.0, %v2263
        %v2265 = vpop.f32.mrb[0].mxu0
        %2266 = vmatprep.mubr.bf16.mxu0 0
        %2267 = vmatmul.mubr.bf16.gmra.mrb[0].mxu0 %v1914
        %v2268 = vpop.f32.mrb[0].mxu0
        %v2269 = vadd.f32 0.0, %v2268
        %v2270 = vpop.f32.mrb[0].mxu0
        %v2271 = vpop.f32.mrb[0].mxu0
        %v2272 = vadd.f32 0.0, %v2271
        %v2273 = vpop.f32.mrb[0].mxu0
        %2274 = vmatprep.mubr.bf16.mxu0 0
        %2275 = vmatmul.mubr.bf16.gmra.mrb[0].mxu0 %v1917
        %v2276 = vpop.f32.mrb[0].mxu0
        %v2277 = vadd.f32 0.0, %v2276
        %v2278 = vpop.f32.mrb[0].mxu0
        %v2279 = vpop.f32.mrb[0].mxu0
        %v2280 = vadd.f32 0.0, %v2279
        %v2281 = vpop.f32.mrb[0].mxu0
        %2282 = vmatprep.mubr.bf16.mxu0 0
        %2283 = vmatmul.mubr.bf16.gmra.mrb[0].mxu0 %v1920
        %v2284 = vpop.f32.mrb[0].mxu0
        %v2285 = vadd.f32 0.0, %v2284
        %v2286 = vpop.f32.mrb[0].mxu0
        %v2287 = vpop.f32.mrb[0].mxu0
        %v2288 = vadd.f32 0.0, %v2287
        %v2289 = vpop.f32.mrb[0].mxu0
        %2290 = vmatprep.mubr.bf16.mxu0 0
        %2291 = vmatmul.mubr.bf16.gmra.mrb[0].mxu0 %v1923
        %v2292 = vpop.f32.mrb[0].mxu0
        %v2293 = vadd.f32 0.0, %v2292
        %v2294 = vpop.f32.mrb[0].mxu0
        %v2295 = vpop.f32.mrb[0].mxu0
        %v2296 = vadd.f32 0.0, %v2295
        %v2297 = vpop.f32.mrb[0].mxu0
        %2298 = vmatprep.mubr.bf16.mxu0 0
        %2299 = vmatmul.mubr.bf16.gmra.mrb[0].mxu0 %v1926
        %v2300 = vpop.f32.mrb[0].mxu0
        %v2301 = vadd.f32 0.0, %v2300
        %v2302 = vpop.f32.mrb[0].mxu0
        %v2303 = vpop.f32.mrb[0].mxu0
        %v2304 = vadd.f32 0.0, %v2303
        %v2305 = vpop.f32.mrb[0].mxu0
        %2306 = vmatprep.mubr.bf16.mxu0 0
        %2307 = vmatmul.mubr.bf16.gmra.mrb[0].mxu0 %v2075
        %v2308 = vpop.f32.mrb[0].mxu0
        %v2309 = vadd.f32 0.0, %v2308
        %v2310 = vpop.f32.mrb[0].mxu0
        %v2311 = vpop.f32.mrb[0].mxu0
        %v2312 = vadd.f32 0.0, %v2311
        %v2313 = vpop.f32.mrb[0].mxu0
        %2314 = vmatprep.mubr.bf16.mxu0 0
        %2315 = vmatmul.mubr.bf16.gmra.mrb[0].mxu0 %v2224
        %v2316 = vpop.f32.mrb[0].mxu0
        %v2317 = vadd.f32 0.0, %v2316
        %v2318 = vpop.f32.mrb[0].mxu0
        %v2319 = vpop.f32.mrb[0].mxu0
        %v2320 = vadd.f32 0.0, %v2319
        %v2321 = vpop.f32.mrb[0].mxu0
        %2322 = vdwg.mxu0
        %v2323 = vadd.f32 %v2174, %v2261
        %v2324 = vadd.f32 %v2175, %v2264
        %v2325 = vadd.f32 %v2176, %v2269
        %v2326 = vadd.f32 %v2177, %v2272
        %v2327 = vadd.f32 %v2178, %v2277
        %v2328 = vadd.f32 %v2179, %v2280
        %v2329 = vadd.f32 %v2180, %v2285
        %v2330 = vadd.f32 %v2181, %v2288
        %v2331 = vadd.f32 %v2182, %v2293
        %v2332 = vadd.f32 %v2183, %v2296
        %v2333 = vadd.f32 %v2184, %v2301
        %v2334 = vadd.f32 %v2185, %v2304
        %v2335 = vadd.f32 %v2186, %v2309
        %v2336 = vadd.f32 %v2187, %v2312
        %v2337 = vadd.f32 %v2188, %v2317
        %v2338 = vadd.f32 %v2189, %v2320
        %v2340 = vlaneseq
        %v2341 = vshrl.u32 %v2340, 7
        %v2342 = vsub.s32 0, %v2341
        %v2343 = vrot.slane %v861, %v2342
        %v2345 = vadd.f32 %v2323, %v2343
        %v2346 = vadd.f32 %v2324, %v2343
        %v2347 = vadd.f32 %v2325, %v2343
        %v2348 = vadd.f32 %v2326, %v2343
        %v2349 = vadd.f32 %v2327, %v2343
        %v2350 = vadd.f32 %v2328, %v2343
        %v2351 = vadd.f32 %v2329, %v2343
        %v2352 = vadd.f32 %v2330, %v2343
        %v2353 = vadd.f32 %v2331, %v2343
        %v2354 = vadd.f32 %v2332, %v2343
        %v2355 = vadd.f32 %v2333, %v2343
        %v2356 = vadd.f32 %v2334, %v2343
        %v2357 = vadd.f32 %v2335, %v2343
        %v2358 = vadd.f32 %v2336, %v2343
        %v2359 = vadd.f32 %v2337, %v2343
        %v2360 = vadd.f32 %v2338, %v2343
        %v2361 = vld [vmem:[%s7] sm:$0xf]
        %v2362 = vld [vmem:[%s7 + $0x4] sm:$0xf]
        %v2363 = vld [vmem:[%s7 + $0x8] sm:$0xf]
        %v2364 = vld [vmem:[%s7 + $0xc] sm:$0xf]
        %v2365 = vld [vmem:[%s8] sm:$0x1]
        %v2367 = vlaneseq
        %v2368 = vshrl.u32 %v2367, 7
        %v2369 = vsub.s32 0, %v2368
        %v2370 = vrot.slane %v2365, %v2369
        %v2388 = vunpack.c.l.b16 %v862
        %v2389 = vunpack.c.l.b16 %v863
        %v2390 = vunpack.c.l.b16 %v864
        %v2391 = vunpack.c.l.b16 %v865
        %v2392 = vunpack.c.l.b16 %v866
        %v2393 = vunpack.c.l.b16 %v867
        %v2394 = vunpack.c.l.b16 %v868
        %v2395 = vunpack.c.l.b16 %v869
        %v2396 = vunpack.c.l.b16 %v870
        %v2397 = vunpack.c.l.b16 %v871
        %v2398 = vunpack.c.l.b16 %v872
        %v2399 = vunpack.c.l.b16 %v873
        %v2400 = vunpack.c.l.b16 %v874
        %v2401 = vunpack.c.l.b16 %v875
        %v2402 = vunpack.c.l.b16 %v876
        %v2403 = vunpack.c.l.b16 %v877
        %v2404 = vpack.c.b16 %v2389, %v2388
        %v2405 = vpack.c.b16 %v2391, %v2390
        %v2406 = vpack.c.b16 %v2393, %v2392
        %v2407 = vpack.c.b16 %v2395, %v2394
        %v2408 = vpack.c.b16 %v2397, %v2396
        %v2409 = vpack.c.b16 %v2399, %v2398
        %v2410 = vpack.c.b16 %v2401, %v2400
        %v2411 = vpack.c.b16 %v2403, %v2402
        %v2416 = vunpack.c.l.b16 %v2361
        %v2417 = vunpack.c.l.b16 %v2362
        %v2418 = vunpack.c.l.b16 %v2363
        %v2419 = vunpack.c.l.b16 %v2364
        %v2420 = vpack.c.b16 %v2417, %v2416
        %v2421 = vpack.c.b16 %v2419, %v2418
        %vm2424 = vcmask 261120
        %v2426 = vsel %vm2424, %v2404, 0
        %v2429 = vsel %vm2424, %v2405, 0
        %v2432 = vsel %vm2424, %v2406, 0
        %v2435 = vsel %vm2424, %v2407, 0
        %v2438 = vsel %vm2424, %v2408, 0
        %v2441 = vsel %vm2424, %v2409, 0
        %v2444 = vsel %vm2424, %v2410, 0
        %v2447 = vsel %vm2424, %v2411, 0
        %2449 = vmatprep.subr.bf16.mxu0 0
        %2450 = vmatpush1.bf16.msra.mxu0 %v2420
        %2451 = vmatprep.subr.bf16.mxu0 0
        %2452 = vmatpush1.bf16.msra.mxu0 %v2421
        %2453 = vmatprep.subr.bf16.mxu0 0
        %2454 = vmatpush1.bf16.msra.mxu0 0
        %2455 = vmatprep.subr.bf16.mxu0 0
        %2456 = vmatpush1.bf16.msra.mxu0 0
        %2457 = vmatprep.subr.bf16.mxu0 0
        %2458 = vmatpush1.bf16.msra.mxu0 0
        %2459 = vmatprep.subr.bf16.mxu0 0
        %2460 = vmatpush1.bf16.msra.mxu0 0
        %2461 = vmatprep.subr.bf16.mxu0 0
        %2462 = vmatpush1.bf16.msra.mxu0 0
        %2463 = vmatprep.subr.bf16.mxu0 0
        %2464 = vmatpush1.bf16.msra.mxu0 0
        %2465 = vmatprep.subr.bf16.mxu0 0
        %2466 = vmatpush1.bf16.msra.mxu0 0
        %2467 = vmatprep.subr.bf16.mxu0 0
        %2468 = vmatpush1.bf16.msra.mxu0 0
        %2469 = vmatprep.subr.bf16.mxu0 0
        %2470 = vmatpush1.bf16.msra.mxu0 0
        %2471 = vmatprep.subr.bf16.mxu0 0
        %2472 = vmatpush1.bf16.msra.mxu0 0
        %2473 = vmatprep.subr.bf16.mxu0 0
        %2474 = vmatpush1.bf16.msra.mxu0 0
        %2475 = vmatprep.subr.bf16.mxu0 0
        %2476 = vmatpush1.bf16.msra.mxu0 0
        %2477 = vmatprep.subr.bf16.mxu0 0
        %2478 = vmatpush1.bf16.msra.mxu0 0
        %2479 = vmatprep.subr.bf16.mxu0 0
        %2480 = vmatpush1.bf16.msra.mxu0 0
        %2481 = vmatprep.mubr.bf16.mxu0 0
        %2482 = vmatmul.mubr.bf16.gmra.mrb[0].mxu0 %v2426
        %v2483 = vpop.f32.mrb[0].mxu0
        %v2484 = vadd.f32 %v2370, %v2483
        %v2485 = vpop.f32.mrb[0].mxu0
        %v2486 = vpop.f32.mrb[0].mxu0
        %v2487 = vadd.f32 %v2370, %v2486
        %v2488 = vpop.f32.mrb[0].mxu0
        %2489 = vmatprep.mubr.bf16.mxu0 0
        %2490 = vmatmul.mubr.bf16.gmra.mrb[0].mxu0 %v2429
        %v2491 = vpop.f32.mrb[0].mxu0
        %v2492 = vadd.f32 %v2370, %v2491
        %v2493 = vpop.f32.mrb[0].mxu0
        %v2494 = vpop.f32.mrb[0].mxu0
        %v2495 = vadd.f32 %v2370, %v2494
        %v2496 = vpop.f32.mrb[0].mxu0
        %2497 = vmatprep.mubr.bf16.mxu0 0
        %2498 = vmatmul.mubr.bf16.gmra.mrb[0].mxu0 %v2432
        %v2499 = vpop.f32.mrb[0].mxu0
        %v2500 = vadd.f32 %v2370, %v2499
        %v2501 = vpop.f32.mrb[0].mxu0
        %v2502 = vpop.f32.mrb[0].mxu0
        %v2503 = vadd.f32 %v2370, %v2502
        %v2504 = vpop.f32.mrb[0].mxu0
        %2505 = vmatprep.mubr.bf16.mxu0 0
        %2506 = vmatmul.mubr.bf16.gmra.mrb[0].mxu0 %v2435
        %v2507 = vpop.f32.mrb[0].mxu0
        %v2508 = vadd.f32 %v2370, %v2507
        %v2509 = vpop.f32.mrb[0].mxu0
        %v2510 = vpop.f32.mrb[0].mxu0
        %v2511 = vadd.f32 %v2370, %v2510
        %v2512 = vpop.f32.mrb[0].mxu0
        %2513 = vmatprep.mubr.bf16.mxu0 0
        %2514 = vmatmul.mubr.bf16.gmra.mrb[0].mxu0 %v2438
        %v2515 = vpop.f32.mrb[0].mxu0
        %v2516 = vadd.f32 %v2370, %v2515
        %v2517 = vpop.f32.mrb[0].mxu0
        %v2518 = vpop.f32.mrb[0].mxu0
        %v2519 = vadd.f32 %v2370, %v2518
        %v2520 = vpop.f32.mrb[0].mxu0
        %2521 = vmatprep.mubr.bf16.mxu0 0
        %2522 = vmatmul.mubr.bf16.gmra.mrb[0].mxu0 %v2441
        %v2523 = vpop.f32.mrb[0].mxu0
        %v2524 = vadd.f32 %v2370, %v2523
        %v2525 = vpop.f32.mrb[0].mxu0
        %v2526 = vpop.f32.mrb[0].mxu0
        %v2527 = vadd.f32 %v2370, %v2526
        %v2528 = vpop.f32.mrb[0].mxu0
        %2529 = vmatprep.mubr.bf16.mxu0 0
        %2530 = vmatmul.mubr.bf16.gmra.mrb[0].mxu0 %v2444
        %v2531 = vpop.f32.mrb[0].mxu0
        %v2532 = vadd.f32 %v2370, %v2531
        %v2533 = vpop.f32.mrb[0].mxu0
        %v2534 = vpop.f32.mrb[0].mxu0
        %v2535 = vadd.f32 %v2370, %v2534
        %v2536 = vpop.f32.mrb[0].mxu0
        %2537 = vmatprep.mubr.bf16.mxu0 0
        %2538 = vmatmul.mubr.bf16.gmra.mrb[0].mxu0 %v2447
        %v2539 = vpop.f32.mrb[0].mxu0
        %v2540 = vadd.f32 %v2370, %v2539
        %v2541 = vpop.f32.mrb[0].mxu0
        %v2542 = vpop.f32.mrb[0].mxu0
        %v2543 = vadd.f32 %v2370, %v2542
        %v2544 = vpop.f32.mrb[0].mxu0
        %2545 = vdwg.mxu0
        %v2546 = vadd.f32 %v2345, %v2484
        %v2547 = vadd.f32 %v2346, %v2487
        %v2548 = vadd.f32 %v2347, %v2492
        %v2549 = vadd.f32 %v2348, %v2495
        %v2550 = vadd.f32 %v2349, %v2500
        %v2551 = vadd.f32 %v2350, %v2503
        %v2552 = vadd.f32 %v2351, %v2508
        %v2553 = vadd.f32 %v2352, %v2511
        %v2554 = vadd.f32 %v2353, %v2516
        %v2555 = vadd.f32 %v2354, %v2519
        %v2556 = vadd.f32 %v2355, %v2524
        %v2557 = vadd.f32 %v2356, %v2527
        %v2558 = vadd.f32 %v2357, %v2532
        %v2559 = vadd.f32 %v2358, %v2535
        %v2560 = vadd.f32 %v2359, %v2540
        %v2561 = vadd.f32 %v2360, %v2543
        %2562 = vst.msk [vmem:[%s483] sm:$0xff] %vm844, %v2546
        %2563 = vst.msk [vmem:[%s483 + $0x8] sm:$0xff] %vm844, %v2547
        %2564 = vst.msk [vmem:[%s483 + $0x10] sm:$0xff] %vm844, %v2548
        %2565 = vst.msk [vmem:[%s483 + $0x18] sm:$0xff] %vm844, %v2549
        %2566 = vst.msk [vmem:[%s483 + $0x20] sm:$0xff] %vm844, %v2550
        %2567 = vst.msk [vmem:[%s483 + $0x28] sm:$0xff] %vm844, %v2551
        %2568 = vst.msk [vmem:[%s483 + $0x30] sm:$0xff] %vm844, %v2552
        %2569 = vst.msk [vmem:[%s483 + $0x38] sm:$0xff] %vm844, %v2553
        %2570 = vst.msk [vmem:[%s483 + $0x40] sm:$0xff] %vm844, %v2554
        %2571 = vst.msk [vmem:[%s483 + $0x48] sm:$0xff] %vm844, %v2555
        %2572 = vst.msk [vmem:[%s483 + $0x50] sm:$0xff] %vm844, %v2556
        %2573 = vst.msk [vmem:[%s483 + $0x58] sm:$0xff] %vm844, %v2557
        %2574 = vst.msk [vmem:[%s483 + $0x60] sm:$0xff] %vm844, %v2558
        %2575 = vst.msk [vmem:[%s483 + $0x68] sm:$0xff] %vm844, %v2559
        %2576 = vst.msk [vmem:[%s483 + $0x70] sm:$0xff] %vm844, %v2560
        %2577 = vst.msk [vmem:[%s483 + $0x78] sm:$0xff] %vm844, %v2561
        %s2578 = sand.u32 %s283, 1
        %s2579 = scalar_lea.sflag [#allocation4], %s2578
        %s2580 = sand.u32 %s283, 1
        %s2581 = smul.addr %s2580, 128
        %s2582 = scalar_lea.vmem [#allocation3], %s2581
        // Predicated region
        $region73: #{resnet_block_forward.7} parent=55 // pred_check
          %p2583 = pneg %p293
        $region74: #{resnet_block_forward.7} parent=55 // pred_check_branch
          %2585 = sbr.rel (%p2583) target = $region76
        $region75: #{resnet_block_forward.7} parent=55 // pred_region
          %s2586 = smul.u32 8, %s28
          %s2588 = ssub.s32 2048, 2048
          %2589 = vsyncadd %s2579, %s2588
          %s2590 = smul.addr %s2586, 2
          %s2591 = smul.addr %s27, 32
          %s2592 = sadd.s32 %s2590, %s2591
          %s2593 = smul.addr %s2592, 128
          %s2594 = scalar_lea.hbm %s9, %s2593
          %s2595 = sshll.u32 %s2582, 4
          %s2596 = int_to_ptr.vmem [resolvable:$true] %s2595
          %2601 = dma.vmem_to_hbm [thread:$0]  %s2596, 2048, %s2594, %s2579, 128, 128, 8
        $region76: #{resnet_block_forward.7} parent=55 // pred_fallthru
          _
      $region56: #{resnet_block_forward.7} parent=5 // pred_fallthru
        _
      %p2602 = scmp.le.s32.totalorder 2, %s18
      // Predicated region
      $region77: #{resnet_block_forward.7} parent=5 // pred_check
        %p2603 = pneg %p2602
      $region78: #{resnet_block_forward.7} parent=5 // pred_check_branch
        %2605 = sbr.rel (%p2603) target = $region80
      $region79: #{resnet_block_forward.7} parent=5 // pred_region
        %s2606 = ssub.s32 %s18, 2
        // Predicated region
        $region81: #{resnet_block_forward.7} parent=79 // pred_check
          %p2607 = pneg %p299
        $region82: #{resnet_block_forward.7} parent=79 // pred_check_branch
          %2609 = sbr.rel (%p2607) target = $region84
        $region83: #{resnet_block_forward.7} parent=79 // pred_region
          %s2610 = sand.u32 %s284, 1
          %s2611 = scalar_lea.sflag [#allocation4], %s2610
          %s2612 = sand.u32 %s284, 1
          %s2613 = smul.addr %s2612, 128
          %s2614 = scalar_lea.vmem [#allocation3], %s2613
          %2615 = dma.done %s2611, 2048
        $region84: #{resnet_block_forward.7} parent=79 // pred_fallthru
          _
      $region80: #{resnet_block_forward.7} parent=5 // pred_fallthru
        _
    $region6: #{resnet_block_forward.7} parent=1 // loop_footer
      %s22 = sadd.s32 1, %s18
    $region7: #{resnet_block_forward.7} parent=1 // loop_footer_branch
      %17 = sbr.rel target = $region3
    $region8: #{resnet_block_forward.7} parent=1 // loop_exit
      _
    %2616 = vsyncpa [#allocation4], 1
    %s2617 = scalar_lea.sflag [#allocation4], 1
    %2618 = vsyncpa %s2617, 1

</llo_original>
